<compile_context>
chip_gen: v5e
topology: v5e:2x2
jax: 0.10.0
libtpu: 0.0.40
codegen_flags: <defaults>
</compile_context>

<pallas_src>
import functools
import math

import jax
import jax.numpy as jnp
from jax import lax
from jax.experimental import pallas as pl
from jax.experimental.pallas import tpu as pltpu

BN_EPS = 1e-5
HIDDEN = 2048            # fixed by the module
N_HIDDEN_LAYERS = 5      # number of identical 2048->2048 blocks


def _batchnorm(x, gamma, beta):
    """Training-mode BatchNorm1d: batch mean, biased variance, eps=1e-5."""
    mean = jnp.mean(x, axis=0, keepdims=True)
    var = jnp.mean(jnp.square(x - mean), axis=0, keepdims=True)
    return (x - mean) * lax.rsqrt(var + BN_EPS) * gamma + beta


# ---------------------------------------------------------------------------
# Fused BatchNorm1d + Linear (+ optional ReLU) for the first and last layers.
# Full-K tile; grid streams only the N dimension ("parallel" -> megacore can
# shard N-tiles; the cheap BN is recomputed per tile to keep tiles independent).
# ---------------------------------------------------------------------------
def _bn_linear_kernel(x_ref, gamma_ref, beta_ref, w_ref, b_ref, o_ref,
                      *, apply_relu):
    x = x_ref[...]                                            # (B, K) f32
    xn = _batchnorm(x, gamma_ref[...], beta_ref[...])
    xn = xn.astype(w_ref.dtype)                               # bf16 for MXU
    y = jnp.dot(xn, w_ref[...], preferred_element_type=jnp.float32)
    y = y + b_ref[...]
    if apply_relu:
        y = jnp.maximum(y, 0.0)
    o_ref[...] = y


def bn_linear(x, gamma, beta, w, b, *, apply_relu, tn=1024):
    """x:(B,K) f32, gamma/beta:(1,K) f32, w:(K,N) bf16, b:(1,N) f32 -> (B,N)."""
    B, K = x.shape
    Kw, N = w.shape
    assert K == Kw
    tn = min(tn, N)
    assert N % tn == 0
    grid = (N // tn,)

    cost = pl.CostEstimate(
        flops=2 * B * K * N,
        transcendentals=0,
        bytes_accessed=int(w.size * w.dtype.itemsize + (x.size + B * N) * 4),
    )
    kernel = functools.partial(_bn_linear_kernel, apply_relu=apply_relu)
    return pl.pallas_call(
        kernel,
        out_shape=jax.ShapeDtypeStruct((B, N), jnp.float32),
        grid_spec=pltpu.PrefetchScalarGridSpec(
            num_scalar_prefetch=0,
            grid=grid,
            in_specs=[
                pl.BlockSpec((B, K), lambda j: (0, 0)),    # x (resident)
                pl.BlockSpec((1, K), lambda j: (0, 0)),    # gamma
                pl.BlockSpec((1, K), lambda j: (0, 0)),    # beta
                pl.BlockSpec((K, tn), lambda j: (0, j)),   # weight (streamed)
                pl.BlockSpec((1, tn), lambda j: (0, j)),   # bias
            ],
            out_specs=pl.BlockSpec((B, tn), lambda j: (0, j)),
        ),
        compiler_params=pltpu.CompilerParams(
            dimension_semantics=("parallel",)),
        cost_estimate=cost,
    )(x, gamma, beta, w, b)


# ---------------------------------------------------------------------------
# Fused stack of the 5 identical hidden blocks: BN(2048)->Linear(2048,2048)->ReLU.
# Grid = (layer, N-tile).  The (B,2048) activation IS the output block (constant
# index_map -> stays resident in VMEM across the whole grid, one HBM writeback
# at the end).  Weights (5,2048,2048) bf16 are streamed tile-by-tile.
# ---------------------------------------------------------------------------
def _hidden_stack_kernel(h_ref, gamma_ref, beta_ref, w_ref, b_ref, o_ref,
                         xn_ref):
    layer = pl.program_id(0)
    j = pl.program_id(1)
    tn = w_ref.shape[-1]

    # Very first grid step: pull the incoming activation into the resident
    # output block (which doubles as the inter-layer activation buffer).
    @pl.when((layer == 0) & (j == 0))
    def _():
        o_ref[...] = h_ref[...]

    # Once per layer (first N-tile): BatchNorm over the resident activation;
    # normalized result cached in bf16 for the MXU.
    @pl.when(j == 0)
    def _():
        xn = _batchnorm(o_ref[...], gamma_ref[0], beta_ref[0])
        xn_ref[...] = xn.astype(xn_ref.dtype)

    # Weight-streaming matmul for this N-tile; f32 accumulation on the MXU.
    y = jnp.dot(xn_ref[...], w_ref[0], preferred_element_type=jnp.float32)
    y = jnp.maximum(y + b_ref[0], 0.0)                         # ReLU

    # This tile is the next layer's input (and, after the last layer, the
    # value that gets written back to HBM once at the end of the grid).
    col = pl.multiple_of(j * tn, tn)
    o_ref[:, pl.ds(col, tn)] = y


def hidden_stack(h, gammas, betas, ws, bs, *, tn=1024):
    """h:(B,2048) f32; gammas/betas/bs:(L,1,2048) f32; ws:(L,2048,2048) bf16."""
    B, K = h.shape
    L, Kw, N = ws.shape
    assert K == Kw and K == N
    tn = min(tn, N)
    assert N % tn == 0
    grid = (L, N // tn)

    cost = pl.CostEstimate(
        flops=2 * B * K * N * L,
        transcendentals=0,
        bytes_accessed=int(ws.size * ws.dtype.itemsize + (h.size + B * N) * 4),
    )
    return pl.pallas_call(
        _hidden_stack_kernel,
        out_shape=jax.ShapeDtypeStruct((B, N), jnp.float32),
        grid_spec=pltpu.PrefetchScalarGridSpec(
            num_scalar_prefetch=0,
            grid=grid,
            in_specs=[
                pl.BlockSpec((B, K), lambda l, j: (0, 0)),        # incoming act
                pl.BlockSpec((1, 1, K), lambda l, j: (l, 0, 0)),  # gamma[l]
                pl.BlockSpec((1, 1, K), lambda l, j: (l, 0, 0)),  # beta[l]
                pl.BlockSpec((1, K, tn), lambda l, j: (l, 0, j)), # W[l] N-tile
                pl.BlockSpec((1, 1, tn), lambda l, j: (l, 0, j)), # b[l] N-tile
            ],
            # Constant block index -> output resident in VMEM for the whole
            # grid; single writeback to HBM when the grid finishes.
            out_specs=pl.BlockSpec((B, N), lambda l, j: (0, 0)),
            scratch_shapes=[
                pltpu.VMEM((B, K), jnp.bfloat16),   # BN-normalized activation
            ],
        ),
        # Layer axis carries state; N axis depends on the per-layer BN step.
        compiler_params=pltpu.CompilerParams(
            dimension_semantics=("arbitrary", "arbitrary")),
        cost_estimate=cost,
    )(h, gammas, betas, ws, bs)


# ---------------------------------------------------------------------------
# Parameter init matching DNN.__init__ (+ init_weights) and forward().
# ---------------------------------------------------------------------------
def init_dnn_params(key, inputdim, outputdim, hidden=HIDDEN,
                    n_hidden=N_HIDDEN_LAYERS, weight_dtype=jnp.bfloat16):
    """Linear weight ~U(-0.05,0.05); bias keeps PyTorch default
    U(-1/sqrt(fan_in), 1/sqrt(fan_in)); BN gamma=1, beta=0."""

    def linear(k, din, dout):
        kw, kb = jax.random.split(k)
        w = jax.random.uniform(kw, (din, dout), jnp.float32, -0.05, 0.05)
        bound = 1.0 / math.sqrt(din)
        b = jax.random.uniform(kb, (1, dout), jnp.float32, -bound, bound)
        return w.astype(weight_dtype), b

    def bn(d):
        return jnp.ones((1, d), jnp.float32), jnp.zeros((1, d), jnp.float32)

    keys = jax.random.split(key, n_hidden + 2)

    g0, be0 = bn(inputdim)
    w0, b0 = linear(keys[0], inputdim, hidden)

    gs, bes, ws, bs = [], [], [], []
    for i in range(n_hidden):
        g, be = bn(hidden)
        w, b = linear(keys[1 + i], hidden, hidden)
        gs.append(g), bes.append(be), ws.append(w), bs.append(b)
    hid = (jnp.stack(gs), jnp.stack(bes), jnp.stack(ws), jnp.stack(bs))

    gl, bel = bn(hidden)
    wl, bl = linear(keys[-1], hidden, outputdim)

    return ((g0, be0, w0, b0), hid, (gl, bel, wl, bl))


@jax.jit
def dnn_forward(params, x):
    """Equivalent of DNN.forward(x); the final Linear has no activation."""
    (g0, be0, w0, b0), (gs, bes, ws, bs), (gl, bel, wl, bl) = params
    h = bn_linear(x, g0, be0, w0, b0, apply_relu=True)        # in -> 2048
    h = hidden_stack(h, gs, bes, ws, bs)                      # 5 x 2048 -> 2048
    return bn_linear(h, gl, bel, wl, bl, apply_relu=False)    # 2048 -> out
# TODO(synk): BatchNorm1d running_mean/running_var buffers are not updated
# (only the training-mode forward normalization is reproduced).


def dnn_reference(params, x):
    """Pure-JAX reference with the same bf16 weight/activation rounding."""
    (g0, be0, w0, b0), (gs, bes, ws, bs), (gl, bel, wl, bl) = params

    def bn_lin(h, g, be, w, b, relu):
        hn = _batchnorm(h, g, be)
        hn = hn.astype(jnp.bfloat16).astype(jnp.float32)
        y = jnp.dot(hn, w.astype(jnp.float32),
                    precision=lax.Precision.HIGHEST) + b
        return jnp.maximum(y, 0.0) if relu else y

    h = bn_lin(x, g0, be0, w0, b0, True)
    for i in range(ws.shape[0]):
        h = bn_lin(h, gs[i], bes[i], ws[i], bs[i], True)
    return bn_lin(h, gl, bel, wl, bl, False)


if __name__ == "__main__":
    batch = 8          # BN batch stats need batch > 1; batch is never tiled
    inputdim = 64
    outputdim = 16

    key = jax.random.PRNGKey(0)
    key, kx = jax.random.split(key)
    x = jax.random.normal(kx, (batch, inputdim), jnp.float32)
    params = init_dnn_params(key, inputdim, outputdim)

    out = jax.block_until_ready(dnn_forward(params, x))
    assert out.shape == (batch, outputdim), out.shape

    ref = jax.block_until_ready(dnn_reference(params, x))
    assert bool(jnp.all(jnp.isfinite(out)))
    assert bool(jnp.allclose(out, ref, rtol=5e-2, atol=5e-2)), (
        float(jnp.max(jnp.abs(out - ref))))
    print("KERNEL_OK")
</pallas_src>

<mosaic_0001>
module attributes {stable_mosaic.version = 11 : i64} {
  func.func @_hidden_stack_kernel(%arg0: i32, %arg1: i32, %arg2: memref<8x2048xf32, #tpu.memory_space<vmem>>, %arg3: memref<1x1x2048xf32, #tpu.memory_space<vmem>>, %arg4: memref<1x1x2048xf32, #tpu.memory_space<vmem>>, %arg5: memref<1x2048x1024xbf16, #tpu.memory_space<vmem>>, %arg6: memref<1x1x1024xf32, #tpu.memory_space<vmem>>, %arg7: memref<8x2048xf32, #tpu.memory_space<vmem>>, %arg8: memref<8x2048xbf16, #tpu.memory_space<vmem>>) attributes {dimension_semantics = [#tpu.dimension_semantics<arbitrary>, #tpu.dimension_semantics<arbitrary>], iteration_bounds = array<i64: 5, 2>, scalar_prefetch = 0 : i64, scratch_operands = 1 : i64, tpu.core_type = #tpu.core_type<tc>, window_params = [{pipeline_mode = #tpu.pipeline_mode<synchronous>, transform_indices = @transform_0, window_bounds = array<i64: 8, 2048>}, {transform_indices = @transform_1, window_bounds = array<i64: 1, 1, 2048>}, {transform_indices = @transform_2, window_bounds = array<i64: 1, 1, 2048>}, {transform_indices = @transform_3, window_bounds = array<i64: 1, 2048, 1024>}, {transform_indices = @transform_4, window_bounds = array<i64: 1, 1, 1024>}, {pipeline_mode = #tpu.pipeline_mode<synchronous>, transform_indices = @transform_5, window_bounds = array<i64: 8, 2048>}]} {
    %c0_i32 = arith.constant 0 : i32
    %0 = arith.cmpi eq, %arg0, %c0_i32 : i32
    %c0_i32_0 = arith.constant 0 : i32
    %1 = arith.cmpi eq, %arg1, %c0_i32_0 : i32
    %2 = arith.andi %0, %1 : i1
    %3 = arith.extui %2 : i1 to i32
    %c0_i32_1 = arith.constant 0 : i32
    %4 = arith.cmpi ne, %3, %c0_i32_1 : i32
    scf.if %4 {
      %c0_13 = arith.constant 0 : index
      %c0_14 = arith.constant 0 : index
      %22 = vector.load %arg2[%c0_13, %c0_14] : memref<8x2048xf32, #tpu.memory_space<vmem>>, vector<8x2048xf32>
      %c0_15 = arith.constant 0 : index
      %c0_16 = arith.constant 0 : index
      %23 = vector.load %arg7[%c0_15, %c0_16] : memref<8x2048xf32, #tpu.memory_space<vmem>>, vector<8x2048xf32>
      tpu.vector_store %arg7[%c0_15, %c0_16], %22 {strides = array<i32>} : memref<8x2048xf32, #tpu.memory_space<vmem>>, vector<8x2048xf32>,
    } else {
    }
    %c0_i32_2 = arith.constant 0 : i32
    %5 = arith.cmpi eq, %arg1, %c0_i32_2 : i32
    %6 = arith.extui %5 : i1 to i32
    %c0_i32_3 = arith.constant 0 : i32
    %7 = arith.cmpi ne, %6, %c0_i32_3 : i32
    scf.if %7 {
      %c0_13 = arith.constant 0 : index
      %c0_14 = arith.constant 0 : index
      %22 = vector.load %arg7[%c0_13, %c0_14] : memref<8x2048xf32, #tpu.memory_space<vmem>>, vector<8x2048xf32>
      %c0_15 = arith.constant 0 : index
      %c0_16 = arith.constant 0 : index
      %c0_17 = arith.constant 0 : index
      %23 = vector.load %arg3[%c0_15, %c0_16, %c0_17] : memref<1x1x2048xf32, #tpu.memory_space<vmem>>, vector<1x1x2048xf32>
      %24 = vector.shape_cast %23 : vector<1x1x2048xf32> to vector<1x2048xf32>
      %c0_18 = arith.constant 0 : index
      %c0_19 = arith.constant 0 : index
      %c0_20 = arith.constant 0 : index
      %25 = vector.load %arg4[%c0_18, %c0_19, %c0_20] : memref<1x1x2048xf32, #tpu.memory_space<vmem>>, vector<1x1x2048xf32>
      %26 = vector.shape_cast %25 : vector<1x1x2048xf32> to vector<1x2048xf32>
      %cst_21 = arith.constant dense<0.000000e+00> : vector<2048xf32>
      %27 = vector.multi_reduction <add>, %22, %cst_21 [0] : vector<8x2048xf32> to vector<2048xf32>
      %28 = vector.shape_cast %27 : vector<2048xf32> to vector<1x2048xf32>
      %cst_22 = arith.constant 8.000000e+00 : f32
      %29 = vector.broadcast %cst_22 : f32 to vector<1x2048xf32>
      %30 = arith.divf %28, %29 : vector<1x2048xf32>
      %31 = vector.broadcast %30 : vector<1x2048xf32> to vector<8x2048xf32>
      %32 = arith.subf %22, %31 : vector<8x2048xf32>
      %33 = arith.mulf %32, %32 : vector<8x2048xf32>
      %cst_23 = arith.constant dense<0.000000e+00> : vector<2048xf32>
      %34 = vector.multi_reduction <add>, %33, %cst_23 [0] : vector<8x2048xf32> to vector<2048xf32>
      %35 = vector.shape_cast %34 : vector<2048xf32> to vector<1x2048xf32>
      %cst_24 = arith.constant 8.000000e+00 : f32
      %36 = vector.broadcast %cst_24 : f32 to vector<1x2048xf32>
      %37 = arith.divf %35, %36 : vector<1x2048xf32>
      %38 = vector.broadcast %30 : vector<1x2048xf32> to vector<8x2048xf32>
      %39 = arith.subf %22, %38 : vector<8x2048xf32>
      %cst_25 = arith.constant 9.99999974E-6 : f32
      %40 = vector.broadcast %cst_25 : f32 to vector<1x2048xf32>
      %41 = arith.addf %37, %40 : vector<1x2048xf32>
      %42 = math.rsqrt %41 : vector<1x2048xf32>
      %43 = vector.broadcast %42 : vector<1x2048xf32> to vector<8x2048xf32>
      %44 = arith.mulf %39, %43 : vector<8x2048xf32>
      %45 = vector.broadcast %24 : vector<1x2048xf32> to vector<8x2048xf32>
      %46 = arith.mulf %44, %45 : vector<8x2048xf32>
      %47 = vector.broadcast %26 : vector<1x2048xf32> to vector<8x2048xf32>
      %48 = arith.addf %46, %47 : vector<8x2048xf32>
      %49 = arith.truncf %48 : vector<8x2048xf32> to vector<8x2048xbf16>
      %c0_26 = arith.constant 0 : index
      %c0_27 = arith.constant 0 : index
      %50 = vector.load %arg8[%c0_26, %c0_27] : memref<8x2048xbf16, #tpu.memory_space<vmem>>, vector<8x2048xbf16>
      tpu.vector_store %arg8[%c0_26, %c0_27], %49 {strides = array<i32>} : memref<8x2048xbf16, #tpu.memory_space<vmem>>, vector<8x2048xbf16>,
    } else {
    }
    %c0 = arith.constant 0 : index
    %c0_4 = arith.constant 0 : index
    %8 = vector.load %arg8[%c0, %c0_4] : memref<8x2048xbf16, #tpu.memory_space<vmem>>, vector<8x2048xbf16>
    %c0_5 = arith.constant 0 : index
    %c0_6 = arith.constant 0 : index
    %c0_7 = arith.constant 0 : index
    %9 = vector.load %arg5[%c0_5, %c0_6, %c0_7] : memref<1x2048x1024xbf16, #tpu.memory_space<vmem>>, vector<1x2048x1024xbf16>
    %10 = vector.shape_cast %9 : vector<1x2048x1024xbf16> to vector<2048x1024xbf16>
    %cst = arith.constant dense<0.000000e+00> : vector<8x1024xf32>
    %11 = tpu.matmul %8, %10, %cst {dimension_numbers = #tpu.dot_dimension_numbers<[1], [0], [0], [1], [0, 0, 1, 1], [], []>} : vector<8x2048xbf16>, vector<2048x1024xbf16>, vector<8x1024xf32> -> vector<8x1024xf32>
    %c0_8 = arith.constant 0 : index
    %c0_9 = arith.constant 0 : index
    %c0_10 = arith.constant 0 : index
    %12 = vector.load %arg6[%c0_8, %c0_9, %c0_10] : memref<1x1x1024xf32, #tpu.memory_space<vmem>>, vector<1x1x1024xf32>
    %13 = vector.shape_cast %12 : vector<1x1x1024xf32> to vector<1x1024xf32>
    %14 = vector.broadcast %13 : vector<1x1024xf32> to vector<8x1024xf32>
    %15 = arith.addf %11, %14 : vector<8x1024xf32>
    %cst_11 = arith.constant 0.000000e+00 : f32
    %16 = vector.broadcast %cst_11 : f32 to vector<8x1024xf32>
    %17 = arith.maximumf %15, %16 : vector<8x1024xf32>
    %c1024_i32 = arith.constant 1024 : i32
    %18 = arith.muli %arg1, %c1024_i32 : i32
    %19 = tpu.assume_multiple %18, 1024 : i32
    %c0_12 = arith.constant 0 : index
    %20 = arith.index_cast %19 : i32 to index
    %21 = vector.load %arg7[%c0_12, %20] : memref<8x2048xf32, #tpu.memory_space<vmem>>, vector<8x1024xf32>
    tpu.vector_store %arg7[%c0_12, %20], %17 {strides = array<i32>} : memref<8x2048xf32, #tpu.memory_space<vmem>>, vector<8x1024xf32>,
    return
  }
  func.func @transform_0(%arg0: i32, %arg1: i32) -> (i32, i32) {
    %c0_i32 = arith.constant 0 : i32
    %c0_i32_0 = arith.constant 0 : i32
    %c0_i32_1 = arith.constant 0 : i32
    return %c0_i32, %c0_i32_0 : i32, i32
  }
  func.func @transform_1(%arg0: i32, %arg1: i32) -> (i32, i32, i32) {
    %c0_i32 = arith.constant 0 : i32
    %c0_i32_0 = arith.constant 0 : i32
    %c0_i32_1 = arith.constant 0 : i32
    return %arg0, %c0_i32, %c0_i32_0 : i32, i32, i32
  }
  func.func @transform_2(%arg0: i32, %arg1: i32) -> (i32, i32, i32) {
    %c0_i32 = arith.constant 0 : i32
    %c0_i32_0 = arith.constant 0 : i32
    %c0_i32_1 = arith.constant 0 : i32
    return %arg0, %c0_i32, %c0_i32_0 : i32, i32, i32
  }
  func.func @transform_3(%arg0: i32, %arg1: i32) -> (i32, i32, i32) {
    %c0_i32 = arith.constant 0 : i32
    %c0_i32_0 = arith.constant 0 : i32
    return %arg0, %c0_i32, %arg1 : i32, i32, i32
  }
  func.func @transform_4(%arg0: i32, %arg1: i32) -> (i32, i32, i32) {
    %c0_i32 = arith.constant 0 : i32
    %c0_i32_0 = arith.constant 0 : i32
    return %arg0, %c0_i32, %arg1 : i32, i32, i32
  }
  func.func @transform_5(%arg0: i32, %arg1: i32) -> (i32, i32) {
    %c0_i32 = arith.constant 0 : i32
    %c0_i32_0 = arith.constant 0 : i32
    %c0_i32_1 = arith.constant 0 : i32
    return %c0_i32, %c0_i32_0 : i32, i32
  }
}

module attributes {stable_mosaic.version = 11 : i64} {
  func.func @_bn_linear_kernel(%arg0: i32, %arg1: memref<8x2048xf32, #tpu.memory_space<vmem>>, %arg2: memref<1x2048xf32, #tpu.memory_space<vmem>>, %arg3: memref<1x2048xf32, #tpu.memory_space<vmem>>, %arg4: memref<2048x16xbf16, #tpu.memory_space<vmem>>, %arg5: memref<1x16xf32, #tpu.memory_space<vmem>>, %arg6: memref<8x16xf32, #tpu.memory_space<vmem>>) attributes {dimension_semantics = [#tpu.dimension_semantics<parallel>], iteration_bounds = array<i64: 1>, scalar_prefetch = 0 : i64, scratch_operands = 0 : i64, tpu.core_type = #tpu.core_type<tc>, window_params = [{pipeline_mode = #tpu.pipeline_mode<synchronous>, transform_indices = @transform_0, window_bounds = array<i64: 8, 2048>}, {pipeline_mode = #tpu.pipeline_mode<synchronous>, transform_indices = @transform_1, window_bounds = array<i64: 1, 2048>}, {pipeline_mode = #tpu.pipeline_mode<synchronous>, transform_indices = @transform_2, window_bounds = array<i64: 1, 2048>}, {transform_indices = @transform_3, window_bounds = array<i64: 2048, 16>}, {transform_indices = @transform_4, window_bounds = array<i64: 1, 16>}, {transform_indices = @transform_5, window_bounds = array<i64: 8, 16>}]} {
    %c0 = arith.constant 0 : index
    %c0_0 = arith.constant 0 : index
    %0 = vector.load %arg1[%c0, %c0_0] : memref<8x2048xf32, #tpu.memory_space<vmem>>, vector<8x2048xf32>
    %c0_1 = arith.constant 0 : index
    %c0_2 = arith.constant 0 : index
    %1 = vector.load %arg2[%c0_1, %c0_2] : memref<1x2048xf32, #tpu.memory_space<vmem>>, vector<1x2048xf32>
    %c0_3 = arith.constant 0 : index
    %c0_4 = arith.constant 0 : index
    %2 = vector.load %arg3[%c0_3, %c0_4] : memref<1x2048xf32, #tpu.memory_space<vmem>>, vector<1x2048xf32>
    %cst = arith.constant dense<0.000000e+00> : vector<2048xf32>
    %3 = vector.multi_reduction <add>, %0, %cst [0] : vector<8x2048xf32> to vector<2048xf32>
    %4 = vector.shape_cast %3 : vector<2048xf32> to vector<1x2048xf32>
    %cst_5 = arith.constant 8.000000e+00 : f32
    %5 = vector.broadcast %cst_5 : f32 to vector<1x2048xf32>
    %6 = arith.divf %4, %5 : vector<1x2048xf32>
    %7 = vector.broadcast %6 : vector<1x2048xf32> to vector<8x2048xf32>
    %8 = arith.subf %0, %7 : vector<8x2048xf32>
    %9 = arith.mulf %8, %8 : vector<8x2048xf32>
    %cst_6 = arith.constant dense<0.000000e+00> : vector<2048xf32>
    %10 = vector.multi_reduction <add>, %9, %cst_6 [0] : vector<8x2048xf32> to vector<2048xf32>
    %11 = vector.shape_cast %10 : vector<2048xf32> to vector<1x2048xf32>
    %cst_7 = arith.constant 8.000000e+00 : f32
    %12 = vector.broadcast %cst_7 : f32 to vector<1x2048xf32>
    %13 = arith.divf %11, %12 : vector<1x2048xf32>
    %14 = vector.broadcast %6 : vector<1x2048xf32> to vector<8x2048xf32>
    %15 = arith.subf %0, %14 : vector<8x2048xf32>
    %cst_8 = arith.constant 9.99999974E-6 : f32
    %16 = vector.broadcast %cst_8 : f32 to vector<1x2048xf32>
    %17 = arith.addf %13, %16 : vector<1x2048xf32>
    %18 = math.rsqrt %17 : vector<1x2048xf32>
    %19 = vector.broadcast %18 : vector<1x2048xf32> to vector<8x2048xf32>
    %20 = arith.mulf %15, %19 : vector<8x2048xf32>
    %21 = vector.broadcast %1 : vector<1x2048xf32> to vector<8x2048xf32>
    %22 = arith.mulf %20, %21 : vector<8x2048xf32>
    %23 = vector.broadcast %2 : vector<1x2048xf32> to vector<8x2048xf32>
    %24 = arith.addf %22, %23 : vector<8x2048xf32>
    %25 = arith.truncf %24 : vector<8x2048xf32> to vector<8x2048xbf16>
    %c0_9 = arith.constant 0 : index
    %c0_10 = arith.constant 0 : index
    %26 = vector.load %arg4[%c0_9, %c0_10] : memref<2048x16xbf16, #tpu.memory_space<vmem>>, vector<2048x16xbf16>
    %cst_11 = arith.constant dense<0.000000e+00> : vector<8x16xf32>
    %27 = tpu.matmul %25, %26, %cst_11 {dimension_numbers = #tpu.dot_dimension_numbers<[1], [0], [0], [1], [0, 0, 1, 1], [], []>} : vector<8x2048xbf16>, vector<2048x16xbf16>, vector<8x16xf32> -> vector<8x16xf32>
    %c0_12 = arith.constant 0 : index
    %c0_13 = arith.constant 0 : index
    %28 = vector.load %arg5[%c0_12, %c0_13] : memref<1x16xf32, #tpu.memory_space<vmem>>, vector<1x16xf32>
    %29 = vector.broadcast %28 : vector<1x16xf32> to vector<8x16xf32>
    %30 = arith.addf %27, %29 : vector<8x16xf32>
    %c0_14 = arith.constant 0 : index
    %c0_15 = arith.constant 0 : index
    %31 = vector.load %arg6[%c0_14, %c0_15] : memref<8x16xf32, #tpu.memory_space<vmem>>, vector<8x16xf32>
    tpu.vector_store %arg6[%c0_14, %c0_15], %30 {strides = array<i32>} : memref<8x16xf32, #tpu.memory_space<vmem>>, vector<8x16xf32>,
    return
  }
  func.func @transform_0(%arg0: i32) -> (i32, i32) {
    %c0_i32 = arith.constant 0 : i32
    %c0_i32_0 = arith.constant 0 : i32
    %c0_i32_1 = arith.constant 0 : i32
    return %c0_i32, %c0_i32_0 : i32, i32
  }
  func.func @transform_1(%arg0: i32) -> (i32, i32) {
    %c0_i32 = arith.constant 0 : i32
    %c0_i32_0 = arith.constant 0 : i32
    %c0_i32_1 = arith.constant 0 : i32
    return %c0_i32, %c0_i32_0 : i32, i32
  }
  func.func @transform_2(%arg0: i32) -> (i32, i32) {
    %c0_i32 = arith.constant 0 : i32
    %c0_i32_0 = arith.constant 0 : i32
    %c0_i32_1 = arith.constant 0 : i32
    return %c0_i32, %c0_i32_0 : i32, i32
  }
  func.func @transform_3(%arg0: i32) -> (i32, i32) {
    %c0_i32 = arith.constant 0 : i32
    %c0_i32_0 = arith.constant 0 : i32
    return %c0_i32, %arg0 : i32, i32
  }
  func.func @transform_4(%arg0: i32) -> (i32, i32) {
    %c0_i32 = arith.constant 0 : i32
    %c0_i32_0 = arith.constant 0 : i32
    return %c0_i32, %arg0 : i32, i32
  }
  func.func @transform_5(%arg0: i32) -> (i32, i32) {
    %c0_i32 = arith.constant 0 : i32
    %c0_i32_0 = arith.constant 0 : i32
    return %c0_i32, %arg0 : i32, i32
  }
}

module attributes {stable_mosaic.version = 11 : i64} {
  func.func @_bn_linear_kernel(%arg0: i32, %arg1: memref<8x64xf32, #tpu.memory_space<vmem>>, %arg2: memref<1x64xf32, #tpu.memory_space<vmem>>, %arg3: memref<1x64xf32, #tpu.memory_space<vmem>>, %arg4: memref<64x1024xbf16, #tpu.memory_space<vmem>>, %arg5: memref<1x1024xf32, #tpu.memory_space<vmem>>, %arg6: memref<8x1024xf32, #tpu.memory_space<vmem>>) attributes {dimension_semantics = [#tpu.dimension_semantics<parallel>], iteration_bounds = array<i64: 2>, scalar_prefetch = 0 : i64, scratch_operands = 0 : i64, tpu.core_type = #tpu.core_type<tc>, window_params = [{pipeline_mode = #tpu.pipeline_mode<synchronous>, transform_indices = @transform_0, window_bounds = array<i64: 8, 64>}, {pipeline_mode = #tpu.pipeline_mode<synchronous>, transform_indices = @transform_1, window_bounds = array<i64: 1, 64>}, {pipeline_mode = #tpu.pipeline_mode<synchronous>, transform_indices = @transform_2, window_bounds = array<i64: 1, 64>}, {transform_indices = @transform_3, window_bounds = array<i64: 64, 1024>}, {transform_indices = @transform_4, window_bounds = array<i64: 1, 1024>}, {transform_indices = @transform_5, window_bounds = array<i64: 8, 1024>}]} {
    %c0 = arith.constant 0 : index
    %c0_0 = arith.constant 0 : index
    %0 = vector.load %arg1[%c0, %c0_0] : memref<8x64xf32, #tpu.memory_space<vmem>>, vector<8x64xf32>
    %c0_1 = arith.constant 0 : index
    %c0_2 = arith.constant 0 : index
    %1 = vector.load %arg2[%c0_1, %c0_2] : memref<1x64xf32, #tpu.memory_space<vmem>>, vector<1x64xf32>
    %c0_3 = arith.constant 0 : index
    %c0_4 = arith.constant 0 : index
    %2 = vector.load %arg3[%c0_3, %c0_4] : memref<1x64xf32, #tpu.memory_space<vmem>>, vector<1x64xf32>
    %cst = arith.constant dense<0.000000e+00> : vector<64xf32>
    %3 = vector.multi_reduction <add>, %0, %cst [0] : vector<8x64xf32> to vector<64xf32>
    %4 = vector.shape_cast %3 : vector<64xf32> to vector<1x64xf32>
    %cst_5 = arith.constant 8.000000e+00 : f32
    %5 = vector.broadcast %cst_5 : f32 to vector<1x64xf32>
    %6 = arith.divf %4, %5 : vector<1x64xf32>
    %7 = vector.broadcast %6 : vector<1x64xf32> to vector<8x64xf32>
    %8 = arith.subf %0, %7 : vector<8x64xf32>
    %9 = arith.mulf %8, %8 : vector<8x64xf32>
    %cst_6 = arith.constant dense<0.000000e+00> : vector<64xf32>
    %10 = vector.multi_reduction <add>, %9, %cst_6 [0] : vector<8x64xf32> to vector<64xf32>
    %11 = vector.shape_cast %10 : vector<64xf32> to vector<1x64xf32>
    %cst_7 = arith.constant 8.000000e+00 : f32
    %12 = vector.broadcast %cst_7 : f32 to vector<1x64xf32>
    %13 = arith.divf %11, %12 : vector<1x64xf32>
    %14 = vector.broadcast %6 : vector<1x64xf32> to vector<8x64xf32>
    %15 = arith.subf %0, %14 : vector<8x64xf32>
    %cst_8 = arith.constant 9.99999974E-6 : f32
    %16 = vector.broadcast %cst_8 : f32 to vector<1x64xf32>
    %17 = arith.addf %13, %16 : vector<1x64xf32>
    %18 = math.rsqrt %17 : vector<1x64xf32>
    %19 = vector.broadcast %18 : vector<1x64xf32> to vector<8x64xf32>
    %20 = arith.mulf %15, %19 : vector<8x64xf32>
    %21 = vector.broadcast %1 : vector<1x64xf32> to vector<8x64xf32>
    %22 = arith.mulf %20, %21 : vector<8x64xf32>
    %23 = vector.broadcast %2 : vector<1x64xf32> to vector<8x64xf32>
    %24 = arith.addf %22, %23 : vector<8x64xf32>
    %25 = arith.truncf %24 : vector<8x64xf32> to vector<8x64xbf16>
    %c0_9 = arith.constant 0 : index
    %c0_10 = arith.constant 0 : index
    %26 = vector.load %arg4[%c0_9, %c0_10] : memref<64x1024xbf16, #tpu.memory_space<vmem>>, vector<64x1024xbf16>
    %cst_11 = arith.constant dense<0.000000e+00> : vector<8x1024xf32>
    %27 = tpu.matmul %25, %26, %cst_11 {dimension_numbers = #tpu.dot_dimension_numbers<[1], [0], [0], [1], [0, 0, 1, 1], [], []>} : vector<8x64xbf16>, vector<64x1024xbf16>, vector<8x1024xf32> -> vector<8x1024xf32>
    %c0_12 = arith.constant 0 : index
    %c0_13 = arith.constant 0 : index
    %28 = vector.load %arg5[%c0_12, %c0_13] : memref<1x1024xf32, #tpu.memory_space<vmem>>, vector<1x1024xf32>
    %29 = vector.broadcast %28 : vector<1x1024xf32> to vector<8x1024xf32>
    %30 = arith.addf %27, %29 : vector<8x1024xf32>
    %cst_14 = arith.constant 0.000000e+00 : f32
    %31 = vector.broadcast %cst_14 : f32 to vector<8x1024xf32>
    %32 = arith.maximumf %30, %31 : vector<8x1024xf32>
    %c0_15 = arith.constant 0 : index
    %c0_16 = arith.constant 0 : index
    %33 = vector.load %arg6[%c0_15, %c0_16] : memref<8x1024xf32, #tpu.memory_space<vmem>>, vector<8x1024xf32>
    tpu.vector_store %arg6[%c0_15, %c0_16], %32 {strides = array<i32>} : memref<8x1024xf32, #tpu.memory_space<vmem>>, vector<8x1024xf32>,
    return
  }
  func.func @transform_0(%arg0: i32) -> (i32, i32) {
    %c0_i32 = arith.constant 0 : i32
    %c0_i32_0 = arith.constant 0 : i32
    %c0_i32_1 = arith.constant 0 : i32
    return %c0_i32, %c0_i32_0 : i32, i32
  }
  func.func @transform_1(%arg0: i32) -> (i32, i32) {
    %c0_i32 = arith.constant 0 : i32
    %c0_i32_0 = arith.constant 0 : i32
    %c0_i32_1 = arith.constant 0 : i32
    return %c0_i32, %c0_i32_0 : i32, i32
  }
  func.func @transform_2(%arg0: i32) -> (i32, i32) {
    %c0_i32 = arith.constant 0 : i32
    %c0_i32_0 = arith.constant 0 : i32
    %c0_i32_1 = arith.constant 0 : i32
    return %c0_i32, %c0_i32_0 : i32, i32
  }
  func.func @transform_3(%arg0: i32) -> (i32, i32) {
    %c0_i32 = arith.constant 0 : i32
    %c0_i32_0 = arith.constant 0 : i32
    return %c0_i32, %arg0 : i32, i32
  }
  func.func @transform_4(%arg0: i32) -> (i32, i32) {
    %c0_i32 = arith.constant 0 : i32
    %c0_i32_0 = arith.constant 0 : i32
    return %c0_i32, %arg0 : i32, i32
  }
  func.func @transform_5(%arg0: i32) -> (i32, i32) {
    %c0_i32 = arith.constant 0 : i32
    %c0_i32_0 = arith.constant 0 : i32
    return %c0_i32, %arg0 : i32, i32
  }
}

</mosaic_0001>

<llo_original>
// kernel: dnn_forward.3
$region0: #{dnn_forward.3}
  #allocation0 [shape = 'u32[]', space=smem, size = 0x4, offset = 0x4, fixed_abs, tag = 'smem constant byte address 0x4 - core index']
  #allocation1 [shape = 'u32[72,128]{1,0:T(1,128)}', space=vmem, size = 0x9000, scoped, tag = 'internal scratch']
  %s0 = inlined_call_operand.hbm [shape: f32[8,64], index: 0, kind: input, shape index: {}]
  %s1 = inlined_call_operand.hbm [shape: f32[1,64], index: 1, kind: input, shape index: {}]
  %s2 = inlined_call_operand.hbm [shape: f32[1,64], index: 2, kind: input, shape index: {}]
  %s3 = inlined_call_operand.hbm [shape: bf16[64,2048], index: 3, kind: input, shape index: {}]
  %s4 = inlined_call_operand.hbm [shape: f32[1,2048], index: 4, kind: input, shape index: {}]
  %s5 = inlined_call_operand.vmem [shape: f32[8,2048], index: 5, kind: output, shape index: {}]
  %s6 = sld [smem:[#allocation0]]
  $region73: #{dnn_forward.3} parent=0
    _
  %s8 = ssub.s32 1, %s6
  %s9 = scalar_select 0, %s8, %s6
  $region1: #{dnn_forward.3} parent=0
    #allocation2 [shape = 'u8[4096]{0}', space=vmem, size = 0x1000, scoped, tag = 'input window, operand 0, single buffered']
    #allocation3 [shape = 's32[2]{0}', space=sflag, size = 0x8, scoped, tag = 'scoped memory for dnn_forward.3']
    #allocation4 [shape = 'u8[512]{0}', space=vmem, size = 0x400, scoped, tag = 'input window, operand 1, single buffered']
    #allocation5 [shape = 's32[1]{0}', space=sflag, size = 0x4, scoped, tag = 'scoped memory for dnn_forward.3']
    #allocation6 [shape = 'u8[512]{0}', space=vmem, size = 0x400, scoped, tag = 'input window, operand 2, single buffered']
    #allocation7 [shape = 'u8[262144]{0}', space=vmem, size = 0x40000, scoped, tag = 'input window, operand 3']
    #allocation8 [shape = 's32[2]{0}', space=sflag, size = 0x8, scoped, tag = 'scoped memory for dnn_forward.3']
    #allocation9 [shape = 'u8[8192]{0}', space=vmem, size = 0x2000, scoped, tag = 'input window, operand 4']
    %10 = vsyncpa [#allocation3], 0
    %11 = vsyncpa [#allocation5], 0
    %12 = vsyncpa [#allocation8], 0
    %s13 = scalar_lea.sflag [#allocation8], 1
    %14 = vsyncpa %s13, 0
    loop: start=0, step=1, limit=4
    $region2: #{dnn_forward.3} parent=1 // loop_pre_header
      _
    $region3: #{dnn_forward.3} parent=1 // loop_header
      %s16 = sphi 0, %s20
      %p17 = scmp.ge.s32.totalorder %s16, 4
      %s24 = sphi 0, %s24
      %s26 = sphi 0, %s24
      %s27 = sphi 0, %s26
      %s41 = sphi 0, %s27
      %s45 = sphi 0, %s45
      %s47 = sphi 0, %s45
      %s48 = sphi 0, %s47
      %s62 = sphi 0, %s48
      %s66 = sphi 0, %s66
      %s68 = sphi 0, %s66
      %s69 = sphi 0, %s68
      %s83 = sphi 0, %s69
      %s89 = sphi 0, %s91
      %s92 = sphi 0, %s89
      %s93 = sphi 0, %s92
      %s109 = sphi 0, %s93
      %s115 = sphi 0, %s117
      %s118 = sphi 0, %s115
      %s119 = sphi 0, %s118
      %s135 = sphi 0, %s119
      %s141 = sphi 0, %s143
      %s144 = sphi 0, %s141
      %s145 = sphi 0, %s144
      %s161 = sphi 0, %s145
    $region4: #{dnn_forward.3} parent=1 // loop_header_branch
      %19 = sbr.rel (%p17) target = $region8
    $region5: #{dnn_forward.3} parent=1 // loop_body
      %s21 = ssub.s32 %s16, 1
      %s22 = ssub.s32 %s16, 2
      %s23 = sadd.s32 %s16, 1
      %s25 = sadd.s32 %s24, 1
      %p28 = scmp.eq.s32.totalorder %s16, 1
      %p29 = scmp.ne.s32.totalorder %s24, %s26
      %p30 = scmp.eq.s32.totalorder %s16, 0
      %p31 = por %p29, %p30
      %p32 = scmp.ne.s32.totalorder %s24, %s26
      %p33 = scmp.eq.s32.totalorder %s21, 1
      %p34 = por %p32, %p33
      %p35 = scmp.ne.s32.totalorder %s26, %s27
      %p36 = scmp.eq.s32.totalorder %s21, 0
      %p37 = por %p35, %p36
      %p38 = scmp.ne.s32.totalorder %s26, %s27
      %p39 = scmp.eq.s32.totalorder %s22, 1
      %p40 = por %p38, %p39
      %p42 = scmp.ne.s32.totalorder %s27, %s41
      %p43 = scmp.eq.s32.totalorder %s22, 0
      %p44 = por %p42, %p43
      %s46 = sadd.s32 %s45, 1
      %p49 = scmp.eq.s32.totalorder %s16, 1
      %p50 = scmp.ne.s32.totalorder %s45, %s47
      %p51 = scmp.eq.s32.totalorder %s16, 0
      %p52 = por %p50, %p51
      %p53 = scmp.ne.s32.totalorder %s45, %s47
      %p54 = scmp.eq.s32.totalorder %s21, 1
      %p55 = por %p53, %p54
      %p56 = scmp.ne.s32.totalorder %s47, %s48
      %p57 = scmp.eq.s32.totalorder %s21, 0
      %p58 = por %p56, %p57
      %p59 = scmp.ne.s32.totalorder %s47, %s48
      %p60 = scmp.eq.s32.totalorder %s22, 1
      %p61 = por %p59, %p60
      %p63 = scmp.ne.s32.totalorder %s48, %s62
      %p64 = scmp.eq.s32.totalorder %s22, 0
      %p65 = por %p63, %p64
      %s67 = sadd.s32 %s66, 1
      %p70 = scmp.eq.s32.totalorder %s16, 1
      %p71 = scmp.ne.s32.totalorder %s66, %s68
      %p72 = scmp.eq.s32.totalorder %s16, 0
      %p73 = por %p71, %p72
      %p74 = scmp.ne.s32.totalorder %s66, %s68
      %p75 = scmp.eq.s32.totalorder %s21, 1
      %p76 = por %p74, %p75
      %p77 = scmp.ne.s32.totalorder %s68, %s69
      %p78 = scmp.eq.s32.totalorder %s21, 0
      %p79 = por %p77, %p78
      %p80 = scmp.ne.s32.totalorder %s68, %s69
      %p81 = scmp.eq.s32.totalorder %s22, 1
      %p82 = por %p80, %p81
      %p84 = scmp.ne.s32.totalorder %s69, %s83
      %p85 = scmp.eq.s32.totalorder %s22, 0
      %p86 = por %p84, %p85
      %s87 = ssub.s32 %s16, %s23
      %p88 = scmp.eq.s32.totalorder %s87, 0
      %s90 = sadd.s32 %s89, 1
      %s91 = scalar_select %p88, %s89, %s90
      %p94 = pneg %p88
      %p95 = scmp.eq.s32.totalorder %s16, 1
      %p96 = por %p94, %p95
      %p97 = scmp.ne.s32.totalorder %s89, %s92
      %p98 = scmp.eq.s32.totalorder %s16, 0
      %p99 = por %p97, %p98
      %p100 = scmp.ne.s32.totalorder %s89, %s92
      %p101 = scmp.eq.s32.totalorder %s21, 1
      %p102 = por %p100, %p101
      %p103 = scmp.ne.s32.totalorder %s92, %s93
      %p104 = scmp.eq.s32.totalorder %s21, 0
      %p105 = por %p103, %p104
      %p106 = scmp.ne.s32.totalorder %s92, %s93
      %p107 = scmp.eq.s32.totalorder %s22, 1
      %p108 = por %p106, %p107
      %p110 = scmp.ne.s32.totalorder %s93, %s109
      %p111 = scmp.eq.s32.totalorder %s22, 0
      %p112 = por %p110, %p111
      %s113 = ssub.s32 %s16, %s23
      %p114 = scmp.eq.s32.totalorder %s113, 0
      %s116 = sadd.s32 %s115, 1
      %s117 = scalar_select %p114, %s115, %s116
      %p120 = pneg %p114
      %p121 = scmp.eq.s32.totalorder %s16, 1
      %p122 = por %p120, %p121
      %p123 = scmp.ne.s32.totalorder %s115, %s118
      %p124 = scmp.eq.s32.totalorder %s16, 0
      %p125 = por %p123, %p124
      %p126 = scmp.ne.s32.totalorder %s115, %s118
      %p127 = scmp.eq.s32.totalorder %s21, 1
      %p128 = por %p126, %p127
      %p129 = scmp.ne.s32.totalorder %s118, %s119
      %p130 = scmp.eq.s32.totalorder %s21, 0
      %p131 = por %p129, %p130
      %p132 = scmp.ne.s32.totalorder %s118, %s119
      %p133 = scmp.eq.s32.totalorder %s22, 1
      %p134 = por %p132, %p133
      %p136 = scmp.ne.s32.totalorder %s119, %s135
      %p137 = scmp.eq.s32.totalorder %s22, 0
      %p138 = por %p136, %p137
      %s139 = ssub.s32 %s16, %s23
      %p140 = scmp.eq.s32.totalorder %s139, 0
      %s142 = sadd.s32 %s141, 1
      %s143 = scalar_select %p140, %s141, %s142
      %p146 = pneg %p140
      %p147 = scmp.eq.s32.totalorder %s16, 1
      %p148 = por %p146, %p147
      %p149 = scmp.ne.s32.totalorder %s141, %s144
      %p150 = scmp.eq.s32.totalorder %s16, 0
      %p151 = por %p149, %p150
      %p152 = scmp.ne.s32.totalorder %s141, %s144
      %p153 = scmp.eq.s32.totalorder %s21, 1
      %p154 = por %p152, %p153
      %p155 = scmp.ne.s32.totalorder %s144, %s145
      %p156 = scmp.eq.s32.totalorder %s21, 0
      %p157 = por %p155, %p156
      %p158 = scmp.ne.s32.totalorder %s144, %s145
      %p159 = scmp.eq.s32.totalorder %s22, 1
      %p160 = por %p158, %p159
      %p162 = scmp.ne.s32.totalorder %s145, %s161
      %p163 = scmp.eq.s32.totalorder %s22, 0
      %p164 = por %p162, %p163
      %p165 = scmp.le.s32.totalorder 1, %s16
      %p166 = scmp.lt.s32.totalorder %s16, 3
      %p167 = pnand %p165, %p166
      %p168 = pneg %p167
      // Predicated region
      $region9: #{dnn_forward.3} parent=5 // pred_check
        _
      $region10: #{dnn_forward.3} parent=5 // pred_check_branch
        %170 = sbr.rel (%p167) target = $region12
      $region11: #{dnn_forward.3} parent=5 // pred_region
        %s171 = ssub.s32 %s16, 1
        // Predicated region
        $region13: #{dnn_forward.3} parent=11 // pred_check
          %p172 = pneg %p37
        $region14: #{dnn_forward.3} parent=11 // pred_check_branch
          %174 = sbr.rel (%p172) target = $region16
        $region15: #{dnn_forward.3} parent=11 // pred_region
          %176 = vsyncadd [#allocation3], 0
          %s178 = sshll.u32 %s0, 4
          %s179 = int_to_ptr.hbm [resolvable:$true] %s178
          %s180 = sshll.u32 [#allocation2], 4
          %s181 = int_to_ptr.vmem [resolvable:$true] %s180
          %183 = dma.hbm_to_vmem [thread:$0]  %s179, 128, %s181, [#allocation3]
        $region16: #{dnn_forward.3} parent=11 // pred_fallthru
          _
        // Predicated region
        $region17: #{dnn_forward.3} parent=11 // pred_check
          %p184 = pneg %p58
        $region18: #{dnn_forward.3} parent=11 // pred_check_branch
          %186 = sbr.rel (%p184) target = $region20
        $region19: #{dnn_forward.3} parent=11 // pred_region
          %188 = vsyncadd [#allocation5], 0
          %s190 = sshll.u32 %s1, 4
          %s191 = int_to_ptr.hbm [resolvable:$true] %s190
          %s192 = sshll.u32 [#allocation4], 4
          %s193 = int_to_ptr.vmem [resolvable:$true] %s192
          %195 = dma.hbm_to_vmem [thread:$0]  %s191, 16, %s193, [#allocation5]
        $region20: #{dnn_forward.3} parent=11 // pred_fallthru
          _
        // Predicated region
        $region21: #{dnn_forward.3} parent=11 // pred_check
          %p196 = pneg %p79
        $region22: #{dnn_forward.3} parent=11 // pred_check_branch
          %198 = sbr.rel (%p196) target = $region24
        $region23: #{dnn_forward.3} parent=11 // pred_region
          %200 = vsyncadd [#allocation5], 0
          %s202 = sshll.u32 %s2, 4
          %s203 = int_to_ptr.hbm [resolvable:$true] %s202
          %s204 = sshll.u32 [#allocation6], 4
          %s205 = int_to_ptr.vmem [resolvable:$true] %s204
          %207 = dma.hbm_to_vmem [thread:$0]  %s203, 16, %s205, [#allocation5]
        $region24: #{dnn_forward.3} parent=11 // pred_fallthru
          _
      $region12: #{dnn_forward.3} parent=5 // pred_fallthru
        _
      %p208 = scmp.lt.s32.totalorder %s16, 2
      // Predicated region
      $region25: #{dnn_forward.3} parent=5 // pred_check
        %p209 = pneg %p208
      $region26: #{dnn_forward.3} parent=5 // pred_check_branch
        %211 = sbr.rel (%p209) target = $region28
      $region27: #{dnn_forward.3} parent=5 // pred_region
        // Predicated region
        $region29: #{dnn_forward.3} parent=27 // pred_check
          %p212 = pneg %p99
        $region30: #{dnn_forward.3} parent=27 // pred_check_branch
          %214 = sbr.rel (%p212) target = $region32
        $region31: #{dnn_forward.3} parent=27 // pred_region
          %s215 = sand.u32 %s16, 1
          %s216 = scalar_lea.sflag [#allocation8], %s215
          %s217 = sand.u32 %s89, 1
          %s218 = smul.addr %s217, 256
          %s219 = scalar_lea.vmem [#allocation7], %s218
          %s220 = smul.u32 8, %s16
          %222 = vsyncadd %s216, 0
          %s223 = smul.addr %s220, 4
          %s224 = scalar_lea.hbm %s3, %s223
          %s225 = sshll.u32 %s224, 4
          %s226 = int_to_ptr.hbm [resolvable:$true] %s225
          %s227 = sshll.u32 %s219, 4
          %s228 = int_to_ptr.vmem [resolvable:$true] %s227
          %233 = dma.hbm_to_vmem [thread:$0]  %s226, 4096, %s228, %s216, 1024, 512, 32
        $region32: #{dnn_forward.3} parent=27 // pred_fallthru
          _
        // Predicated region
        $region33: #{dnn_forward.3} parent=27 // pred_check
          %p234 = pneg %p125
        $region34: #{dnn_forward.3} parent=27 // pred_check_branch
          %236 = sbr.rel (%p234) target = $region36
        $region35: #{dnn_forward.3} parent=27 // pred_region
          %s237 = sand.u32 %s16, 1
          %s238 = scalar_lea.sflag [#allocation8], %s237
          %s239 = sand.u32 %s115, 1
          %s240 = smul.addr %s239, 8
          %s241 = scalar_lea.vmem [#allocation9], %s240
          %s242 = smul.u32 8, %s16
          %244 = vsyncadd %s238, 0
          %s245 = scalar_lea.hbm %s4, %s242
          %s247 = sshll.u32 %s245, 4
          %s248 = int_to_ptr.hbm [resolvable:$true] %s247
          %s249 = sshll.u32 %s241, 4
          %s250 = int_to_ptr.vmem [resolvable:$true] %s249
          %252 = dma.hbm_to_vmem [thread:$0]  %s248, 128, %s250, %s238
        $region36: #{dnn_forward.3} parent=27 // pred_fallthru
          _
      $region28: #{dnn_forward.3} parent=5 // pred_fallthru
        _
      %p253 = scmp.le.s32.totalorder 1, %s16
      %p254 = scmp.lt.s32.totalorder %s16, 3
      %p255 = pnand %p253, %p254
      %p256 = pneg %p255
      // Predicated region
      $region37: #{dnn_forward.3} parent=5 // pred_check
        _
      $region38: #{dnn_forward.3} parent=5 // pred_check_branch
        %258 = sbr.rel (%p255) target = $region40
      $region39: #{dnn_forward.3} parent=5 // pred_region
        %s259 = ssub.s32 %s16, 1
        // Predicated region
        $region41: #{dnn_forward.3} parent=39 // pred_check
          %p260 = pneg %p37
        $region42: #{dnn_forward.3} parent=39 // pred_check_branch
          %262 = sbr.rel (%p260) target = $region44
        $region43: #{dnn_forward.3} parent=39 // pred_region
          %264 = dma.done [#allocation3], 128
        $region44: #{dnn_forward.3} parent=39 // pred_fallthru
          _
        // Predicated region
        $region45: #{dnn_forward.3} parent=39 // pred_check
          %p265 = pneg %p58
        $region46: #{dnn_forward.3} parent=39 // pred_check_branch
          %267 = sbr.rel (%p265) target = $region48
        $region47: #{dnn_forward.3} parent=39 // pred_region
          %269 = dma.done [#allocation5], 16
        $region48: #{dnn_forward.3} parent=39 // pred_fallthru
          _
        // Predicated region
        $region49: #{dnn_forward.3} parent=39 // pred_check
          %p270 = pneg %p79
        $region50: #{dnn_forward.3} parent=39 // pred_check_branch
          %272 = sbr.rel (%p270) target = $region52
        $region51: #{dnn_forward.3} parent=39 // pred_region
          %274 = dma.done [#allocation5], 16
        $region52: #{dnn_forward.3} parent=39 // pred_fallthru
          _
        %s275 = sand.u32 %s21, 1
        %s276 = scalar_lea.sflag [#allocation8], %s275
        %s277 = sand.u32 %s92, 1
        %s278 = smul.addr %s277, 256
        %s279 = scalar_lea.vmem [#allocation7], %s278
        // Predicated region
        $region53: #{dnn_forward.3} parent=39 // pred_check
          %p280 = pneg %p105
        $region54: #{dnn_forward.3} parent=39 // pred_check_branch
          %282 = sbr.rel (%p280) target = $region56
        $region55: #{dnn_forward.3} parent=39 // pred_region
          %284 = dma.done %s276, 4096
        $region56: #{dnn_forward.3} parent=39 // pred_fallthru
          _
        %s285 = sand.u32 %s21, 1
        %s286 = scalar_lea.sflag [#allocation8], %s285
        %s287 = sand.u32 %s118, 1
        %s288 = smul.addr %s287, 8
        %s289 = scalar_lea.vmem [#allocation9], %s288
        // Predicated region
        $region57: #{dnn_forward.3} parent=39 // pred_check
          %p290 = pneg %p131
        $region58: #{dnn_forward.3} parent=39 // pred_check_branch
          %292 = sbr.rel (%p290) target = $region60
        $region59: #{dnn_forward.3} parent=39 // pred_region
          %294 = dma.done %s286, 128
        $region60: #{dnn_forward.3} parent=39 // pred_fallthru
          _
        %p295 = pneg %p37
        %p296 = pneg %p34
        %p297 = pneg %p58
        %p298 = pneg %p55
        %p299 = pneg %p79
        %p300 = pneg %p76
        %s301 = sand.u32 %s21, 1
        %s302 = scalar_lea.sflag [#allocation8], %s301
        %s303 = sand.u32 %s92, 1
        %s304 = smul.addr %s303, 256
        %s305 = scalar_lea.vmem [#allocation7], %s304
        %p306 = pneg %p105
        %p307 = pneg %p102
        %s308 = sand.u32 %s21, 1
        %s309 = scalar_lea.sflag [#allocation8], %s308
        %s310 = sand.u32 %s118, 1
        %s311 = smul.addr %s310, 8
        %s312 = scalar_lea.vmem [#allocation9], %s311
        %p313 = pneg %p131
        %p314 = pneg %p128
        %p315 = pneg %p157
        %p316 = pneg %p154
        %s317 = smul.u32 8, %s21
        %p318 = scmp.lt.s32.totalorder %s317, 15
        %s319 = scalar_select %p318, %s317, 15
        %s320 = smul.addr %s319, 8
        %s321 = scalar_lea.vmem %s5, %s320
        %s322 = smul.u32 8, %s21
        %s323 = smul.u32 8, %s21
        %s324 = smul.u32 8, %s21
        %p325 = scmp.lt.s32.totalorder %s324, 15
        %s326 = scalar_select %p325, %s324, 15
        %s327 = smul.addr %s326, 8
        %s328 = scalar_lea.vmem %s5, %s327
        %s329 = smul.u32 8, %s21
        %v331 = vld [vmem:[#allocation2] sm:$0xff]
        %v332 = vld [vmem:[#allocation4] sm:$0x1]
        %v333 = vld [vmem:[#allocation6] sm:$0x1]
        %vm334 = vcmask 523264
        %v335 = vsel %vm334, %v331, 0.0
        %v336 = vrot.slane %v335, 4
        %v337 = vadd.f32 %v335, %v336
        %v338 = vrot.slane %v337, 2
        %v339 = vadd.f32 %v337, %v338
        %v340 = vrot.slane %v339, 1
        %v341 = vadd.f32 %v339, %v340
        %v342 = vrcp.pop 8.0
        %v343 = vmul.f32 8.0, %v342
        %v344 = vsub.f32 1.0, %v343
        %v345 = vmul.f32 %v342, %v344
        %v346 = vadd.f32 %v342, %v345
        %vm347 = vweird.f32 %v342
        %v348 = vsel %vm347, %v342, %v346
        %v349 = vmul.f32 %v341, %v348
        %v350 = vsub.f32 %v331, %v349
        %v351 = vmul.f32 %v350, %v350
        %v352 = vsel %vm334, %v351, 0.0
        %v353 = vrot.slane %v352, 4
        %v354 = vadd.f32 %v352, %v353
        %v355 = vrot.slane %v354, 2
        %v356 = vadd.f32 %v354, %v355
        %v357 = vrot.slane %v356, 1
        %v358 = vadd.f32 %v356, %v357
        %v359 = vmul.f32 %v358, %v348
        %v360 = vadd.f32 %v359, 1e-05
        %v361 = vrsqrt.pop %v360
        %v362 = vmul.f32 %v361, %v360
        %v363 = vmul.f32 %v362, %v361
        %v364 = vmul.f32 0.5, %v363
        %v365 = vsub.f32 1.5, %v364
        %v366 = vmul.f32 %v361, %v365
        %vm367 = vweird.f32 %v360
        %vm368 = vweird.f32 %v361
        %vm369 = vmor %vm367, %vm368
        %v370 = vsel %vm369, %v361, %v366
        %v371 = vmul.f32 %v350, %v370
        %v373 = vperm.slane %v332, 0
        %v375 = vmul.f32 %v371, %v373
        %v377 = vperm.slane %v333, 0
        %v379 = vadd.f32 %v375, %v377
        %v380 = vpack.c.bf16 %v379, %v379
        %v381 = vld [vmem:[%s279] sm:$0xff]
        %v382 = vld [vmem:[%s279 + $0x8] sm:$0xff]
        %v383 = vld [vmem:[%s279 + $0x10] sm:$0xff]
        %v384 = vld [vmem:[%s279 + $0x18] sm:$0xff]
        %v385 = vld [vmem:[%s279 + $0x20] sm:$0xff]
        %v386 = vld [vmem:[%s279 + $0x28] sm:$0xff]
        %v387 = vld [vmem:[%s279 + $0x30] sm:$0xff]
        %v388 = vld [vmem:[%s279 + $0x38] sm:$0xff]
        %v389 = vld [vmem:[%s279 + $0x40] sm:$0xff]
        %v390 = vld [vmem:[%s279 + $0x48] sm:$0xff]
        %v391 = vld [vmem:[%s279 + $0x50] sm:$0xff]
        %v392 = vld [vmem:[%s279 + $0x58] sm:$0xff]
        %v393 = vld [vmem:[%s279 + $0x60] sm:$0xff]
        %v394 = vld [vmem:[%s279 + $0x68] sm:$0xff]
        %v395 = vld [vmem:[%s279 + $0x70] sm:$0xff]
        %v396 = vld [vmem:[%s279 + $0x78] sm:$0xff]
        %v397 = vld [vmem:[%s279 + $0x80] sm:$0xff]
        %v398 = vld [vmem:[%s279 + $0x88] sm:$0xff]
        %v399 = vld [vmem:[%s279 + $0x90] sm:$0xff]
        %v400 = vld [vmem:[%s279 + $0x98] sm:$0xff]
        %v401 = vld [vmem:[%s279 + $0xa0] sm:$0xff]
        %v402 = vld [vmem:[%s279 + $0xa8] sm:$0xff]
        %v403 = vld [vmem:[%s279 + $0xb0] sm:$0xff]
        %v404 = vld [vmem:[%s279 + $0xb8] sm:$0xff]
        %v405 = vld [vmem:[%s279 + $0xc0] sm:$0xff]
        %v406 = vld [vmem:[%s279 + $0xc8] sm:$0xff]
        %v407 = vld [vmem:[%s279 + $0xd0] sm:$0xff]
        %v408 = vld [vmem:[%s279 + $0xd8] sm:$0xff]
        %v409 = vld [vmem:[%s279 + $0xe0] sm:$0xff]
        %v410 = vld [vmem:[%s279 + $0xe8] sm:$0xff]
        %v411 = vld [vmem:[%s279 + $0xf0] sm:$0xff]
        %v412 = vld [vmem:[%s279 + $0xf8] sm:$0xff]
        %v413 = vld [vmem:[%s289] sm:$0xff]
        %v415 = vperm.slane %v413, 0
        %v416 = vperm.slane %v413, 1
        %v417 = vperm.slane %v413, 2
        %v418 = vperm.slane %v413, 3
        %v419 = vperm.slane %v413, 4
        %v420 = vperm.slane %v413, 5
        %v421 = vperm.slane %v413, 6
        %v422 = vperm.slane %v413, 7
        %v463 = vunpack.c.l.b16 %v381
        %v464 = vunpack.c.h.b16 %v381
        %v465 = vunpack.c.l.b16 %v382
        %v466 = vunpack.c.h.b16 %v382
        %v467 = vunpack.c.l.b16 %v383
        %v468 = vunpack.c.h.b16 %v383
        %v469 = vunpack.c.l.b16 %v384
        %v470 = vunpack.c.h.b16 %v384
        %v471 = vunpack.c.l.b16 %v385
        %v472 = vunpack.c.h.b16 %v385
        %v473 = vunpack.c.l.b16 %v386
        %v474 = vunpack.c.h.b16 %v386
        %v475 = vunpack.c.l.b16 %v387
        %v476 = vunpack.c.h.b16 %v387
        %v477 = vunpack.c.l.b16 %v388
        %v478 = vunpack.c.h.b16 %v388
        %v479 = vunpack.c.l.b16 %v389
        %v480 = vunpack.c.h.b16 %v389
        %v481 = vunpack.c.l.b16 %v390
        %v482 = vunpack.c.h.b16 %v390
        %v483 = vunpack.c.l.b16 %v391
        %v484 = vunpack.c.h.b16 %v391
        %v485 = vunpack.c.l.b16 %v392
        %v486 = vunpack.c.h.b16 %v392
        %v487 = vunpack.c.l.b16 %v393
        %v488 = vunpack.c.h.b16 %v393
        %v489 = vunpack.c.l.b16 %v394
        %v490 = vunpack.c.h.b16 %v394
        %v491 = vunpack.c.l.b16 %v395
        %v492 = vunpack.c.h.b16 %v395
        %v493 = vunpack.c.l.b16 %v396
        %v494 = vunpack.c.h.b16 %v396
        %v495 = vunpack.c.l.b16 %v397
        %v496 = vunpack.c.h.b16 %v397
        %v497 = vunpack.c.l.b16 %v398
        %v498 = vunpack.c.h.b16 %v398
        %v499 = vunpack.c.l.b16 %v399
        %v500 = vunpack.c.h.b16 %v399
        %v501 = vunpack.c.l.b16 %v400
        %v502 = vunpack.c.h.b16 %v400
        %v503 = vunpack.c.l.b16 %v401
        %v504 = vunpack.c.h.b16 %v401
        %v505 = vunpack.c.l.b16 %v402
        %v506 = vunpack.c.h.b16 %v402
        %v507 = vunpack.c.l.b16 %v403
        %v508 = vunpack.c.h.b16 %v403
        %v509 = vunpack.c.l.b16 %v404
        %v510 = vunpack.c.h.b16 %v404
        %v511 = vunpack.c.l.b16 %v405
        %v512 = vunpack.c.h.b16 %v405
        %v513 = vunpack.c.l.b16 %v406
        %v514 = vunpack.c.h.b16 %v406
        %v515 = vunpack.c.l.b16 %v407
        %v516 = vunpack.c.h.b16 %v407
        %v517 = vunpack.c.l.b16 %v408
        %v518 = vunpack.c.h.b16 %v408
        %v519 = vunpack.c.l.b16 %v409
        %v520 = vunpack.c.h.b16 %v409
        %v521 = vunpack.c.l.b16 %v410
        %v522 = vunpack.c.h.b16 %v410
        %v523 = vunpack.c.l.b16 %v411
        %v524 = vunpack.c.h.b16 %v411
        %v525 = vunpack.c.l.b16 %v412
        %v526 = vunpack.c.h.b16 %v412
        %v527 = vpack.c.b16 %v471, %v463
        %v528 = vpack.c.b16 %v472, %v464
        %v529 = vpack.c.b16 %v473, %v465
        %v530 = vpack.c.b16 %v474, %v466
        %v531 = vpack.c.b16 %v475, %v467
        %v532 = vpack.c.b16 %v476, %v468
        %v533 = vpack.c.b16 %v477, %v469
        %v534 = vpack.c.b16 %v478, %v470
        %v535 = vpack.c.b16 %v487, %v479
        %v536 = vpack.c.b16 %v488, %v480
        %v537 = vpack.c.b16 %v489, %v481
        %v538 = vpack.c.b16 %v490, %v482
        %v539 = vpack.c.b16 %v491, %v483
        %v540 = vpack.c.b16 %v492, %v484
        %v541 = vpack.c.b16 %v493, %v485
        %v542 = vpack.c.b16 %v494, %v486
        %v543 = vpack.c.b16 %v503, %v495
        %v544 = vpack.c.b16 %v504, %v496
        %v545 = vpack.c.b16 %v505, %v497
        %v546 = vpack.c.b16 %v506, %v498
        %v547 = vpack.c.b16 %v507, %v499
        %v548 = vpack.c.b16 %v508, %v500
        %v549 = vpack.c.b16 %v509, %v501
        %v550 = vpack.c.b16 %v510, %v502
        %v551 = vpack.c.b16 %v519, %v511
        %v552 = vpack.c.b16 %v520, %v512
        %v553 = vpack.c.b16 %v521, %v513
        %v554 = vpack.c.b16 %v522, %v514
        %v555 = vpack.c.b16 %v523, %v515
        %v556 = vpack.c.b16 %v524, %v516
        %v557 = vpack.c.b16 %v525, %v517
        %v558 = vpack.c.b16 %v526, %v518
        %v592 = vsel %vm334, %v380, 0
        %594 = vmatpush.bf16.msra.mxu0 0
        %595 = vmatpush.bf16.msra.mxu0 0
        %596 = vmatpush.bf16.msra.mxu0 0
        %597 = vmatpush.bf16.msra.mxu0 0
        %598 = vmatpush.bf16.msra.mxu0 %v551
        %599 = vmatpush.bf16.msra.mxu0 %v543
        %600 = vmatpush.bf16.msra.mxu0 %v535
        %601 = vmatpush.bf16.msra.mxu0 %v527
        %602 = vmatmul.bf16.gmra.mxu0 %v592
        %v603 = vpop.f32.mrf.mxu0
        %v604 = vadd.f32 %v415, %v603
        %v605 = vpop.f32.mrf.mxu0
        %606 = vdwg.mxu0
        %607 = vmatpush.bf16.msra.mxu0 0
        %608 = vmatpush.bf16.msra.mxu0 0
        %609 = vmatpush.bf16.msra.mxu0 0
        %610 = vmatpush.bf16.msra.mxu0 0
        %611 = vmatpush.bf16.msra.mxu0 %v552
        %612 = vmatpush.bf16.msra.mxu0 %v544
        %613 = vmatpush.bf16.msra.mxu0 %v536
        %614 = vmatpush.bf16.msra.mxu0 %v528
        %615 = vmatmul.bf16.gmra.mxu0 %v592
        %v616 = vpop.f32.mrf.mxu0
        %v617 = vadd.f32 %v416, %v616
        %v618 = vpop.f32.mrf.mxu0
        %619 = vdwg.mxu0
        %620 = vmatpush.bf16.msra.mxu0 0
        %621 = vmatpush.bf16.msra.mxu0 0
        %622 = vmatpush.bf16.msra.mxu0 0
        %623 = vmatpush.bf16.msra.mxu0 0
        %624 = vmatpush.bf16.msra.mxu0 %v553
        %625 = vmatpush.bf16.msra.mxu0 %v545
        %626 = vmatpush.bf16.msra.mxu0 %v537
        %627 = vmatpush.bf16.msra.mxu0 %v529
        %628 = vmatmul.bf16.gmra.mxu0 %v592
        %v629 = vpop.f32.mrf.mxu0
        %v630 = vadd.f32 %v417, %v629
        %v631 = vpop.f32.mrf.mxu0
        %632 = vdwg.mxu0
        %633 = vmatpush.bf16.msra.mxu0 0
        %634 = vmatpush.bf16.msra.mxu0 0
        %635 = vmatpush.bf16.msra.mxu0 0
        %636 = vmatpush.bf16.msra.mxu0 0
        %637 = vmatpush.bf16.msra.mxu0 %v554
        %638 = vmatpush.bf16.msra.mxu0 %v546
        %639 = vmatpush.bf16.msra.mxu0 %v538
        %640 = vmatpush.bf16.msra.mxu0 %v530
        %641 = vmatmul.bf16.gmra.mxu0 %v592
        %v642 = vpop.f32.mrf.mxu0
        %v643 = vadd.f32 %v418, %v642
        %v644 = vpop.f32.mrf.mxu0
        %645 = vdwg.mxu0
        %646 = vmatpush.bf16.msra.mxu0 0
        %647 = vmatpush.bf16.msra.mxu0 0
        %648 = vmatpush.bf16.msra.mxu0 0
        %649 = vmatpush.bf16.msra.mxu0 0
        %650 = vmatpush.bf16.msra.mxu0 %v555
        %651 = vmatpush.bf16.msra.mxu0 %v547
        %652 = vmatpush.bf16.msra.mxu0 %v539
        %653 = vmatpush.bf16.msra.mxu0 %v531
        %654 = vmatmul.bf16.gmra.mxu0 %v592
        %v655 = vpop.f32.mrf.mxu0
        %v656 = vadd.f32 %v419, %v655
        %v657 = vpop.f32.mrf.mxu0
        %658 = vdwg.mxu0
        %659 = vmatpush.bf16.msra.mxu0 0
        %660 = vmatpush.bf16.msra.mxu0 0
        %661 = vmatpush.bf16.msra.mxu0 0
        %662 = vmatpush.bf16.msra.mxu0 0
        %663 = vmatpush.bf16.msra.mxu0 %v556
        %664 = vmatpush.bf16.msra.mxu0 %v548
        %665 = vmatpush.bf16.msra.mxu0 %v540
        %666 = vmatpush.bf16.msra.mxu0 %v532
        %667 = vmatmul.bf16.gmra.mxu0 %v592
        %v668 = vpop.f32.mrf.mxu0
        %v669 = vadd.f32 %v420, %v668
        %v670 = vpop.f32.mrf.mxu0
        %671 = vdwg.mxu0
        %672 = vmatpush.bf16.msra.mxu0 0
        %673 = vmatpush.bf16.msra.mxu0 0
        %674 = vmatpush.bf16.msra.mxu0 0
        %675 = vmatpush.bf16.msra.mxu0 0
        %676 = vmatpush.bf16.msra.mxu0 %v557
        %677 = vmatpush.bf16.msra.mxu0 %v549
        %678 = vmatpush.bf16.msra.mxu0 %v541
        %679 = vmatpush.bf16.msra.mxu0 %v533
        %680 = vmatmul.bf16.gmra.mxu0 %v592
        %v681 = vpop.f32.mrf.mxu0
        %v682 = vadd.f32 %v421, %v681
        %v683 = vpop.f32.mrf.mxu0
        %684 = vdwg.mxu0
        %685 = vmatpush.bf16.msra.mxu0 0
        %686 = vmatpush.bf16.msra.mxu0 0
        %687 = vmatpush.bf16.msra.mxu0 0
        %688 = vmatpush.bf16.msra.mxu0 0
        %689 = vmatpush.bf16.msra.mxu0 %v558
        %690 = vmatpush.bf16.msra.mxu0 %v550
        %691 = vmatpush.bf16.msra.mxu0 %v542
        %692 = vmatpush.bf16.msra.mxu0 %v534
        %693 = vmatmul.bf16.gmra.mxu0 %v592
        %v694 = vpop.f32.mrf.mxu0
        %v695 = vadd.f32 %v422, %v694
        %v696 = vpop.f32.mrf.mxu0
        %697 = vdwg.mxu0
        %v698 = vmax.f32 %v604, 0.0
        %v699 = vmax.f32 %v617, 0.0
        %v700 = vmax.f32 %v630, 0.0
        %v701 = vmax.f32 %v643, 0.0
        %v702 = vmax.f32 %v656, 0.0
        %v703 = vmax.f32 %v669, 0.0
        %v704 = vmax.f32 %v682, 0.0
        %v705 = vmax.f32 %v695, 0.0
        %706 = vst [vmem:[%s328] sm:$0xff] %v698
        %707 = vst [vmem:[%s328 + $0x8] sm:$0xff] %v699
        %708 = vst [vmem:[%s328 + $0x10] sm:$0xff] %v700
        %709 = vst [vmem:[%s328 + $0x18] sm:$0xff] %v701
        %710 = vst [vmem:[%s328 + $0x20] sm:$0xff] %v702
        %711 = vst [vmem:[%s328 + $0x28] sm:$0xff] %v703
        %712 = vst [vmem:[%s328 + $0x30] sm:$0xff] %v704
        %713 = vst [vmem:[%s328 + $0x38] sm:$0xff] %v705
        %s714 = smul.u32 8, %s21
        %p715 = scmp.lt.s32.totalorder %s714, 15
        %s716 = scalar_select %p715, %s714, 15
        %s717 = smul.addr %s716, 8
        %s718 = scalar_lea.vmem %s5, %s717
        // Predicated region
        $region61: #{dnn_forward.3} parent=39 // pred_check
          %p719 = pneg %p154
        $region62: #{dnn_forward.3} parent=39 // pred_check_branch
          %721 = sbr.rel (%p719) target = $region64
        $region63: #{dnn_forward.3} parent=39 // pred_region
          %s722 = smul.u32 8, %s21
        $region64: #{dnn_forward.3} parent=39 // pred_fallthru
          _
      $region40: #{dnn_forward.3} parent=5 // pred_fallthru
        _
      %p723 = scmp.le.s32.totalorder 2, %s16
      // Predicated region
      $region65: #{dnn_forward.3} parent=5 // pred_check
        %p724 = pneg %p723
      $region66: #{dnn_forward.3} parent=5 // pred_check_branch
        %726 = sbr.rel (%p724) target = $region68
      $region67: #{dnn_forward.3} parent=5 // pred_region
        %s727 = ssub.s32 %s16, 2
        // Predicated region
        $region69: #{dnn_forward.3} parent=67 // pred_check
          %p728 = pneg %p160
        $region70: #{dnn_forward.3} parent=67 // pred_check_branch
          %730 = sbr.rel (%p728) target = $region72
        $region71: #{dnn_forward.3} parent=67 // pred_region
          %s731 = smul.u32 8, %s22
          %p732 = scmp.lt.s32.totalorder %s731, 15
          %s733 = scalar_select %p732, %s731, 15
          %s734 = smul.addr %s733, 8
          %s735 = scalar_lea.vmem %s5, %s734
        $region72: #{dnn_forward.3} parent=67 // pred_fallthru
          _
      $region68: #{dnn_forward.3} parent=5 // pred_fallthru
        _
    $region6: #{dnn_forward.3} parent=1 // loop_footer
      %s20 = sadd.s32 1, %s16
    $region7: #{dnn_forward.3} parent=1 // loop_footer_branch
      %15 = sbr.rel target = $region3
    $region8: #{dnn_forward.3} parent=1 // loop_exit
      _
    %736 = vsyncpa [#allocation3], 1
    %s737 = scalar_lea.sflag [#allocation3], 1
    %738 = vsyncpa %s737, 1
    %739 = vsyncpa [#allocation5], 1
    %740 = vsyncpa [#allocation8], 1
    %s741 = scalar_lea.sflag [#allocation8], 1
    %742 = vsyncpa %s741, 1

// kernel: dnn_forward.5
$region0: #{dnn_forward.5}
  #allocation0 [shape = 'u32[]', space=smem, size = 0x4, offset = 0x4, fixed_abs, tag = 'smem constant byte address 0x4 - core index']
  #allocation1 [shape = 'u32[72,128]{1,0:T(1,128)}', space=vmem, size = 0x9000, scoped, tag = 'internal scratch']
  %s0 = inlined_call_operand.vmem [shape: f32[8,2048], index: 0, kind: input, shape index: {}]
  %s1 = inlined_call_operand.vmem [shape: f32[1,2048], index: 1, kind: input, shape index: {}]
  %s2 = inlined_call_operand.vmem [shape: f32[1,2048], index: 2, kind: input, shape index: {}]
  %s3 = inlined_call_operand.vmem [shape: bf16[2048,16], index: 3, kind: input, shape index: {}]
  %s4 = inlined_call_operand.vmem [shape: f32[1,16], index: 4, kind: input, shape index: {}]
  %s5 = inlined_call_operand.hbm [shape: f32[8,16], index: 5, kind: output, shape index: {}]
  %s6 = sld [smem:[#allocation0]]
  $region30: #{dnn_forward.5} parent=0
    _
  %s8 = ssub.s32 1, %s6
  %s9 = scalar_select 0, %s8, %s6
  $region1: #{dnn_forward.5} parent=0
    #allocation2 [shape = 'u8[4096]{0}', space=vmem, size = 0x1000, scoped, tag = 'output window, operand 0, single buffered']
    #allocation3 [shape = 's32[1]{0}', space=sflag, size = 0x4, scoped, tag = 'scoped memory for dnn_forward.5']
    %10 = vsyncpa [#allocation3], 0
    // Predicated region
    $region2: #{dnn_forward.5} parent=1 // pred_check
      _
    $region3: #{dnn_forward.5} parent=1 // pred_check_branch
      %12 = sbr.rel (0) target = $region5
    $region4: #{dnn_forward.5} parent=1 // pred_region
      _
    $region5: #{dnn_forward.5} parent=1 // pred_fallthru
      _
    // Predicated region
    $region6: #{dnn_forward.5} parent=1 // pred_check
      _
    $region7: #{dnn_forward.5} parent=1 // pred_check_branch
      %14 = sbr.rel (0) target = $region9
    $region8: #{dnn_forward.5} parent=1 // pred_region
      _
    $region9: #{dnn_forward.5} parent=1 // pred_fallthru
      _
    // Predicated region
    $region10: #{dnn_forward.5} parent=1 // pred_check
      _
    $region11: #{dnn_forward.5} parent=1 // pred_check_branch
      %16 = sbr.rel (0) target = $region13
    $region12: #{dnn_forward.5} parent=1 // pred_region
      _
    $region13: #{dnn_forward.5} parent=1 // pred_fallthru
      _
    // Predicated region
    $region14: #{dnn_forward.5} parent=1 // pred_check
      _
    $region15: #{dnn_forward.5} parent=1 // pred_check_branch
      %18 = sbr.rel (0) target = $region17
    $region16: #{dnn_forward.5} parent=1 // pred_region
      _
    $region17: #{dnn_forward.5} parent=1 // pred_fallthru
      _
    // Predicated region
    $region18: #{dnn_forward.5} parent=1 // pred_check
      _
    $region19: #{dnn_forward.5} parent=1 // pred_check_branch
      %20 = sbr.rel (0) target = $region21
    $region20: #{dnn_forward.5} parent=1 // pred_region
      _
    $region21: #{dnn_forward.5} parent=1 // pred_fallthru
      _
    %v21 = vld [vmem:[%s0] sm:$0xff]
    %v22 = vld [vmem:[%s0 + $0x8] sm:$0xff]
    %v23 = vld [vmem:[%s0 + $0x10] sm:$0xff]
    %v24 = vld [vmem:[%s0 + $0x18] sm:$0xff]
    %v25 = vld [vmem:[%s0 + $0x20] sm:$0xff]
    %v26 = vld [vmem:[%s0 + $0x28] sm:$0xff]
    %v27 = vld [vmem:[%s0 + $0x30] sm:$0xff]
    %v28 = vld [vmem:[%s0 + $0x38] sm:$0xff]
    %v29 = vld [vmem:[%s0 + $0x40] sm:$0xff]
    %v30 = vld [vmem:[%s0 + $0x48] sm:$0xff]
    %v31 = vld [vmem:[%s0 + $0x50] sm:$0xff]
    %v32 = vld [vmem:[%s0 + $0x58] sm:$0xff]
    %v33 = vld [vmem:[%s0 + $0x60] sm:$0xff]
    %v34 = vld [vmem:[%s0 + $0x68] sm:$0xff]
    %v35 = vld [vmem:[%s0 + $0x70] sm:$0xff]
    %v36 = vld [vmem:[%s0 + $0x78] sm:$0xff]
    %v37 = vld [vmem:[%s1] sm:$0xff]
    %v38 = vld [vmem:[%s1 + $0x8] sm:$0xff]
    %v39 = vld [vmem:[%s2] sm:$0xff]
    %v40 = vld [vmem:[%s2 + $0x8] sm:$0xff]
    %v41 = vrot.slane %v21, 4
    %v42 = vadd.f32 %v21, %v41
    %v43 = vrot.slane %v42, 2
    %v44 = vadd.f32 %v42, %v43
    %v45 = vrot.slane %v44, 1
    %v46 = vadd.f32 %v44, %v45
    %v47 = vrot.slane %v22, 4
    %v48 = vadd.f32 %v22, %v47
    %v49 = vrot.slane %v48, 2
    %v50 = vadd.f32 %v48, %v49
    %v51 = vrot.slane %v50, 1
    %v52 = vadd.f32 %v50, %v51
    %v53 = vrot.slane %v23, 4
    %v54 = vadd.f32 %v23, %v53
    %v55 = vrot.slane %v54, 2
    %v56 = vadd.f32 %v54, %v55
    %v57 = vrot.slane %v56, 1
    %v58 = vadd.f32 %v56, %v57
    %v59 = vrot.slane %v24, 4
    %v60 = vadd.f32 %v24, %v59
    %v61 = vrot.slane %v60, 2
    %v62 = vadd.f32 %v60, %v61
    %v63 = vrot.slane %v62, 1
    %v64 = vadd.f32 %v62, %v63
    %v65 = vrot.slane %v25, 4
    %v66 = vadd.f32 %v25, %v65
    %v67 = vrot.slane %v66, 2
    %v68 = vadd.f32 %v66, %v67
    %v69 = vrot.slane %v68, 1
    %v70 = vadd.f32 %v68, %v69
    %v71 = vrot.slane %v26, 4
    %v72 = vadd.f32 %v26, %v71
    %v73 = vrot.slane %v72, 2
    %v74 = vadd.f32 %v72, %v73
    %v75 = vrot.slane %v74, 1
    %v76 = vadd.f32 %v74, %v75
    %v77 = vrot.slane %v27, 4
    %v78 = vadd.f32 %v27, %v77
    %v79 = vrot.slane %v78, 2
    %v80 = vadd.f32 %v78, %v79
    %v81 = vrot.slane %v80, 1
    %v82 = vadd.f32 %v80, %v81
    %v83 = vrot.slane %v28, 4
    %v84 = vadd.f32 %v28, %v83
    %v85 = vrot.slane %v84, 2
    %v86 = vadd.f32 %v84, %v85
    %v87 = vrot.slane %v86, 1
    %v88 = vadd.f32 %v86, %v87
    %v89 = vrot.slane %v29, 4
    %v90 = vadd.f32 %v29, %v89
    %v91 = vrot.slane %v90, 2
    %v92 = vadd.f32 %v90, %v91
    %v93 = vrot.slane %v92, 1
    %v94 = vadd.f32 %v92, %v93
    %v95 = vrot.slane %v30, 4
    %v96 = vadd.f32 %v30, %v95
    %v97 = vrot.slane %v96, 2
    %v98 = vadd.f32 %v96, %v97
    %v99 = vrot.slane %v98, 1
    %v100 = vadd.f32 %v98, %v99
    %v101 = vrot.slane %v31, 4
    %v102 = vadd.f32 %v31, %v101
    %v103 = vrot.slane %v102, 2
    %v104 = vadd.f32 %v102, %v103
    %v105 = vrot.slane %v104, 1
    %v106 = vadd.f32 %v104, %v105
    %v107 = vrot.slane %v32, 4
    %v108 = vadd.f32 %v32, %v107
    %v109 = vrot.slane %v108, 2
    %v110 = vadd.f32 %v108, %v109
    %v111 = vrot.slane %v110, 1
    %v112 = vadd.f32 %v110, %v111
    %v113 = vrot.slane %v33, 4
    %v114 = vadd.f32 %v33, %v113
    %v115 = vrot.slane %v114, 2
    %v116 = vadd.f32 %v114, %v115
    %v117 = vrot.slane %v116, 1
    %v118 = vadd.f32 %v116, %v117
    %v119 = vrot.slane %v34, 4
    %v120 = vadd.f32 %v34, %v119
    %v121 = vrot.slane %v120, 2
    %v122 = vadd.f32 %v120, %v121
    %v123 = vrot.slane %v122, 1
    %v124 = vadd.f32 %v122, %v123
    %v125 = vrot.slane %v35, 4
    %v126 = vadd.f32 %v35, %v125
    %v127 = vrot.slane %v126, 2
    %v128 = vadd.f32 %v126, %v127
    %v129 = vrot.slane %v128, 1
    %v130 = vadd.f32 %v128, %v129
    %v131 = vrot.slane %v36, 4
    %v132 = vadd.f32 %v36, %v131
    %v133 = vrot.slane %v132, 2
    %v134 = vadd.f32 %v132, %v133
    %v135 = vrot.slane %v134, 1
    %v136 = vadd.f32 %v134, %v135
    %v137 = vrcp.pop 8.0
    %v138 = vmul.f32 8.0, %v137
    %v139 = vsub.f32 1.0, %v138
    %v140 = vmul.f32 %v137, %v139
    %v141 = vadd.f32 %v137, %v140
    %vm142 = vweird.f32 %v137
    %v143 = vsel %vm142, %v137, %v141
    %v144 = vmul.f32 %v46, %v143
    %v145 = vmul.f32 %v52, %v143
    %v146 = vmul.f32 %v58, %v143
    %v147 = vmul.f32 %v64, %v143
    %v148 = vmul.f32 %v70, %v143
    %v149 = vmul.f32 %v76, %v143
    %v150 = vmul.f32 %v82, %v143
    %v151 = vmul.f32 %v88, %v143
    %v152 = vmul.f32 %v94, %v143
    %v153 = vmul.f32 %v100, %v143
    %v154 = vmul.f32 %v106, %v143
    %v155 = vmul.f32 %v112, %v143
    %v156 = vmul.f32 %v118, %v143
    %v157 = vmul.f32 %v124, %v143
    %v158 = vmul.f32 %v130, %v143
    %v159 = vmul.f32 %v136, %v143
    %v160 = vsub.f32 %v21, %v144
    %v161 = vsub.f32 %v22, %v145
    %v162 = vsub.f32 %v23, %v146
    %v163 = vsub.f32 %v24, %v147
    %v164 = vsub.f32 %v25, %v148
    %v165 = vsub.f32 %v26, %v149
    %v166 = vsub.f32 %v27, %v150
    %v167 = vsub.f32 %v28, %v151
    %v168 = vsub.f32 %v29, %v152
    %v169 = vsub.f32 %v30, %v153
    %v170 = vsub.f32 %v31, %v154
    %v171 = vsub.f32 %v32, %v155
    %v172 = vsub.f32 %v33, %v156
    %v173 = vsub.f32 %v34, %v157
    %v174 = vsub.f32 %v35, %v158
    %v175 = vsub.f32 %v36, %v159
    %v176 = vmul.f32 %v160, %v160
    %v177 = vmul.f32 %v161, %v161
    %v178 = vmul.f32 %v162, %v162
    %v179 = vmul.f32 %v163, %v163
    %v180 = vmul.f32 %v164, %v164
    %v181 = vmul.f32 %v165, %v165
    %v182 = vmul.f32 %v166, %v166
    %v183 = vmul.f32 %v167, %v167
    %v184 = vmul.f32 %v168, %v168
    %v185 = vmul.f32 %v169, %v169
    %v186 = vmul.f32 %v170, %v170
    %v187 = vmul.f32 %v171, %v171
    %v188 = vmul.f32 %v172, %v172
    %v189 = vmul.f32 %v173, %v173
    %v190 = vmul.f32 %v174, %v174
    %v191 = vmul.f32 %v175, %v175
    %v192 = vrot.slane %v176, 4
    %v193 = vadd.f32 %v176, %v192
    %v194 = vrot.slane %v193, 2
    %v195 = vadd.f32 %v193, %v194
    %v196 = vrot.slane %v195, 1
    %v197 = vadd.f32 %v195, %v196
    %v198 = vrot.slane %v177, 4
    %v199 = vadd.f32 %v177, %v198
    %v200 = vrot.slane %v199, 2
    %v201 = vadd.f32 %v199, %v200
    %v202 = vrot.slane %v201, 1
    %v203 = vadd.f32 %v201, %v202
    %v204 = vrot.slane %v178, 4
    %v205 = vadd.f32 %v178, %v204
    %v206 = vrot.slane %v205, 2
    %v207 = vadd.f32 %v205, %v206
    %v208 = vrot.slane %v207, 1
    %v209 = vadd.f32 %v207, %v208
    %v210 = vrot.slane %v179, 4
    %v211 = vadd.f32 %v179, %v210
    %v212 = vrot.slane %v211, 2
    %v213 = vadd.f32 %v211, %v212
    %v214 = vrot.slane %v213, 1
    %v215 = vadd.f32 %v213, %v214
    %v216 = vrot.slane %v180, 4
    %v217 = vadd.f32 %v180, %v216
    %v218 = vrot.slane %v217, 2
    %v219 = vadd.f32 %v217, %v218
    %v220 = vrot.slane %v219, 1
    %v221 = vadd.f32 %v219, %v220
    %v222 = vrot.slane %v181, 4
    %v223 = vadd.f32 %v181, %v222
    %v224 = vrot.slane %v223, 2
    %v225 = vadd.f32 %v223, %v224
    %v226 = vrot.slane %v225, 1
    %v227 = vadd.f32 %v225, %v226
    %v228 = vrot.slane %v182, 4
    %v229 = vadd.f32 %v182, %v228
    %v230 = vrot.slane %v229, 2
    %v231 = vadd.f32 %v229, %v230
    %v232 = vrot.slane %v231, 1
    %v233 = vadd.f32 %v231, %v232
    %v234 = vrot.slane %v183, 4
    %v235 = vadd.f32 %v183, %v234
    %v236 = vrot.slane %v235, 2
    %v237 = vadd.f32 %v235, %v236
    %v238 = vrot.slane %v237, 1
    %v239 = vadd.f32 %v237, %v238
    %v240 = vrot.slane %v184, 4
    %v241 = vadd.f32 %v184, %v240
    %v242 = vrot.slane %v241, 2
    %v243 = vadd.f32 %v241, %v242
    %v244 = vrot.slane %v243, 1
    %v245 = vadd.f32 %v243, %v244
    %v246 = vrot.slane %v185, 4
    %v247 = vadd.f32 %v185, %v246
    %v248 = vrot.slane %v247, 2
    %v249 = vadd.f32 %v247, %v248
    %v250 = vrot.slane %v249, 1
    %v251 = vadd.f32 %v249, %v250
    %v252 = vrot.slane %v186, 4
    %v253 = vadd.f32 %v186, %v252
    %v254 = vrot.slane %v253, 2
    %v255 = vadd.f32 %v253, %v254
    %v256 = vrot.slane %v255, 1
    %v257 = vadd.f32 %v255, %v256
    %v258 = vrot.slane %v187, 4
    %v259 = vadd.f32 %v187, %v258
    %v260 = vrot.slane %v259, 2
    %v261 = vadd.f32 %v259, %v260
    %v262 = vrot.slane %v261, 1
    %v263 = vadd.f32 %v261, %v262
    %v264 = vrot.slane %v188, 4
    %v265 = vadd.f32 %v188, %v264
    %v266 = vrot.slane %v265, 2
    %v267 = vadd.f32 %v265, %v266
    %v268 = vrot.slane %v267, 1
    %v269 = vadd.f32 %v267, %v268
    %v270 = vrot.slane %v189, 4
    %v271 = vadd.f32 %v189, %v270
    %v272 = vrot.slane %v271, 2
    %v273 = vadd.f32 %v271, %v272
    %v274 = vrot.slane %v273, 1
    %v275 = vadd.f32 %v273, %v274
    %v276 = vrot.slane %v190, 4
    %v277 = vadd.f32 %v190, %v276
    %v278 = vrot.slane %v277, 2
    %v279 = vadd.f32 %v277, %v278
    %v280 = vrot.slane %v279, 1
    %v281 = vadd.f32 %v279, %v280
    %v282 = vrot.slane %v191, 4
    %v283 = vadd.f32 %v191, %v282
    %v284 = vrot.slane %v283, 2
    %v285 = vadd.f32 %v283, %v284
    %v286 = vrot.slane %v285, 1
    %v287 = vadd.f32 %v285, %v286
    %v288 = vmul.f32 %v197, %v143
    %v289 = vmul.f32 %v203, %v143
    %v290 = vmul.f32 %v209, %v143
    %v291 = vmul.f32 %v215, %v143
    %v292 = vmul.f32 %v221, %v143
    %v293 = vmul.f32 %v227, %v143
    %v294 = vmul.f32 %v233, %v143
    %v295 = vmul.f32 %v239, %v143
    %v296 = vmul.f32 %v245, %v143
    %v297 = vmul.f32 %v251, %v143
    %v298 = vmul.f32 %v257, %v143
    %v299 = vmul.f32 %v263, %v143
    %v300 = vmul.f32 %v269, %v143
    %v301 = vmul.f32 %v275, %v143
    %v302 = vmul.f32 %v281, %v143
    %v303 = vmul.f32 %v287, %v143
    %v304 = vadd.f32 %v288, 1e-05
    %v305 = vadd.f32 %v289, 1e-05
    %v306 = vadd.f32 %v290, 1e-05
    %v307 = vadd.f32 %v291, 1e-05
    %v308 = vadd.f32 %v292, 1e-05
    %v309 = vadd.f32 %v293, 1e-05
    %v310 = vadd.f32 %v294, 1e-05
    %v311 = vadd.f32 %v295, 1e-05
    %v312 = vadd.f32 %v296, 1e-05
    %v313 = vadd.f32 %v297, 1e-05
    %v314 = vadd.f32 %v298, 1e-05
    %v315 = vadd.f32 %v299, 1e-05
    %v316 = vadd.f32 %v300, 1e-05
    %v317 = vadd.f32 %v301, 1e-05
    %v318 = vadd.f32 %v302, 1e-05
    %v319 = vadd.f32 %v303, 1e-05
    %v320 = vrsqrt.pop %v304
    %v321 = vmul.f32 %v320, %v304
    %v322 = vmul.f32 %v321, %v320
    %v323 = vmul.f32 0.5, %v322
    %v324 = vsub.f32 1.5, %v323
    %v325 = vmul.f32 %v320, %v324
    %vm326 = vweird.f32 %v304
    %vm327 = vweird.f32 %v320
    %vm328 = vmor %vm326, %vm327
    %v329 = vsel %vm328, %v320, %v325
    %v330 = vrsqrt.pop %v305
    %v331 = vmul.f32 %v330, %v305
    %v332 = vmul.f32 %v331, %v330
    %v333 = vmul.f32 0.5, %v332
    %v334 = vsub.f32 1.5, %v333
    %v335 = vmul.f32 %v330, %v334
    %vm336 = vweird.f32 %v305
    %vm337 = vweird.f32 %v330
    %vm338 = vmor %vm336, %vm337
    %v339 = vsel %vm338, %v330, %v335
    %v340 = vrsqrt.pop %v306
    %v341 = vmul.f32 %v340, %v306
    %v342 = vmul.f32 %v341, %v340
    %v343 = vmul.f32 0.5, %v342
    %v344 = vsub.f32 1.5, %v343
    %v345 = vmul.f32 %v340, %v344
    %vm346 = vweird.f32 %v306
    %vm347 = vweird.f32 %v340
    %vm348 = vmor %vm346, %vm347
    %v349 = vsel %vm348, %v340, %v345
    %v350 = vrsqrt.pop %v307
    %v351 = vmul.f32 %v350, %v307
    %v352 = vmul.f32 %v351, %v350
    %v353 = vmul.f32 0.5, %v352
    %v354 = vsub.f32 1.5, %v353
    %v355 = vmul.f32 %v350, %v354
    %vm356 = vweird.f32 %v307
    %vm357 = vweird.f32 %v350
    %vm358 = vmor %vm356, %vm357
    %v359 = vsel %vm358, %v350, %v355
    %v360 = vrsqrt.pop %v308
    %v361 = vmul.f32 %v360, %v308
    %v362 = vmul.f32 %v361, %v360
    %v363 = vmul.f32 0.5, %v362
    %v364 = vsub.f32 1.5, %v363
    %v365 = vmul.f32 %v360, %v364
    %vm366 = vweird.f32 %v308
    %vm367 = vweird.f32 %v360
    %vm368 = vmor %vm366, %vm367
    %v369 = vsel %vm368, %v360, %v365
    %v370 = vrsqrt.pop %v309
    %v371 = vmul.f32 %v370, %v309
    %v372 = vmul.f32 %v371, %v370
    %v373 = vmul.f32 0.5, %v372
    %v374 = vsub.f32 1.5, %v373
    %v375 = vmul.f32 %v370, %v374
    %vm376 = vweird.f32 %v309
    %vm377 = vweird.f32 %v370
    %vm378 = vmor %vm376, %vm377
    %v379 = vsel %vm378, %v370, %v375
    %v380 = vrsqrt.pop %v310
    %v381 = vmul.f32 %v380, %v310
    %v382 = vmul.f32 %v381, %v380
    %v383 = vmul.f32 0.5, %v382
    %v384 = vsub.f32 1.5, %v383
    %v385 = vmul.f32 %v380, %v384
    %vm386 = vweird.f32 %v310
    %vm387 = vweird.f32 %v380
    %vm388 = vmor %vm386, %vm387
    %v389 = vsel %vm388, %v380, %v385
    %v390 = vrsqrt.pop %v311
    %v391 = vmul.f32 %v390, %v311
    %v392 = vmul.f32 %v391, %v390
    %v393 = vmul.f32 0.5, %v392
    %v394 = vsub.f32 1.5, %v393
    %v395 = vmul.f32 %v390, %v394
    %vm396 = vweird.f32 %v311
    %vm397 = vweird.f32 %v390
    %vm398 = vmor %vm396, %vm397
    %v399 = vsel %vm398, %v390, %v395
    %v400 = vrsqrt.pop %v312
    %v401 = vmul.f32 %v400, %v312
    %v402 = vmul.f32 %v401, %v400
    %v403 = vmul.f32 0.5, %v402
    %v404 = vsub.f32 1.5, %v403
    %v405 = vmul.f32 %v400, %v404
    %vm406 = vweird.f32 %v312
    %vm407 = vweird.f32 %v400
    %vm408 = vmor %vm406, %vm407
    %v409 = vsel %vm408, %v400, %v405
    %v410 = vrsqrt.pop %v313
    %v411 = vmul.f32 %v410, %v313
    %v412 = vmul.f32 %v411, %v410
    %v413 = vmul.f32 0.5, %v412
    %v414 = vsub.f32 1.5, %v413
    %v415 = vmul.f32 %v410, %v414
    %vm416 = vweird.f32 %v313
    %vm417 = vweird.f32 %v410
    %vm418 = vmor %vm416, %vm417
    %v419 = vsel %vm418, %v410, %v415
    %v420 = vrsqrt.pop %v314
    %v421 = vmul.f32 %v420, %v314
    %v422 = vmul.f32 %v421, %v420
    %v423 = vmul.f32 0.5, %v422
    %v424 = vsub.f32 1.5, %v423
    %v425 = vmul.f32 %v420, %v424
    %vm426 = vweird.f32 %v314
    %vm427 = vweird.f32 %v420
    %vm428 = vmor %vm426, %vm427
    %v429 = vsel %vm428, %v420, %v425
    %v430 = vrsqrt.pop %v315
    %v431 = vmul.f32 %v430, %v315
    %v432 = vmul.f32 %v431, %v430
    %v433 = vmul.f32 0.5, %v432
    %v434 = vsub.f32 1.5, %v433
    %v435 = vmul.f32 %v430, %v434
    %vm436 = vweird.f32 %v315
    %vm437 = vweird.f32 %v430
    %vm438 = vmor %vm436, %vm437
    %v439 = vsel %vm438, %v430, %v435
    %v440 = vrsqrt.pop %v316
    %v441 = vmul.f32 %v440, %v316
    %v442 = vmul.f32 %v441, %v440
    %v443 = vmul.f32 0.5, %v442
    %v444 = vsub.f32 1.5, %v443
    %v445 = vmul.f32 %v440, %v444
    %vm446 = vweird.f32 %v316
    %vm447 = vweird.f32 %v440
    %vm448 = vmor %vm446, %vm447
    %v449 = vsel %vm448, %v440, %v445
    %v450 = vrsqrt.pop %v317
    %v451 = vmul.f32 %v450, %v317
    %v452 = vmul.f32 %v451, %v450
    %v453 = vmul.f32 0.5, %v452
    %v454 = vsub.f32 1.5, %v453
    %v455 = vmul.f32 %v450, %v454
    %vm456 = vweird.f32 %v317
    %vm457 = vweird.f32 %v450
    %vm458 = vmor %vm456, %vm457
    %v459 = vsel %vm458, %v450, %v455
    %v460 = vrsqrt.pop %v318
    %v461 = vmul.f32 %v460, %v318
    %v462 = vmul.f32 %v461, %v460
    %v463 = vmul.f32 0.5, %v462
    %v464 = vsub.f32 1.5, %v463
    %v465 = vmul.f32 %v460, %v464
    %vm466 = vweird.f32 %v318
    %vm467 = vweird.f32 %v460
    %vm468 = vmor %vm466, %vm467
    %v469 = vsel %vm468, %v460, %v465
    %v470 = vrsqrt.pop %v319
    %v471 = vmul.f32 %v470, %v319
    %v472 = vmul.f32 %v471, %v470
    %v473 = vmul.f32 0.5, %v472
    %v474 = vsub.f32 1.5, %v473
    %v475 = vmul.f32 %v470, %v474
    %vm476 = vweird.f32 %v319
    %vm477 = vweird.f32 %v470
    %vm478 = vmor %vm476, %vm477
    %v479 = vsel %vm478, %v470, %v475
    %v480 = vmul.f32 %v160, %v329
    %v481 = vmul.f32 %v161, %v339
    %v482 = vmul.f32 %v162, %v349
    %v483 = vmul.f32 %v163, %v359
    %v484 = vmul.f32 %v164, %v369
    %v485 = vmul.f32 %v165, %v379
    %v486 = vmul.f32 %v166, %v389
    %v487 = vmul.f32 %v167, %v399
    %v488 = vmul.f32 %v168, %v409
    %v489 = vmul.f32 %v169, %v419
    %v490 = vmul.f32 %v170, %v429
    %v491 = vmul.f32 %v171, %v439
    %v492 = vmul.f32 %v172, %v449
    %v493 = vmul.f32 %v173, %v459
    %v494 = vmul.f32 %v174, %v469
    %v495 = vmul.f32 %v175, %v479
    %v498 = vperm.slane %v37, 0
    %v499 = vperm.slane %v37, 1
    %v500 = vperm.slane %v37, 2
    %v501 = vperm.slane %v37, 3
    %v502 = vperm.slane %v37, 4
    %v503 = vperm.slane %v37, 5
    %v504 = vperm.slane %v37, 6
    %v505 = vperm.slane %v37, 7
    %v506 = vperm.slane %v38, 0
    %v507 = vperm.slane %v38, 1
    %v508 = vperm.slane %v38, 2
    %v509 = vperm.slane %v38, 3
    %v510 = vperm.slane %v38, 4
    %v511 = vperm.slane %v38, 5
    %v512 = vperm.slane %v38, 6
    %v513 = vperm.slane %v38, 7
    %v530 = vmul.f32 %v480, %v498
    %v531 = vmul.f32 %v481, %v499
    %v532 = vmul.f32 %v482, %v500
    %v533 = vmul.f32 %v483, %v501
    %v534 = vmul.f32 %v484, %v502
    %v535 = vmul.f32 %v485, %v503
    %v536 = vmul.f32 %v486, %v504
    %v537 = vmul.f32 %v487, %v505
    %v538 = vmul.f32 %v488, %v506
    %v539 = vmul.f32 %v489, %v507
    %v540 = vmul.f32 %v490, %v508
    %v541 = vmul.f32 %v491, %v509
    %v542 = vmul.f32 %v492, %v510
    %v543 = vmul.f32 %v493, %v511
    %v544 = vmul.f32 %v494, %v512
    %v545 = vmul.f32 %v495, %v513
    %v548 = vperm.slane %v39, 0
    %v549 = vperm.slane %v39, 1
    %v550 = vperm.slane %v39, 2
    %v551 = vperm.slane %v39, 3
    %v552 = vperm.slane %v39, 4
    %v553 = vperm.slane %v39, 5
    %v554 = vperm.slane %v39, 6
    %v555 = vperm.slane %v39, 7
    %v556 = vperm.slane %v40, 0
    %v557 = vperm.slane %v40, 1
    %v558 = vperm.slane %v40, 2
    %v559 = vperm.slane %v40, 3
    %v560 = vperm.slane %v40, 4
    %v561 = vperm.slane %v40, 5
    %v562 = vperm.slane %v40, 6
    %v563 = vperm.slane %v40, 7
    %v580 = vadd.f32 %v530, %v548
    %v581 = vadd.f32 %v531, %v549
    %v582 = vadd.f32 %v532, %v550
    %v583 = vadd.f32 %v533, %v551
    %v584 = vadd.f32 %v534, %v552
    %v585 = vadd.f32 %v535, %v553
    %v586 = vadd.f32 %v536, %v554
    %v587 = vadd.f32 %v537, %v555
    %v588 = vadd.f32 %v538, %v556
    %v589 = vadd.f32 %v539, %v557
    %v590 = vadd.f32 %v540, %v558
    %v591 = vadd.f32 %v541, %v559
    %v592 = vadd.f32 %v542, %v560
    %v593 = vadd.f32 %v543, %v561
    %v594 = vadd.f32 %v544, %v562
    %v595 = vadd.f32 %v545, %v563
    %v596 = vpack.c.bf16 %v580, %v580
    %v597 = vpack.c.bf16 %v581, %v581
    %v598 = vpack.c.bf16 %v582, %v582
    %v599 = vpack.c.bf16 %v583, %v583
    %v600 = vpack.c.bf16 %v584, %v584
    %v601 = vpack.c.bf16 %v585, %v585
    %v602 = vpack.c.bf16 %v586, %v586
    %v603 = vpack.c.bf16 %v587, %v587
    %v604 = vpack.c.bf16 %v588, %v588
    %v605 = vpack.c.bf16 %v589, %v589
    %v606 = vpack.c.bf16 %v590, %v590
    %v607 = vpack.c.bf16 %v591, %v591
    %v608 = vpack.c.bf16 %v592, %v592
    %v609 = vpack.c.bf16 %v593, %v593
    %v610 = vpack.c.bf16 %v594, %v594
    %v611 = vpack.c.bf16 %v595, %v595
    %v612 = vld [vmem:[%s3] sm:$0xf]
    %v613 = vld [vmem:[%s3 + $0x4] sm:$0xf]
    %v614 = vld [vmem:[%s3 + $0x8] sm:$0xf]
    %v615 = vld [vmem:[%s3 + $0xc] sm:$0xf]
    %v616 = vld [vmem:[%s3 + $0x10] sm:$0xf]
    %v617 = vld [vmem:[%s3 + $0x14] sm:$0xf]
    %v618 = vld [vmem:[%s3 + $0x18] sm:$0xf]
    %v619 = vld [vmem:[%s3 + $0x1c] sm:$0xf]
    %v620 = vld [vmem:[%s3 + $0x20] sm:$0xf]
    %v621 = vld [vmem:[%s3 + $0x24] sm:$0xf]
    %v622 = vld [vmem:[%s3 + $0x28] sm:$0xf]
    %v623 = vld [vmem:[%s3 + $0x2c] sm:$0xf]
    %v624 = vld [vmem:[%s3 + $0x30] sm:$0xf]
    %v625 = vld [vmem:[%s3 + $0x34] sm:$0xf]
    %v626 = vld [vmem:[%s3 + $0x38] sm:$0xf]
    %v627 = vld [vmem:[%s3 + $0x3c] sm:$0xf]
    %v628 = vld [vmem:[%s3 + $0x40] sm:$0xf]
    %v629 = vld [vmem:[%s3 + $0x44] sm:$0xf]
    %v630 = vld [vmem:[%s3 + $0x48] sm:$0xf]
    %v631 = vld [vmem:[%s3 + $0x4c] sm:$0xf]
    %v632 = vld [vmem:[%s3 + $0x50] sm:$0xf]
    %v633 = vld [vmem:[%s3 + $0x54] sm:$0xf]
    %v634 = vld [vmem:[%s3 + $0x58] sm:$0xf]
    %v635 = vld [vmem:[%s3 + $0x5c] sm:$0xf]
    %v636 = vld [vmem:[%s3 + $0x60] sm:$0xf]
    %v637 = vld [vmem:[%s3 + $0x64] sm:$0xf]
    %v638 = vld [vmem:[%s3 + $0x68] sm:$0xf]
    %v639 = vld [vmem:[%s3 + $0x6c] sm:$0xf]
    %v640 = vld [vmem:[%s3 + $0x70] sm:$0xf]
    %v641 = vld [vmem:[%s3 + $0x74] sm:$0xf]
    %v642 = vld [vmem:[%s3 + $0x78] sm:$0xf]
    %v643 = vld [vmem:[%s3 + $0x7c] sm:$0xf]
    %v644 = vld [vmem:[%s3 + $0x80] sm:$0xf]
    %v645 = vld [vmem:[%s3 + $0x84] sm:$0xf]
    %v646 = vld [vmem:[%s3 + $0x88] sm:$0xf]
    %v647 = vld [vmem:[%s3 + $0x8c] sm:$0xf]
    %v648 = vld [vmem:[%s3 + $0x90] sm:$0xf]
    %v649 = vld [vmem:[%s3 + $0x94] sm:$0xf]
    %v650 = vld [vmem:[%s3 + $0x98] sm:$0xf]
    %v651 = vld [vmem:[%s3 + $0x9c] sm:$0xf]
    %v652 = vld [vmem:[%s3 + $0xa0] sm:$0xf]
    %v653 = vld [vmem:[%s3 + $0xa4] sm:$0xf]
    %v654 = vld [vmem:[%s3 + $0xa8] sm:$0xf]
    %v655 = vld [vmem:[%s3 + $0xac] sm:$0xf]
    %v656 = vld [vmem:[%s3 + $0xb0] sm:$0xf]
    %v657 = vld [vmem:[%s3 + $0xb4] sm:$0xf]
    %v658 = vld [vmem:[%s3 + $0xb8] sm:$0xf]
    %v659 = vld [vmem:[%s3 + $0xbc] sm:$0xf]
    %v660 = vld [vmem:[%s3 + $0xc0] sm:$0xf]
    %v661 = vld [vmem:[%s3 + $0xc4] sm:$0xf]
    %v662 = vld [vmem:[%s3 + $0xc8] sm:$0xf]
    %v663 = vld [vmem:[%s3 + $0xcc] sm:$0xf]
    %v664 = vld [vmem:[%s3 + $0xd0] sm:$0xf]
    %v665 = vld [vmem:[%s3 + $0xd4] sm:$0xf]
    %v666 = vld [vmem:[%s3 + $0xd8] sm:$0xf]
    %v667 = vld [vmem:[%s3 + $0xdc] sm:$0xf]
    %v668 = vld [vmem:[%s3 + $0xe0] sm:$0xf]
    %v669 = vld [vmem:[%s3 + $0xe4] sm:$0xf]
    %v670 = vld [vmem:[%s3 + $0xe8] sm:$0xf]
    %v671 = vld [vmem:[%s3 + $0xec] sm:$0xf]
    %v672 = vld [vmem:[%s3 + $0xf0] sm:$0xf]
    %v673 = vld [vmem:[%s3 + $0xf4] sm:$0xf]
    %v674 = vld [vmem:[%s3 + $0xf8] sm:$0xf]
    %v675 = vld [vmem:[%s3 + $0xfc] sm:$0xf]
    %v676 = vld [vmem:[%s3 + $0x100] sm:$0xf]
    %v677 = vld [vmem:[%s3 + $0x104] sm:$0xf]
    %v678 = vld [vmem:[%s3 + $0x108] sm:$0xf]
    %v679 = vld [vmem:[%s3 + $0x10c] sm:$0xf]
    %v680 = vld [vmem:[%s3 + $0x110] sm:$0xf]
    %v681 = vld [vmem:[%s3 + $0x114] sm:$0xf]
    %v682 = vld [vmem:[%s3 + $0x118] sm:$0xf]
    %v683 = vld [vmem:[%s3 + $0x11c] sm:$0xf]
    %v684 = vld [vmem:[%s3 + $0x120] sm:$0xf]
    %v685 = vld [vmem:[%s3 + $0x124] sm:$0xf]
    %v686 = vld [vmem:[%s3 + $0x128] sm:$0xf]
    %v687 = vld [vmem:[%s3 + $0x12c] sm:$0xf]
    %v688 = vld [vmem:[%s3 + $0x130] sm:$0xf]
    %v689 = vld [vmem:[%s3 + $0x134] sm:$0xf]
    %v690 = vld [vmem:[%s3 + $0x138] sm:$0xf]
    %v691 = vld [vmem:[%s3 + $0x13c] sm:$0xf]
    %v692 = vld [vmem:[%s3 + $0x140] sm:$0xf]
    %v693 = vld [vmem:[%s3 + $0x144] sm:$0xf]
    %v694 = vld [vmem:[%s3 + $0x148] sm:$0xf]
    %v695 = vld [vmem:[%s3 + $0x14c] sm:$0xf]
    %v696 = vld [vmem:[%s3 + $0x150] sm:$0xf]
    %v697 = vld [vmem:[%s3 + $0x154] sm:$0xf]
    %v698 = vld [vmem:[%s3 + $0x158] sm:$0xf]
    %v699 = vld [vmem:[%s3 + $0x15c] sm:$0xf]
    %v700 = vld [vmem:[%s3 + $0x160] sm:$0xf]
    %v701 = vld [vmem:[%s3 + $0x164] sm:$0xf]
    %v702 = vld [vmem:[%s3 + $0x168] sm:$0xf]
    %v703 = vld [vmem:[%s3 + $0x16c] sm:$0xf]
    %v704 = vld [vmem:[%s3 + $0x170] sm:$0xf]
    %v705 = vld [vmem:[%s3 + $0x174] sm:$0xf]
    %v706 = vld [vmem:[%s3 + $0x178] sm:$0xf]
    %v707 = vld [vmem:[%s3 + $0x17c] sm:$0xf]
    %v708 = vld [vmem:[%s3 + $0x180] sm:$0xf]
    %v709 = vld [vmem:[%s3 + $0x184] sm:$0xf]
    %v710 = vld [vmem:[%s3 + $0x188] sm:$0xf]
    %v711 = vld [vmem:[%s3 + $0x18c] sm:$0xf]
    %v712 = vld [vmem:[%s3 + $0x190] sm:$0xf]
    %v713 = vld [vmem:[%s3 + $0x194] sm:$0xf]
    %v714 = vld [vmem:[%s3 + $0x198] sm:$0xf]
    %v715 = vld [vmem:[%s3 + $0x19c] sm:$0xf]
    %v716 = vld [vmem:[%s3 + $0x1a0] sm:$0xf]
    %v717 = vld [vmem:[%s3 + $0x1a4] sm:$0xf]
    %v718 = vld [vmem:[%s3 + $0x1a8] sm:$0xf]
    %v719 = vld [vmem:[%s3 + $0x1ac] sm:$0xf]
    %v720 = vld [vmem:[%s3 + $0x1b0] sm:$0xf]
    %v721 = vld [vmem:[%s3 + $0x1b4] sm:$0xf]
    %v722 = vld [vmem:[%s3 + $0x1b8] sm:$0xf]
    %v723 = vld [vmem:[%s3 + $0x1bc] sm:$0xf]
    %v724 = vld [vmem:[%s3 + $0x1c0] sm:$0xf]
    %v725 = vld [vmem:[%s3 + $0x1c4] sm:$0xf]
    %v726 = vld [vmem:[%s3 + $0x1c8] sm:$0xf]
    %v727 = vld [vmem:[%s3 + $0x1cc] sm:$0xf]
    %v728 = vld [vmem:[%s3 + $0x1d0] sm:$0xf]
    %v729 = vld [vmem:[%s3 + $0x1d4] sm:$0xf]
    %v730 = vld [vmem:[%s3 + $0x1d8] sm:$0xf]
    %v731 = vld [vmem:[%s3 + $0x1dc] sm:$0xf]
    %v732 = vld [vmem:[%s3 + $0x1e0] sm:$0xf]
    %v733 = vld [vmem:[%s3 + $0x1e4] sm:$0xf]
    %v734 = vld [vmem:[%s3 + $0x1e8] sm:$0xf]
    %v735 = vld [vmem:[%s3 + $0x1ec] sm:$0xf]
    %v736 = vld [vmem:[%s3 + $0x1f0] sm:$0xf]
    %v737 = vld [vmem:[%s3 + $0x1f4] sm:$0xf]
    %v738 = vld [vmem:[%s3 + $0x1f8] sm:$0xf]
    %v739 = vld [vmem:[%s3 + $0x1fc] sm:$0xf]
    %v740 = vld [vmem:[%s3 + $0x200] sm:$0xf]
    %v741 = vld [vmem:[%s3 + $0x204] sm:$0xf]
    %v742 = vld [vmem:[%s3 + $0x208] sm:$0xf]
    %v743 = vld [vmem:[%s3 + $0x20c] sm:$0xf]
    %v744 = vld [vmem:[%s3 + $0x210] sm:$0xf]
    %v745 = vld [vmem:[%s3 + $0x214] sm:$0xf]
    %v746 = vld [vmem:[%s3 + $0x218] sm:$0xf]
    %v747 = vld [vmem:[%s3 + $0x21c] sm:$0xf]
    %v748 = vld [vmem:[%s3 + $0x220] sm:$0xf]
    %v749 = vld [vmem:[%s3 + $0x224] sm:$0xf]
    %v750 = vld [vmem:[%s3 + $0x228] sm:$0xf]
    %v751 = vld [vmem:[%s3 + $0x22c] sm:$0xf]
    %v752 = vld [vmem:[%s3 + $0x230] sm:$0xf]
    %v753 = vld [vmem:[%s3 + $0x234] sm:$0xf]
    %v754 = vld [vmem:[%s3 + $0x238] sm:$0xf]
    %v755 = vld [vmem:[%s3 + $0x23c] sm:$0xf]
    %v756 = vld [vmem:[%s3 + $0x240] sm:$0xf]
    %v757 = vld [vmem:[%s3 + $0x244] sm:$0xf]
    %v758 = vld [vmem:[%s3 + $0x248] sm:$0xf]
    %v759 = vld [vmem:[%s3 + $0x24c] sm:$0xf]
    %v760 = vld [vmem:[%s3 + $0x250] sm:$0xf]
    %v761 = vld [vmem:[%s3 + $0x254] sm:$0xf]
    %v762 = vld [vmem:[%s3 + $0x258] sm:$0xf]
    %v763 = vld [vmem:[%s3 + $0x25c] sm:$0xf]
    %v764 = vld [vmem:[%s3 + $0x260] sm:$0xf]
    %v765 = vld [vmem:[%s3 + $0x264] sm:$0xf]
    %v766 = vld [vmem:[%s3 + $0x268] sm:$0xf]
    %v767 = vld [vmem:[%s3 + $0x26c] sm:$0xf]
    %v768 = vld [vmem:[%s3 + $0x270] sm:$0xf]
    %v769 = vld [vmem:[%s3 + $0x274] sm:$0xf]
    %v770 = vld [vmem:[%s3 + $0x278] sm:$0xf]
    %v771 = vld [vmem:[%s3 + $0x27c] sm:$0xf]
    %v772 = vld [vmem:[%s3 + $0x280] sm:$0xf]
    %v773 = vld [vmem:[%s3 + $0x284] sm:$0xf]
    %v774 = vld [vmem:[%s3 + $0x288] sm:$0xf]
    %v775 = vld [vmem:[%s3 + $0x28c] sm:$0xf]
    %v776 = vld [vmem:[%s3 + $0x290] sm:$0xf]
    %v777 = vld [vmem:[%s3 + $0x294] sm:$0xf]
    %v778 = vld [vmem:[%s3 + $0x298] sm:$0xf]
    %v779 = vld [vmem:[%s3 + $0x29c] sm:$0xf]
    %v780 = vld [vmem:[%s3 + $0x2a0] sm:$0xf]
    %v781 = vld [vmem:[%s3 + $0x2a4] sm:$0xf]
    %v782 = vld [vmem:[%s3 + $0x2a8] sm:$0xf]
    %v783 = vld [vmem:[%s3 + $0x2ac] sm:$0xf]
    %v784 = vld [vmem:[%s3 + $0x2b0] sm:$0xf]
    %v785 = vld [vmem:[%s3 + $0x2b4] sm:$0xf]
    %v786 = vld [vmem:[%s3 + $0x2b8] sm:$0xf]
    %v787 = vld [vmem:[%s3 + $0x2bc] sm:$0xf]
    %v788 = vld [vmem:[%s3 + $0x2c0] sm:$0xf]
    %v789 = vld [vmem:[%s3 + $0x2c4] sm:$0xf]
    %v790 = vld [vmem:[%s3 + $0x2c8] sm:$0xf]
    %v791 = vld [vmem:[%s3 + $0x2cc] sm:$0xf]
    %v792 = vld [vmem:[%s3 + $0x2d0] sm:$0xf]
    %v793 = vld [vmem:[%s3 + $0x2d4] sm:$0xf]
    %v794 = vld [vmem:[%s3 + $0x2d8] sm:$0xf]
    %v795 = vld [vmem:[%s3 + $0x2dc] sm:$0xf]
    %v796 = vld [vmem:[%s3 + $0x2e0] sm:$0xf]
    %v797 = vld [vmem:[%s3 + $0x2e4] sm:$0xf]
    %v798 = vld [vmem:[%s3 + $0x2e8] sm:$0xf]
    %v799 = vld [vmem:[%s3 + $0x2ec] sm:$0xf]
    %v800 = vld [vmem:[%s3 + $0x2f0] sm:$0xf]
    %v801 = vld [vmem:[%s3 + $0x2f4] sm:$0xf]
    %v802 = vld [vmem:[%s3 + $0x2f8] sm:$0xf]
    %v803 = vld [vmem:[%s3 + $0x2fc] sm:$0xf]
    %v804 = vld [vmem:[%s3 + $0x300] sm:$0xf]
    %v805 = vld [vmem:[%s3 + $0x304] sm:$0xf]
    %v806 = vld [vmem:[%s3 + $0x308] sm:$0xf]
    %v807 = vld [vmem:[%s3 + $0x30c] sm:$0xf]
    %v808 = vld [vmem:[%s3 + $0x310] sm:$0xf]
    %v809 = vld [vmem:[%s3 + $0x314] sm:$0xf]
    %v810 = vld [vmem:[%s3 + $0x318] sm:$0xf]
    %v811 = vld [vmem:[%s3 + $0x31c] sm:$0xf]
    %v812 = vld [vmem:[%s3 + $0x320] sm:$0xf]
    %v813 = vld [vmem:[%s3 + $0x324] sm:$0xf]
    %v814 = vld [vmem:[%s3 + $0x328] sm:$0xf]
    %v815 = vld [vmem:[%s3 + $0x32c] sm:$0xf]
    %v816 = vld [vmem:[%s3 + $0x330] sm:$0xf]
    %v817 = vld [vmem:[%s3 + $0x334] sm:$0xf]
    %v818 = vld [vmem:[%s3 + $0x338] sm:$0xf]
    %v819 = vld [vmem:[%s3 + $0x33c] sm:$0xf]
    %v820 = vld [vmem:[%s3 + $0x340] sm:$0xf]
    %v821 = vld [vmem:[%s3 + $0x344] sm:$0xf]
    %v822 = vld [vmem:[%s3 + $0x348] sm:$0xf]
    %v823 = vld [vmem:[%s3 + $0x34c] sm:$0xf]
    %v824 = vld [vmem:[%s3 + $0x350] sm:$0xf]
    %v825 = vld [vmem:[%s3 + $0x354] sm:$0xf]
    %v826 = vld [vmem:[%s3 + $0x358] sm:$0xf]
    %v827 = vld [vmem:[%s3 + $0x35c] sm:$0xf]
    %v828 = vld [vmem:[%s3 + $0x360] sm:$0xf]
    %v829 = vld [vmem:[%s3 + $0x364] sm:$0xf]
    %v830 = vld [vmem:[%s3 + $0x368] sm:$0xf]
    %v831 = vld [vmem:[%s3 + $0x36c] sm:$0xf]
    %v832 = vld [vmem:[%s3 + $0x370] sm:$0xf]
    %v833 = vld [vmem:[%s3 + $0x374] sm:$0xf]
    %v834 = vld [vmem:[%s3 + $0x378] sm:$0xf]
    %v835 = vld [vmem:[%s3 + $0x37c] sm:$0xf]
    %v836 = vld [vmem:[%s3 + $0x380] sm:$0xf]
    %v837 = vld [vmem:[%s3 + $0x384] sm:$0xf]
    %v838 = vld [vmem:[%s3 + $0x388] sm:$0xf]
    %v839 = vld [vmem:[%s3 + $0x38c] sm:$0xf]
    %v840 = vld [vmem:[%s3 + $0x390] sm:$0xf]
    %v841 = vld [vmem:[%s3 + $0x394] sm:$0xf]
    %v842 = vld [vmem:[%s3 + $0x398] sm:$0xf]
    %v843 = vld [vmem:[%s3 + $0x39c] sm:$0xf]
    %v844 = vld [vmem:[%s3 + $0x3a0] sm:$0xf]
    %v845 = vld [vmem:[%s3 + $0x3a4] sm:$0xf]
    %v846 = vld [vmem:[%s3 + $0x3a8] sm:$0xf]
    %v847 = vld [vmem:[%s3 + $0x3ac] sm:$0xf]
    %v848 = vld [vmem:[%s3 + $0x3b0] sm:$0xf]
    %v849 = vld [vmem:[%s3 + $0x3b4] sm:$0xf]
    %v850 = vld [vmem:[%s3 + $0x3b8] sm:$0xf]
    %v851 = vld [vmem:[%s3 + $0x3bc] sm:$0xf]
    %v852 = vld [vmem:[%s3 + $0x3c0] sm:$0xf]
    %v853 = vld [vmem:[%s3 + $0x3c4] sm:$0xf]
    %v854 = vld [vmem:[%s3 + $0x3c8] sm:$0xf]
    %v855 = vld [vmem:[%s3 + $0x3cc] sm:$0xf]
    %v856 = vld [vmem:[%s3 + $0x3d0] sm:$0xf]
    %v857 = vld [vmem:[%s3 + $0x3d4] sm:$0xf]
    %v858 = vld [vmem:[%s3 + $0x3d8] sm:$0xf]
    %v859 = vld [vmem:[%s3 + $0x3dc] sm:$0xf]
    %v860 = vld [vmem:[%s3 + $0x3e0] sm:$0xf]
    %v861 = vld [vmem:[%s3 + $0x3e4] sm:$0xf]
    %v862 = vld [vmem:[%s3 + $0x3e8] sm:$0xf]
    %v863 = vld [vmem:[%s3 + $0x3ec] sm:$0xf]
    %v864 = vld [vmem:[%s3 + $0x3f0] sm:$0xf]
    %v865 = vld [vmem:[%s3 + $0x3f4] sm:$0xf]
    %v866 = vld [vmem:[%s3 + $0x3f8] sm:$0xf]
    %v867 = vld [vmem:[%s3 + $0x3fc] sm:$0xf]
    %v868 = vld [vmem:[%s4] sm:$0x1]
    %v870 = vperm.slane %v868, 0
    %v1128 = vunpack.c.l.b16 %v612
    %v1129 = vunpack.c.l.b16 %v613
    %v1130 = vunpack.c.l.b16 %v614
    %v1131 = vunpack.c.l.b16 %v615
    %v1132 = vunpack.c.l.b16 %v616
    %v1133 = vunpack.c.l.b16 %v617
    %v1134 = vunpack.c.l.b16 %v618
    %v1135 = vunpack.c.l.b16 %v619
    %v1136 = vunpack.c.l.b16 %v620
    %v1137 = vunpack.c.l.b16 %v621
    %v1138 = vunpack.c.l.b16 %v622
    %v1139 = vunpack.c.l.b16 %v623
    %v1140 = vunpack.c.l.b16 %v624
    %v1141 = vunpack.c.l.b16 %v625
    %v1142 = vunpack.c.l.b16 %v626
    %v1143 = vunpack.c.l.b16 %v627
    %v1144 = vunpack.c.l.b16 %v628
    %v1145 = vunpack.c.l.b16 %v629
    %v1146 = vunpack.c.l.b16 %v630
    %v1147 = vunpack.c.l.b16 %v631
    %v1148 = vunpack.c.l.b16 %v632
    %v1149 = vunpack.c.l.b16 %v633
    %v1150 = vunpack.c.l.b16 %v634
    %v1151 = vunpack.c.l.b16 %v635
    %v1152 = vunpack.c.l.b16 %v636
    %v1153 = vunpack.c.l.b16 %v637
    %v1154 = vunpack.c.l.b16 %v638
    %v1155 = vunpack.c.l.b16 %v639
    %v1156 = vunpack.c.l.b16 %v640
    %v1157 = vunpack.c.l.b16 %v641
    %v1158 = vunpack.c.l.b16 %v642
    %v1159 = vunpack.c.l.b16 %v643
    %v1160 = vunpack.c.l.b16 %v644
    %v1161 = vunpack.c.l.b16 %v645
    %v1162 = vunpack.c.l.b16 %v646
    %v1163 = vunpack.c.l.b16 %v647
    %v1164 = vunpack.c.l.b16 %v648
    %v1165 = vunpack.c.l.b16 %v649
    %v1166 = vunpack.c.l.b16 %v650
    %v1167 = vunpack.c.l.b16 %v651
    %v1168 = vunpack.c.l.b16 %v652
    %v1169 = vunpack.c.l.b16 %v653
    %v1170 = vunpack.c.l.b16 %v654
    %v1171 = vunpack.c.l.b16 %v655
    %v1172 = vunpack.c.l.b16 %v656
    %v1173 = vunpack.c.l.b16 %v657
    %v1174 = vunpack.c.l.b16 %v658
    %v1175 = vunpack.c.l.b16 %v659
    %v1176 = vunpack.c.l.b16 %v660
    %v1177 = vunpack.c.l.b16 %v661
    %v1178 = vunpack.c.l.b16 %v662
    %v1179 = vunpack.c.l.b16 %v663
    %v1180 = vunpack.c.l.b16 %v664
    %v1181 = vunpack.c.l.b16 %v665
    %v1182 = vunpack.c.l.b16 %v666
    %v1183 = vunpack.c.l.b16 %v667
    %v1184 = vunpack.c.l.b16 %v668
    %v1185 = vunpack.c.l.b16 %v669
    %v1186 = vunpack.c.l.b16 %v670
    %v1187 = vunpack.c.l.b16 %v671
    %v1188 = vunpack.c.l.b16 %v672
    %v1189 = vunpack.c.l.b16 %v673
    %v1190 = vunpack.c.l.b16 %v674
    %v1191 = vunpack.c.l.b16 %v675
    %v1192 = vunpack.c.l.b16 %v676
    %v1193 = vunpack.c.l.b16 %v677
    %v1194 = vunpack.c.l.b16 %v678
    %v1195 = vunpack.c.l.b16 %v679
    %v1196 = vunpack.c.l.b16 %v680
    %v1197 = vunpack.c.l.b16 %v681
    %v1198 = vunpack.c.l.b16 %v682
    %v1199 = vunpack.c.l.b16 %v683
    %v1200 = vunpack.c.l.b16 %v684
    %v1201 = vunpack.c.l.b16 %v685
    %v1202 = vunpack.c.l.b16 %v686
    %v1203 = vunpack.c.l.b16 %v687
    %v1204 = vunpack.c.l.b16 %v688
    %v1205 = vunpack.c.l.b16 %v689
    %v1206 = vunpack.c.l.b16 %v690
    %v1207 = vunpack.c.l.b16 %v691
    %v1208 = vunpack.c.l.b16 %v692
    %v1209 = vunpack.c.l.b16 %v693
    %v1210 = vunpack.c.l.b16 %v694
    %v1211 = vunpack.c.l.b16 %v695
    %v1212 = vunpack.c.l.b16 %v696
    %v1213 = vunpack.c.l.b16 %v697
    %v1214 = vunpack.c.l.b16 %v698
    %v1215 = vunpack.c.l.b16 %v699
    %v1216 = vunpack.c.l.b16 %v700
    %v1217 = vunpack.c.l.b16 %v701
    %v1218 = vunpack.c.l.b16 %v702
    %v1219 = vunpack.c.l.b16 %v703
    %v1220 = vunpack.c.l.b16 %v704
    %v1221 = vunpack.c.l.b16 %v705
    %v1222 = vunpack.c.l.b16 %v706
    %v1223 = vunpack.c.l.b16 %v707
    %v1224 = vunpack.c.l.b16 %v708
    %v1225 = vunpack.c.l.b16 %v709
    %v1226 = vunpack.c.l.b16 %v710
    %v1227 = vunpack.c.l.b16 %v711
    %v1228 = vunpack.c.l.b16 %v712
    %v1229 = vunpack.c.l.b16 %v713
    %v1230 = vunpack.c.l.b16 %v714
    %v1231 = vunpack.c.l.b16 %v715
    %v1232 = vunpack.c.l.b16 %v716
    %v1233 = vunpack.c.l.b16 %v717
    %v1234 = vunpack.c.l.b16 %v718
    %v1235 = vunpack.c.l.b16 %v719
    %v1236 = vunpack.c.l.b16 %v720
    %v1237 = vunpack.c.l.b16 %v721
    %v1238 = vunpack.c.l.b16 %v722
    %v1239 = vunpack.c.l.b16 %v723
    %v1240 = vunpack.c.l.b16 %v724
    %v1241 = vunpack.c.l.b16 %v725
    %v1242 = vunpack.c.l.b16 %v726
    %v1243 = vunpack.c.l.b16 %v727
    %v1244 = vunpack.c.l.b16 %v728
    %v1245 = vunpack.c.l.b16 %v729
    %v1246 = vunpack.c.l.b16 %v730
    %v1247 = vunpack.c.l.b16 %v731
    %v1248 = vunpack.c.l.b16 %v732
    %v1249 = vunpack.c.l.b16 %v733
    %v1250 = vunpack.c.l.b16 %v734
    %v1251 = vunpack.c.l.b16 %v735
    %v1252 = vunpack.c.l.b16 %v736
    %v1253 = vunpack.c.l.b16 %v737
    %v1254 = vunpack.c.l.b16 %v738
    %v1255 = vunpack.c.l.b16 %v739
    %v1256 = vunpack.c.l.b16 %v740
    %v1257 = vunpack.c.l.b16 %v741
    %v1258 = vunpack.c.l.b16 %v742
    %v1259 = vunpack.c.l.b16 %v743
    %v1260 = vunpack.c.l.b16 %v744
    %v1261 = vunpack.c.l.b16 %v745
    %v1262 = vunpack.c.l.b16 %v746
    %v1263 = vunpack.c.l.b16 %v747
    %v1264 = vunpack.c.l.b16 %v748
    %v1265 = vunpack.c.l.b16 %v749
    %v1266 = vunpack.c.l.b16 %v750
    %v1267 = vunpack.c.l.b16 %v751
    %v1268 = vunpack.c.l.b16 %v752
    %v1269 = vunpack.c.l.b16 %v753
    %v1270 = vunpack.c.l.b16 %v754
    %v1271 = vunpack.c.l.b16 %v755
    %v1272 = vunpack.c.l.b16 %v756
    %v1273 = vunpack.c.l.b16 %v757
    %v1274 = vunpack.c.l.b16 %v758
    %v1275 = vunpack.c.l.b16 %v759
    %v1276 = vunpack.c.l.b16 %v760
    %v1277 = vunpack.c.l.b16 %v761
    %v1278 = vunpack.c.l.b16 %v762
    %v1279 = vunpack.c.l.b16 %v763
    %v1280 = vunpack.c.l.b16 %v764
    %v1281 = vunpack.c.l.b16 %v765
    %v1282 = vunpack.c.l.b16 %v766
    %v1283 = vunpack.c.l.b16 %v767
    %v1284 = vunpack.c.l.b16 %v768
    %v1285 = vunpack.c.l.b16 %v769
    %v1286 = vunpack.c.l.b16 %v770
    %v1287 = vunpack.c.l.b16 %v771
    %v1288 = vunpack.c.l.b16 %v772
    %v1289 = vunpack.c.l.b16 %v773
    %v1290 = vunpack.c.l.b16 %v774
    %v1291 = vunpack.c.l.b16 %v775
    %v1292 = vunpack.c.l.b16 %v776
    %v1293 = vunpack.c.l.b16 %v777
    %v1294 = vunpack.c.l.b16 %v778
    %v1295 = vunpack.c.l.b16 %v779
    %v1296 = vunpack.c.l.b16 %v780
    %v1297 = vunpack.c.l.b16 %v781
    %v1298 = vunpack.c.l.b16 %v782
    %v1299 = vunpack.c.l.b16 %v783
    %v1300 = vunpack.c.l.b16 %v784
    %v1301 = vunpack.c.l.b16 %v785
    %v1302 = vunpack.c.l.b16 %v786
    %v1303 = vunpack.c.l.b16 %v787
    %v1304 = vunpack.c.l.b16 %v788
    %v1305 = vunpack.c.l.b16 %v789
    %v1306 = vunpack.c.l.b16 %v790
    %v1307 = vunpack.c.l.b16 %v791
    %v1308 = vunpack.c.l.b16 %v792
    %v1309 = vunpack.c.l.b16 %v793
    %v1310 = vunpack.c.l.b16 %v794
    %v1311 = vunpack.c.l.b16 %v795
    %v1312 = vunpack.c.l.b16 %v796
    %v1313 = vunpack.c.l.b16 %v797
    %v1314 = vunpack.c.l.b16 %v798
    %v1315 = vunpack.c.l.b16 %v799
    %v1316 = vunpack.c.l.b16 %v800
    %v1317 = vunpack.c.l.b16 %v801
    %v1318 = vunpack.c.l.b16 %v802
    %v1319 = vunpack.c.l.b16 %v803
    %v1320 = vunpack.c.l.b16 %v804
    %v1321 = vunpack.c.l.b16 %v805
    %v1322 = vunpack.c.l.b16 %v806
    %v1323 = vunpack.c.l.b16 %v807
    %v1324 = vunpack.c.l.b16 %v808
    %v1325 = vunpack.c.l.b16 %v809
    %v1326 = vunpack.c.l.b16 %v810
    %v1327 = vunpack.c.l.b16 %v811
    %v1328 = vunpack.c.l.b16 %v812
    %v1329 = vunpack.c.l.b16 %v813
    %v1330 = vunpack.c.l.b16 %v814
    %v1331 = vunpack.c.l.b16 %v815
    %v1332 = vunpack.c.l.b16 %v816
    %v1333 = vunpack.c.l.b16 %v817
    %v1334 = vunpack.c.l.b16 %v818
    %v1335 = vunpack.c.l.b16 %v819
    %v1336 = vunpack.c.l.b16 %v820
    %v1337 = vunpack.c.l.b16 %v821
    %v1338 = vunpack.c.l.b16 %v822
    %v1339 = vunpack.c.l.b16 %v823
    %v1340 = vunpack.c.l.b16 %v824
    %v1341 = vunpack.c.l.b16 %v825
    %v1342 = vunpack.c.l.b16 %v826
    %v1343 = vunpack.c.l.b16 %v827
    %v1344 = vunpack.c.l.b16 %v828
    %v1345 = vunpack.c.l.b16 %v829
    %v1346 = vunpack.c.l.b16 %v830
    %v1347 = vunpack.c.l.b16 %v831
    %v1348 = vunpack.c.l.b16 %v832
    %v1349 = vunpack.c.l.b16 %v833
    %v1350 = vunpack.c.l.b16 %v834
    %v1351 = vunpack.c.l.b16 %v835
    %v1352 = vunpack.c.l.b16 %v836
    %v1353 = vunpack.c.l.b16 %v837
    %v1354 = vunpack.c.l.b16 %v838
    %v1355 = vunpack.c.l.b16 %v839
    %v1356 = vunpack.c.l.b16 %v840
    %v1357 = vunpack.c.l.b16 %v841
    %v1358 = vunpack.c.l.b16 %v842
    %v1359 = vunpack.c.l.b16 %v843
    %v1360 = vunpack.c.l.b16 %v844
    %v1361 = vunpack.c.l.b16 %v845
    %v1362 = vunpack.c.l.b16 %v846
    %v1363 = vunpack.c.l.b16 %v847
    %v1364 = vunpack.c.l.b16 %v848
    %v1365 = vunpack.c.l.b16 %v849
    %v1366 = vunpack.c.l.b16 %v850
    %v1367 = vunpack.c.l.b16 %v851
    %v1368 = vunpack.c.l.b16 %v852
    %v1369 = vunpack.c.l.b16 %v853
    %v1370 = vunpack.c.l.b16 %v854
    %v1371 = vunpack.c.l.b16 %v855
    %v1372 = vunpack.c.l.b16 %v856
    %v1373 = vunpack.c.l.b16 %v857
    %v1374 = vunpack.c.l.b16 %v858
    %v1375 = vunpack.c.l.b16 %v859
    %v1376 = vunpack.c.l.b16 %v860
    %v1377 = vunpack.c.l.b16 %v861
    %v1378 = vunpack.c.l.b16 %v862
    %v1379 = vunpack.c.l.b16 %v863
    %v1380 = vunpack.c.l.b16 %v864
    %v1381 = vunpack.c.l.b16 %v865
    %v1382 = vunpack.c.l.b16 %v866
    %v1383 = vunpack.c.l.b16 %v867
    %v1384 = vpack.c.b16 %v1129, %v1128
    %v1385 = vpack.c.b16 %v1131, %v1130
    %v1386 = vpack.c.b16 %v1133, %v1132
    %v1387 = vpack.c.b16 %v1135, %v1134
    %v1388 = vpack.c.b16 %v1137, %v1136
    %v1389 = vpack.c.b16 %v1139, %v1138
    %v1390 = vpack.c.b16 %v1141, %v1140
    %v1391 = vpack.c.b16 %v1143, %v1142
    %v1392 = vpack.c.b16 %v1145, %v1144
    %v1393 = vpack.c.b16 %v1147, %v1146
    %v1394 = vpack.c.b16 %v1149, %v1148
    %v1395 = vpack.c.b16 %v1151, %v1150
    %v1396 = vpack.c.b16 %v1153, %v1152
    %v1397 = vpack.c.b16 %v1155, %v1154
    %v1398 = vpack.c.b16 %v1157, %v1156
    %v1399 = vpack.c.b16 %v1159, %v1158
    %v1400 = vpack.c.b16 %v1161, %v1160
    %v1401 = vpack.c.b16 %v1163, %v1162
    %v1402 = vpack.c.b16 %v1165, %v1164
    %v1403 = vpack.c.b16 %v1167, %v1166
    %v1404 = vpack.c.b16 %v1169, %v1168
    %v1405 = vpack.c.b16 %v1171, %v1170
    %v1406 = vpack.c.b16 %v1173, %v1172
    %v1407 = vpack.c.b16 %v1175, %v1174
    %v1408 = vpack.c.b16 %v1177, %v1176
    %v1409 = vpack.c.b16 %v1179, %v1178
    %v1410 = vpack.c.b16 %v1181, %v1180
    %v1411 = vpack.c.b16 %v1183, %v1182
    %v1412 = vpack.c.b16 %v1185, %v1184
    %v1413 = vpack.c.b16 %v1187, %v1186
    %v1414 = vpack.c.b16 %v1189, %v1188
    %v1415 = vpack.c.b16 %v1191, %v1190
    %v1416 = vpack.c.b16 %v1193, %v1192
    %v1417 = vpack.c.b16 %v1195, %v1194
    %v1418 = vpack.c.b16 %v1197, %v1196
    %v1419 = vpack.c.b16 %v1199, %v1198
    %v1420 = vpack.c.b16 %v1201, %v1200
    %v1421 = vpack.c.b16 %v1203, %v1202
    %v1422 = vpack.c.b16 %v1205, %v1204
    %v1423 = vpack.c.b16 %v1207, %v1206
    %v1424 = vpack.c.b16 %v1209, %v1208
    %v1425 = vpack.c.b16 %v1211, %v1210
    %v1426 = vpack.c.b16 %v1213, %v1212
    %v1427 = vpack.c.b16 %v1215, %v1214
    %v1428 = vpack.c.b16 %v1217, %v1216
    %v1429 = vpack.c.b16 %v1219, %v1218
    %v1430 = vpack.c.b16 %v1221, %v1220
    %v1431 = vpack.c.b16 %v1223, %v1222
    %v1432 = vpack.c.b16 %v1225, %v1224
    %v1433 = vpack.c.b16 %v1227, %v1226
    %v1434 = vpack.c.b16 %v1229, %v1228
    %v1435 = vpack.c.b16 %v1231, %v1230
    %v1436 = vpack.c.b16 %v1233, %v1232
    %v1437 = vpack.c.b16 %v1235, %v1234
    %v1438 = vpack.c.b16 %v1237, %v1236
    %v1439 = vpack.c.b16 %v1239, %v1238
    %v1440 = vpack.c.b16 %v1241, %v1240
    %v1441 = vpack.c.b16 %v1243, %v1242
    %v1442 = vpack.c.b16 %v1245, %v1244
    %v1443 = vpack.c.b16 %v1247, %v1246
    %v1444 = vpack.c.b16 %v1249, %v1248
    %v1445 = vpack.c.b16 %v1251, %v1250
    %v1446 = vpack.c.b16 %v1253, %v1252
    %v1447 = vpack.c.b16 %v1255, %v1254
    %v1448 = vpack.c.b16 %v1257, %v1256
    %v1449 = vpack.c.b16 %v1259, %v1258
    %v1450 = vpack.c.b16 %v1261, %v1260
    %v1451 = vpack.c.b16 %v1263, %v1262
    %v1452 = vpack.c.b16 %v1265, %v1264
    %v1453 = vpack.c.b16 %v1267, %v1266
    %v1454 = vpack.c.b16 %v1269, %v1268
    %v1455 = vpack.c.b16 %v1271, %v1270
    %v1456 = vpack.c.b16 %v1273, %v1272
    %v1457 = vpack.c.b16 %v1275, %v1274
    %v1458 = vpack.c.b16 %v1277, %v1276
    %v1459 = vpack.c.b16 %v1279, %v1278
    %v1460 = vpack.c.b16 %v1281, %v1280
    %v1461 = vpack.c.b16 %v1283, %v1282
    %v1462 = vpack.c.b16 %v1285, %v1284
    %v1463 = vpack.c.b16 %v1287, %v1286
    %v1464 = vpack.c.b16 %v1289, %v1288
    %v1465 = vpack.c.b16 %v1291, %v1290
    %v1466 = vpack.c.b16 %v1293, %v1292
    %v1467 = vpack.c.b16 %v1295, %v1294
    %v1468 = vpack.c.b16 %v1297, %v1296
    %v1469 = vpack.c.b16 %v1299, %v1298
    %v1470 = vpack.c.b16 %v1301, %v1300
    %v1471 = vpack.c.b16 %v1303, %v1302
    %v1472 = vpack.c.b16 %v1305, %v1304
    %v1473 = vpack.c.b16 %v1307, %v1306
    %v1474 = vpack.c.b16 %v1309, %v1308
    %v1475 = vpack.c.b16 %v1311, %v1310
    %v1476 = vpack.c.b16 %v1313, %v1312
    %v1477 = vpack.c.b16 %v1315, %v1314
    %v1478 = vpack.c.b16 %v1317, %v1316
    %v1479 = vpack.c.b16 %v1319, %v1318
    %v1480 = vpack.c.b16 %v1321, %v1320
    %v1481 = vpack.c.b16 %v1323, %v1322
    %v1482 = vpack.c.b16 %v1325, %v1324
    %v1483 = vpack.c.b16 %v1327, %v1326
    %v1484 = vpack.c.b16 %v1329, %v1328
    %v1485 = vpack.c.b16 %v1331, %v1330
    %v1486 = vpack.c.b16 %v1333, %v1332
    %v1487 = vpack.c.b16 %v1335, %v1334
    %v1488 = vpack.c.b16 %v1337, %v1336
    %v1489 = vpack.c.b16 %v1339, %v1338
    %v1490 = vpack.c.b16 %v1341, %v1340
    %v1491 = vpack.c.b16 %v1343, %v1342
    %v1492 = vpack.c.b16 %v1345, %v1344
    %v1493 = vpack.c.b16 %v1347, %v1346
    %v1494 = vpack.c.b16 %v1349, %v1348
    %v1495 = vpack.c.b16 %v1351, %v1350
    %v1496 = vpack.c.b16 %v1353, %v1352
    %v1497 = vpack.c.b16 %v1355, %v1354
    %v1498 = vpack.c.b16 %v1357, %v1356
    %v1499 = vpack.c.b16 %v1359, %v1358
    %v1500 = vpack.c.b16 %v1361, %v1360
    %v1501 = vpack.c.b16 %v1363, %v1362
    %v1502 = vpack.c.b16 %v1365, %v1364
    %v1503 = vpack.c.b16 %v1367, %v1366
    %v1504 = vpack.c.b16 %v1369, %v1368
    %v1505 = vpack.c.b16 %v1371, %v1370
    %v1506 = vpack.c.b16 %v1373, %v1372
    %v1507 = vpack.c.b16 %v1375, %v1374
    %v1508 = vpack.c.b16 %v1377, %v1376
    %v1509 = vpack.c.b16 %v1379, %v1378
    %v1510 = vpack.c.b16 %v1381, %v1380
    %v1511 = vpack.c.b16 %v1383, %v1382
    %1640 = vmatpush.bf16.msra.mxu0 %v1391
    %1641 = vmatpush.bf16.msra.mxu0 %v1390
    %1642 = vmatpush.bf16.msra.mxu0 %v1389
    %1643 = vmatpush.bf16.msra.mxu0 %v1388
    %1644 = vmatpush.bf16.msra.mxu0 %v1387
    %1645 = vmatpush.bf16.msra.mxu0 %v1386
    %1646 = vmatpush.bf16.msra.mxu0 %v1385
    %1647 = vmatpush.bf16.msra.mxu0 %v1384
    %1648 = vmatmul.bf16.gmra.mxu0 %v596
    %v1649 = vpop.f32.mrf.mxu0
    %v1650 = vadd.f32 %v870, %v1649
    %v1651 = vpop.f32.mrf.mxu0
    %1652 = vdwg.mxu0
    %1653 = vmatpush.bf16.msra.mxu0 %v1399
    %1654 = vmatpush.bf16.msra.mxu0 %v1398
    %1655 = vmatpush.bf16.msra.mxu0 %v1397
    %1656 = vmatpush.bf16.msra.mxu0 %v1396
    %1657 = vmatpush.bf16.msra.mxu0 %v1395
    %1658 = vmatpush.bf16.msra.mxu0 %v1394
    %1659 = vmatpush.bf16.msra.mxu0 %v1393
    %1660 = vmatpush.bf16.msra.mxu0 %v1392
    %1661 = vmatmul.bf16.gmra.mxu0 %v597
    %v1662 = vpop.f32.mrf.mxu0
    %v1663 = vadd.f32 %v1650, %v1662
    %v1664 = vpop.f32.mrf.mxu0
    %1665 = vdwg.mxu0
    %1666 = vmatpush.bf16.msra.mxu0 %v1407
    %1667 = vmatpush.bf16.msra.mxu0 %v1406
    %1668 = vmatpush.bf16.msra.mxu0 %v1405
    %1669 = vmatpush.bf16.msra.mxu0 %v1404
    %1670 = vmatpush.bf16.msra.mxu0 %v1403
    %1671 = vmatpush.bf16.msra.mxu0 %v1402
    %1672 = vmatpush.bf16.msra.mxu0 %v1401
    %1673 = vmatpush.bf16.msra.mxu0 %v1400
    %1674 = vmatmul.bf16.gmra.mxu0 %v598
    %v1675 = vpop.f32.mrf.mxu0
    %v1676 = vadd.f32 %v1663, %v1675
    %v1677 = vpop.f32.mrf.mxu0
    %1678 = vdwg.mxu0
    %1679 = vmatpush.bf16.msra.mxu0 %v1415
    %1680 = vmatpush.bf16.msra.mxu0 %v1414
    %1681 = vmatpush.bf16.msra.mxu0 %v1413
    %1682 = vmatpush.bf16.msra.mxu0 %v1412
    %1683 = vmatpush.bf16.msra.mxu0 %v1411
    %1684 = vmatpush.bf16.msra.mxu0 %v1410
    %1685 = vmatpush.bf16.msra.mxu0 %v1409
    %1686 = vmatpush.bf16.msra.mxu0 %v1408
    %1687 = vmatmul.bf16.gmra.mxu0 %v599
    %v1688 = vpop.f32.mrf.mxu0
    %v1689 = vadd.f32 %v1676, %v1688
    %v1690 = vpop.f32.mrf.mxu0
    %1691 = vdwg.mxu0
    %1692 = vmatpush.bf16.msra.mxu0 %v1423
    %1693 = vmatpush.bf16.msra.mxu0 %v1422
    %1694 = vmatpush.bf16.msra.mxu0 %v1421
    %1695 = vmatpush.bf16.msra.mxu0 %v1420
    %1696 = vmatpush.bf16.msra.mxu0 %v1419
    %1697 = vmatpush.bf16.msra.mxu0 %v1418
    %1698 = vmatpush.bf16.msra.mxu0 %v1417
    %1699 = vmatpush.bf16.msra.mxu0 %v1416
    %1700 = vmatmul.bf16.gmra.mxu0 %v600
    %v1701 = vpop.f32.mrf.mxu0
    %v1702 = vadd.f32 %v1689, %v1701
    %v1703 = vpop.f32.mrf.mxu0
    %1704 = vdwg.mxu0
    %1705 = vmatpush.bf16.msra.mxu0 %v1431
    %1706 = vmatpush.bf16.msra.mxu0 %v1430
    %1707 = vmatpush.bf16.msra.mxu0 %v1429
    %1708 = vmatpush.bf16.msra.mxu0 %v1428
    %1709 = vmatpush.bf16.msra.mxu0 %v1427
    %1710 = vmatpush.bf16.msra.mxu0 %v1426
    %1711 = vmatpush.bf16.msra.mxu0 %v1425
    %1712 = vmatpush.bf16.msra.mxu0 %v1424
    %1713 = vmatmul.bf16.gmra.mxu0 %v601
    %v1714 = vpop.f32.mrf.mxu0
    %v1715 = vadd.f32 %v1702, %v1714
    %v1716 = vpop.f32.mrf.mxu0
    %1717 = vdwg.mxu0
    %1718 = vmatpush.bf16.msra.mxu0 %v1439
    %1719 = vmatpush.bf16.msra.mxu0 %v1438
    %1720 = vmatpush.bf16.msra.mxu0 %v1437
    %1721 = vmatpush.bf16.msra.mxu0 %v1436
    %1722 = vmatpush.bf16.msra.mxu0 %v1435
    %1723 = vmatpush.bf16.msra.mxu0 %v1434
    %1724 = vmatpush.bf16.msra.mxu0 %v1433
    %1725 = vmatpush.bf16.msra.mxu0 %v1432
    %1726 = vmatmul.bf16.gmra.mxu0 %v602
    %v1727 = vpop.f32.mrf.mxu0
    %v1728 = vadd.f32 %v1715, %v1727
    %v1729 = vpop.f32.mrf.mxu0
    %1730 = vdwg.mxu0
    %1731 = vmatpush.bf16.msra.mxu0 %v1447
    %1732 = vmatpush.bf16.msra.mxu0 %v1446
    %1733 = vmatpush.bf16.msra.mxu0 %v1445
    %1734 = vmatpush.bf16.msra.mxu0 %v1444
    %1735 = vmatpush.bf16.msra.mxu0 %v1443
    %1736 = vmatpush.bf16.msra.mxu0 %v1442
    %1737 = vmatpush.bf16.msra.mxu0 %v1441
    %1738 = vmatpush.bf16.msra.mxu0 %v1440
    %1739 = vmatmul.bf16.gmra.mxu0 %v603
    %v1740 = vpop.f32.mrf.mxu0
    %v1741 = vadd.f32 %v1728, %v1740
    %v1742 = vpop.f32.mrf.mxu0
    %1743 = vdwg.mxu0
    %1744 = vmatpush.bf16.msra.mxu0 %v1455
    %1745 = vmatpush.bf16.msra.mxu0 %v1454
    %1746 = vmatpush.bf16.msra.mxu0 %v1453
    %1747 = vmatpush.bf16.msra.mxu0 %v1452
    %1748 = vmatpush.bf16.msra.mxu0 %v1451
    %1749 = vmatpush.bf16.msra.mxu0 %v1450
    %1750 = vmatpush.bf16.msra.mxu0 %v1449
    %1751 = vmatpush.bf16.msra.mxu0 %v1448
    %1752 = vmatmul.bf16.gmra.mxu0 %v604
    %v1753 = vpop.f32.mrf.mxu0
    %v1754 = vadd.f32 %v1741, %v1753
    %v1755 = vpop.f32.mrf.mxu0
    %1756 = vdwg.mxu0
    %1757 = vmatpush.bf16.msra.mxu0 %v1463
    %1758 = vmatpush.bf16.msra.mxu0 %v1462
    %1759 = vmatpush.bf16.msra.mxu0 %v1461
    %1760 = vmatpush.bf16.msra.mxu0 %v1460
    %1761 = vmatpush.bf16.msra.mxu0 %v1459
    %1762 = vmatpush.bf16.msra.mxu0 %v1458
    %1763 = vmatpush.bf16.msra.mxu0 %v1457
    %1764 = vmatpush.bf16.msra.mxu0 %v1456
    %1765 = vmatmul.bf16.gmra.mxu0 %v605
    %v1766 = vpop.f32.mrf.mxu0
    %v1767 = vadd.f32 %v1754, %v1766
    %v1768 = vpop.f32.mrf.mxu0
    %1769 = vdwg.mxu0
    %1770 = vmatpush.bf16.msra.mxu0 %v1471
    %1771 = vmatpush.bf16.msra.mxu0 %v1470
    %1772 = vmatpush.bf16.msra.mxu0 %v1469
    %1773 = vmatpush.bf16.msra.mxu0 %v1468
    %1774 = vmatpush.bf16.msra.mxu0 %v1467
    %1775 = vmatpush.bf16.msra.mxu0 %v1466
    %1776 = vmatpush.bf16.msra.mxu0 %v1465
    %1777 = vmatpush.bf16.msra.mxu0 %v1464
    %1778 = vmatmul.bf16.gmra.mxu0 %v606
    %v1779 = vpop.f32.mrf.mxu0
    %v1780 = vadd.f32 %v1767, %v1779
    %v1781 = vpop.f32.mrf.mxu0
    %1782 = vdwg.mxu0
    %1783 = vmatpush.bf16.msra.mxu0 %v1479
    %1784 = vmatpush.bf16.msra.mxu0 %v1478
    %1785 = vmatpush.bf16.msra.mxu0 %v1477
    %1786 = vmatpush.bf16.msra.mxu0 %v1476
    %1787 = vmatpush.bf16.msra.mxu0 %v1475
    %1788 = vmatpush.bf16.msra.mxu0 %v1474
    %1789 = vmatpush.bf16.msra.mxu0 %v1473
    %1790 = vmatpush.bf16.msra.mxu0 %v1472
    %1791 = vmatmul.bf16.gmra.mxu0 %v607
    %v1792 = vpop.f32.mrf.mxu0
    %v1793 = vadd.f32 %v1780, %v1792
    %v1794 = vpop.f32.mrf.mxu0
    %1795 = vdwg.mxu0
    %1796 = vmatpush.bf16.msra.mxu0 %v1487
    %1797 = vmatpush.bf16.msra.mxu0 %v1486
    %1798 = vmatpush.bf16.msra.mxu0 %v1485
    %1799 = vmatpush.bf16.msra.mxu0 %v1484
    %1800 = vmatpush.bf16.msra.mxu0 %v1483
    %1801 = vmatpush.bf16.msra.mxu0 %v1482
    %1802 = vmatpush.bf16.msra.mxu0 %v1481
    %1803 = vmatpush.bf16.msra.mxu0 %v1480
    %1804 = vmatmul.bf16.gmra.mxu0 %v608
    %v1805 = vpop.f32.mrf.mxu0
    %v1806 = vadd.f32 %v1793, %v1805
    %v1807 = vpop.f32.mrf.mxu0
    %1808 = vdwg.mxu0
    %1809 = vmatpush.bf16.msra.mxu0 %v1495
    %1810 = vmatpush.bf16.msra.mxu0 %v1494
    %1811 = vmatpush.bf16.msra.mxu0 %v1493
    %1812 = vmatpush.bf16.msra.mxu0 %v1492
    %1813 = vmatpush.bf16.msra.mxu0 %v1491
    %1814 = vmatpush.bf16.msra.mxu0 %v1490
    %1815 = vmatpush.bf16.msra.mxu0 %v1489
    %1816 = vmatpush.bf16.msra.mxu0 %v1488
    %1817 = vmatmul.bf16.gmra.mxu0 %v609
    %v1818 = vpop.f32.mrf.mxu0
    %v1819 = vadd.f32 %v1806, %v1818
    %v1820 = vpop.f32.mrf.mxu0
    %1821 = vdwg.mxu0
    %1822 = vmatpush.bf16.msra.mxu0 %v1503
    %1823 = vmatpush.bf16.msra.mxu0 %v1502
    %1824 = vmatpush.bf16.msra.mxu0 %v1501
    %1825 = vmatpush.bf16.msra.mxu0 %v1500
    %1826 = vmatpush.bf16.msra.mxu0 %v1499
    %1827 = vmatpush.bf16.msra.mxu0 %v1498
    %1828 = vmatpush.bf16.msra.mxu0 %v1497
    %1829 = vmatpush.bf16.msra.mxu0 %v1496
    %1830 = vmatmul.bf16.gmra.mxu0 %v610
    %v1831 = vpop.f32.mrf.mxu0
    %v1832 = vadd.f32 %v1819, %v1831
    %v1833 = vpop.f32.mrf.mxu0
    %1834 = vdwg.mxu0
    %1835 = vmatpush.bf16.msra.mxu0 %v1511
    %1836 = vmatpush.bf16.msra.mxu0 %v1510
    %1837 = vmatpush.bf16.msra.mxu0 %v1509
    %1838 = vmatpush.bf16.msra.mxu0 %v1508
    %1839 = vmatpush.bf16.msra.mxu0 %v1507
    %1840 = vmatpush.bf16.msra.mxu0 %v1506
    %1841 = vmatpush.bf16.msra.mxu0 %v1505
    %1842 = vmatpush.bf16.msra.mxu0 %v1504
    %1843 = vmatmul.bf16.gmra.mxu0 %v611
    %v1844 = vpop.f32.mrf.mxu0
    %v1845 = vadd.f32 %v1832, %v1844
    %v1846 = vpop.f32.mrf.mxu0
    %1847 = vdwg.mxu0
    %vm1848 = vcmask 130048
    %1849 = vst.msk [vmem:[#allocation2] sm:$0xff] %vm1848, %v1845
    // Predicated region
    $region22: #{dnn_forward.5} parent=1 // pred_check
      _
    $region23: #{dnn_forward.5} parent=1 // pred_check_branch
      %1851 = sbr.rel (0) target = $region25
    $region24: #{dnn_forward.5} parent=1 // pred_region
      %1853 = vsyncadd [#allocation3], 0
      %s1855 = sshll.u32 [#allocation2], 4
      %s1856 = int_to_ptr.vmem [resolvable:$true] %s1855
      %s1857 = sshll.u32 %s5, 4
      %s1858 = int_to_ptr.hbm [resolvable:$true] %s1857
      %1860 = dma.vmem_to_hbm [thread:$0]  %s1856, 128, %s1858, [#allocation3]
    $region25: #{dnn_forward.5} parent=1 // pred_fallthru
      _
    // Predicated region
    $region26: #{dnn_forward.5} parent=1 // pred_check
      _
    $region27: #{dnn_forward.5} parent=1 // pred_check_branch
      %1862 = sbr.rel (0) target = $region29
    $region28: #{dnn_forward.5} parent=1 // pred_region
      %1864 = dma.done [#allocation3], 128
    $region29: #{dnn_forward.5} parent=1 // pred_fallthru
      _
    %1865 = vsyncpa [#allocation3], 1

// kernel: dnn_forward.4
$region0: #{dnn_forward.4}
  #allocation0 [shape = 'u32[]', space=smem, size = 0x4, offset = 0x4, fixed_abs, tag = 'smem constant byte address 0x4 - core index']
  #allocation1 [shape = 'u32[72,128]{1,0:T(1,128)}', space=vmem, size = 0x9000, scoped, tag = 'internal scratch']
  #allocation2 [shape = 'bf16[8,2048]{1,0:T(8,128)(2,1)}', space=vmem, size = 0x8000, scoped, tag = 'scratch operand']
  %s0 = inlined_call_operand.vmem [shape: f32[8,2048], index: 0, kind: input, shape index: {}]
  %s1 = inlined_call_operand.hbm [shape: f32[5,1,2048], index: 1, kind: input, shape index: {}]
  %s2 = inlined_call_operand.hbm [shape: f32[5,1,2048], index: 2, kind: input, shape index: {}]
  %s3 = inlined_call_operand.hbm [shape: bf16[5,2048,2048], index: 3, kind: input, shape index: {}]
  %s4 = inlined_call_operand.hbm [shape: f32[5,1,2048], index: 4, kind: input, shape index: {}]
  %s5 = inlined_call_operand.vmem [shape: f32[8,2048], index: 5, kind: output, shape index: {}]
  %s6 = sld [smem:[#allocation0]]
  $region77: #{dnn_forward.4} parent=0
    _
  %s8 = ssub.s32 1, %s6
  %s9 = scalar_select 0, %s8, %s6
  $region1: #{dnn_forward.4} parent=0
    #allocation3 [shape = 'u8[16384]{0}', space=vmem, size = 0x4000, scoped, tag = 'input window, operand 1']
    #allocation4 [shape = 's32[2]{0}', space=sflag, size = 0x8, scoped, tag = 'scoped memory for dnn_forward.4']
    #allocation5 [shape = 'u8[16384]{0}', space=vmem, size = 0x4000, scoped, tag = 'input window, operand 2']
    #allocation6 [shape = 's32[2]{0}', space=sflag, size = 0x8, scoped, tag = 'scoped memory for dnn_forward.4']
    #allocation7 [shape = 'u8[8388608]{0}', space=vmem, size = 0x800000, scoped, tag = 'input window, operand 3']
    #allocation8 [shape = 'u8[8192]{0}', space=vmem, size = 0x2000, scoped, tag = 'input window, operand 4']
    #allocation9 [shape = 's32[2]{0}', space=sflag, size = 0x8, scoped, tag = 'scoped memory for dnn_forward.4']
    %10 = vsyncpa [#allocation4], 0
    %s11 = scalar_lea.sflag [#allocation4], 1
    %12 = vsyncpa %s11, 0
    %13 = vsyncpa [#allocation6], 0
    %s14 = scalar_lea.sflag [#allocation6], 1
    %15 = vsyncpa %s14, 0
    %16 = vsyncpa [#allocation9], 0
    %s17 = scalar_lea.sflag [#allocation9], 1
    %18 = vsyncpa %s17, 0
    loop: start=0, step=1, limit=12
    $region2: #{dnn_forward.4} parent=1 // loop_pre_header
      _
    $region3: #{dnn_forward.4} parent=1 // loop_header
      %s20 = sphi 0, %s24
      %p21 = scmp.ge.s32.totalorder %s20, 12
      %s27 = sphi 0, %s39
      %s28 = sphi 0, %s35
      %s29 = sphi 0, %s27
      %s30 = sphi 0, %s28
      %s31 = sphi 0, %s29
      %s32 = sphi 0, %s30
      %s40 = sphi 0, %s40
      %s42 = sphi 0, %s40
      %s43 = sphi 0, %s42
      %s57 = sphi 0, %s43
      %s63 = sphi 0, %s65
      %s66 = sphi 0, %s63
      %s67 = sphi 0, %s66
      %s83 = sphi 0, %s67
      %s89 = sphi 0, %s91
      %s92 = sphi 0, %s89
      %s93 = sphi 0, %s92
      %s109 = sphi 0, %s93
      %s117 = sphi 0, %s119
      %s120 = sphi 0, %s117
      %s121 = sphi 0, %s120
      %s137 = sphi 0, %s121
      %s145 = sphi 0, %s147
      %s148 = sphi 0, %s145
      %s149 = sphi 0, %s148
      %s165 = sphi 0, %s149
      %s169 = sphi 0, %s169
      %s171 = sphi 0, %s169
      %s172 = sphi 0, %s171
      %s186 = sphi 0, %s172
    $region4: #{dnn_forward.4} parent=1 // loop_header_branch
      %23 = sbr.rel (%p21) target = $region8
    $region5: #{dnn_forward.4} parent=1 // loop_body
      %s25 = ssub.s32 %s20, 1
      %s26 = ssub.s32 %s20, 2
      %s33 = sadd.s32 1, %s28
      %p34 = scmp.ge.s32.totalorder %s33, 2
      %s35 = scalar_select %p34, 0, %s33
      %s36 = sadd.s32 1, %s27
      %s37 = scalar_select %p34, %s36, %s27
      %p38 = scmp.ge.s32.totalorder %s37, 5
      %s39 = scalar_select %p38, 0, %s37
      %s41 = sadd.s32 %s40, 1
      %p44 = scmp.eq.s32.totalorder %s20, 9
      %p45 = scmp.ne.s32.totalorder %s40, %s42
      %p46 = scmp.eq.s32.totalorder %s20, 0
      %p47 = por %p45, %p46
      %p48 = scmp.ne.s32.totalorder %s40, %s42
      %p49 = scmp.eq.s32.totalorder %s25, 9
      %p50 = por %p48, %p49
      %p51 = scmp.ne.s32.totalorder %s42, %s43
      %p52 = scmp.eq.s32.totalorder %s25, 0
      %p53 = por %p51, %p52
      %p54 = scmp.ne.s32.totalorder %s42, %s43
      %p55 = scmp.eq.s32.totalorder %s26, 9
      %p56 = por %p54, %p55
      %p58 = scmp.ne.s32.totalorder %s43, %s57
      %p59 = scmp.eq.s32.totalorder %s26, 0
      %p60 = por %p58, %p59
      %s61 = ssub.s32 %s27, %s39
      %p62 = scmp.eq.s32.totalorder %s61, 0
      %s64 = sadd.s32 %s63, 1
      %s65 = scalar_select %p62, %s63, %s64
      %p68 = pneg %p62
      %p69 = scmp.eq.s32.totalorder %s20, 9
      %p70 = por %p68, %p69
      %p71 = scmp.ne.s32.totalorder %s63, %s66
      %p72 = scmp.eq.s32.totalorder %s20, 0
      %p73 = por %p71, %p72
      %p74 = scmp.ne.s32.totalorder %s63, %s66
      %p75 = scmp.eq.s32.totalorder %s25, 9
      %p76 = por %p74, %p75
      %p77 = scmp.ne.s32.totalorder %s66, %s67
      %p78 = scmp.eq.s32.totalorder %s25, 0
      %p79 = por %p77, %p78
      %p80 = scmp.ne.s32.totalorder %s66, %s67
      %p81 = scmp.eq.s32.totalorder %s26, 9
      %p82 = por %p80, %p81
      %p84 = scmp.ne.s32.totalorder %s67, %s83
      %p85 = scmp.eq.s32.totalorder %s26, 0
      %p86 = por %p84, %p85
      %s87 = ssub.s32 %s27, %s39
      %p88 = scmp.eq.s32.totalorder %s87, 0
      %s90 = sadd.s32 %s89, 1
      %s91 = scalar_select %p88, %s89, %s90
      %p94 = pneg %p88
      %p95 = scmp.eq.s32.totalorder %s20, 9
      %p96 = por %p94, %p95
      %p97 = scmp.ne.s32.totalorder %s89, %s92
      %p98 = scmp.eq.s32.totalorder %s20, 0
      %p99 = por %p97, %p98
      %p100 = scmp.ne.s32.totalorder %s89, %s92
      %p101 = scmp.eq.s32.totalorder %s25, 9
      %p102 = por %p100, %p101
      %p103 = scmp.ne.s32.totalorder %s92, %s93
      %p104 = scmp.eq.s32.totalorder %s25, 0
      %p105 = por %p103, %p104
      %p106 = scmp.ne.s32.totalorder %s92, %s93
      %p107 = scmp.eq.s32.totalorder %s26, 9
      %p108 = por %p106, %p107
      %p110 = scmp.ne.s32.totalorder %s93, %s109
      %p111 = scmp.eq.s32.totalorder %s26, 0
      %p112 = por %p110, %p111
      %s113 = ssub.s32 %s27, %s39
      %s114 = ssub.s32 %s28, %s35
      %s115 = sor.u32 %s113, %s114
      %p116 = scmp.eq.s32.totalorder %s115, 0
      %s118 = sadd.s32 %s117, 1
      %s119 = scalar_select %p116, %s117, %s118
      %p122 = pneg %p116
      %p123 = scmp.eq.s32.totalorder %s20, 9
      %p124 = por %p122, %p123
      %p125 = scmp.ne.s32.totalorder %s117, %s120
      %p126 = scmp.eq.s32.totalorder %s20, 0
      %p127 = por %p125, %p126
      %p128 = scmp.ne.s32.totalorder %s117, %s120
      %p129 = scmp.eq.s32.totalorder %s25, 9
      %p130 = por %p128, %p129
      %p131 = scmp.ne.s32.totalorder %s120, %s121
      %p132 = scmp.eq.s32.totalorder %s25, 0
      %p133 = por %p131, %p132
      %p134 = scmp.ne.s32.totalorder %s120, %s121
      %p135 = scmp.eq.s32.totalorder %s26, 9
      %p136 = por %p134, %p135
      %p138 = scmp.ne.s32.totalorder %s121, %s137
      %p139 = scmp.eq.s32.totalorder %s26, 0
      %p140 = por %p138, %p139
      %s141 = ssub.s32 %s27, %s39
      %s142 = ssub.s32 %s28, %s35
      %s143 = sor.u32 %s141, %s142
      %p144 = scmp.eq.s32.totalorder %s143, 0
      %s146 = sadd.s32 %s145, 1
      %s147 = scalar_select %p144, %s145, %s146
      %p150 = pneg %p144
      %p151 = scmp.eq.s32.totalorder %s20, 9
      %p152 = por %p150, %p151
      %p153 = scmp.ne.s32.totalorder %s145, %s148
      %p154 = scmp.eq.s32.totalorder %s20, 0
      %p155 = por %p153, %p154
      %p156 = scmp.ne.s32.totalorder %s145, %s148
      %p157 = scmp.eq.s32.totalorder %s25, 9
      %p158 = por %p156, %p157
      %p159 = scmp.ne.s32.totalorder %s148, %s149
      %p160 = scmp.eq.s32.totalorder %s25, 0
      %p161 = por %p159, %p160
      %p162 = scmp.ne.s32.totalorder %s148, %s149
      %p163 = scmp.eq.s32.totalorder %s26, 9
      %p164 = por %p162, %p163
      %p166 = scmp.ne.s32.totalorder %s149, %s165
      %p167 = scmp.eq.s32.totalorder %s26, 0
      %p168 = por %p166, %p167
      %s170 = sadd.s32 %s169, 1
      %p173 = scmp.eq.s32.totalorder %s20, 9
      %p174 = scmp.ne.s32.totalorder %s169, %s171
      %p175 = scmp.eq.s32.totalorder %s20, 0
      %p176 = por %p174, %p175
      %p177 = scmp.ne.s32.totalorder %s169, %s171
      %p178 = scmp.eq.s32.totalorder %s25, 9
      %p179 = por %p177, %p178
      %p180 = scmp.ne.s32.totalorder %s171, %s172
      %p181 = scmp.eq.s32.totalorder %s25, 0
      %p182 = por %p180, %p181
      %p183 = scmp.ne.s32.totalorder %s171, %s172
      %p184 = scmp.eq.s32.totalorder %s26, 9
      %p185 = por %p183, %p184
      %p187 = scmp.ne.s32.totalorder %s172, %s186
      %p188 = scmp.eq.s32.totalorder %s26, 0
      %p189 = por %p187, %p188
      %p190 = scmp.le.s32.totalorder 1, %s20
      %p191 = scmp.lt.s32.totalorder %s20, 11
      %p192 = pnand %p190, %p191
      %p193 = pneg %p192
      // Predicated region
      $region9: #{dnn_forward.4} parent=5 // pred_check
        _
      $region10: #{dnn_forward.4} parent=5 // pred_check_branch
        %195 = sbr.rel (%p192) target = $region12
      $region11: #{dnn_forward.4} parent=5 // pred_region
        %s196 = ssub.s32 %s20, 1
        // Predicated region
        $region13: #{dnn_forward.4} parent=11 // pred_check
          %p197 = pneg %p53
        $region14: #{dnn_forward.4} parent=11 // pred_check_branch
          %199 = sbr.rel (%p197) target = $region16
        $region15: #{dnn_forward.4} parent=11 // pred_region
          _
        $region16: #{dnn_forward.4} parent=11 // pred_fallthru
          _
      $region12: #{dnn_forward.4} parent=5 // pred_fallthru
        _
      %p200 = scmp.lt.s32.totalorder %s20, 10
      // Predicated region
      $region17: #{dnn_forward.4} parent=5 // pred_check
        %p201 = pneg %p200
      $region18: #{dnn_forward.4} parent=5 // pred_check_branch
        %203 = sbr.rel (%p201) target = $region20
      $region19: #{dnn_forward.4} parent=5 // pred_region
        // Predicated region
        $region21: #{dnn_forward.4} parent=19 // pred_check
          %p204 = pneg %p73
        $region22: #{dnn_forward.4} parent=19 // pred_check_branch
          %206 = sbr.rel (%p204) target = $region24
        $region23: #{dnn_forward.4} parent=19 // pred_region
          %s207 = sand.u32 %s63, 1
          %s208 = scalar_lea.sflag [#allocation4], %s207
          %s209 = sand.u32 %s63, 1
          %s210 = smul.addr %s209, 16
          %s211 = scalar_lea.vmem [#allocation3], %s210
          %213 = vsyncadd %s208, 0
          %s214 = smul.addr %s27, 16
          %s215 = scalar_lea.hbm %s1, %s214
          %s217 = sshll.u32 %s215, 4
          %s218 = int_to_ptr.hbm [resolvable:$true] %s217
          %s219 = sshll.u32 %s211, 4
          %s220 = int_to_ptr.vmem [resolvable:$true] %s219
          %222 = dma.hbm_to_vmem [thread:$0]  %s218, 256, %s220, %s208
        $region24: #{dnn_forward.4} parent=19 // pred_fallthru
          _
        // Predicated region
        $region25: #{dnn_forward.4} parent=19 // pred_check
          %p223 = pneg %p99
        $region26: #{dnn_forward.4} parent=19 // pred_check_branch
          %225 = sbr.rel (%p223) target = $region28
        $region27: #{dnn_forward.4} parent=19 // pred_region
          %s226 = sand.u32 %s20, 1
          %s227 = scalar_lea.sflag [#allocation6], %s226
          %s228 = sand.u32 %s89, 1
          %s229 = smul.addr %s228, 16
          %s230 = scalar_lea.vmem [#allocation5], %s229
          %232 = vsyncadd %s227, 0
          %s233 = smul.addr %s27, 16
          %s234 = scalar_lea.hbm %s2, %s233
          %s236 = sshll.u32 %s234, 4
          %s237 = int_to_ptr.hbm [resolvable:$true] %s236
          %s238 = sshll.u32 %s230, 4
          %s239 = int_to_ptr.vmem [resolvable:$true] %s238
          %241 = dma.hbm_to_vmem [thread:$0]  %s237, 256, %s239, %s227
        $region28: #{dnn_forward.4} parent=19 // pred_fallthru
          _
        // Predicated region
        $region29: #{dnn_forward.4} parent=19 // pred_check
          %p242 = pneg %p127
        $region30: #{dnn_forward.4} parent=19 // pred_check_branch
          %244 = sbr.rel (%p242) target = $region32
        $region31: #{dnn_forward.4} parent=19 // pred_region
          %s245 = sand.u32 %s20, 1
          %s246 = scalar_lea.sflag [#allocation6], %s245
          %s247 = sand.u32 %s117, 1
          %s248 = smul.addr %s247, 8192
          %s249 = scalar_lea.vmem [#allocation7], %s248
          %s250 = smul.u32 8, %s28
          %252 = vsyncadd %s246, 0
          %s253 = smul.addr %s27, 4096
          %s254 = sadd.s32 %s250, %s253
          %s255 = smul.addr %s254, 4
          %s256 = scalar_lea.hbm %s3, %s255
          %s257 = sshll.u32 %s256, 4
          %s258 = int_to_ptr.hbm [resolvable:$true] %s257
          %s259 = sshll.u32 %s249, 4
          %s260 = int_to_ptr.vmem [resolvable:$true] %s259
          %265 = dma.hbm_to_vmem [thread:$0]  %s258, 131072, %s260, %s246, 1024, 512, 32
        $region32: #{dnn_forward.4} parent=19 // pred_fallthru
          _
        // Predicated region
        $region33: #{dnn_forward.4} parent=19 // pred_check
          %p266 = pneg %p155
        $region34: #{dnn_forward.4} parent=19 // pred_check_branch
          %268 = sbr.rel (%p266) target = $region36
        $region35: #{dnn_forward.4} parent=19 // pred_region
          %s269 = sand.u32 %s145, 1
          %s270 = scalar_lea.sflag [#allocation9], %s269
          %s271 = sand.u32 %s145, 1
          %s272 = smul.addr %s271, 8
          %s273 = scalar_lea.vmem [#allocation8], %s272
          %s274 = smul.u32 8, %s28
          %276 = vsyncadd %s270, 0
          %s277 = smul.addr %s27, 16
          %s278 = sadd.s32 %s274, %s277
          %s279 = scalar_lea.hbm %s4, %s278
          %s281 = sshll.u32 %s279, 4
          %s282 = int_to_ptr.hbm [resolvable:$true] %s281
          %s283 = sshll.u32 %s273, 4
          %s284 = int_to_ptr.vmem [resolvable:$true] %s283
          %286 = dma.hbm_to_vmem [thread:$0]  %s282, 128, %s284, %s270
        $region36: #{dnn_forward.4} parent=19 // pred_fallthru
          _
      $region20: #{dnn_forward.4} parent=5 // pred_fallthru
        _
      %p287 = scmp.le.s32.totalorder 1, %s20
      %p288 = scmp.lt.s32.totalorder %s20, 11
      %p289 = pnand %p287, %p288
      %p290 = pneg %p289
      // Predicated region
      $region37: #{dnn_forward.4} parent=5 // pred_check
        _
      $region38: #{dnn_forward.4} parent=5 // pred_check_branch
        %292 = sbr.rel (%p289) target = $region40
      $region39: #{dnn_forward.4} parent=5 // pred_region
        %s293 = ssub.s32 %s20, 1
        %s294 = sand.u32 %s66, 1
        %s295 = scalar_lea.sflag [#allocation4], %s294
        %s296 = sand.u32 %s66, 1
        %s297 = smul.addr %s296, 16
        %s298 = scalar_lea.vmem [#allocation3], %s297
        // Predicated region
        $region41: #{dnn_forward.4} parent=39 // pred_check
          %p299 = pneg %p79
        $region42: #{dnn_forward.4} parent=39 // pred_check_branch
          %301 = sbr.rel (%p299) target = $region44
        $region43: #{dnn_forward.4} parent=39 // pred_region
          %303 = dma.done %s295, 256
        $region44: #{dnn_forward.4} parent=39 // pred_fallthru
          _
        %s304 = sand.u32 %s25, 1
        %s305 = scalar_lea.sflag [#allocation6], %s304
        %s306 = sand.u32 %s92, 1
        %s307 = smul.addr %s306, 16
        %s308 = scalar_lea.vmem [#allocation5], %s307
        // Predicated region
        $region45: #{dnn_forward.4} parent=39 // pred_check
          %p309 = pneg %p105
        $region46: #{dnn_forward.4} parent=39 // pred_check_branch
          %311 = sbr.rel (%p309) target = $region48
        $region47: #{dnn_forward.4} parent=39 // pred_region
          %313 = dma.done %s305, 256
        $region48: #{dnn_forward.4} parent=39 // pred_fallthru
          _
        %s314 = sand.u32 %s25, 1
        %s315 = scalar_lea.sflag [#allocation6], %s314
        %s316 = sand.u32 %s120, 1
        %s317 = smul.addr %s316, 8192
        %s318 = scalar_lea.vmem [#allocation7], %s317
        // Predicated region
        $region49: #{dnn_forward.4} parent=39 // pred_check
          %p319 = pneg %p133
        $region50: #{dnn_forward.4} parent=39 // pred_check_branch
          %321 = sbr.rel (%p319) target = $region52
        $region51: #{dnn_forward.4} parent=39 // pred_region
          %323 = dma.done %s315, 131072
        $region52: #{dnn_forward.4} parent=39 // pred_fallthru
          _
        %s324 = sand.u32 %s148, 1
        %s325 = scalar_lea.sflag [#allocation9], %s324
        %s326 = sand.u32 %s148, 1
        %s327 = smul.addr %s326, 8
        %s328 = scalar_lea.vmem [#allocation8], %s327
        // Predicated region
        $region53: #{dnn_forward.4} parent=39 // pred_check
          %p329 = pneg %p161
        $region54: #{dnn_forward.4} parent=39 // pred_check_branch
          %331 = sbr.rel (%p329) target = $region56
        $region55: #{dnn_forward.4} parent=39 // pred_region
          %333 = dma.done %s325, 128
        $region56: #{dnn_forward.4} parent=39 // pred_fallthru
          _
        %p334 = pneg %p53
        %p335 = pneg %p50
        %s336 = sand.u32 %s66, 1
        %s337 = scalar_lea.sflag [#allocation4], %s336
        %s338 = sand.u32 %s66, 1
        %s339 = smul.addr %s338, 16
        %s340 = scalar_lea.vmem [#allocation3], %s339
        %p341 = pneg %p79
        %p342 = pneg %p76
        %s343 = sand.u32 %s25, 1
        %s344 = scalar_lea.sflag [#allocation6], %s343
        %s345 = sand.u32 %s92, 1
        %s346 = smul.addr %s345, 16
        %s347 = scalar_lea.vmem [#allocation5], %s346
        %p348 = pneg %p105
        %p349 = pneg %p102
        %s350 = sand.u32 %s25, 1
        %s351 = scalar_lea.sflag [#allocation6], %s350
        %s352 = sand.u32 %s120, 1
        %s353 = smul.addr %s352, 8192
        %s354 = scalar_lea.vmem [#allocation7], %s353
        %p355 = pneg %p133
        %p356 = pneg %p130
        %s357 = sand.u32 %s148, 1
        %s358 = scalar_lea.sflag [#allocation9], %s357
        %s359 = sand.u32 %s148, 1
        %s360 = smul.addr %s359, 8
        %s361 = scalar_lea.vmem [#allocation8], %s360
        %p362 = pneg %p161
        %p363 = pneg %p158
        %p364 = pneg %p182
        %p365 = pneg %p179
        %s366 = smul.u32 8, %s30
        %s367 = smul.u32 8, %s30
        %p368 = scmp.eq.s32.totalorder %s29, 0
        %p369 = scmp.eq.s32.totalorder %s30, 0
        %p370 = pnand %p368, %p369
        %p371 = pneg %p370
        // Predicated region
        $region57: #{dnn_forward.4} parent=39 // pred_check
          _
        $region58: #{dnn_forward.4} parent=39 // pred_check_branch
          %373 = sbr.rel (%p370) target = $region60
        $region59: #{dnn_forward.4} parent=39 // pred_region
          %v374 = vld [vmem:[%s0] sm:$0xff]
          %v375 = vld [vmem:[%s0 + $0x8] sm:$0xff]
          %v376 = vld [vmem:[%s0 + $0x10] sm:$0xff]
          %v377 = vld [vmem:[%s0 + $0x18] sm:$0xff]
          %v378 = vld [vmem:[%s0 + $0x20] sm:$0xff]
          %v379 = vld [vmem:[%s0 + $0x28] sm:$0xff]
          %v380 = vld [vmem:[%s0 + $0x30] sm:$0xff]
          %v381 = vld [vmem:[%s0 + $0x38] sm:$0xff]
          %v382 = vld [vmem:[%s0 + $0x40] sm:$0xff]
          %v383 = vld [vmem:[%s0 + $0x48] sm:$0xff]
          %v384 = vld [vmem:[%s0 + $0x50] sm:$0xff]
          %v385 = vld [vmem:[%s0 + $0x58] sm:$0xff]
          %v386 = vld [vmem:[%s0 + $0x60] sm:$0xff]
          %v387 = vld [vmem:[%s0 + $0x68] sm:$0xff]
          %v388 = vld [vmem:[%s0 + $0x70] sm:$0xff]
          %v389 = vld [vmem:[%s0 + $0x78] sm:$0xff]
          %390 = vst [vmem:[%s5] sm:$0xff] %v374
          %391 = vst [vmem:[%s5 + $0x8] sm:$0xff] %v375
          %392 = vst [vmem:[%s5 + $0x10] sm:$0xff] %v376
          %393 = vst [vmem:[%s5 + $0x18] sm:$0xff] %v377
          %394 = vst [vmem:[%s5 + $0x20] sm:$0xff] %v378
          %395 = vst [vmem:[%s5 + $0x28] sm:$0xff] %v379
          %396 = vst [vmem:[%s5 + $0x30] sm:$0xff] %v380
          %397 = vst [vmem:[%s5 + $0x38] sm:$0xff] %v381
          %398 = vst [vmem:[%s5 + $0x40] sm:$0xff] %v382
          %399 = vst [vmem:[%s5 + $0x48] sm:$0xff] %v383
          %400 = vst [vmem:[%s5 + $0x50] sm:$0xff] %v384
          %401 = vst [vmem:[%s5 + $0x58] sm:$0xff] %v385
          %402 = vst [vmem:[%s5 + $0x60] sm:$0xff] %v386
          %403 = vst [vmem:[%s5 + $0x68] sm:$0xff] %v387
          %404 = vst [vmem:[%s5 + $0x70] sm:$0xff] %v388
          %405 = vst [vmem:[%s5 + $0x78] sm:$0xff] %v389
        $region60: #{dnn_forward.4} parent=39 // pred_fallthru
          _
        // Predicated region
        $region61: #{dnn_forward.4} parent=39 // pred_check
          %p406 = pneg %p369
        $region62: #{dnn_forward.4} parent=39 // pred_check_branch
          %408 = sbr.rel (%p406) target = $region64
        $region63: #{dnn_forward.4} parent=39 // pred_region
          %v409 = vld [vmem:[%s5] sm:$0xff]
          %v410 = vld [vmem:[%s5 + $0x8] sm:$0xff]
          %v411 = vld [vmem:[%s5 + $0x10] sm:$0xff]
          %v412 = vld [vmem:[%s5 + $0x18] sm:$0xff]
          %v413 = vld [vmem:[%s5 + $0x20] sm:$0xff]
          %v414 = vld [vmem:[%s5 + $0x28] sm:$0xff]
          %v415 = vld [vmem:[%s5 + $0x30] sm:$0xff]
          %v416 = vld [vmem:[%s5 + $0x38] sm:$0xff]
          %v417 = vld [vmem:[%s5 + $0x40] sm:$0xff]
          %v418 = vld [vmem:[%s5 + $0x48] sm:$0xff]
          %v419 = vld [vmem:[%s5 + $0x50] sm:$0xff]
          %v420 = vld [vmem:[%s5 + $0x58] sm:$0xff]
          %v421 = vld [vmem:[%s5 + $0x60] sm:$0xff]
          %v422 = vld [vmem:[%s5 + $0x68] sm:$0xff]
          %v423 = vld [vmem:[%s5 + $0x70] sm:$0xff]
          %v424 = vld [vmem:[%s5 + $0x78] sm:$0xff]
          %v425 = vld [vmem:[%s298] sm:$0xff]
          %v426 = vld [vmem:[%s298 + $0x8] sm:$0xff]
          %v427 = vld [vmem:[%s308] sm:$0xff]
          %v428 = vld [vmem:[%s308 + $0x8] sm:$0xff]
          %v429 = vrot.slane %v409, 4
          %v430 = vadd.f32 %v409, %v429
          %v431 = vrot.slane %v430, 2
          %v432 = vadd.f32 %v430, %v431
          %v433 = vrot.slane %v432, 1
          %v434 = vadd.f32 %v432, %v433
          %v435 = vrot.slane %v410, 4
          %v436 = vadd.f32 %v410, %v435
          %v437 = vrot.slane %v436, 2
          %v438 = vadd.f32 %v436, %v437
          %v439 = vrot.slane %v438, 1
          %v440 = vadd.f32 %v438, %v439
          %v441 = vrot.slane %v411, 4
          %v442 = vadd.f32 %v411, %v441
          %v443 = vrot.slane %v442, 2
          %v444 = vadd.f32 %v442, %v443
          %v445 = vrot.slane %v444, 1
          %v446 = vadd.f32 %v444, %v445
          %v447 = vrot.slane %v412, 4
          %v448 = vadd.f32 %v412, %v447
          %v449 = vrot.slane %v448, 2
          %v450 = vadd.f32 %v448, %v449
          %v451 = vrot.slane %v450, 1
          %v452 = vadd.f32 %v450, %v451
          %v453 = vrot.slane %v413, 4
          %v454 = vadd.f32 %v413, %v453
          %v455 = vrot.slane %v454, 2
          %v456 = vadd.f32 %v454, %v455
          %v457 = vrot.slane %v456, 1
          %v458 = vadd.f32 %v456, %v457
          %v459 = vrot.slane %v414, 4
          %v460 = vadd.f32 %v414, %v459
          %v461 = vrot.slane %v460, 2
          %v462 = vadd.f32 %v460, %v461
          %v463 = vrot.slane %v462, 1
          %v464 = vadd.f32 %v462, %v463
          %v465 = vrot.slane %v415, 4
          %v466 = vadd.f32 %v415, %v465
          %v467 = vrot.slane %v466, 2
          %v468 = vadd.f32 %v466, %v467
          %v469 = vrot.slane %v468, 1
          %v470 = vadd.f32 %v468, %v469
          %v471 = vrot.slane %v416, 4
          %v472 = vadd.f32 %v416, %v471
          %v473 = vrot.slane %v472, 2
          %v474 = vadd.f32 %v472, %v473
          %v475 = vrot.slane %v474, 1
          %v476 = vadd.f32 %v474, %v475
          %v477 = vrot.slane %v417, 4
          %v478 = vadd.f32 %v417, %v477
          %v479 = vrot.slane %v478, 2
          %v480 = vadd.f32 %v478, %v479
          %v481 = vrot.slane %v480, 1
          %v482 = vadd.f32 %v480, %v481
          %v483 = vrot.slane %v418, 4
          %v484 = vadd.f32 %v418, %v483
          %v485 = vrot.slane %v484, 2
          %v486 = vadd.f32 %v484, %v485
          %v487 = vrot.slane %v486, 1
          %v488 = vadd.f32 %v486, %v487
          %v489 = vrot.slane %v419, 4
          %v490 = vadd.f32 %v419, %v489
          %v491 = vrot.slane %v490, 2
          %v492 = vadd.f32 %v490, %v491
          %v493 = vrot.slane %v492, 1
          %v494 = vadd.f32 %v492, %v493
          %v495 = vrot.slane %v420, 4
          %v496 = vadd.f32 %v420, %v495
          %v497 = vrot.slane %v496, 2
          %v498 = vadd.f32 %v496, %v497
          %v499 = vrot.slane %v498, 1
          %v500 = vadd.f32 %v498, %v499
          %v501 = vrot.slane %v421, 4
          %v502 = vadd.f32 %v421, %v501
          %v503 = vrot.slane %v502, 2
          %v504 = vadd.f32 %v502, %v503
          %v505 = vrot.slane %v504, 1
          %v506 = vadd.f32 %v504, %v505
          %v507 = vrot.slane %v422, 4
          %v508 = vadd.f32 %v422, %v507
          %v509 = vrot.slane %v508, 2
          %v510 = vadd.f32 %v508, %v509
          %v511 = vrot.slane %v510, 1
          %v512 = vadd.f32 %v510, %v511
          %v513 = vrot.slane %v423, 4
          %v514 = vadd.f32 %v423, %v513
          %v515 = vrot.slane %v514, 2
          %v516 = vadd.f32 %v514, %v515
          %v517 = vrot.slane %v516, 1
          %v518 = vadd.f32 %v516, %v517
          %v519 = vrot.slane %v424, 4
          %v520 = vadd.f32 %v424, %v519
          %v521 = vrot.slane %v520, 2
          %v522 = vadd.f32 %v520, %v521
          %v523 = vrot.slane %v522, 1
          %v524 = vadd.f32 %v522, %v523
          %v525 = vrcp.pop 8.0
          %v526 = vmul.f32 8.0, %v525
          %v527 = vsub.f32 1.0, %v526
          %v528 = vmul.f32 %v525, %v527
          %v529 = vadd.f32 %v525, %v528
          %vm530 = vweird.f32 %v525
          %v531 = vsel %vm530, %v525, %v529
          %v532 = vmul.f32 %v434, %v531
          %v533 = vmul.f32 %v440, %v531
          %v534 = vmul.f32 %v446, %v531
          %v535 = vmul.f32 %v452, %v531
          %v536 = vmul.f32 %v458, %v531
          %v537 = vmul.f32 %v464, %v531
          %v538 = vmul.f32 %v470, %v531
          %v539 = vmul.f32 %v476, %v531
          %v540 = vmul.f32 %v482, %v531
          %v541 = vmul.f32 %v488, %v531
          %v542 = vmul.f32 %v494, %v531
          %v543 = vmul.f32 %v500, %v531
          %v544 = vmul.f32 %v506, %v531
          %v545 = vmul.f32 %v512, %v531
          %v546 = vmul.f32 %v518, %v531
          %v547 = vmul.f32 %v524, %v531
          %v548 = vsub.f32 %v409, %v532
          %v549 = vsub.f32 %v410, %v533
          %v550 = vsub.f32 %v411, %v534
          %v551 = vsub.f32 %v412, %v535
          %v552 = vsub.f32 %v413, %v536
          %v553 = vsub.f32 %v414, %v537
          %v554 = vsub.f32 %v415, %v538
          %v555 = vsub.f32 %v416, %v539
          %v556 = vsub.f32 %v417, %v540
          %v557 = vsub.f32 %v418, %v541
          %v558 = vsub.f32 %v419, %v542
          %v559 = vsub.f32 %v420, %v543
          %v560 = vsub.f32 %v421, %v544
          %v561 = vsub.f32 %v422, %v545
          %v562 = vsub.f32 %v423, %v546
          %v563 = vsub.f32 %v424, %v547
          %v564 = vmul.f32 %v548, %v548
          %v565 = vmul.f32 %v549, %v549
          %v566 = vmul.f32 %v550, %v550
          %v567 = vmul.f32 %v551, %v551
          %v568 = vmul.f32 %v552, %v552
          %v569 = vmul.f32 %v553, %v553
          %v570 = vmul.f32 %v554, %v554
          %v571 = vmul.f32 %v555, %v555
          %v572 = vmul.f32 %v556, %v556
          %v573 = vmul.f32 %v557, %v557
          %v574 = vmul.f32 %v558, %v558
          %v575 = vmul.f32 %v559, %v559
          %v576 = vmul.f32 %v560, %v560
          %v577 = vmul.f32 %v561, %v561
          %v578 = vmul.f32 %v562, %v562
          %v579 = vmul.f32 %v563, %v563
          %v580 = vrot.slane %v564, 4
          %v581 = vadd.f32 %v564, %v580
          %v582 = vrot.slane %v581, 2
          %v583 = vadd.f32 %v581, %v582
          %v584 = vrot.slane %v583, 1
          %v585 = vadd.f32 %v583, %v584
          %v586 = vrot.slane %v565, 4
          %v587 = vadd.f32 %v565, %v586
          %v588 = vrot.slane %v587, 2
          %v589 = vadd.f32 %v587, %v588
          %v590 = vrot.slane %v589, 1
          %v591 = vadd.f32 %v589, %v590
          %v592 = vrot.slane %v566, 4
          %v593 = vadd.f32 %v566, %v592
          %v594 = vrot.slane %v593, 2
          %v595 = vadd.f32 %v593, %v594
          %v596 = vrot.slane %v595, 1
          %v597 = vadd.f32 %v595, %v596
          %v598 = vrot.slane %v567, 4
          %v599 = vadd.f32 %v567, %v598
          %v600 = vrot.slane %v599, 2
          %v601 = vadd.f32 %v599, %v600
          %v602 = vrot.slane %v601, 1
          %v603 = vadd.f32 %v601, %v602
          %v604 = vrot.slane %v568, 4
          %v605 = vadd.f32 %v568, %v604
          %v606 = vrot.slane %v605, 2
          %v607 = vadd.f32 %v605, %v606
          %v608 = vrot.slane %v607, 1
          %v609 = vadd.f32 %v607, %v608
          %v610 = vrot.slane %v569, 4
          %v611 = vadd.f32 %v569, %v610
          %v612 = vrot.slane %v611, 2
          %v613 = vadd.f32 %v611, %v612
          %v614 = vrot.slane %v613, 1
          %v615 = vadd.f32 %v613, %v614
          %v616 = vrot.slane %v570, 4
          %v617 = vadd.f32 %v570, %v616
          %v618 = vrot.slane %v617, 2
          %v619 = vadd.f32 %v617, %v618
          %v620 = vrot.slane %v619, 1
          %v621 = vadd.f32 %v619, %v620
          %v622 = vrot.slane %v571, 4
          %v623 = vadd.f32 %v571, %v622
          %v624 = vrot.slane %v623, 2
          %v625 = vadd.f32 %v623, %v624
          %v626 = vrot.slane %v625, 1
          %v627 = vadd.f32 %v625, %v626
          %v628 = vrot.slane %v572, 4
          %v629 = vadd.f32 %v572, %v628
          %v630 = vrot.slane %v629, 2
          %v631 = vadd.f32 %v629, %v630
          %v632 = vrot.slane %v631, 1
          %v633 = vadd.f32 %v631, %v632
          %v634 = vrot.slane %v573, 4
          %v635 = vadd.f32 %v573, %v634
          %v636 = vrot.slane %v635, 2
          %v637 = vadd.f32 %v635, %v636
          %v638 = vrot.slane %v637, 1
          %v639 = vadd.f32 %v637, %v638
          %v640 = vrot.slane %v574, 4
          %v641 = vadd.f32 %v574, %v640
          %v642 = vrot.slane %v641, 2
          %v643 = vadd.f32 %v641, %v642
          %v644 = vrot.slane %v643, 1
          %v645 = vadd.f32 %v643, %v644
          %v646 = vrot.slane %v575, 4
          %v647 = vadd.f32 %v575, %v646
          %v648 = vrot.slane %v647, 2
          %v649 = vadd.f32 %v647, %v648
          %v650 = vrot.slane %v649, 1
          %v651 = vadd.f32 %v649, %v650
          %v652 = vrot.slane %v576, 4
          %v653 = vadd.f32 %v576, %v652
          %v654 = vrot.slane %v653, 2
          %v655 = vadd.f32 %v653, %v654
          %v656 = vrot.slane %v655, 1
          %v657 = vadd.f32 %v655, %v656
          %v658 = vrot.slane %v577, 4
          %v659 = vadd.f32 %v577, %v658
          %v660 = vrot.slane %v659, 2
          %v661 = vadd.f32 %v659, %v660
          %v662 = vrot.slane %v661, 1
          %v663 = vadd.f32 %v661, %v662
          %v664 = vrot.slane %v578, 4
          %v665 = vadd.f32 %v578, %v664
          %v666 = vrot.slane %v665, 2
          %v667 = vadd.f32 %v665, %v666
          %v668 = vrot.slane %v667, 1
          %v669 = vadd.f32 %v667, %v668
          %v670 = vrot.slane %v579, 4
          %v671 = vadd.f32 %v579, %v670
          %v672 = vrot.slane %v671, 2
          %v673 = vadd.f32 %v671, %v672
          %v674 = vrot.slane %v673, 1
          %v675 = vadd.f32 %v673, %v674
          %v676 = vmul.f32 %v585, %v531
          %v677 = vmul.f32 %v591, %v531
          %v678 = vmul.f32 %v597, %v531
          %v679 = vmul.f32 %v603, %v531
          %v680 = vmul.f32 %v609, %v531
          %v681 = vmul.f32 %v615, %v531
          %v682 = vmul.f32 %v621, %v531
          %v683 = vmul.f32 %v627, %v531
          %v684 = vmul.f32 %v633, %v531
          %v685 = vmul.f32 %v639, %v531
          %v686 = vmul.f32 %v645, %v531
          %v687 = vmul.f32 %v651, %v531
          %v688 = vmul.f32 %v657, %v531
          %v689 = vmul.f32 %v663, %v531
          %v690 = vmul.f32 %v669, %v531
          %v691 = vmul.f32 %v675, %v531
          %v692 = vadd.f32 %v676, 1e-05
          %v693 = vadd.f32 %v677, 1e-05
          %v694 = vadd.f32 %v678, 1e-05
          %v695 = vadd.f32 %v679, 1e-05
          %v696 = vadd.f32 %v680, 1e-05
          %v697 = vadd.f32 %v681, 1e-05
          %v698 = vadd.f32 %v682, 1e-05
          %v699 = vadd.f32 %v683, 1e-05
          %v700 = vadd.f32 %v684, 1e-05
          %v701 = vadd.f32 %v685, 1e-05
          %v702 = vadd.f32 %v686, 1e-05
          %v703 = vadd.f32 %v687, 1e-05
          %v704 = vadd.f32 %v688, 1e-05
          %v705 = vadd.f32 %v689, 1e-05
          %v706 = vadd.f32 %v690, 1e-05
          %v707 = vadd.f32 %v691, 1e-05
          %v708 = vrsqrt.pop %v692
          %v709 = vmul.f32 %v708, %v692
          %v710 = vmul.f32 %v709, %v708
          %v711 = vmul.f32 0.5, %v710
          %v712 = vsub.f32 1.5, %v711
          %v713 = vmul.f32 %v708, %v712
          %vm714 = vweird.f32 %v692
          %vm715 = vweird.f32 %v708
          %vm716 = vmor %vm714, %vm715
          %v717 = vsel %vm716, %v708, %v713
          %v718 = vrsqrt.pop %v693
          %v719 = vmul.f32 %v718, %v693
          %v720 = vmul.f32 %v719, %v718
          %v721 = vmul.f32 0.5, %v720
          %v722 = vsub.f32 1.5, %v721
          %v723 = vmul.f32 %v718, %v722
          %vm724 = vweird.f32 %v693
          %vm725 = vweird.f32 %v718
          %vm726 = vmor %vm724, %vm725
          %v727 = vsel %vm726, %v718, %v723
          %v728 = vrsqrt.pop %v694
          %v729 = vmul.f32 %v728, %v694
          %v730 = vmul.f32 %v729, %v728
          %v731 = vmul.f32 0.5, %v730
          %v732 = vsub.f32 1.5, %v731
          %v733 = vmul.f32 %v728, %v732
          %vm734 = vweird.f32 %v694
          %vm735 = vweird.f32 %v728
          %vm736 = vmor %vm734, %vm735
          %v737 = vsel %vm736, %v728, %v733
          %v738 = vrsqrt.pop %v695
          %v739 = vmul.f32 %v738, %v695
          %v740 = vmul.f32 %v739, %v738
          %v741 = vmul.f32 0.5, %v740
          %v742 = vsub.f32 1.5, %v741
          %v743 = vmul.f32 %v738, %v742
          %vm744 = vweird.f32 %v695
          %vm745 = vweird.f32 %v738
          %vm746 = vmor %vm744, %vm745
          %v747 = vsel %vm746, %v738, %v743
          %v748 = vrsqrt.pop %v696
          %v749 = vmul.f32 %v748, %v696
          %v750 = vmul.f32 %v749, %v748
          %v751 = vmul.f32 0.5, %v750
          %v752 = vsub.f32 1.5, %v751
          %v753 = vmul.f32 %v748, %v752
          %vm754 = vweird.f32 %v696
          %vm755 = vweird.f32 %v748
          %vm756 = vmor %vm754, %vm755
          %v757 = vsel %vm756, %v748, %v753
          %v758 = vrsqrt.pop %v697
          %v759 = vmul.f32 %v758, %v697
          %v760 = vmul.f32 %v759, %v758
          %v761 = vmul.f32 0.5, %v760
          %v762 = vsub.f32 1.5, %v761
          %v763 = vmul.f32 %v758, %v762
          %vm764 = vweird.f32 %v697
          %vm765 = vweird.f32 %v758
          %vm766 = vmor %vm764, %vm765
          %v767 = vsel %vm766, %v758, %v763
          %v768 = vrsqrt.pop %v698
          %v769 = vmul.f32 %v768, %v698
          %v770 = vmul.f32 %v769, %v768
          %v771 = vmul.f32 0.5, %v770
          %v772 = vsub.f32 1.5, %v771
          %v773 = vmul.f32 %v768, %v772
          %vm774 = vweird.f32 %v698
          %vm775 = vweird.f32 %v768
          %vm776 = vmor %vm774, %vm775
          %v777 = vsel %vm776, %v768, %v773
          %v778 = vrsqrt.pop %v699
          %v779 = vmul.f32 %v778, %v699
          %v780 = vmul.f32 %v779, %v778
          %v781 = vmul.f32 0.5, %v780
          %v782 = vsub.f32 1.5, %v781
          %v783 = vmul.f32 %v778, %v782
          %vm784 = vweird.f32 %v699
          %vm785 = vweird.f32 %v778
          %vm786 = vmor %vm784, %vm785
          %v787 = vsel %vm786, %v778, %v783
          %v788 = vrsqrt.pop %v700
          %v789 = vmul.f32 %v788, %v700
          %v790 = vmul.f32 %v789, %v788
          %v791 = vmul.f32 0.5, %v790
          %v792 = vsub.f32 1.5, %v791
          %v793 = vmul.f32 %v788, %v792
          %vm794 = vweird.f32 %v700
          %vm795 = vweird.f32 %v788
          %vm796 = vmor %vm794, %vm795
          %v797 = vsel %vm796, %v788, %v793
          %v798 = vrsqrt.pop %v701
          %v799 = vmul.f32 %v798, %v701
          %v800 = vmul.f32 %v799, %v798
          %v801 = vmul.f32 0.5, %v800
          %v802 = vsub.f32 1.5, %v801
          %v803 = vmul.f32 %v798, %v802
          %vm804 = vweird.f32 %v701
          %vm805 = vweird.f32 %v798
          %vm806 = vmor %vm804, %vm805
          %v807 = vsel %vm806, %v798, %v803
          %v808 = vrsqrt.pop %v702
          %v809 = vmul.f32 %v808, %v702
          %v810 = vmul.f32 %v809, %v808
          %v811 = vmul.f32 0.5, %v810
          %v812 = vsub.f32 1.5, %v811
          %v813 = vmul.f32 %v808, %v812
          %vm814 = vweird.f32 %v702
          %vm815 = vweird.f32 %v808
          %vm816 = vmor %vm814, %vm815
          %v817 = vsel %vm816, %v808, %v813
          %v818 = vrsqrt.pop %v703
          %v819 = vmul.f32 %v818, %v703
          %v820 = vmul.f32 %v819, %v818
          %v821 = vmul.f32 0.5, %v820
          %v822 = vsub.f32 1.5, %v821
          %v823 = vmul.f32 %v818, %v822
          %vm824 = vweird.f32 %v703
          %vm825 = vweird.f32 %v818
          %vm826 = vmor %vm824, %vm825
          %v827 = vsel %vm826, %v818, %v823
          %v828 = vrsqrt.pop %v704
          %v829 = vmul.f32 %v828, %v704
          %v830 = vmul.f32 %v829, %v828
          %v831 = vmul.f32 0.5, %v830
          %v832 = vsub.f32 1.5, %v831
          %v833 = vmul.f32 %v828, %v832
          %vm834 = vweird.f32 %v704
          %vm835 = vweird.f32 %v828
          %vm836 = vmor %vm834, %vm835
          %v837 = vsel %vm836, %v828, %v833
          %v838 = vrsqrt.pop %v705
          %v839 = vmul.f32 %v838, %v705
          %v840 = vmul.f32 %v839, %v838
          %v841 = vmul.f32 0.5, %v840
          %v842 = vsub.f32 1.5, %v841
          %v843 = vmul.f32 %v838, %v842
          %vm844 = vweird.f32 %v705
          %vm845 = vweird.f32 %v838
          %vm846 = vmor %vm844, %vm845
          %v847 = vsel %vm846, %v838, %v843
          %v848 = vrsqrt.pop %v706
          %v849 = vmul.f32 %v848, %v706
          %v850 = vmul.f32 %v849, %v848
          %v851 = vmul.f32 0.5, %v850
          %v852 = vsub.f32 1.5, %v851
          %v853 = vmul.f32 %v848, %v852
          %vm854 = vweird.f32 %v706
          %vm855 = vweird.f32 %v848
          %vm856 = vmor %vm854, %vm855
          %v857 = vsel %vm856, %v848, %v853
          %v858 = vrsqrt.pop %v707
          %v859 = vmul.f32 %v858, %v707
          %v860 = vmul.f32 %v859, %v858
          %v861 = vmul.f32 0.5, %v860
          %v862 = vsub.f32 1.5, %v861
          %v863 = vmul.f32 %v858, %v862
          %vm864 = vweird.f32 %v707
          %vm865 = vweird.f32 %v858
          %vm866 = vmor %vm864, %vm865
          %v867 = vsel %vm866, %v858, %v863
          %v868 = vmul.f32 %v548, %v717
          %v869 = vmul.f32 %v549, %v727
          %v870 = vmul.f32 %v550, %v737
          %v871 = vmul.f32 %v551, %v747
          %v872 = vmul.f32 %v552, %v757
          %v873 = vmul.f32 %v553, %v767
          %v874 = vmul.f32 %v554, %v777
          %v875 = vmul.f32 %v555, %v787
          %v876 = vmul.f32 %v556, %v797
          %v877 = vmul.f32 %v557, %v807
          %v878 = vmul.f32 %v558, %v817
          %v879 = vmul.f32 %v559, %v827
          %v880 = vmul.f32 %v560, %v837
          %v881 = vmul.f32 %v561, %v847
          %v882 = vmul.f32 %v562, %v857
          %v883 = vmul.f32 %v563, %v867
          %v886 = vperm.slane %v425, 0
          %v887 = vperm.slane %v425, 1
          %v888 = vperm.slane %v425, 2
          %v889 = vperm.slane %v425, 3
          %v890 = vperm.slane %v425, 4
          %v891 = vperm.slane %v425, 5
          %v892 = vperm.slane %v425, 6
          %v893 = vperm.slane %v425, 7
          %v894 = vperm.slane %v426, 0
          %v895 = vperm.slane %v426, 1
          %v896 = vperm.slane %v426, 2
          %v897 = vperm.slane %v426, 3
          %v898 = vperm.slane %v426, 4
          %v899 = vperm.slane %v426, 5
          %v900 = vperm.slane %v426, 6
          %v901 = vperm.slane %v426, 7
          %v918 = vmul.f32 %v868, %v886
          %v919 = vmul.f32 %v869, %v887
          %v920 = vmul.f32 %v870, %v888
          %v921 = vmul.f32 %v871, %v889
          %v922 = vmul.f32 %v872, %v890
          %v923 = vmul.f32 %v873, %v891
          %v924 = vmul.f32 %v874, %v892
          %v925 = vmul.f32 %v875, %v893
          %v926 = vmul.f32 %v876, %v894
          %v927 = vmul.f32 %v877, %v895
          %v928 = vmul.f32 %v878, %v896
          %v929 = vmul.f32 %v879, %v897
          %v930 = vmul.f32 %v880, %v898
          %v931 = vmul.f32 %v881, %v899
          %v932 = vmul.f32 %v882, %v900
          %v933 = vmul.f32 %v883, %v901
          %v936 = vperm.slane %v427, 0
          %v937 = vperm.slane %v427, 1
          %v938 = vperm.slane %v427, 2
          %v939 = vperm.slane %v427, 3
          %v940 = vperm.slane %v427, 4
          %v941 = vperm.slane %v427, 5
          %v942 = vperm.slane %v427, 6
          %v943 = vperm.slane %v427, 7
          %v944 = vperm.slane %v428, 0
          %v945 = vperm.slane %v428, 1
          %v946 = vperm.slane %v428, 2
          %v947 = vperm.slane %v428, 3
          %v948 = vperm.slane %v428, 4
          %v949 = vperm.slane %v428, 5
          %v950 = vperm.slane %v428, 6
          %v951 = vperm.slane %v428, 7
          %v968 = vadd.f32 %v918, %v936
          %v969 = vadd.f32 %v919, %v937
          %v970 = vadd.f32 %v920, %v938
          %v971 = vadd.f32 %v921, %v939
          %v972 = vadd.f32 %v922, %v940
          %v973 = vadd.f32 %v923, %v941
          %v974 = vadd.f32 %v924, %v942
          %v975 = vadd.f32 %v925, %v943
          %v976 = vadd.f32 %v926, %v944
          %v977 = vadd.f32 %v927, %v945
          %v978 = vadd.f32 %v928, %v946
          %v979 = vadd.f32 %v929, %v947
          %v980 = vadd.f32 %v930, %v948
          %v981 = vadd.f32 %v931, %v949
          %v982 = vadd.f32 %v932, %v950
          %v983 = vadd.f32 %v933, %v951
          %v984 = vpack.c.bf16 %v969, %v968
          %v985 = vpack.c.bf16 %v971, %v970
          %v986 = vpack.c.bf16 %v973, %v972
          %v987 = vpack.c.bf16 %v975, %v974
          %v988 = vpack.c.bf16 %v977, %v976
          %v989 = vpack.c.bf16 %v979, %v978
          %v990 = vpack.c.bf16 %v981, %v980
          %v991 = vpack.c.bf16 %v983, %v982
          %992 = vst [vmem:[#allocation2] sm:$0xff] %v984
          %993 = vst [vmem:[#allocation2 + $0x8] sm:$0xff] %v985
          %994 = vst [vmem:[#allocation2 + $0x10] sm:$0xff] %v986
          %995 = vst [vmem:[#allocation2 + $0x18] sm:$0xff] %v987
          %996 = vst [vmem:[#allocation2 + $0x20] sm:$0xff] %v988
          %997 = vst [vmem:[#allocation2 + $0x28] sm:$0xff] %v989
          %998 = vst [vmem:[#allocation2 + $0x30] sm:$0xff] %v990
          %999 = vst [vmem:[#allocation2 + $0x38] sm:$0xff] %v991
        $region64: #{dnn_forward.4} parent=39 // pred_fallthru
          _
        %v1000 = vld [vmem:[#allocation2] sm:$0xff]
        %v1001 = vld [vmem:[#allocation2 + $0x8] sm:$0xff]
        %v1002 = vld [vmem:[#allocation2 + $0x10] sm:$0xff]
        %v1003 = vld [vmem:[#allocation2 + $0x18] sm:$0xff]
        %v1004 = vld [vmem:[#allocation2 + $0x20] sm:$0xff]
        %v1005 = vld [vmem:[#allocation2 + $0x28] sm:$0xff]
        %v1006 = vld [vmem:[#allocation2 + $0x30] sm:$0xff]
        %v1007 = vld [vmem:[#allocation2 + $0x38] sm:$0xff]
        %v1008 = vld [vmem:[%s318] sm:$0xff]
        %v1009 = vld [vmem:[%s318 + $0x8] sm:$0xff]
        %v1010 = vld [vmem:[%s318 + $0x10] sm:$0xff]
        %v1011 = vld [vmem:[%s318 + $0x18] sm:$0xff]
        %v1012 = vld [vmem:[%s318 + $0x20] sm:$0xff]
        %v1013 = vld [vmem:[%s318 + $0x28] sm:$0xff]
        %v1014 = vld [vmem:[%s318 + $0x30] sm:$0xff]
        %v1015 = vld [vmem:[%s318 + $0x38] sm:$0xff]
        %v1016 = vld [vmem:[%s318 + $0x40] sm:$0xff]
        %v1017 = vld [vmem:[%s318 + $0x48] sm:$0xff]
        %v1018 = vld [vmem:[%s318 + $0x50] sm:$0xff]
        %v1019 = vld [vmem:[%s318 + $0x58] sm:$0xff]
        %v1020 = vld [vmem:[%s318 + $0x60] sm:$0xff]
        %v1021 = vld [vmem:[%s318 + $0x68] sm:$0xff]
        %v1022 = vld [vmem:[%s318 + $0x70] sm:$0xff]
        %v1023 = vld [vmem:[%s318 + $0x78] sm:$0xff]
        %v1024 = vld [vmem:[%s318 + $0x80] sm:$0xff]
        %v1025 = vld [vmem:[%s318 + $0x88] sm:$0xff]
        %v1026 = vld [vmem:[%s318 + $0x90] sm:$0xff]
        %v1027 = vld [vmem:[%s318 + $0x98] sm:$0xff]
        %v1028 = vld [vmem:[%s318 + $0xa0] sm:$0xff]
        %v1029 = vld [vmem:[%s318 + $0xa8] sm:$0xff]
        %v1030 = vld [vmem:[%s318 + $0xb0] sm:$0xff]
        %v1031 = vld [vmem:[%s318 + $0xb8] sm:$0xff]
        %v1032 = vld [vmem:[%s318 + $0xc0] sm:$0xff]
        %v1033 = vld [vmem:[%s318 + $0xc8] sm:$0xff]
        %v1034 = vld [vmem:[%s318 + $0xd0] sm:$0xff]
        %v1035 = vld [vmem:[%s318 + $0xd8] sm:$0xff]
        %v1036 = vld [vmem:[%s318 + $0xe0] sm:$0xff]
        %v1037 = vld [vmem:[%s318 + $0xe8] sm:$0xff]
        %v1038 = vld [vmem:[%s318 + $0xf0] sm:$0xff]
        %v1039 = vld [vmem:[%s318 + $0xf8] sm:$0xff]
        %v1040 = vld [vmem:[%s318 + $0x100] sm:$0xff]
        %v1041 = vld [vmem:[%s318 + $0x108] sm:$0xff]
        %v1042 = vld [vmem:[%s318 + $0x110] sm:$0xff]
        %v1043 = vld [vmem:[%s318 + $0x118] sm:$0xff]
        %v1044 = vld [vmem:[%s318 + $0x120] sm:$0xff]
        %v1045 = vld [vmem:[%s318 + $0x128] sm:$0xff]
        %v1046 = vld [vmem:[%s318 + $0x130] sm:$0xff]
        %v1047 = vld [vmem:[%s318 + $0x138] sm:$0xff]
        %v1048 = vld [vmem:[%s318 + $0x140] sm:$0xff]
        %v1049 = vld [vmem:[%s318 + $0x148] sm:$0xff]
        %v1050 = vld [vmem:[%s318 + $0x150] sm:$0xff]
        %v1051 = vld [vmem:[%s318 + $0x158] sm:$0xff]
        %v1052 = vld [vmem:[%s318 + $0x160] sm:$0xff]
        %v1053 = vld [vmem:[%s318 + $0x168] sm:$0xff]
        %v1054 = vld [vmem:[%s318 + $0x170] sm:$0xff]
        %v1055 = vld [vmem:[%s318 + $0x178] sm:$0xff]
        %v1056 = vld [vmem:[%s318 + $0x180] sm:$0xff]
        %v1057 = vld [vmem:[%s318 + $0x188] sm:$0xff]
        %v1058 = vld [vmem:[%s318 + $0x190] sm:$0xff]
        %v1059 = vld [vmem:[%s318 + $0x198] sm:$0xff]
        %v1060 = vld [vmem:[%s318 + $0x1a0] sm:$0xff]
        %v1061 = vld [vmem:[%s318 + $0x1a8] sm:$0xff]
        %v1062 = vld [vmem:[%s318 + $0x1b0] sm:$0xff]
        %v1063 = vld [vmem:[%s318 + $0x1b8] sm:$0xff]
        %v1064 = vld [vmem:[%s318 + $0x1c0] sm:$0xff]
        %v1065 = vld [vmem:[%s318 + $0x1c8] sm:$0xff]
        %v1066 = vld [vmem:[%s318 + $0x1d0] sm:$0xff]
        %v1067 = vld [vmem:[%s318 + $0x1d8] sm:$0xff]
        %v1068 = vld [vmem:[%s318 + $0x1e0] sm:$0xff]
        %v1069 = vld [vmem:[%s318 + $0x1e8] sm:$0xff]
        %v1070 = vld [vmem:[%s318 + $0x1f0] sm:$0xff]
        %v1071 = vld [vmem:[%s318 + $0x1f8] sm:$0xff]
        %v1072 = vld [vmem:[%s318 + $0x200] sm:$0xff]
        %v1073 = vld [vmem:[%s318 + $0x208] sm:$0xff]
        %v1074 = vld [vmem:[%s318 + $0x210] sm:$0xff]
        %v1075 = vld [vmem:[%s318 + $0x218] sm:$0xff]
        %v1076 = vld [vmem:[%s318 + $0x220] sm:$0xff]
        %v1077 = vld [vmem:[%s318 + $0x228] sm:$0xff]
        %v1078 = vld [vmem:[%s318 + $0x230] sm:$0xff]
        %v1079 = vld [vmem:[%s318 + $0x238] sm:$0xff]
        %v1080 = vld [vmem:[%s318 + $0x240] sm:$0xff]
        %v1081 = vld [vmem:[%s318 + $0x248] sm:$0xff]
        %v1082 = vld [vmem:[%s318 + $0x250] sm:$0xff]
        %v1083 = vld [vmem:[%s318 + $0x258] sm:$0xff]
        %v1084 = vld [vmem:[%s318 + $0x260] sm:$0xff]
        %v1085 = vld [vmem:[%s318 + $0x268] sm:$0xff]
        %v1086 = vld [vmem:[%s318 + $0x270] sm:$0xff]
        %v1087 = vld [vmem:[%s318 + $0x278] sm:$0xff]
        %v1088 = vld [vmem:[%s318 + $0x280] sm:$0xff]
        %v1089 = vld [vmem:[%s318 + $0x288] sm:$0xff]
        %v1090 = vld [vmem:[%s318 + $0x290] sm:$0xff]
        %v1091 = vld [vmem:[%s318 + $0x298] sm:$0xff]
        %v1092 = vld [vmem:[%s318 + $0x2a0] sm:$0xff]
        %v1093 = vld [vmem:[%s318 + $0x2a8] sm:$0xff]
        %v1094 = vld [vmem:[%s318 + $0x2b0] sm:$0xff]
        %v1095 = vld [vmem:[%s318 + $0x2b8] sm:$0xff]
        %v1096 = vld [vmem:[%s318 + $0x2c0] sm:$0xff]
        %v1097 = vld [vmem:[%s318 + $0x2c8] sm:$0xff]
        %v1098 = vld [vmem:[%s318 + $0x2d0] sm:$0xff]
        %v1099 = vld [vmem:[%s318 + $0x2d8] sm:$0xff]
        %v1100 = vld [vmem:[%s318 + $0x2e0] sm:$0xff]
        %v1101 = vld [vmem:[%s318 + $0x2e8] sm:$0xff]
        %v1102 = vld [vmem:[%s318 + $0x2f0] sm:$0xff]
        %v1103 = vld [vmem:[%s318 + $0x2f8] sm:$0xff]
        %v1104 = vld [vmem:[%s318 + $0x300] sm:$0xff]
        %v1105 = vld [vmem:[%s318 + $0x308] sm:$0xff]
        %v1106 = vld [vmem:[%s318 + $0x310] sm:$0xff]
        %v1107 = vld [vmem:[%s318 + $0x318] sm:$0xff]
        %v1108 = vld [vmem:[%s318 + $0x320] sm:$0xff]
        %v1109 = vld [vmem:[%s318 + $0x328] sm:$0xff]
        %v1110 = vld [vmem:[%s318 + $0x330] sm:$0xff]
        %v1111 = vld [vmem:[%s318 + $0x338] sm:$0xff]
        %v1112 = vld [vmem:[%s318 + $0x340] sm:$0xff]
        %v1113 = vld [vmem:[%s318 + $0x348] sm:$0xff]
        %v1114 = vld [vmem:[%s318 + $0x350] sm:$0xff]
        %v1115 = vld [vmem:[%s318 + $0x358] sm:$0xff]
        %v1116 = vld [vmem:[%s318 + $0x360] sm:$0xff]
        %v1117 = vld [vmem:[%s318 + $0x368] sm:$0xff]
        %v1118 = vld [vmem:[%s318 + $0x370] sm:$0xff]
        %v1119 = vld [vmem:[%s318 + $0x378] sm:$0xff]
        %v1120 = vld [vmem:[%s318 + $0x380] sm:$0xff]
        %v1121 = vld [vmem:[%s318 + $0x388] sm:$0xff]
        %v1122 = vld [vmem:[%s318 + $0x390] sm:$0xff]
        %v1123 = vld [vmem:[%s318 + $0x398] sm:$0xff]
        %v1124 = vld [vmem:[%s318 + $0x3a0] sm:$0xff]
        %v1125 = vld [vmem:[%s318 + $0x3a8] sm:$0xff]
        %v1126 = vld [vmem:[%s318 + $0x3b0] sm:$0xff]
        %v1127 = vld [vmem:[%s318 + $0x3b8] sm:$0xff]
        %v1128 = vld [vmem:[%s318 + $0x3c0] sm:$0xff]
        %v1129 = vld [vmem:[%s318 + $0x3c8] sm:$0xff]
        %v1130 = vld [vmem:[%s318 + $0x3d0] sm:$0xff]
        %v1131 = vld [vmem:[%s318 + $0x3d8] sm:$0xff]
        %v1132 = vld [vmem:[%s318 + $0x3e0] sm:$0xff]
        %v1133 = vld [vmem:[%s318 + $0x3e8] sm:$0xff]
        %v1134 = vld [vmem:[%s318 + $0x3f0] sm:$0xff]
        %v1135 = vld [vmem:[%s318 + $0x3f8] sm:$0xff]
        %v1136 = vld [vmem:[%s318 + $0x400] sm:$0xff]
        %v1137 = vld [vmem:[%s318 + $0x408] sm:$0xff]
        %v1138 = vld [vmem:[%s318 + $0x410] sm:$0xff]
        %v1139 = vld [vmem:[%s318 + $0x418] sm:$0xff]
        %v1140 = vld [vmem:[%s318 + $0x420] sm:$0xff]
        %v1141 = vld [vmem:[%s318 + $0x428] sm:$0xff]
        %v1142 = vld [vmem:[%s318 + $0x430] sm:$0xff]
        %v1143 = vld [vmem:[%s318 + $0x438] sm:$0xff]
        %v1144 = vld [vmem:[%s318 + $0x440] sm:$0xff]
        %v1145 = vld [vmem:[%s318 + $0x448] sm:$0xff]
        %v1146 = vld [vmem:[%s318 + $0x450] sm:$0xff]
        %v1147 = vld [vmem:[%s318 + $0x458] sm:$0xff]
        %v1148 = vld [vmem:[%s318 + $0x460] sm:$0xff]
        %v1149 = vld [vmem:[%s318 + $0x468] sm:$0xff]
        %v1150 = vld [vmem:[%s318 + $0x470] sm:$0xff]
        %v1151 = vld [vmem:[%s318 + $0x478] sm:$0xff]
        %v1152 = vld [vmem:[%s318 + $0x480] sm:$0xff]
        %v1153 = vld [vmem:[%s318 + $0x488] sm:$0xff]
        %v1154 = vld [vmem:[%s318 + $0x490] sm:$0xff]
        %v1155 = vld [vmem:[%s318 + $0x498] sm:$0xff]
        %v1156 = vld [vmem:[%s318 + $0x4a0] sm:$0xff]
        %v1157 = vld [vmem:[%s318 + $0x4a8] sm:$0xff]
        %v1158 = vld [vmem:[%s318 + $0x4b0] sm:$0xff]
        %v1159 = vld [vmem:[%s318 + $0x4b8] sm:$0xff]
        %v1160 = vld [vmem:[%s318 + $0x4c0] sm:$0xff]
        %v1161 = vld [vmem:[%s318 + $0x4c8] sm:$0xff]
        %v1162 = vld [vmem:[%s318 + $0x4d0] sm:$0xff]
        %v1163 = vld [vmem:[%s318 + $0x4d8] sm:$0xff]
        %v1164 = vld [vmem:[%s318 + $0x4e0] sm:$0xff]
        %v1165 = vld [vmem:[%s318 + $0x4e8] sm:$0xff]
        %v1166 = vld [vmem:[%s318 + $0x4f0] sm:$0xff]
        %v1167 = vld [vmem:[%s318 + $0x4f8] sm:$0xff]
        %v1168 = vld [vmem:[%s318 + $0x500] sm:$0xff]
        %v1169 = vld [vmem:[%s318 + $0x508] sm:$0xff]
        %v1170 = vld [vmem:[%s318 + $0x510] sm:$0xff]
        %v1171 = vld [vmem:[%s318 + $0x518] sm:$0xff]
        %v1172 = vld [vmem:[%s318 + $0x520] sm:$0xff]
        %v1173 = vld [vmem:[%s318 + $0x528] sm:$0xff]
        %v1174 = vld [vmem:[%s318 + $0x530] sm:$0xff]
        %v1175 = vld [vmem:[%s318 + $0x538] sm:$0xff]
        %v1176 = vld [vmem:[%s318 + $0x540] sm:$0xff]
        %v1177 = vld [vmem:[%s318 + $0x548] sm:$0xff]
        %v1178 = vld [vmem:[%s318 + $0x550] sm:$0xff]
        %v1179 = vld [vmem:[%s318 + $0x558] sm:$0xff]
        %v1180 = vld [vmem:[%s318 + $0x560] sm:$0xff]
        %v1181 = vld [vmem:[%s318 + $0x568] sm:$0xff]
        %v1182 = vld [vmem:[%s318 + $0x570] sm:$0xff]
        %v1183 = vld [vmem:[%s318 + $0x578] sm:$0xff]
        %v1184 = vld [vmem:[%s318 + $0x580] sm:$0xff]
        %v1185 = vld [vmem:[%s318 + $0x588] sm:$0xff]
        %v1186 = vld [vmem:[%s318 + $0x590] sm:$0xff]
        %v1187 = vld [vmem:[%s318 + $0x598] sm:$0xff]
        %v1188 = vld [vmem:[%s318 + $0x5a0] sm:$0xff]
        %v1189 = vld [vmem:[%s318 + $0x5a8] sm:$0xff]
        %v1190 = vld [vmem:[%s318 + $0x5b0] sm:$0xff]
        %v1191 = vld [vmem:[%s318 + $0x5b8] sm:$0xff]
        %v1192 = vld [vmem:[%s318 + $0x5c0] sm:$0xff]
        %v1193 = vld [vmem:[%s318 + $0x5c8] sm:$0xff]
        %v1194 = vld [vmem:[%s318 + $0x5d0] sm:$0xff]
        %v1195 = vld [vmem:[%s318 + $0x5d8] sm:$0xff]
        %v1196 = vld [vmem:[%s318 + $0x5e0] sm:$0xff]
        %v1197 = vld [vmem:[%s318 + $0x5e8] sm:$0xff]
        %v1198 = vld [vmem:[%s318 + $0x5f0] sm:$0xff]
        %v1199 = vld [vmem:[%s318 + $0x5f8] sm:$0xff]
        %v1200 = vld [vmem:[%s318 + $0x600] sm:$0xff]
        %v1201 = vld [vmem:[%s318 + $0x608] sm:$0xff]
        %v1202 = vld [vmem:[%s318 + $0x610] sm:$0xff]
        %v1203 = vld [vmem:[%s318 + $0x618] sm:$0xff]
        %v1204 = vld [vmem:[%s318 + $0x620] sm:$0xff]
        %v1205 = vld [vmem:[%s318 + $0x628] sm:$0xff]
        %v1206 = vld [vmem:[%s318 + $0x630] sm:$0xff]
        %v1207 = vld [vmem:[%s318 + $0x638] sm:$0xff]
        %v1208 = vld [vmem:[%s318 + $0x640] sm:$0xff]
        %v1209 = vld [vmem:[%s318 + $0x648] sm:$0xff]
        %v1210 = vld [vmem:[%s318 + $0x650] sm:$0xff]
        %v1211 = vld [vmem:[%s318 + $0x658] sm:$0xff]
        %v1212 = vld [vmem:[%s318 + $0x660] sm:$0xff]
        %v1213 = vld [vmem:[%s318 + $0x668] sm:$0xff]
        %v1214 = vld [vmem:[%s318 + $0x670] sm:$0xff]
        %v1215 = vld [vmem:[%s318 + $0x678] sm:$0xff]
        %v1216 = vld [vmem:[%s318 + $0x680] sm:$0xff]
        %v1217 = vld [vmem:[%s318 + $0x688] sm:$0xff]
        %v1218 = vld [vmem:[%s318 + $0x690] sm:$0xff]
        %v1219 = vld [vmem:[%s318 + $0x698] sm:$0xff]
        %v1220 = vld [vmem:[%s318 + $0x6a0] sm:$0xff]
        %v1221 = vld [vmem:[%s318 + $0x6a8] sm:$0xff]
        %v1222 = vld [vmem:[%s318 + $0x6b0] sm:$0xff]
        %v1223 = vld [vmem:[%s318 + $0x6b8] sm:$0xff]
        %v1224 = vld [vmem:[%s318 + $0x6c0] sm:$0xff]
        %v1225 = vld [vmem:[%s318 + $0x6c8] sm:$0xff]
        %v1226 = vld [vmem:[%s318 + $0x6d0] sm:$0xff]
        %v1227 = vld [vmem:[%s318 + $0x6d8] sm:$0xff]
        %v1228 = vld [vmem:[%s318 + $0x6e0] sm:$0xff]
        %v1229 = vld [vmem:[%s318 + $0x6e8] sm:$0xff]
        %v1230 = vld [vmem:[%s318 + $0x6f0] sm:$0xff]
        %v1231 = vld [vmem:[%s318 + $0x6f8] sm:$0xff]
        %v1232 = vld [vmem:[%s318 + $0x700] sm:$0xff]
        %v1233 = vld [vmem:[%s318 + $0x708] sm:$0xff]
        %v1234 = vld [vmem:[%s318 + $0x710] sm:$0xff]
        %v1235 = vld [vmem:[%s318 + $0x718] sm:$0xff]
        %v1236 = vld [vmem:[%s318 + $0x720] sm:$0xff]
        %v1237 = vld [vmem:[%s318 + $0x728] sm:$0xff]
        %v1238 = vld [vmem:[%s318 + $0x730] sm:$0xff]
        %v1239 = vld [vmem:[%s318 + $0x738] sm:$0xff]
        %v1240 = vld [vmem:[%s318 + $0x740] sm:$0xff]
        %v1241 = vld [vmem:[%s318 + $0x748] sm:$0xff]
        %v1242 = vld [vmem:[%s318 + $0x750] sm:$0xff]
        %v1243 = vld [vmem:[%s318 + $0x758] sm:$0xff]
        %v1244 = vld [vmem:[%s318 + $0x760] sm:$0xff]
        %v1245 = vld [vmem:[%s318 + $0x768] sm:$0xff]
        %v1246 = vld [vmem:[%s318 + $0x770] sm:$0xff]
        %v1247 = vld [vmem:[%s318 + $0x778] sm:$0xff]
        %v1248 = vld [vmem:[%s318 + $0x780] sm:$0xff]
        %v1249 = vld [vmem:[%s318 + $0x788] sm:$0xff]
        %v1250 = vld [vmem:[%s318 + $0x790] sm:$0xff]
        %v1251 = vld [vmem:[%s318 + $0x798] sm:$0xff]
        %v1252 = vld [vmem:[%s318 + $0x7a0] sm:$0xff]
        %v1253 = vld [vmem:[%s318 + $0x7a8] sm:$0xff]
        %v1254 = vld [vmem:[%s318 + $0x7b0] sm:$0xff]
        %v1255 = vld [vmem:[%s318 + $0x7b8] sm:$0xff]
        %v1256 = vld [vmem:[%s318 + $0x7c0] sm:$0xff]
        %v1257 = vld [vmem:[%s318 + $0x7c8] sm:$0xff]
        %v1258 = vld [vmem:[%s318 + $0x7d0] sm:$0xff]
        %v1259 = vld [vmem:[%s318 + $0x7d8] sm:$0xff]
        %v1260 = vld [vmem:[%s318 + $0x7e0] sm:$0xff]
        %v1261 = vld [vmem:[%s318 + $0x7e8] sm:$0xff]
        %v1262 = vld [vmem:[%s318 + $0x7f0] sm:$0xff]
        %v1263 = vld [vmem:[%s318 + $0x7f8] sm:$0xff]
        %v1264 = vld [vmem:[%s318 + $0x800] sm:$0xff]
        %v1265 = vld [vmem:[%s318 + $0x808] sm:$0xff]
        %v1266 = vld [vmem:[%s318 + $0x810] sm:$0xff]
        %v1267 = vld [vmem:[%s318 + $0x818] sm:$0xff]
        %v1268 = vld [vmem:[%s318 + $0x820] sm:$0xff]
        %v1269 = vld [vmem:[%s318 + $0x828] sm:$0xff]
        %v1270 = vld [vmem:[%s318 + $0x830] sm:$0xff]
        %v1271 = vld [vmem:[%s318 + $0x838] sm:$0xff]
        %v1272 = vld [vmem:[%s318 + $0x840] sm:$0xff]
        %v1273 = vld [vmem:[%s318 + $0x848] sm:$0xff]
        %v1274 = vld [vmem:[%s318 + $0x850] sm:$0xff]
        %v1275 = vld [vmem:[%s318 + $0x858] sm:$0xff]
        %v1276 = vld [vmem:[%s318 + $0x860] sm:$0xff]
        %v1277 = vld [vmem:[%s318 + $0x868] sm:$0xff]
        %v1278 = vld [vmem:[%s318 + $0x870] sm:$0xff]
        %v1279 = vld [vmem:[%s318 + $0x878] sm:$0xff]
        %v1280 = vld [vmem:[%s318 + $0x880] sm:$0xff]
        %v1281 = vld [vmem:[%s318 + $0x888] sm:$0xff]
        %v1282 = vld [vmem:[%s318 + $0x890] sm:$0xff]
        %v1283 = vld [vmem:[%s318 + $0x898] sm:$0xff]
        %v1284 = vld [vmem:[%s318 + $0x8a0] sm:$0xff]
        %v1285 = vld [vmem:[%s318 + $0x8a8] sm:$0xff]
        %v1286 = vld [vmem:[%s318 + $0x8b0] sm:$0xff]
        %v1287 = vld [vmem:[%s318 + $0x8b8] sm:$0xff]
        %v1288 = vld [vmem:[%s318 + $0x8c0] sm:$0xff]
        %v1289 = vld [vmem:[%s318 + $0x8c8] sm:$0xff]
        %v1290 = vld [vmem:[%s318 + $0x8d0] sm:$0xff]
        %v1291 = vld [vmem:[%s318 + $0x8d8] sm:$0xff]
        %v1292 = vld [vmem:[%s318 + $0x8e0] sm:$0xff]
        %v1293 = vld [vmem:[%s318 + $0x8e8] sm:$0xff]
        %v1294 = vld [vmem:[%s318 + $0x8f0] sm:$0xff]
        %v1295 = vld [vmem:[%s318 + $0x8f8] sm:$0xff]
        %v1296 = vld [vmem:[%s318 + $0x900] sm:$0xff]
        %v1297 = vld [vmem:[%s318 + $0x908] sm:$0xff]
        %v1298 = vld [vmem:[%s318 + $0x910] sm:$0xff]
        %v1299 = vld [vmem:[%s318 + $0x918] sm:$0xff]
        %v1300 = vld [vmem:[%s318 + $0x920] sm:$0xff]
        %v1301 = vld [vmem:[%s318 + $0x928] sm:$0xff]
        %v1302 = vld [vmem:[%s318 + $0x930] sm:$0xff]
        %v1303 = vld [vmem:[%s318 + $0x938] sm:$0xff]
        %v1304 = vld [vmem:[%s318 + $0x940] sm:$0xff]
        %v1305 = vld [vmem:[%s318 + $0x948] sm:$0xff]
        %v1306 = vld [vmem:[%s318 + $0x950] sm:$0xff]
        %v1307 = vld [vmem:[%s318 + $0x958] sm:$0xff]
        %v1308 = vld [vmem:[%s318 + $0x960] sm:$0xff]
        %v1309 = vld [vmem:[%s318 + $0x968] sm:$0xff]
        %v1310 = vld [vmem:[%s318 + $0x970] sm:$0xff]
        %v1311 = vld [vmem:[%s318 + $0x978] sm:$0xff]
        %v1312 = vld [vmem:[%s318 + $0x980] sm:$0xff]
        %v1313 = vld [vmem:[%s318 + $0x988] sm:$0xff]
        %v1314 = vld [vmem:[%s318 + $0x990] sm:$0xff]
        %v1315 = vld [vmem:[%s318 + $0x998] sm:$0xff]
        %v1316 = vld [vmem:[%s318 + $0x9a0] sm:$0xff]
        %v1317 = vld [vmem:[%s318 + $0x9a8] sm:$0xff]
        %v1318 = vld [vmem:[%s318 + $0x9b0] sm:$0xff]
        %v1319 = vld [vmem:[%s318 + $0x9b8] sm:$0xff]
        %v1320 = vld [vmem:[%s318 + $0x9c0] sm:$0xff]
        %v1321 = vld [vmem:[%s318 + $0x9c8] sm:$0xff]
        %v1322 = vld [vmem:[%s318 + $0x9d0] sm:$0xff]
        %v1323 = vld [vmem:[%s318 + $0x9d8] sm:$0xff]
        %v1324 = vld [vmem:[%s318 + $0x9e0] sm:$0xff]
        %v1325 = vld [vmem:[%s318 + $0x9e8] sm:$0xff]
        %v1326 = vld [vmem:[%s318 + $0x9f0] sm:$0xff]
        %v1327 = vld [vmem:[%s318 + $0x9f8] sm:$0xff]
        %v1328 = vld [vmem:[%s318 + $0xa00] sm:$0xff]
        %v1329 = vld [vmem:[%s318 + $0xa08] sm:$0xff]
        %v1330 = vld [vmem:[%s318 + $0xa10] sm:$0xff]
        %v1331 = vld [vmem:[%s318 + $0xa18] sm:$0xff]
        %v1332 = vld [vmem:[%s318 + $0xa20] sm:$0xff]
        %v1333 = vld [vmem:[%s318 + $0xa28] sm:$0xff]
        %v1334 = vld [vmem:[%s318 + $0xa30] sm:$0xff]
        %v1335 = vld [vmem:[%s318 + $0xa38] sm:$0xff]
        %v1336 = vld [vmem:[%s318 + $0xa40] sm:$0xff]
        %v1337 = vld [vmem:[%s318 + $0xa48] sm:$0xff]
        %v1338 = vld [vmem:[%s318 + $0xa50] sm:$0xff]
        %v1339 = vld [vmem:[%s318 + $0xa58] sm:$0xff]
        %v1340 = vld [vmem:[%s318 + $0xa60] sm:$0xff]
        %v1341 = vld [vmem:[%s318 + $0xa68] sm:$0xff]
        %v1342 = vld [vmem:[%s318 + $0xa70] sm:$0xff]
        %v1343 = vld [vmem:[%s318 + $0xa78] sm:$0xff]
        %v1344 = vld [vmem:[%s318 + $0xa80] sm:$0xff]
        %v1345 = vld [vmem:[%s318 + $0xa88] sm:$0xff]
        %v1346 = vld [vmem:[%s318 + $0xa90] sm:$0xff]
        %v1347 = vld [vmem:[%s318 + $0xa98] sm:$0xff]
        %v1348 = vld [vmem:[%s318 + $0xaa0] sm:$0xff]
        %v1349 = vld [vmem:[%s318 + $0xaa8] sm:$0xff]
        %v1350 = vld [vmem:[%s318 + $0xab0] sm:$0xff]
        %v1351 = vld [vmem:[%s318 + $0xab8] sm:$0xff]
        %v1352 = vld [vmem:[%s318 + $0xac0] sm:$0xff]
        %v1353 = vld [vmem:[%s318 + $0xac8] sm:$0xff]
        %v1354 = vld [vmem:[%s318 + $0xad0] sm:$0xff]
        %v1355 = vld [vmem:[%s318 + $0xad8] sm:$0xff]
        %v1356 = vld [vmem:[%s318 + $0xae0] sm:$0xff]
        %v1357 = vld [vmem:[%s318 + $0xae8] sm:$0xff]
        %v1358 = vld [vmem:[%s318 + $0xaf0] sm:$0xff]
        %v1359 = vld [vmem:[%s318 + $0xaf8] sm:$0xff]
        %v1360 = vld [vmem:[%s318 + $0xb00] sm:$0xff]
        %v1361 = vld [vmem:[%s318 + $0xb08] sm:$0xff]
        %v1362 = vld [vmem:[%s318 + $0xb10] sm:$0xff]
        %v1363 = vld [vmem:[%s318 + $0xb18] sm:$0xff]
        %v1364 = vld [vmem:[%s318 + $0xb20] sm:$0xff]
        %v1365 = vld [vmem:[%s318 + $0xb28] sm:$0xff]
        %v1366 = vld [vmem:[%s318 + $0xb30] sm:$0xff]
        %v1367 = vld [vmem:[%s318 + $0xb38] sm:$0xff]
        %v1368 = vld [vmem:[%s318 + $0xb40] sm:$0xff]
        %v1369 = vld [vmem:[%s318 + $0xb48] sm:$0xff]
        %v1370 = vld [vmem:[%s318 + $0xb50] sm:$0xff]
        %v1371 = vld [vmem:[%s318 + $0xb58] sm:$0xff]
        %v1372 = vld [vmem:[%s318 + $0xb60] sm:$0xff]
        %v1373 = vld [vmem:[%s318 + $0xb68] sm:$0xff]
        %v1374 = vld [vmem:[%s318 + $0xb70] sm:$0xff]
        %v1375 = vld [vmem:[%s318 + $0xb78] sm:$0xff]
        %v1376 = vld [vmem:[%s318 + $0xb80] sm:$0xff]
        %v1377 = vld [vmem:[%s318 + $0xb88] sm:$0xff]
        %v1378 = vld [vmem:[%s318 + $0xb90] sm:$0xff]
        %v1379 = vld [vmem:[%s318 + $0xb98] sm:$0xff]
        %v1380 = vld [vmem:[%s318 + $0xba0] sm:$0xff]
        %v1381 = vld [vmem:[%s318 + $0xba8] sm:$0xff]
        %v1382 = vld [vmem:[%s318 + $0xbb0] sm:$0xff]
        %v1383 = vld [vmem:[%s318 + $0xbb8] sm:$0xff]
        %v1384 = vld [vmem:[%s318 + $0xbc0] sm:$0xff]
        %v1385 = vld [vmem:[%s318 + $0xbc8] sm:$0xff]
        %v1386 = vld [vmem:[%s318 + $0xbd0] sm:$0xff]
        %v1387 = vld [vmem:[%s318 + $0xbd8] sm:$0xff]
        %v1388 = vld [vmem:[%s318 + $0xbe0] sm:$0xff]
        %v1389 = vld [vmem:[%s318 + $0xbe8] sm:$0xff]
        %v1390 = vld [vmem:[%s318 + $0xbf0] sm:$0xff]
        %v1391 = vld [vmem:[%s318 + $0xbf8] sm:$0xff]
        %v1392 = vld [vmem:[%s318 + $0xc00] sm:$0xff]
        %v1393 = vld [vmem:[%s318 + $0xc08] sm:$0xff]
        %v1394 = vld [vmem:[%s318 + $0xc10] sm:$0xff]
        %v1395 = vld [vmem:[%s318 + $0xc18] sm:$0xff]
        %v1396 = vld [vmem:[%s318 + $0xc20] sm:$0xff]
        %v1397 = vld [vmem:[%s318 + $0xc28] sm:$0xff]
        %v1398 = vld [vmem:[%s318 + $0xc30] sm:$0xff]
        %v1399 = vld [vmem:[%s318 + $0xc38] sm:$0xff]
        %v1400 = vld [vmem:[%s318 + $0xc40] sm:$0xff]
        %v1401 = vld [vmem:[%s318 + $0xc48] sm:$0xff]
        %v1402 = vld [vmem:[%s318 + $0xc50] sm:$0xff]
        %v1403 = vld [vmem:[%s318 + $0xc58] sm:$0xff]
        %v1404 = vld [vmem:[%s318 + $0xc60] sm:$0xff]
        %v1405 = vld [vmem:[%s318 + $0xc68] sm:$0xff]
        %v1406 = vld [vmem:[%s318 + $0xc70] sm:$0xff]
        %v1407 = vld [vmem:[%s318 + $0xc78] sm:$0xff]
        %v1408 = vld [vmem:[%s318 + $0xc80] sm:$0xff]
        %v1409 = vld [vmem:[%s318 + $0xc88] sm:$0xff]
        %v1410 = vld [vmem:[%s318 + $0xc90] sm:$0xff]
        %v1411 = vld [vmem:[%s318 + $0xc98] sm:$0xff]
        %v1412 = vld [vmem:[%s318 + $0xca0] sm:$0xff]
        %v1413 = vld [vmem:[%s318 + $0xca8] sm:$0xff]
        %v1414 = vld [vmem:[%s318 + $0xcb0] sm:$0xff]
        %v1415 = vld [vmem:[%s318 + $0xcb8] sm:$0xff]
        %v1416 = vld [vmem:[%s318 + $0xcc0] sm:$0xff]
        %v1417 = vld [vmem:[%s318 + $0xcc8] sm:$0xff]
        %v1418 = vld [vmem:[%s318 + $0xcd0] sm:$0xff]
        %v1419 = vld [vmem:[%s318 + $0xcd8] sm:$0xff]
        %v1420 = vld [vmem:[%s318 + $0xce0] sm:$0xff]
        %v1421 = vld [vmem:[%s318 + $0xce8] sm:$0xff]
        %v1422 = vld [vmem:[%s318 + $0xcf0] sm:$0xff]
        %v1423 = vld [vmem:[%s318 + $0xcf8] sm:$0xff]
        %v1424 = vld [vmem:[%s318 + $0xd00] sm:$0xff]
        %v1425 = vld [vmem:[%s318 + $0xd08] sm:$0xff]
        %v1426 = vld [vmem:[%s318 + $0xd10] sm:$0xff]
        %v1427 = vld [vmem:[%s318 + $0xd18] sm:$0xff]
        %v1428 = vld [vmem:[%s318 + $0xd20] sm:$0xff]
        %v1429 = vld [vmem:[%s318 + $0xd28] sm:$0xff]
        %v1430 = vld [vmem:[%s318 + $0xd30] sm:$0xff]
        %v1431 = vld [vmem:[%s318 + $0xd38] sm:$0xff]
        %v1432 = vld [vmem:[%s318 + $0xd40] sm:$0xff]
        %v1433 = vld [vmem:[%s318 + $0xd48] sm:$0xff]
        %v1434 = vld [vmem:[%s318 + $0xd50] sm:$0xff]
        %v1435 = vld [vmem:[%s318 + $0xd58] sm:$0xff]
        %v1436 = vld [vmem:[%s318 + $0xd60] sm:$0xff]
        %v1437 = vld [vmem:[%s318 + $0xd68] sm:$0xff]
        %v1438 = vld [vmem:[%s318 + $0xd70] sm:$0xff]
        %v1439 = vld [vmem:[%s318 + $0xd78] sm:$0xff]
        %v1440 = vld [vmem:[%s318 + $0xd80] sm:$0xff]
        %v1441 = vld [vmem:[%s318 + $0xd88] sm:$0xff]
        %v1442 = vld [vmem:[%s318 + $0xd90] sm:$0xff]
        %v1443 = vld [vmem:[%s318 + $0xd98] sm:$0xff]
        %v1444 = vld [vmem:[%s318 + $0xda0] sm:$0xff]
        %v1445 = vld [vmem:[%s318 + $0xda8] sm:$0xff]
        %v1446 = vld [vmem:[%s318 + $0xdb0] sm:$0xff]
        %v1447 = vld [vmem:[%s318 + $0xdb8] sm:$0xff]
        %v1448 = vld [vmem:[%s318 + $0xdc0] sm:$0xff]
        %v1449 = vld [vmem:[%s318 + $0xdc8] sm:$0xff]
        %v1450 = vld [vmem:[%s318 + $0xdd0] sm:$0xff]
        %v1451 = vld [vmem:[%s318 + $0xdd8] sm:$0xff]
        %v1452 = vld [vmem:[%s318 + $0xde0] sm:$0xff]
        %v1453 = vld [vmem:[%s318 + $0xde8] sm:$0xff]
        %v1454 = vld [vmem:[%s318 + $0xdf0] sm:$0xff]
        %v1455 = vld [vmem:[%s318 + $0xdf8] sm:$0xff]
        %v1456 = vld [vmem:[%s318 + $0xe00] sm:$0xff]
        %v1457 = vld [vmem:[%s318 + $0xe08] sm:$0xff]
        %v1458 = vld [vmem:[%s318 + $0xe10] sm:$0xff]
        %v1459 = vld [vmem:[%s318 + $0xe18] sm:$0xff]
        %v1460 = vld [vmem:[%s318 + $0xe20] sm:$0xff]
        %v1461 = vld [vmem:[%s318 + $0xe28] sm:$0xff]
        %v1462 = vld [vmem:[%s318 + $0xe30] sm:$0xff]
        %v1463 = vld [vmem:[%s318 + $0xe38] sm:$0xff]
        %v1464 = vld [vmem:[%s318 + $0xe40] sm:$0xff]
        %v1465 = vld [vmem:[%s318 + $0xe48] sm:$0xff]
        %v1466 = vld [vmem:[%s318 + $0xe50] sm:$0xff]
        %v1467 = vld [vmem:[%s318 + $0xe58] sm:$0xff]
        %v1468 = vld [vmem:[%s318 + $0xe60] sm:$0xff]
        %v1469 = vld [vmem:[%s318 + $0xe68] sm:$0xff]
        %v1470 = vld [vmem:[%s318 + $0xe70] sm:$0xff]
        %v1471 = vld [vmem:[%s318 + $0xe78] sm:$0xff]
        %v1472 = vld [vmem:[%s318 + $0xe80] sm:$0xff]
        %v1473 = vld [vmem:[%s318 + $0xe88] sm:$0xff]
        %v1474 = vld [vmem:[%s318 + $0xe90] sm:$0xff]
        %v1475 = vld [vmem:[%s318 + $0xe98] sm:$0xff]
        %v1476 = vld [vmem:[%s318 + $0xea0] sm:$0xff]
        %v1477 = vld [vmem:[%s318 + $0xea8] sm:$0xff]
        %v1478 = vld [vmem:[%s318 + $0xeb0] sm:$0xff]
        %v1479 = vld [vmem:[%s318 + $0xeb8] sm:$0xff]
        %v1480 = vld [vmem:[%s318 + $0xec0] sm:$0xff]
        %v1481 = vld [vmem:[%s318 + $0xec8] sm:$0xff]
        %v1482 = vld [vmem:[%s318 + $0xed0] sm:$0xff]
        %v1483 = vld [vmem:[%s318 + $0xed8] sm:$0xff]
        %v1484 = vld [vmem:[%s318 + $0xee0] sm:$0xff]
        %v1485 = vld [vmem:[%s318 + $0xee8] sm:$0xff]
        %v1486 = vld [vmem:[%s318 + $0xef0] sm:$0xff]
        %v1487 = vld [vmem:[%s318 + $0xef8] sm:$0xff]
        %v1488 = vld [vmem:[%s318 + $0xf00] sm:$0xff]
        %v1489 = vld [vmem:[%s318 + $0xf08] sm:$0xff]
        %v1490 = vld [vmem:[%s318 + $0xf10] sm:$0xff]
        %v1491 = vld [vmem:[%s318 + $0xf18] sm:$0xff]
        %v1492 = vld [vmem:[%s318 + $0xf20] sm:$0xff]
        %v1493 = vld [vmem:[%s318 + $0xf28] sm:$0xff]
        %v1494 = vld [vmem:[%s318 + $0xf30] sm:$0xff]
        %v1495 = vld [vmem:[%s318 + $0xf38] sm:$0xff]
        %v1496 = vld [vmem:[%s318 + $0xf40] sm:$0xff]
        %v1497 = vld [vmem:[%s318 + $0xf48] sm:$0xff]
        %v1498 = vld [vmem:[%s318 + $0xf50] sm:$0xff]
        %v1499 = vld [vmem:[%s318 + $0xf58] sm:$0xff]
        %v1500 = vld [vmem:[%s318 + $0xf60] sm:$0xff]
        %v1501 = vld [vmem:[%s318 + $0xf68] sm:$0xff]
        %v1502 = vld [vmem:[%s318 + $0xf70] sm:$0xff]
        %v1503 = vld [vmem:[%s318 + $0xf78] sm:$0xff]
        %v1504 = vld [vmem:[%s318 + $0xf80] sm:$0xff]
        %v1505 = vld [vmem:[%s318 + $0xf88] sm:$0xff]
        %v1506 = vld [vmem:[%s318 + $0xf90] sm:$0xff]
        %v1507 = vld [vmem:[%s318 + $0xf98] sm:$0xff]
        %v1508 = vld [vmem:[%s318 + $0xfa0] sm:$0xff]
        %v1509 = vld [vmem:[%s318 + $0xfa8] sm:$0xff]
        %v1510 = vld [vmem:[%s318 + $0xfb0] sm:$0xff]
        %v1511 = vld [vmem:[%s318 + $0xfb8] sm:$0xff]
        %v1512 = vld [vmem:[%s318 + $0xfc0] sm:$0xff]
        %v1513 = vld [vmem:[%s318 + $0xfc8] sm:$0xff]
        %v1514 = vld [vmem:[%s318 + $0xfd0] sm:$0xff]
        %v1515 = vld [vmem:[%s318 + $0xfd8] sm:$0xff]
        %v1516 = vld [vmem:[%s318 + $0xfe0] sm:$0xff]
        %v1517 = vld [vmem:[%s318 + $0xfe8] sm:$0xff]
        %v1518 = vld [vmem:[%s318 + $0xff0] sm:$0xff]
        %v1519 = vld [vmem:[%s318 + $0xff8] sm:$0xff]
        %v1520 = vld [vmem:[%s318 + $0x1000] sm:$0xff]
        %v1521 = vld [vmem:[%s318 + $0x1008] sm:$0xff]
        %v1522 = vld [vmem:[%s318 + $0x1010] sm:$0xff]
        %v1523 = vld [vmem:[%s318 + $0x1018] sm:$0xff]
        %v1524 = vld [vmem:[%s318 + $0x1020] sm:$0xff]
        %v1525 = vld [vmem:[%s318 + $0x1028] sm:$0xff]
        %v1526 = vld [vmem:[%s318 + $0x1030] sm:$0xff]
        %v1527 = vld [vmem:[%s318 + $0x1038] sm:$0xff]
        %v1528 = vld [vmem:[%s318 + $0x1040] sm:$0xff]
        %v1529 = vld [vmem:[%s318 + $0x1048] sm:$0xff]
        %v1530 = vld [vmem:[%s318 + $0x1050] sm:$0xff]
        %v1531 = vld [vmem:[%s318 + $0x1058] sm:$0xff]
        %v1532 = vld [vmem:[%s318 + $0x1060] sm:$0xff]
        %v1533 = vld [vmem:[%s318 + $0x1068] sm:$0xff]
        %v1534 = vld [vmem:[%s318 + $0x1070] sm:$0xff]
        %v1535 = vld [vmem:[%s318 + $0x1078] sm:$0xff]
        %v1536 = vld [vmem:[%s318 + $0x1080] sm:$0xff]
        %v1537 = vld [vmem:[%s318 + $0x1088] sm:$0xff]
        %v1538 = vld [vmem:[%s318 + $0x1090] sm:$0xff]
        %v1539 = vld [vmem:[%s318 + $0x1098] sm:$0xff]
        %v1540 = vld [vmem:[%s318 + $0x10a0] sm:$0xff]
        %v1541 = vld [vmem:[%s318 + $0x10a8] sm:$0xff]
        %v1542 = vld [vmem:[%s318 + $0x10b0] sm:$0xff]
        %v1543 = vld [vmem:[%s318 + $0x10b8] sm:$0xff]
        %v1544 = vld [vmem:[%s318 + $0x10c0] sm:$0xff]
        %v1545 = vld [vmem:[%s318 + $0x10c8] sm:$0xff]
        %v1546 = vld [vmem:[%s318 + $0x10d0] sm:$0xff]
        %v1547 = vld [vmem:[%s318 + $0x10d8] sm:$0xff]
        %v1548 = vld [vmem:[%s318 + $0x10e0] sm:$0xff]
        %v1549 = vld [vmem:[%s318 + $0x10e8] sm:$0xff]
        %v1550 = vld [vmem:[%s318 + $0x10f0] sm:$0xff]
        %v1551 = vld [vmem:[%s318 + $0x10f8] sm:$0xff]
        %v1552 = vld [vmem:[%s318 + $0x1100] sm:$0xff]
        %v1553 = vld [vmem:[%s318 + $0x1108] sm:$0xff]
        %v1554 = vld [vmem:[%s318 + $0x1110] sm:$0xff]
        %v1555 = vld [vmem:[%s318 + $0x1118] sm:$0xff]
        %v1556 = vld [vmem:[%s318 + $0x1120] sm:$0xff]
        %v1557 = vld [vmem:[%s318 + $0x1128] sm:$0xff]
        %v1558 = vld [vmem:[%s318 + $0x1130] sm:$0xff]
        %v1559 = vld [vmem:[%s318 + $0x1138] sm:$0xff]
        %v1560 = vld [vmem:[%s318 + $0x1140] sm:$0xff]
        %v1561 = vld [vmem:[%s318 + $0x1148] sm:$0xff]
        %v1562 = vld [vmem:[%s318 + $0x1150] sm:$0xff]
        %v1563 = vld [vmem:[%s318 + $0x1158] sm:$0xff]
        %v1564 = vld [vmem:[%s318 + $0x1160] sm:$0xff]
        %v1565 = vld [vmem:[%s318 + $0x1168] sm:$0xff]
        %v1566 = vld [vmem:[%s318 + $0x1170] sm:$0xff]
        %v1567 = vld [vmem:[%s318 + $0x1178] sm:$0xff]
        %v1568 = vld [vmem:[%s318 + $0x1180] sm:$0xff]
        %v1569 = vld [vmem:[%s318 + $0x1188] sm:$0xff]
        %v1570 = vld [vmem:[%s318 + $0x1190] sm:$0xff]
        %v1571 = vld [vmem:[%s318 + $0x1198] sm:$0xff]
        %v1572 = vld [vmem:[%s318 + $0x11a0] sm:$0xff]
        %v1573 = vld [vmem:[%s318 + $0x11a8] sm:$0xff]
        %v1574 = vld [vmem:[%s318 + $0x11b0] sm:$0xff]
        %v1575 = vld [vmem:[%s318 + $0x11b8] sm:$0xff]
        %v1576 = vld [vmem:[%s318 + $0x11c0] sm:$0xff]
        %v1577 = vld [vmem:[%s318 + $0x11c8] sm:$0xff]
        %v1578 = vld [vmem:[%s318 + $0x11d0] sm:$0xff]
        %v1579 = vld [vmem:[%s318 + $0x11d8] sm:$0xff]
        %v1580 = vld [vmem:[%s318 + $0x11e0] sm:$0xff]
        %v1581 = vld [vmem:[%s318 + $0x11e8] sm:$0xff]
        %v1582 = vld [vmem:[%s318 + $0x11f0] sm:$0xff]
        %v1583 = vld [vmem:[%s318 + $0x11f8] sm:$0xff]
        %v1584 = vld [vmem:[%s318 + $0x1200] sm:$0xff]
        %v1585 = vld [vmem:[%s318 + $0x1208] sm:$0xff]
        %v1586 = vld [vmem:[%s318 + $0x1210] sm:$0xff]
        %v1587 = vld [vmem:[%s318 + $0x1218] sm:$0xff]
        %v1588 = vld [vmem:[%s318 + $0x1220] sm:$0xff]
        %v1589 = vld [vmem:[%s318 + $0x1228] sm:$0xff]
        %v1590 = vld [vmem:[%s318 + $0x1230] sm:$0xff]
        %v1591 = vld [vmem:[%s318 + $0x1238] sm:$0xff]
        %v1592 = vld [vmem:[%s318 + $0x1240] sm:$0xff]
        %v1593 = vld [vmem:[%s318 + $0x1248] sm:$0xff]
        %v1594 = vld [vmem:[%s318 + $0x1250] sm:$0xff]
        %v1595 = vld [vmem:[%s318 + $0x1258] sm:$0xff]
        %v1596 = vld [vmem:[%s318 + $0x1260] sm:$0xff]
        %v1597 = vld [vmem:[%s318 + $0x1268] sm:$0xff]
        %v1598 = vld [vmem:[%s318 + $0x1270] sm:$0xff]
        %v1599 = vld [vmem:[%s318 + $0x1278] sm:$0xff]
        %v1600 = vld [vmem:[%s318 + $0x1280] sm:$0xff]
        %v1601 = vld [vmem:[%s318 + $0x1288] sm:$0xff]
        %v1602 = vld [vmem:[%s318 + $0x1290] sm:$0xff]
        %v1603 = vld [vmem:[%s318 + $0x1298] sm:$0xff]
        %v1604 = vld [vmem:[%s318 + $0x12a0] sm:$0xff]
        %v1605 = vld [vmem:[%s318 + $0x12a8] sm:$0xff]
        %v1606 = vld [vmem:[%s318 + $0x12b0] sm:$0xff]
        %v1607 = vld [vmem:[%s318 + $0x12b8] sm:$0xff]
        %v1608 = vld [vmem:[%s318 + $0x12c0] sm:$0xff]
        %v1609 = vld [vmem:[%s318 + $0x12c8] sm:$0xff]
        %v1610 = vld [vmem:[%s318 + $0x12d0] sm:$0xff]
        %v1611 = vld [vmem:[%s318 + $0x12d8] sm:$0xff]
        %v1612 = vld [vmem:[%s318 + $0x12e0] sm:$0xff]
        %v1613 = vld [vmem:[%s318 + $0x12e8] sm:$0xff]
        %v1614 = vld [vmem:[%s318 + $0x12f0] sm:$0xff]
        %v1615 = vld [vmem:[%s318 + $0x12f8] sm:$0xff]
        %v1616 = vld [vmem:[%s318 + $0x1300] sm:$0xff]
        %v1617 = vld [vmem:[%s318 + $0x1308] sm:$0xff]
        %v1618 = vld [vmem:[%s318 + $0x1310] sm:$0xff]
        %v1619 = vld [vmem:[%s318 + $0x1318] sm:$0xff]
        %v1620 = vld [vmem:[%s318 + $0x1320] sm:$0xff]
        %v1621 = vld [vmem:[%s318 + $0x1328] sm:$0xff]
        %v1622 = vld [vmem:[%s318 + $0x1330] sm:$0xff]
        %v1623 = vld [vmem:[%s318 + $0x1338] sm:$0xff]
        %v1624 = vld [vmem:[%s318 + $0x1340] sm:$0xff]
        %v1625 = vld [vmem:[%s318 + $0x1348] sm:$0xff]
        %v1626 = vld [vmem:[%s318 + $0x1350] sm:$0xff]
        %v1627 = vld [vmem:[%s318 + $0x1358] sm:$0xff]
        %v1628 = vld [vmem:[%s318 + $0x1360] sm:$0xff]
        %v1629 = vld [vmem:[%s318 + $0x1368] sm:$0xff]
        %v1630 = vld [vmem:[%s318 + $0x1370] sm:$0xff]
        %v1631 = vld [vmem:[%s318 + $0x1378] sm:$0xff]
        %v1632 = vld [vmem:[%s318 + $0x1380] sm:$0xff]
        %v1633 = vld [vmem:[%s318 + $0x1388] sm:$0xff]
        %v1634 = vld [vmem:[%s318 + $0x1390] sm:$0xff]
        %v1635 = vld [vmem:[%s318 + $0x1398] sm:$0xff]
        %v1636 = vld [vmem:[%s318 + $0x13a0] sm:$0xff]
        %v1637 = vld [vmem:[%s318 + $0x13a8] sm:$0xff]
        %v1638 = vld [vmem:[%s318 + $0x13b0] sm:$0xff]
        %v1639 = vld [vmem:[%s318 + $0x13b8] sm:$0xff]
        %v1640 = vld [vmem:[%s318 + $0x13c0] sm:$0xff]
        %v1641 = vld [vmem:[%s318 + $0x13c8] sm:$0xff]
        %v1642 = vld [vmem:[%s318 + $0x13d0] sm:$0xff]
        %v1643 = vld [vmem:[%s318 + $0x13d8] sm:$0xff]
        %v1644 = vld [vmem:[%s318 + $0x13e0] sm:$0xff]
        %v1645 = vld [vmem:[%s318 + $0x13e8] sm:$0xff]
        %v1646 = vld [vmem:[%s318 + $0x13f0] sm:$0xff]
        %v1647 = vld [vmem:[%s318 + $0x13f8] sm:$0xff]
        %v1648 = vld [vmem:[%s318 + $0x1400] sm:$0xff]
        %v1649 = vld [vmem:[%s318 + $0x1408] sm:$0xff]
        %v1650 = vld [vmem:[%s318 + $0x1410] sm:$0xff]
        %v1651 = vld [vmem:[%s318 + $0x1418] sm:$0xff]
        %v1652 = vld [vmem:[%s318 + $0x1420] sm:$0xff]
        %v1653 = vld [vmem:[%s318 + $0x1428] sm:$0xff]
        %v1654 = vld [vmem:[%s318 + $0x1430] sm:$0xff]
        %v1655 = vld [vmem:[%s318 + $0x1438] sm:$0xff]
        %v1656 = vld [vmem:[%s318 + $0x1440] sm:$0xff]
        %v1657 = vld [vmem:[%s318 + $0x1448] sm:$0xff]
        %v1658 = vld [vmem:[%s318 + $0x1450] sm:$0xff]
        %v1659 = vld [vmem:[%s318 + $0x1458] sm:$0xff]
        %v1660 = vld [vmem:[%s318 + $0x1460] sm:$0xff]
        %v1661 = vld [vmem:[%s318 + $0x1468] sm:$0xff]
        %v1662 = vld [vmem:[%s318 + $0x1470] sm:$0xff]
        %v1663 = vld [vmem:[%s318 + $0x1478] sm:$0xff]
        %v1664 = vld [vmem:[%s318 + $0x1480] sm:$0xff]
        %v1665 = vld [vmem:[%s318 + $0x1488] sm:$0xff]
        %v1666 = vld [vmem:[%s318 + $0x1490] sm:$0xff]
        %v1667 = vld [vmem:[%s318 + $0x1498] sm:$0xff]
        %v1668 = vld [vmem:[%s318 + $0x14a0] sm:$0xff]
        %v1669 = vld [vmem:[%s318 + $0x14a8] sm:$0xff]
        %v1670 = vld [vmem:[%s318 + $0x14b0] sm:$0xff]
        %v1671 = vld [vmem:[%s318 + $0x14b8] sm:$0xff]
        %v1672 = vld [vmem:[%s318 + $0x14c0] sm:$0xff]
        %v1673 = vld [vmem:[%s318 + $0x14c8] sm:$0xff]
        %v1674 = vld [vmem:[%s318 + $0x14d0] sm:$0xff]
        %v1675 = vld [vmem:[%s318 + $0x14d8] sm:$0xff]
        %v1676 = vld [vmem:[%s318 + $0x14e0] sm:$0xff]
        %v1677 = vld [vmem:[%s318 + $0x14e8] sm:$0xff]
        %v1678 = vld [vmem:[%s318 + $0x14f0] sm:$0xff]
        %v1679 = vld [vmem:[%s318 + $0x14f8] sm:$0xff]
        %v1680 = vld [vmem:[%s318 + $0x1500] sm:$0xff]
        %v1681 = vld [vmem:[%s318 + $0x1508] sm:$0xff]
        %v1682 = vld [vmem:[%s318 + $0x1510] sm:$0xff]
        %v1683 = vld [vmem:[%s318 + $0x1518] sm:$0xff]
        %v1684 = vld [vmem:[%s318 + $0x1520] sm:$0xff]
        %v1685 = vld [vmem:[%s318 + $0x1528] sm:$0xff]
        %v1686 = vld [vmem:[%s318 + $0x1530] sm:$0xff]
        %v1687 = vld [vmem:[%s318 + $0x1538] sm:$0xff]
        %v1688 = vld [vmem:[%s318 + $0x1540] sm:$0xff]
        %v1689 = vld [vmem:[%s318 + $0x1548] sm:$0xff]
        %v1690 = vld [vmem:[%s318 + $0x1550] sm:$0xff]
        %v1691 = vld [vmem:[%s318 + $0x1558] sm:$0xff]
        %v1692 = vld [vmem:[%s318 + $0x1560] sm:$0xff]
        %v1693 = vld [vmem:[%s318 + $0x1568] sm:$0xff]
        %v1694 = vld [vmem:[%s318 + $0x1570] sm:$0xff]
        %v1695 = vld [vmem:[%s318 + $0x1578] sm:$0xff]
        %v1696 = vld [vmem:[%s318 + $0x1580] sm:$0xff]
        %v1697 = vld [vmem:[%s318 + $0x1588] sm:$0xff]
        %v1698 = vld [vmem:[%s318 + $0x1590] sm:$0xff]
        %v1699 = vld [vmem:[%s318 + $0x1598] sm:$0xff]
        %v1700 = vld [vmem:[%s318 + $0x15a0] sm:$0xff]
        %v1701 = vld [vmem:[%s318 + $0x15a8] sm:$0xff]
        %v1702 = vld [vmem:[%s318 + $0x15b0] sm:$0xff]
        %v1703 = vld [vmem:[%s318 + $0x15b8] sm:$0xff]
        %v1704 = vld [vmem:[%s318 + $0x15c0] sm:$0xff]
        %v1705 = vld [vmem:[%s318 + $0x15c8] sm:$0xff]
        %v1706 = vld [vmem:[%s318 + $0x15d0] sm:$0xff]
        %v1707 = vld [vmem:[%s318 + $0x15d8] sm:$0xff]
        %v1708 = vld [vmem:[%s318 + $0x15e0] sm:$0xff]
        %v1709 = vld [vmem:[%s318 + $0x15e8] sm:$0xff]
        %v1710 = vld [vmem:[%s318 + $0x15f0] sm:$0xff]
        %v1711 = vld [vmem:[%s318 + $0x15f8] sm:$0xff]
        %v1712 = vld [vmem:[%s318 + $0x1600] sm:$0xff]
        %v1713 = vld [vmem:[%s318 + $0x1608] sm:$0xff]
        %v1714 = vld [vmem:[%s318 + $0x1610] sm:$0xff]
        %v1715 = vld [vmem:[%s318 + $0x1618] sm:$0xff]
        %v1716 = vld [vmem:[%s318 + $0x1620] sm:$0xff]
        %v1717 = vld [vmem:[%s318 + $0x1628] sm:$0xff]
        %v1718 = vld [vmem:[%s318 + $0x1630] sm:$0xff]
        %v1719 = vld [vmem:[%s318 + $0x1638] sm:$0xff]
        %v1720 = vld [vmem:[%s318 + $0x1640] sm:$0xff]
        %v1721 = vld [vmem:[%s318 + $0x1648] sm:$0xff]
        %v1722 = vld [vmem:[%s318 + $0x1650] sm:$0xff]
        %v1723 = vld [vmem:[%s318 + $0x1658] sm:$0xff]
        %v1724 = vld [vmem:[%s318 + $0x1660] sm:$0xff]
        %v1725 = vld [vmem:[%s318 + $0x1668] sm:$0xff]
        %v1726 = vld [vmem:[%s318 + $0x1670] sm:$0xff]
        %v1727 = vld [vmem:[%s318 + $0x1678] sm:$0xff]
        %v1728 = vld [vmem:[%s318 + $0x1680] sm:$0xff]
        %v1729 = vld [vmem:[%s318 + $0x1688] sm:$0xff]
        %v1730 = vld [vmem:[%s318 + $0x1690] sm:$0xff]
        %v1731 = vld [vmem:[%s318 + $0x1698] sm:$0xff]
        %v1732 = vld [vmem:[%s318 + $0x16a0] sm:$0xff]
        %v1733 = vld [vmem:[%s318 + $0x16a8] sm:$0xff]
        %v1734 = vld [vmem:[%s318 + $0x16b0] sm:$0xff]
        %v1735 = vld [vmem:[%s318 + $0x16b8] sm:$0xff]
        %v1736 = vld [vmem:[%s318 + $0x16c0] sm:$0xff]
        %v1737 = vld [vmem:[%s318 + $0x16c8] sm:$0xff]
        %v1738 = vld [vmem:[%s318 + $0x16d0] sm:$0xff]
        %v1739 = vld [vmem:[%s318 + $0x16d8] sm:$0xff]
        %v1740 = vld [vmem:[%s318 + $0x16e0] sm:$0xff]
        %v1741 = vld [vmem:[%s318 + $0x16e8] sm:$0xff]
        %v1742 = vld [vmem:[%s318 + $0x16f0] sm:$0xff]
        %v1743 = vld [vmem:[%s318 + $0x16f8] sm:$0xff]
        %v1744 = vld [vmem:[%s318 + $0x1700] sm:$0xff]
        %v1745 = vld [vmem:[%s318 + $0x1708] sm:$0xff]
        %v1746 = vld [vmem:[%s318 + $0x1710] sm:$0xff]
        %v1747 = vld [vmem:[%s318 + $0x1718] sm:$0xff]
        %v1748 = vld [vmem:[%s318 + $0x1720] sm:$0xff]
        %v1749 = vld [vmem:[%s318 + $0x1728] sm:$0xff]
        %v1750 = vld [vmem:[%s318 + $0x1730] sm:$0xff]
        %v1751 = vld [vmem:[%s318 + $0x1738] sm:$0xff]
        %v1752 = vld [vmem:[%s318 + $0x1740] sm:$0xff]
        %v1753 = vld [vmem:[%s318 + $0x1748] sm:$0xff]
        %v1754 = vld [vmem:[%s318 + $0x1750] sm:$0xff]
        %v1755 = vld [vmem:[%s318 + $0x1758] sm:$0xff]
        %v1756 = vld [vmem:[%s318 + $0x1760] sm:$0xff]
        %v1757 = vld [vmem:[%s318 + $0x1768] sm:$0xff]
        %v1758 = vld [vmem:[%s318 + $0x1770] sm:$0xff]
        %v1759 = vld [vmem:[%s318 + $0x1778] sm:$0xff]
        %v1760 = vld [vmem:[%s318 + $0x1780] sm:$0xff]
        %v1761 = vld [vmem:[%s318 + $0x1788] sm:$0xff]
        %v1762 = vld [vmem:[%s318 + $0x1790] sm:$0xff]
        %v1763 = vld [vmem:[%s318 + $0x1798] sm:$0xff]
        %v1764 = vld [vmem:[%s318 + $0x17a0] sm:$0xff]
        %v1765 = vld [vmem:[%s318 + $0x17a8] sm:$0xff]
        %v1766 = vld [vmem:[%s318 + $0x17b0] sm:$0xff]
        %v1767 = vld [vmem:[%s318 + $0x17b8] sm:$0xff]
        %v1768 = vld [vmem:[%s318 + $0x17c0] sm:$0xff]
        %v1769 = vld [vmem:[%s318 + $0x17c8] sm:$0xff]
        %v1770 = vld [vmem:[%s318 + $0x17d0] sm:$0xff]
        %v1771 = vld [vmem:[%s318 + $0x17d8] sm:$0xff]
        %v1772 = vld [vmem:[%s318 + $0x17e0] sm:$0xff]
        %v1773 = vld [vmem:[%s318 + $0x17e8] sm:$0xff]
        %v1774 = vld [vmem:[%s318 + $0x17f0] sm:$0xff]
        %v1775 = vld [vmem:[%s318 + $0x17f8] sm:$0xff]
        %v1776 = vld [vmem:[%s318 + $0x1800] sm:$0xff]
        %v1777 = vld [vmem:[%s318 + $0x1808] sm:$0xff]
        %v1778 = vld [vmem:[%s318 + $0x1810] sm:$0xff]
        %v1779 = vld [vmem:[%s318 + $0x1818] sm:$0xff]
        %v1780 = vld [vmem:[%s318 + $0x1820] sm:$0xff]
        %v1781 = vld [vmem:[%s318 + $0x1828] sm:$0xff]
        %v1782 = vld [vmem:[%s318 + $0x1830] sm:$0xff]
        %v1783 = vld [vmem:[%s318 + $0x1838] sm:$0xff]
        %v1784 = vld [vmem:[%s318 + $0x1840] sm:$0xff]
        %v1785 = vld [vmem:[%s318 + $0x1848] sm:$0xff]
        %v1786 = vld [vmem:[%s318 + $0x1850] sm:$0xff]
        %v1787 = vld [vmem:[%s318 + $0x1858] sm:$0xff]
        %v1788 = vld [vmem:[%s318 + $0x1860] sm:$0xff]
        %v1789 = vld [vmem:[%s318 + $0x1868] sm:$0xff]
        %v1790 = vld [vmem:[%s318 + $0x1870] sm:$0xff]
        %v1791 = vld [vmem:[%s318 + $0x1878] sm:$0xff]
        %v1792 = vld [vmem:[%s318 + $0x1880] sm:$0xff]
        %v1793 = vld [vmem:[%s318 + $0x1888] sm:$0xff]
        %v1794 = vld [vmem:[%s318 + $0x1890] sm:$0xff]
        %v1795 = vld [vmem:[%s318 + $0x1898] sm:$0xff]
        %v1796 = vld [vmem:[%s318 + $0x18a0] sm:$0xff]
        %v1797 = vld [vmem:[%s318 + $0x18a8] sm:$0xff]
        %v1798 = vld [vmem:[%s318 + $0x18b0] sm:$0xff]
        %v1799 = vld [vmem:[%s318 + $0x18b8] sm:$0xff]
        %v1800 = vld [vmem:[%s318 + $0x18c0] sm:$0xff]
        %v1801 = vld [vmem:[%s318 + $0x18c8] sm:$0xff]
        %v1802 = vld [vmem:[%s318 + $0x18d0] sm:$0xff]
        %v1803 = vld [vmem:[%s318 + $0x18d8] sm:$0xff]
        %v1804 = vld [vmem:[%s318 + $0x18e0] sm:$0xff]
        %v1805 = vld [vmem:[%s318 + $0x18e8] sm:$0xff]
        %v1806 = vld [vmem:[%s318 + $0x18f0] sm:$0xff]
        %v1807 = vld [vmem:[%s318 + $0x18f8] sm:$0xff]
        %v1808 = vld [vmem:[%s318 + $0x1900] sm:$0xff]
        %v1809 = vld [vmem:[%s318 + $0x1908] sm:$0xff]
        %v1810 = vld [vmem:[%s318 + $0x1910] sm:$0xff]
        %v1811 = vld [vmem:[%s318 + $0x1918] sm:$0xff]
        %v1812 = vld [vmem:[%s318 + $0x1920] sm:$0xff]
        %v1813 = vld [vmem:[%s318 + $0x1928] sm:$0xff]
        %v1814 = vld [vmem:[%s318 + $0x1930] sm:$0xff]
        %v1815 = vld [vmem:[%s318 + $0x1938] sm:$0xff]
        %v1816 = vld [vmem:[%s318 + $0x1940] sm:$0xff]
        %v1817 = vld [vmem:[%s318 + $0x1948] sm:$0xff]
        %v1818 = vld [vmem:[%s318 + $0x1950] sm:$0xff]
        %v1819 = vld [vmem:[%s318 + $0x1958] sm:$0xff]
        %v1820 = vld [vmem:[%s318 + $0x1960] sm:$0xff]
        %v1821 = vld [vmem:[%s318 + $0x1968] sm:$0xff]
        %v1822 = vld [vmem:[%s318 + $0x1970] sm:$0xff]
        %v1823 = vld [vmem:[%s318 + $0x1978] sm:$0xff]
        %v1824 = vld [vmem:[%s318 + $0x1980] sm:$0xff]
        %v1825 = vld [vmem:[%s318 + $0x1988] sm:$0xff]
        %v1826 = vld [vmem:[%s318 + $0x1990] sm:$0xff]
        %v1827 = vld [vmem:[%s318 + $0x1998] sm:$0xff]
        %v1828 = vld [vmem:[%s318 + $0x19a0] sm:$0xff]
        %v1829 = vld [vmem:[%s318 + $0x19a8] sm:$0xff]
        %v1830 = vld [vmem:[%s318 + $0x19b0] sm:$0xff]
        %v1831 = vld [vmem:[%s318 + $0x19b8] sm:$0xff]
        %v1832 = vld [vmem:[%s318 + $0x19c0] sm:$0xff]
        %v1833 = vld [vmem:[%s318 + $0x19c8] sm:$0xff]
        %v1834 = vld [vmem:[%s318 + $0x19d0] sm:$0xff]
        %v1835 = vld [vmem:[%s318 + $0x19d8] sm:$0xff]
        %v1836 = vld [vmem:[%s318 + $0x19e0] sm:$0xff]
        %v1837 = vld [vmem:[%s318 + $0x19e8] sm:$0xff]
        %v1838 = vld [vmem:[%s318 + $0x19f0] sm:$0xff]
        %v1839 = vld [vmem:[%s318 + $0x19f8] sm:$0xff]
        %v1840 = vld [vmem:[%s318 + $0x1a00] sm:$0xff]
        %v1841 = vld [vmem:[%s318 + $0x1a08] sm:$0xff]
        %v1842 = vld [vmem:[%s318 + $0x1a10] sm:$0xff]
        %v1843 = vld [vmem:[%s318 + $0x1a18] sm:$0xff]
        %v1844 = vld [vmem:[%s318 + $0x1a20] sm:$0xff]
        %v1845 = vld [vmem:[%s318 + $0x1a28] sm:$0xff]
        %v1846 = vld [vmem:[%s318 + $0x1a30] sm:$0xff]
        %v1847 = vld [vmem:[%s318 + $0x1a38] sm:$0xff]
        %v1848 = vld [vmem:[%s318 + $0x1a40] sm:$0xff]
        %v1849 = vld [vmem:[%s318 + $0x1a48] sm:$0xff]
        %v1850 = vld [vmem:[%s318 + $0x1a50] sm:$0xff]
        %v1851 = vld [vmem:[%s318 + $0x1a58] sm:$0xff]
        %v1852 = vld [vmem:[%s318 + $0x1a60] sm:$0xff]
        %v1853 = vld [vmem:[%s318 + $0x1a68] sm:$0xff]
        %v1854 = vld [vmem:[%s318 + $0x1a70] sm:$0xff]
        %v1855 = vld [vmem:[%s318 + $0x1a78] sm:$0xff]
        %v1856 = vld [vmem:[%s318 + $0x1a80] sm:$0xff]
        %v1857 = vld [vmem:[%s318 + $0x1a88] sm:$0xff]
        %v1858 = vld [vmem:[%s318 + $0x1a90] sm:$0xff]
        %v1859 = vld [vmem:[%s318 + $0x1a98] sm:$0xff]
        %v1860 = vld [vmem:[%s318 + $0x1aa0] sm:$0xff]
        %v1861 = vld [vmem:[%s318 + $0x1aa8] sm:$0xff]
        %v1862 = vld [vmem:[%s318 + $0x1ab0] sm:$0xff]
        %v1863 = vld [vmem:[%s318 + $0x1ab8] sm:$0xff]
        %v1864 = vld [vmem:[%s318 + $0x1ac0] sm:$0xff]
        %v1865 = vld [vmem:[%s318 + $0x1ac8] sm:$0xff]
        %v1866 = vld [vmem:[%s318 + $0x1ad0] sm:$0xff]
        %v1867 = vld [vmem:[%s318 + $0x1ad8] sm:$0xff]
        %v1868 = vld [vmem:[%s318 + $0x1ae0] sm:$0xff]
        %v1869 = vld [vmem:[%s318 + $0x1ae8] sm:$0xff]
        %v1870 = vld [vmem:[%s318 + $0x1af0] sm:$0xff]
        %v1871 = vld [vmem:[%s318 + $0x1af8] sm:$0xff]
        %v1872 = vld [vmem:[%s318 + $0x1b00] sm:$0xff]
        %v1873 = vld [vmem:[%s318 + $0x1b08] sm:$0xff]
        %v1874 = vld [vmem:[%s318 + $0x1b10] sm:$0xff]
        %v1875 = vld [vmem:[%s318 + $0x1b18] sm:$0xff]
        %v1876 = vld [vmem:[%s318 + $0x1b20] sm:$0xff]
        %v1877 = vld [vmem:[%s318 + $0x1b28] sm:$0xff]
        %v1878 = vld [vmem:[%s318 + $0x1b30] sm:$0xff]
        %v1879 = vld [vmem:[%s318 + $0x1b38] sm:$0xff]
        %v1880 = vld [vmem:[%s318 + $0x1b40] sm:$0xff]
        %v1881 = vld [vmem:[%s318 + $0x1b48] sm:$0xff]
        %v1882 = vld [vmem:[%s318 + $0x1b50] sm:$0xff]
        %v1883 = vld [vmem:[%s318 + $0x1b58] sm:$0xff]
        %v1884 = vld [vmem:[%s318 + $0x1b60] sm:$0xff]
        %v1885 = vld [vmem:[%s318 + $0x1b68] sm:$0xff]
        %v1886 = vld [vmem:[%s318 + $0x1b70] sm:$0xff]
        %v1887 = vld [vmem:[%s318 + $0x1b78] sm:$0xff]
        %v1888 = vld [vmem:[%s318 + $0x1b80] sm:$0xff]
        %v1889 = vld [vmem:[%s318 + $0x1b88] sm:$0xff]
        %v1890 = vld [vmem:[%s318 + $0x1b90] sm:$0xff]
        %v1891 = vld [vmem:[%s318 + $0x1b98] sm:$0xff]
        %v1892 = vld [vmem:[%s318 + $0x1ba0] sm:$0xff]
        %v1893 = vld [vmem:[%s318 + $0x1ba8] sm:$0xff]
        %v1894 = vld [vmem:[%s318 + $0x1bb0] sm:$0xff]
        %v1895 = vld [vmem:[%s318 + $0x1bb8] sm:$0xff]
        %v1896 = vld [vmem:[%s318 + $0x1bc0] sm:$0xff]
        %v1897 = vld [vmem:[%s318 + $0x1bc8] sm:$0xff]
        %v1898 = vld [vmem:[%s318 + $0x1bd0] sm:$0xff]
        %v1899 = vld [vmem:[%s318 + $0x1bd8] sm:$0xff]
        %v1900 = vld [vmem:[%s318 + $0x1be0] sm:$0xff]
        %v1901 = vld [vmem:[%s318 + $0x1be8] sm:$0xff]
        %v1902 = vld [vmem:[%s318 + $0x1bf0] sm:$0xff]
        %v1903 = vld [vmem:[%s318 + $0x1bf8] sm:$0xff]
        %v1904 = vld [vmem:[%s318 + $0x1c00] sm:$0xff]
        %v1905 = vld [vmem:[%s318 + $0x1c08] sm:$0xff]
        %v1906 = vld [vmem:[%s318 + $0x1c10] sm:$0xff]
        %v1907 = vld [vmem:[%s318 + $0x1c18] sm:$0xff]
        %v1908 = vld [vmem:[%s318 + $0x1c20] sm:$0xff]
        %v1909 = vld [vmem:[%s318 + $0x1c28] sm:$0xff]
        %v1910 = vld [vmem:[%s318 + $0x1c30] sm:$0xff]
        %v1911 = vld [vmem:[%s318 + $0x1c38] sm:$0xff]
        %v1912 = vld [vmem:[%s318 + $0x1c40] sm:$0xff]
        %v1913 = vld [vmem:[%s318 + $0x1c48] sm:$0xff]
        %v1914 = vld [vmem:[%s318 + $0x1c50] sm:$0xff]
        %v1915 = vld [vmem:[%s318 + $0x1c58] sm:$0xff]
        %v1916 = vld [vmem:[%s318 + $0x1c60] sm:$0xff]
        %v1917 = vld [vmem:[%s318 + $0x1c68] sm:$0xff]
        %v1918 = vld [vmem:[%s318 + $0x1c70] sm:$0xff]
        %v1919 = vld [vmem:[%s318 + $0x1c78] sm:$0xff]
        %v1920 = vld [vmem:[%s318 + $0x1c80] sm:$0xff]
        %v1921 = vld [vmem:[%s318 + $0x1c88] sm:$0xff]
        %v1922 = vld [vmem:[%s318 + $0x1c90] sm:$0xff]
        %v1923 = vld [vmem:[%s318 + $0x1c98] sm:$0xff]
        %v1924 = vld [vmem:[%s318 + $0x1ca0] sm:$0xff]
        %v1925 = vld [vmem:[%s318 + $0x1ca8] sm:$0xff]
        %v1926 = vld [vmem:[%s318 + $0x1cb0] sm:$0xff]
        %v1927 = vld [vmem:[%s318 + $0x1cb8] sm:$0xff]
        %v1928 = vld [vmem:[%s318 + $0x1cc0] sm:$0xff]
        %v1929 = vld [vmem:[%s318 + $0x1cc8] sm:$0xff]
        %v1930 = vld [vmem:[%s318 + $0x1cd0] sm:$0xff]
        %v1931 = vld [vmem:[%s318 + $0x1cd8] sm:$0xff]
        %v1932 = vld [vmem:[%s318 + $0x1ce0] sm:$0xff]
        %v1933 = vld [vmem:[%s318 + $0x1ce8] sm:$0xff]
        %v1934 = vld [vmem:[%s318 + $0x1cf0] sm:$0xff]
        %v1935 = vld [vmem:[%s318 + $0x1cf8] sm:$0xff]
        %v1936 = vld [vmem:[%s318 + $0x1d00] sm:$0xff]
        %v1937 = vld [vmem:[%s318 + $0x1d08] sm:$0xff]
        %v1938 = vld [vmem:[%s318 + $0x1d10] sm:$0xff]
        %v1939 = vld [vmem:[%s318 + $0x1d18] sm:$0xff]
        %v1940 = vld [vmem:[%s318 + $0x1d20] sm:$0xff]
        %v1941 = vld [vmem:[%s318 + $0x1d28] sm:$0xff]
        %v1942 = vld [vmem:[%s318 + $0x1d30] sm:$0xff]
        %v1943 = vld [vmem:[%s318 + $0x1d38] sm:$0xff]
        %v1944 = vld [vmem:[%s318 + $0x1d40] sm:$0xff]
        %v1945 = vld [vmem:[%s318 + $0x1d48] sm:$0xff]
        %v1946 = vld [vmem:[%s318 + $0x1d50] sm:$0xff]
        %v1947 = vld [vmem:[%s318 + $0x1d58] sm:$0xff]
        %v1948 = vld [vmem:[%s318 + $0x1d60] sm:$0xff]
        %v1949 = vld [vmem:[%s318 + $0x1d68] sm:$0xff]
        %v1950 = vld [vmem:[%s318 + $0x1d70] sm:$0xff]
        %v1951 = vld [vmem:[%s318 + $0x1d78] sm:$0xff]
        %v1952 = vld [vmem:[%s318 + $0x1d80] sm:$0xff]
        %v1953 = vld [vmem:[%s318 + $0x1d88] sm:$0xff]
        %v1954 = vld [vmem:[%s318 + $0x1d90] sm:$0xff]
        %v1955 = vld [vmem:[%s318 + $0x1d98] sm:$0xff]
        %v1956 = vld [vmem:[%s318 + $0x1da0] sm:$0xff]
        %v1957 = vld [vmem:[%s318 + $0x1da8] sm:$0xff]
        %v1958 = vld [vmem:[%s318 + $0x1db0] sm:$0xff]
        %v1959 = vld [vmem:[%s318 + $0x1db8] sm:$0xff]
        %v1960 = vld [vmem:[%s318 + $0x1dc0] sm:$0xff]
        %v1961 = vld [vmem:[%s318 + $0x1dc8] sm:$0xff]
        %v1962 = vld [vmem:[%s318 + $0x1dd0] sm:$0xff]
        %v1963 = vld [vmem:[%s318 + $0x1dd8] sm:$0xff]
        %v1964 = vld [vmem:[%s318 + $0x1de0] sm:$0xff]
        %v1965 = vld [vmem:[%s318 + $0x1de8] sm:$0xff]
        %v1966 = vld [vmem:[%s318 + $0x1df0] sm:$0xff]
        %v1967 = vld [vmem:[%s318 + $0x1df8] sm:$0xff]
        %v1968 = vld [vmem:[%s318 + $0x1e00] sm:$0xff]
        %v1969 = vld [vmem:[%s318 + $0x1e08] sm:$0xff]
        %v1970 = vld [vmem:[%s318 + $0x1e10] sm:$0xff]
        %v1971 = vld [vmem:[%s318 + $0x1e18] sm:$0xff]
        %v1972 = vld [vmem:[%s318 + $0x1e20] sm:$0xff]
        %v1973 = vld [vmem:[%s318 + $0x1e28] sm:$0xff]
        %v1974 = vld [vmem:[%s318 + $0x1e30] sm:$0xff]
        %v1975 = vld [vmem:[%s318 + $0x1e38] sm:$0xff]
        %v1976 = vld [vmem:[%s318 + $0x1e40] sm:$0xff]
        %v1977 = vld [vmem:[%s318 + $0x1e48] sm:$0xff]
        %v1978 = vld [vmem:[%s318 + $0x1e50] sm:$0xff]
        %v1979 = vld [vmem:[%s318 + $0x1e58] sm:$0xff]
        %v1980 = vld [vmem:[%s318 + $0x1e60] sm:$0xff]
        %v1981 = vld [vmem:[%s318 + $0x1e68] sm:$0xff]
        %v1982 = vld [vmem:[%s318 + $0x1e70] sm:$0xff]
        %v1983 = vld [vmem:[%s318 + $0x1e78] sm:$0xff]
        %v1984 = vld [vmem:[%s318 + $0x1e80] sm:$0xff]
        %v1985 = vld [vmem:[%s318 + $0x1e88] sm:$0xff]
        %v1986 = vld [vmem:[%s318 + $0x1e90] sm:$0xff]
        %v1987 = vld [vmem:[%s318 + $0x1e98] sm:$0xff]
        %v1988 = vld [vmem:[%s318 + $0x1ea0] sm:$0xff]
        %v1989 = vld [vmem:[%s318 + $0x1ea8] sm:$0xff]
        %v1990 = vld [vmem:[%s318 + $0x1eb0] sm:$0xff]
        %v1991 = vld [vmem:[%s318 + $0x1eb8] sm:$0xff]
        %v1992 = vld [vmem:[%s318 + $0x1ec0] sm:$0xff]
        %v1993 = vld [vmem:[%s318 + $0x1ec8] sm:$0xff]
        %v1994 = vld [vmem:[%s318 + $0x1ed0] sm:$0xff]
        %v1995 = vld [vmem:[%s318 + $0x1ed8] sm:$0xff]
        %v1996 = vld [vmem:[%s318 + $0x1ee0] sm:$0xff]
        %v1997 = vld [vmem:[%s318 + $0x1ee8] sm:$0xff]
        %v1998 = vld [vmem:[%s318 + $0x1ef0] sm:$0xff]
        %v1999 = vld [vmem:[%s318 + $0x1ef8] sm:$0xff]
        %v2000 = vld [vmem:[%s318 + $0x1f00] sm:$0xff]
        %v2001 = vld [vmem:[%s318 + $0x1f08] sm:$0xff]
        %v2002 = vld [vmem:[%s318 + $0x1f10] sm:$0xff]
        %v2003 = vld [vmem:[%s318 + $0x1f18] sm:$0xff]
        %v2004 = vld [vmem:[%s318 + $0x1f20] sm:$0xff]
        %v2005 = vld [vmem:[%s318 + $0x1f28] sm:$0xff]
        %v2006 = vld [vmem:[%s318 + $0x1f30] sm:$0xff]
        %v2007 = vld [vmem:[%s318 + $0x1f38] sm:$0xff]
        %v2008 = vld [vmem:[%s318 + $0x1f40] sm:$0xff]
        %v2009 = vld [vmem:[%s318 + $0x1f48] sm:$0xff]
        %v2010 = vld [vmem:[%s318 + $0x1f50] sm:$0xff]
        %v2011 = vld [vmem:[%s318 + $0x1f58] sm:$0xff]
        %v2012 = vld [vmem:[%s318 + $0x1f60] sm:$0xff]
        %v2013 = vld [vmem:[%s318 + $0x1f68] sm:$0xff]
        %v2014 = vld [vmem:[%s318 + $0x1f70] sm:$0xff]
        %v2015 = vld [vmem:[%s318 + $0x1f78] sm:$0xff]
        %v2016 = vld [vmem:[%s318 + $0x1f80] sm:$0xff]
        %v2017 = vld [vmem:[%s318 + $0x1f88] sm:$0xff]
        %v2018 = vld [vmem:[%s318 + $0x1f90] sm:$0xff]
        %v2019 = vld [vmem:[%s318 + $0x1f98] sm:$0xff]
        %v2020 = vld [vmem:[%s318 + $0x1fa0] sm:$0xff]
        %v2021 = vld [vmem:[%s318 + $0x1fa8] sm:$0xff]
        %v2022 = vld [vmem:[%s318 + $0x1fb0] sm:$0xff]
        %v2023 = vld [vmem:[%s318 + $0x1fb8] sm:$0xff]
        %v2024 = vld [vmem:[%s318 + $0x1fc0] sm:$0xff]
        %v2025 = vld [vmem:[%s318 + $0x1fc8] sm:$0xff]
        %v2026 = vld [vmem:[%s318 + $0x1fd0] sm:$0xff]
        %v2027 = vld [vmem:[%s318 + $0x1fd8] sm:$0xff]
        %v2028 = vld [vmem:[%s318 + $0x1fe0] sm:$0xff]
        %v2029 = vld [vmem:[%s318 + $0x1fe8] sm:$0xff]
        %v2030 = vld [vmem:[%s318 + $0x1ff0] sm:$0xff]
        %v2031 = vld [vmem:[%s318 + $0x1ff8] sm:$0xff]
        %v2032 = vld [vmem:[%s328] sm:$0xff]
        %v2034 = vperm.slane %v2032, 0
        %v2035 = vperm.slane %v2032, 1
        %v2036 = vperm.slane %v2032, 2
        %v2037 = vperm.slane %v2032, 3
        %v2038 = vperm.slane %v2032, 4
        %v2039 = vperm.slane %v2032, 5
        %v2040 = vperm.slane %v2032, 6
        %v2041 = vperm.slane %v2032, 7
        %v2058 = vunpack.c.l.b16 %v1000
        %v2059 = vunpack.c.h.b16 %v1000
        %v2060 = vunpack.c.l.b16 %v1001
        %v2061 = vunpack.c.h.b16 %v1001
        %v2062 = vunpack.c.l.b16 %v1002
        %v2063 = vunpack.c.h.b16 %v1002
        %v2064 = vunpack.c.l.b16 %v1003
        %v2065 = vunpack.c.h.b16 %v1003
        %v2066 = vunpack.c.l.b16 %v1004
        %v2067 = vunpack.c.h.b16 %v1004
        %v2068 = vunpack.c.l.b16 %v1005
        %v2069 = vunpack.c.h.b16 %v1005
        %v2070 = vunpack.c.l.b16 %v1006
        %v2071 = vunpack.c.h.b16 %v1006
        %v2072 = vunpack.c.l.b16 %v1007
        %v2073 = vunpack.c.h.b16 %v1007
        %v2074 = vpack.c.b16 %v2058, %v2058
        %v2075 = vpack.c.b16 %v2059, %v2059
        %v2076 = vpack.c.b16 %v2060, %v2060
        %v2077 = vpack.c.b16 %v2061, %v2061
        %v2078 = vpack.c.b16 %v2062, %v2062
        %v2079 = vpack.c.b16 %v2063, %v2063
        %v2080 = vpack.c.b16 %v2064, %v2064
        %v2081 = vpack.c.b16 %v2065, %v2065
        %v2082 = vpack.c.b16 %v2066, %v2066
        %v2083 = vpack.c.b16 %v2067, %v2067
        %v2084 = vpack.c.b16 %v2068, %v2068
        %v2085 = vpack.c.b16 %v2069, %v2069
        %v2086 = vpack.c.b16 %v2070, %v2070
        %v2087 = vpack.c.b16 %v2071, %v2071
        %v2088 = vpack.c.b16 %v2072, %v2072
        %v2089 = vpack.c.b16 %v2073, %v2073
        %v3130 = vunpack.c.l.b16 %v1008
        %v3131 = vunpack.c.h.b16 %v1008
        %v3132 = vunpack.c.l.b16 %v1009
        %v3133 = vunpack.c.h.b16 %v1009
        %v3134 = vunpack.c.l.b16 %v1010
        %v3135 = vunpack.c.h.b16 %v1010
        %v3136 = vunpack.c.l.b16 %v1011
        %v3137 = vunpack.c.h.b16 %v1011
        %v3138 = vunpack.c.l.b16 %v1012
        %v3139 = vunpack.c.h.b16 %v1012
        %v3140 = vunpack.c.l.b16 %v1013
        %v3141 = vunpack.c.h.b16 %v1013
        %v3142 = vunpack.c.l.b16 %v1014
        %v3143 = vunpack.c.h.b16 %v1014
        %v3144 = vunpack.c.l.b16 %v1015
        %v3145 = vunpack.c.h.b16 %v1015
        %v3146 = vunpack.c.l.b16 %v1016
        %v3147 = vunpack.c.h.b16 %v1016
        %v3148 = vunpack.c.l.b16 %v1017
        %v3149 = vunpack.c.h.b16 %v1017
        %v3150 = vunpack.c.l.b16 %v1018
        %v3151 = vunpack.c.h.b16 %v1018
        %v3152 = vunpack.c.l.b16 %v1019
        %v3153 = vunpack.c.h.b16 %v1019
        %v3154 = vunpack.c.l.b16 %v1020
        %v3155 = vunpack.c.h.b16 %v1020
        %v3156 = vunpack.c.l.b16 %v1021
        %v3157 = vunpack.c.h.b16 %v1021
        %v3158 = vunpack.c.l.b16 %v1022
        %v3159 = vunpack.c.h.b16 %v1022
        %v3160 = vunpack.c.l.b16 %v1023
        %v3161 = vunpack.c.h.b16 %v1023
        %v3162 = vunpack.c.l.b16 %v1024
        %v3163 = vunpack.c.h.b16 %v1024
        %v3164 = vunpack.c.l.b16 %v1025
        %v3165 = vunpack.c.h.b16 %v1025
        %v3166 = vunpack.c.l.b16 %v1026
        %v3167 = vunpack.c.h.b16 %v1026
        %v3168 = vunpack.c.l.b16 %v1027
        %v3169 = vunpack.c.h.b16 %v1027
        %v3170 = vunpack.c.l.b16 %v1028
        %v3171 = vunpack.c.h.b16 %v1028
        %v3172 = vunpack.c.l.b16 %v1029
        %v3173 = vunpack.c.h.b16 %v1029
        %v3174 = vunpack.c.l.b16 %v1030
        %v3175 = vunpack.c.h.b16 %v1030
        %v3176 = vunpack.c.l.b16 %v1031
        %v3177 = vunpack.c.h.b16 %v1031
        %v3178 = vunpack.c.l.b16 %v1032
        %v3179 = vunpack.c.h.b16 %v1032
        %v3180 = vunpack.c.l.b16 %v1033
        %v3181 = vunpack.c.h.b16 %v1033
        %v3182 = vunpack.c.l.b16 %v1034
        %v3183 = vunpack.c.h.b16 %v1034
        %v3184 = vunpack.c.l.b16 %v1035
        %v3185 = vunpack.c.h.b16 %v1035
        %v3186 = vunpack.c.l.b16 %v1036
        %v3187 = vunpack.c.h.b16 %v1036
        %v3188 = vunpack.c.l.b16 %v1037
        %v3189 = vunpack.c.h.b16 %v1037
        %v3190 = vunpack.c.l.b16 %v1038
        %v3191 = vunpack.c.h.b16 %v1038
        %v3192 = vunpack.c.l.b16 %v1039
        %v3193 = vunpack.c.h.b16 %v1039
        %v3194 = vunpack.c.l.b16 %v1040
        %v3195 = vunpack.c.h.b16 %v1040
        %v3196 = vunpack.c.l.b16 %v1041
        %v3197 = vunpack.c.h.b16 %v1041
        %v3198 = vunpack.c.l.b16 %v1042
        %v3199 = vunpack.c.h.b16 %v1042
        %v3200 = vunpack.c.l.b16 %v1043
        %v3201 = vunpack.c.h.b16 %v1043
        %v3202 = vunpack.c.l.b16 %v1044
        %v3203 = vunpack.c.h.b16 %v1044
        %v3204 = vunpack.c.l.b16 %v1045
        %v3205 = vunpack.c.h.b16 %v1045
        %v3206 = vunpack.c.l.b16 %v1046
        %v3207 = vunpack.c.h.b16 %v1046
        %v3208 = vunpack.c.l.b16 %v1047
        %v3209 = vunpack.c.h.b16 %v1047
        %v3210 = vunpack.c.l.b16 %v1048
        %v3211 = vunpack.c.h.b16 %v1048
        %v3212 = vunpack.c.l.b16 %v1049
        %v3213 = vunpack.c.h.b16 %v1049
        %v3214 = vunpack.c.l.b16 %v1050
        %v3215 = vunpack.c.h.b16 %v1050
        %v3216 = vunpack.c.l.b16 %v1051
        %v3217 = vunpack.c.h.b16 %v1051
        %v3218 = vunpack.c.l.b16 %v1052
        %v3219 = vunpack.c.h.b16 %v1052
        %v3220 = vunpack.c.l.b16 %v1053
        %v3221 = vunpack.c.h.b16 %v1053
        %v3222 = vunpack.c.l.b16 %v1054
        %v3223 = vunpack.c.h.b16 %v1054
        %v3224 = vunpack.c.l.b16 %v1055
        %v3225 = vunpack.c.h.b16 %v1055
        %v3226 = vunpack.c.l.b16 %v1056
        %v3227 = vunpack.c.h.b16 %v1056
        %v3228 = vunpack.c.l.b16 %v1057
        %v3229 = vunpack.c.h.b16 %v1057
        %v3230 = vunpack.c.l.b16 %v1058
        %v3231 = vunpack.c.h.b16 %v1058
        %v3232 = vunpack.c.l.b16 %v1059
        %v3233 = vunpack.c.h.b16 %v1059
        %v3234 = vunpack.c.l.b16 %v1060
        %v3235 = vunpack.c.h.b16 %v1060
        %v3236 = vunpack.c.l.b16 %v1061
        %v3237 = vunpack.c.h.b16 %v1061
        %v3238 = vunpack.c.l.b16 %v1062
        %v3239 = vunpack.c.h.b16 %v1062
        %v3240 = vunpack.c.l.b16 %v1063
        %v3241 = vunpack.c.h.b16 %v1063
        %v3242 = vunpack.c.l.b16 %v1064
        %v3243 = vunpack.c.h.b16 %v1064
        %v3244 = vunpack.c.l.b16 %v1065
        %v3245 = vunpack.c.h.b16 %v1065
        %v3246 = vunpack.c.l.b16 %v1066
        %v3247 = vunpack.c.h.b16 %v1066
        %v3248 = vunpack.c.l.b16 %v1067
        %v3249 = vunpack.c.h.b16 %v1067
        %v3250 = vunpack.c.l.b16 %v1068
        %v3251 = vunpack.c.h.b16 %v1068
        %v3252 = vunpack.c.l.b16 %v1069
        %v3253 = vunpack.c.h.b16 %v1069
        %v3254 = vunpack.c.l.b16 %v1070
        %v3255 = vunpack.c.h.b16 %v1070
        %v3256 = vunpack.c.l.b16 %v1071
        %v3257 = vunpack.c.h.b16 %v1071
        %v3258 = vunpack.c.l.b16 %v1072
        %v3259 = vunpack.c.h.b16 %v1072
        %v3260 = vunpack.c.l.b16 %v1073
        %v3261 = vunpack.c.h.b16 %v1073
        %v3262 = vunpack.c.l.b16 %v1074
        %v3263 = vunpack.c.h.b16 %v1074
        %v3264 = vunpack.c.l.b16 %v1075
        %v3265 = vunpack.c.h.b16 %v1075
        %v3266 = vunpack.c.l.b16 %v1076
        %v3267 = vunpack.c.h.b16 %v1076
        %v3268 = vunpack.c.l.b16 %v1077
        %v3269 = vunpack.c.h.b16 %v1077
        %v3270 = vunpack.c.l.b16 %v1078
        %v3271 = vunpack.c.h.b16 %v1078
        %v3272 = vunpack.c.l.b16 %v1079
        %v3273 = vunpack.c.h.b16 %v1079
        %v3274 = vunpack.c.l.b16 %v1080
        %v3275 = vunpack.c.h.b16 %v1080
        %v3276 = vunpack.c.l.b16 %v1081
        %v3277 = vunpack.c.h.b16 %v1081
        %v3278 = vunpack.c.l.b16 %v1082
        %v3279 = vunpack.c.h.b16 %v1082
        %v3280 = vunpack.c.l.b16 %v1083
        %v3281 = vunpack.c.h.b16 %v1083
        %v3282 = vunpack.c.l.b16 %v1084
        %v3283 = vunpack.c.h.b16 %v1084
        %v3284 = vunpack.c.l.b16 %v1085
        %v3285 = vunpack.c.h.b16 %v1085
        %v3286 = vunpack.c.l.b16 %v1086
        %v3287 = vunpack.c.h.b16 %v1086
        %v3288 = vunpack.c.l.b16 %v1087
        %v3289 = vunpack.c.h.b16 %v1087
        %v3290 = vunpack.c.l.b16 %v1088
        %v3291 = vunpack.c.h.b16 %v1088
        %v3292 = vunpack.c.l.b16 %v1089
        %v3293 = vunpack.c.h.b16 %v1089
        %v3294 = vunpack.c.l.b16 %v1090
        %v3295 = vunpack.c.h.b16 %v1090
        %v3296 = vunpack.c.l.b16 %v1091
        %v3297 = vunpack.c.h.b16 %v1091
        %v3298 = vunpack.c.l.b16 %v1092
        %v3299 = vunpack.c.h.b16 %v1092
        %v3300 = vunpack.c.l.b16 %v1093
        %v3301 = vunpack.c.h.b16 %v1093
        %v3302 = vunpack.c.l.b16 %v1094
        %v3303 = vunpack.c.h.b16 %v1094
        %v3304 = vunpack.c.l.b16 %v1095
        %v3305 = vunpack.c.h.b16 %v1095
        %v3306 = vunpack.c.l.b16 %v1096
        %v3307 = vunpack.c.h.b16 %v1096
        %v3308 = vunpack.c.l.b16 %v1097
        %v3309 = vunpack.c.h.b16 %v1097
        %v3310 = vunpack.c.l.b16 %v1098
        %v3311 = vunpack.c.h.b16 %v1098
        %v3312 = vunpack.c.l.b16 %v1099
        %v3313 = vunpack.c.h.b16 %v1099
        %v3314 = vunpack.c.l.b16 %v1100
        %v3315 = vunpack.c.h.b16 %v1100
        %v3316 = vunpack.c.l.b16 %v1101
        %v3317 = vunpack.c.h.b16 %v1101
        %v3318 = vunpack.c.l.b16 %v1102
        %v3319 = vunpack.c.h.b16 %v1102
        %v3320 = vunpack.c.l.b16 %v1103
        %v3321 = vunpack.c.h.b16 %v1103
        %v3322 = vunpack.c.l.b16 %v1104
        %v3323 = vunpack.c.h.b16 %v1104
        %v3324 = vunpack.c.l.b16 %v1105
        %v3325 = vunpack.c.h.b16 %v1105
        %v3326 = vunpack.c.l.b16 %v1106
        %v3327 = vunpack.c.h.b16 %v1106
        %v3328 = vunpack.c.l.b16 %v1107
        %v3329 = vunpack.c.h.b16 %v1107
        %v3330 = vunpack.c.l.b16 %v1108
        %v3331 = vunpack.c.h.b16 %v1108
        %v3332 = vunpack.c.l.b16 %v1109
        %v3333 = vunpack.c.h.b16 %v1109
        %v3334 = vunpack.c.l.b16 %v1110
        %v3335 = vunpack.c.h.b16 %v1110
        %v3336 = vunpack.c.l.b16 %v1111
        %v3337 = vunpack.c.h.b16 %v1111
        %v3338 = vunpack.c.l.b16 %v1112
        %v3339 = vunpack.c.h.b16 %v1112
        %v3340 = vunpack.c.l.b16 %v1113
        %v3341 = vunpack.c.h.b16 %v1113
        %v3342 = vunpack.c.l.b16 %v1114
        %v3343 = vunpack.c.h.b16 %v1114
        %v3344 = vunpack.c.l.b16 %v1115
        %v3345 = vunpack.c.h.b16 %v1115
        %v3346 = vunpack.c.l.b16 %v1116
        %v3347 = vunpack.c.h.b16 %v1116
        %v3348 = vunpack.c.l.b16 %v1117
        %v3349 = vunpack.c.h.b16 %v1117
        %v3350 = vunpack.c.l.b16 %v1118
        %v3351 = vunpack.c.h.b16 %v1118
        %v3352 = vunpack.c.l.b16 %v1119
        %v3353 = vunpack.c.h.b16 %v1119
        %v3354 = vunpack.c.l.b16 %v1120
        %v3355 = vunpack.c.h.b16 %v1120
        %v3356 = vunpack.c.l.b16 %v1121
        %v3357 = vunpack.c.h.b16 %v1121
        %v3358 = vunpack.c.l.b16 %v1122
        %v3359 = vunpack.c.h.b16 %v1122
        %v3360 = vunpack.c.l.b16 %v1123
        %v3361 = vunpack.c.h.b16 %v1123
        %v3362 = vunpack.c.l.b16 %v1124
        %v3363 = vunpack.c.h.b16 %v1124
        %v3364 = vunpack.c.l.b16 %v1125
        %v3365 = vunpack.c.h.b16 %v1125
        %v3366 = vunpack.c.l.b16 %v1126
        %v3367 = vunpack.c.h.b16 %v1126
        %v3368 = vunpack.c.l.b16 %v1127
        %v3369 = vunpack.c.h.b16 %v1127
        %v3370 = vunpack.c.l.b16 %v1128
        %v3371 = vunpack.c.h.b16 %v1128
        %v3372 = vunpack.c.l.b16 %v1129
        %v3373 = vunpack.c.h.b16 %v1129
        %v3374 = vunpack.c.l.b16 %v1130
        %v3375 = vunpack.c.h.b16 %v1130
        %v3376 = vunpack.c.l.b16 %v1131
        %v3377 = vunpack.c.h.b16 %v1131
        %v3378 = vunpack.c.l.b16 %v1132
        %v3379 = vunpack.c.h.b16 %v1132
        %v3380 = vunpack.c.l.b16 %v1133
        %v3381 = vunpack.c.h.b16 %v1133
        %v3382 = vunpack.c.l.b16 %v1134
        %v3383 = vunpack.c.h.b16 %v1134
        %v3384 = vunpack.c.l.b16 %v1135
        %v3385 = vunpack.c.h.b16 %v1135
        %v3386 = vunpack.c.l.b16 %v1136
        %v3387 = vunpack.c.h.b16 %v1136
        %v3388 = vunpack.c.l.b16 %v1137
        %v3389 = vunpack.c.h.b16 %v1137
        %v3390 = vunpack.c.l.b16 %v1138
        %v3391 = vunpack.c.h.b16 %v1138
        %v3392 = vunpack.c.l.b16 %v1139
        %v3393 = vunpack.c.h.b16 %v1139
        %v3394 = vunpack.c.l.b16 %v1140
        %v3395 = vunpack.c.h.b16 %v1140
        %v3396 = vunpack.c.l.b16 %v1141
        %v3397 = vunpack.c.h.b16 %v1141
        %v3398 = vunpack.c.l.b16 %v1142
        %v3399 = vunpack.c.h.b16 %v1142
        %v3400 = vunpack.c.l.b16 %v1143
        %v3401 = vunpack.c.h.b16 %v1143
        %v3402 = vunpack.c.l.b16 %v1144
        %v3403 = vunpack.c.h.b16 %v1144
        %v3404 = vunpack.c.l.b16 %v1145
        %v3405 = vunpack.c.h.b16 %v1145
        %v3406 = vunpack.c.l.b16 %v1146
        %v3407 = vunpack.c.h.b16 %v1146
        %v3408 = vunpack.c.l.b16 %v1147
        %v3409 = vunpack.c.h.b16 %v1147
        %v3410 = vunpack.c.l.b16 %v1148
        %v3411 = vunpack.c.h.b16 %v1148
        %v3412 = vunpack.c.l.b16 %v1149
        %v3413 = vunpack.c.h.b16 %v1149
        %v3414 = vunpack.c.l.b16 %v1150
        %v3415 = vunpack.c.h.b16 %v1150
        %v3416 = vunpack.c.l.b16 %v1151
        %v3417 = vunpack.c.h.b16 %v1151
        %v3418 = vunpack.c.l.b16 %v1152
        %v3419 = vunpack.c.h.b16 %v1152
        %v3420 = vunpack.c.l.b16 %v1153
        %v3421 = vunpack.c.h.b16 %v1153
        %v3422 = vunpack.c.l.b16 %v1154
        %v3423 = vunpack.c.h.b16 %v1154
        %v3424 = vunpack.c.l.b16 %v1155
        %v3425 = vunpack.c.h.b16 %v1155
        %v3426 = vunpack.c.l.b16 %v1156
        %v3427 = vunpack.c.h.b16 %v1156
        %v3428 = vunpack.c.l.b16 %v1157
        %v3429 = vunpack.c.h.b16 %v1157
        %v3430 = vunpack.c.l.b16 %v1158
        %v3431 = vunpack.c.h.b16 %v1158
        %v3432 = vunpack.c.l.b16 %v1159
        %v3433 = vunpack.c.h.b16 %v1159
        %v3434 = vunpack.c.l.b16 %v1160
        %v3435 = vunpack.c.h.b16 %v1160
        %v3436 = vunpack.c.l.b16 %v1161
        %v3437 = vunpack.c.h.b16 %v1161
        %v3438 = vunpack.c.l.b16 %v1162
        %v3439 = vunpack.c.h.b16 %v1162
        %v3440 = vunpack.c.l.b16 %v1163
        %v3441 = vunpack.c.h.b16 %v1163
        %v3442 = vunpack.c.l.b16 %v1164
        %v3443 = vunpack.c.h.b16 %v1164
        %v3444 = vunpack.c.l.b16 %v1165
        %v3445 = vunpack.c.h.b16 %v1165
        %v3446 = vunpack.c.l.b16 %v1166
        %v3447 = vunpack.c.h.b16 %v1166
        %v3448 = vunpack.c.l.b16 %v1167
        %v3449 = vunpack.c.h.b16 %v1167
        %v3450 = vunpack.c.l.b16 %v1168
        %v3451 = vunpack.c.h.b16 %v1168
        %v3452 = vunpack.c.l.b16 %v1169
        %v3453 = vunpack.c.h.b16 %v1169
        %v3454 = vunpack.c.l.b16 %v1170
        %v3455 = vunpack.c.h.b16 %v1170
        %v3456 = vunpack.c.l.b16 %v1171
        %v3457 = vunpack.c.h.b16 %v1171
        %v3458 = vunpack.c.l.b16 %v1172
        %v3459 = vunpack.c.h.b16 %v1172
        %v3460 = vunpack.c.l.b16 %v1173
        %v3461 = vunpack.c.h.b16 %v1173
        %v3462 = vunpack.c.l.b16 %v1174
        %v3463 = vunpack.c.h.b16 %v1174
        %v3464 = vunpack.c.l.b16 %v1175
        %v3465 = vunpack.c.h.b16 %v1175
        %v3466 = vunpack.c.l.b16 %v1176
        %v3467 = vunpack.c.h.b16 %v1176
        %v3468 = vunpack.c.l.b16 %v1177
        %v3469 = vunpack.c.h.b16 %v1177
        %v3470 = vunpack.c.l.b16 %v1178
        %v3471 = vunpack.c.h.b16 %v1178
        %v3472 = vunpack.c.l.b16 %v1179
        %v3473 = vunpack.c.h.b16 %v1179
        %v3474 = vunpack.c.l.b16 %v1180
        %v3475 = vunpack.c.h.b16 %v1180
        %v3476 = vunpack.c.l.b16 %v1181
        %v3477 = vunpack.c.h.b16 %v1181
        %v3478 = vunpack.c.l.b16 %v1182
        %v3479 = vunpack.c.h.b16 %v1182
        %v3480 = vunpack.c.l.b16 %v1183
        %v3481 = vunpack.c.h.b16 %v1183
        %v3482 = vunpack.c.l.b16 %v1184
        %v3483 = vunpack.c.h.b16 %v1184
        %v3484 = vunpack.c.l.b16 %v1185
        %v3485 = vunpack.c.h.b16 %v1185
        %v3486 = vunpack.c.l.b16 %v1186
        %v3487 = vunpack.c.h.b16 %v1186
        %v3488 = vunpack.c.l.b16 %v1187
        %v3489 = vunpack.c.h.b16 %v1187
        %v3490 = vunpack.c.l.b16 %v1188
        %v3491 = vunpack.c.h.b16 %v1188
        %v3492 = vunpack.c.l.b16 %v1189
        %v3493 = vunpack.c.h.b16 %v1189
        %v3494 = vunpack.c.l.b16 %v1190
        %v3495 = vunpack.c.h.b16 %v1190
        %v3496 = vunpack.c.l.b16 %v1191
        %v3497 = vunpack.c.h.b16 %v1191
        %v3498 = vunpack.c.l.b16 %v1192
        %v3499 = vunpack.c.h.b16 %v1192
        %v3500 = vunpack.c.l.b16 %v1193
        %v3501 = vunpack.c.h.b16 %v1193
        %v3502 = vunpack.c.l.b16 %v1194
        %v3503 = vunpack.c.h.b16 %v1194
        %v3504 = vunpack.c.l.b16 %v1195
        %v3505 = vunpack.c.h.b16 %v1195
        %v3506 = vunpack.c.l.b16 %v1196
        %v3507 = vunpack.c.h.b16 %v1196
        %v3508 = vunpack.c.l.b16 %v1197
        %v3509 = vunpack.c.h.b16 %v1197
        %v3510 = vunpack.c.l.b16 %v1198
        %v3511 = vunpack.c.h.b16 %v1198
        %v3512 = vunpack.c.l.b16 %v1199
        %v3513 = vunpack.c.h.b16 %v1199
        %v3514 = vunpack.c.l.b16 %v1200
        %v3515 = vunpack.c.h.b16 %v1200
        %v3516 = vunpack.c.l.b16 %v1201
        %v3517 = vunpack.c.h.b16 %v1201
        %v3518 = vunpack.c.l.b16 %v1202
        %v3519 = vunpack.c.h.b16 %v1202
        %v3520 = vunpack.c.l.b16 %v1203
        %v3521 = vunpack.c.h.b16 %v1203
        %v3522 = vunpack.c.l.b16 %v1204
        %v3523 = vunpack.c.h.b16 %v1204
        %v3524 = vunpack.c.l.b16 %v1205
        %v3525 = vunpack.c.h.b16 %v1205
        %v3526 = vunpack.c.l.b16 %v1206
        %v3527 = vunpack.c.h.b16 %v1206
        %v3528 = vunpack.c.l.b16 %v1207
        %v3529 = vunpack.c.h.b16 %v1207
        %v3530 = vunpack.c.l.b16 %v1208
        %v3531 = vunpack.c.h.b16 %v1208
        %v3532 = vunpack.c.l.b16 %v1209
        %v3533 = vunpack.c.h.b16 %v1209
        %v3534 = vunpack.c.l.b16 %v1210
        %v3535 = vunpack.c.h.b16 %v1210
        %v3536 = vunpack.c.l.b16 %v1211
        %v3537 = vunpack.c.h.b16 %v1211
        %v3538 = vunpack.c.l.b16 %v1212
        %v3539 = vunpack.c.h.b16 %v1212
        %v3540 = vunpack.c.l.b16 %v1213
        %v3541 = vunpack.c.h.b16 %v1213
        %v3542 = vunpack.c.l.b16 %v1214
        %v3543 = vunpack.c.h.b16 %v1214
        %v3544 = vunpack.c.l.b16 %v1215
        %v3545 = vunpack.c.h.b16 %v1215
        %v3546 = vunpack.c.l.b16 %v1216
        %v3547 = vunpack.c.h.b16 %v1216
        %v3548 = vunpack.c.l.b16 %v1217
        %v3549 = vunpack.c.h.b16 %v1217
        %v3550 = vunpack.c.l.b16 %v1218
        %v3551 = vunpack.c.h.b16 %v1218
        %v3552 = vunpack.c.l.b16 %v1219
        %v3553 = vunpack.c.h.b16 %v1219
        %v3554 = vunpack.c.l.b16 %v1220
        %v3555 = vunpack.c.h.b16 %v1220
        %v3556 = vunpack.c.l.b16 %v1221
        %v3557 = vunpack.c.h.b16 %v1221
        %v3558 = vunpack.c.l.b16 %v1222
        %v3559 = vunpack.c.h.b16 %v1222
        %v3560 = vunpack.c.l.b16 %v1223
        %v3561 = vunpack.c.h.b16 %v1223
        %v3562 = vunpack.c.l.b16 %v1224
        %v3563 = vunpack.c.h.b16 %v1224
        %v3564 = vunpack.c.l.b16 %v1225
        %v3565 = vunpack.c.h.b16 %v1225
        %v3566 = vunpack.c.l.b16 %v1226
        %v3567 = vunpack.c.h.b16 %v1226
        %v3568 = vunpack.c.l.b16 %v1227
        %v3569 = vunpack.c.h.b16 %v1227
        %v3570 = vunpack.c.l.b16 %v1228
        %v3571 = vunpack.c.h.b16 %v1228
        %v3572 = vunpack.c.l.b16 %v1229
        %v3573 = vunpack.c.h.b16 %v1229
        %v3574 = vunpack.c.l.b16 %v1230
        %v3575 = vunpack.c.h.b16 %v1230
        %v3576 = vunpack.c.l.b16 %v1231
        %v3577 = vunpack.c.h.b16 %v1231
        %v3578 = vunpack.c.l.b16 %v1232
        %v3579 = vunpack.c.h.b16 %v1232
        %v3580 = vunpack.c.l.b16 %v1233
        %v3581 = vunpack.c.h.b16 %v1233
        %v3582 = vunpack.c.l.b16 %v1234
        %v3583 = vunpack.c.h.b16 %v1234
        %v3584 = vunpack.c.l.b16 %v1235
        %v3585 = vunpack.c.h.b16 %v1235
        %v3586 = vunpack.c.l.b16 %v1236
        %v3587 = vunpack.c.h.b16 %v1236
        %v3588 = vunpack.c.l.b16 %v1237
        %v3589 = vunpack.c.h.b16 %v1237
        %v3590 = vunpack.c.l.b16 %v1238
        %v3591 = vunpack.c.h.b16 %v1238
        %v3592 = vunpack.c.l.b16 %v1239
        %v3593 = vunpack.c.h.b16 %v1239
        %v3594 = vunpack.c.l.b16 %v1240
        %v3595 = vunpack.c.h.b16 %v1240
        %v3596 = vunpack.c.l.b16 %v1241
        %v3597 = vunpack.c.h.b16 %v1241
        %v3598 = vunpack.c.l.b16 %v1242
        %v3599 = vunpack.c.h.b16 %v1242
        %v3600 = vunpack.c.l.b16 %v1243
        %v3601 = vunpack.c.h.b16 %v1243
        %v3602 = vunpack.c.l.b16 %v1244
        %v3603 = vunpack.c.h.b16 %v1244
        %v3604 = vunpack.c.l.b16 %v1245
        %v3605 = vunpack.c.h.b16 %v1245
        %v3606 = vunpack.c.l.b16 %v1246
        %v3607 = vunpack.c.h.b16 %v1246
        %v3608 = vunpack.c.l.b16 %v1247
        %v3609 = vunpack.c.h.b16 %v1247
        %v3610 = vunpack.c.l.b16 %v1248
        %v3611 = vunpack.c.h.b16 %v1248
        %v3612 = vunpack.c.l.b16 %v1249
        %v3613 = vunpack.c.h.b16 %v1249
        %v3614 = vunpack.c.l.b16 %v1250
        %v3615 = vunpack.c.h.b16 %v1250
        %v3616 = vunpack.c.l.b16 %v1251
        %v3617 = vunpack.c.h.b16 %v1251
        %v3618 = vunpack.c.l.b16 %v1252
        %v3619 = vunpack.c.h.b16 %v1252
        %v3620 = vunpack.c.l.b16 %v1253
        %v3621 = vunpack.c.h.b16 %v1253
        %v3622 = vunpack.c.l.b16 %v1254
        %v3623 = vunpack.c.h.b16 %v1254
        %v3624 = vunpack.c.l.b16 %v1255
        %v3625 = vunpack.c.h.b16 %v1255
        %v3626 = vunpack.c.l.b16 %v1256
        %v3627 = vunpack.c.h.b16 %v1256
        %v3628 = vunpack.c.l.b16 %v1257
        %v3629 = vunpack.c.h.b16 %v1257
        %v3630 = vunpack.c.l.b16 %v1258
        %v3631 = vunpack.c.h.b16 %v1258
        %v3632 = vunpack.c.l.b16 %v1259
        %v3633 = vunpack.c.h.b16 %v1259
        %v3634 = vunpack.c.l.b16 %v1260
        %v3635 = vunpack.c.h.b16 %v1260
        %v3636 = vunpack.c.l.b16 %v1261
        %v3637 = vunpack.c.h.b16 %v1261
        %v3638 = vunpack.c.l.b16 %v1262
        %v3639 = vunpack.c.h.b16 %v1262
        %v3640 = vunpack.c.l.b16 %v1263
        %v3641 = vunpack.c.h.b16 %v1263
        %v3642 = vunpack.c.l.b16 %v1264
        %v3643 = vunpack.c.h.b16 %v1264
        %v3644 = vunpack.c.l.b16 %v1265
        %v3645 = vunpack.c.h.b16 %v1265
        %v3646 = vunpack.c.l.b16 %v1266
        %v3647 = vunpack.c.h.b16 %v1266
        %v3648 = vunpack.c.l.b16 %v1267
        %v3649 = vunpack.c.h.b16 %v1267
        %v3650 = vunpack.c.l.b16 %v1268
        %v3651 = vunpack.c.h.b16 %v1268
        %v3652 = vunpack.c.l.b16 %v1269
        %v3653 = vunpack.c.h.b16 %v1269
        %v3654 = vunpack.c.l.b16 %v1270
        %v3655 = vunpack.c.h.b16 %v1270
        %v3656 = vunpack.c.l.b16 %v1271
        %v3657 = vunpack.c.h.b16 %v1271
        %v3658 = vunpack.c.l.b16 %v1272
        %v3659 = vunpack.c.h.b16 %v1272
        %v3660 = vunpack.c.l.b16 %v1273
        %v3661 = vunpack.c.h.b16 %v1273
        %v3662 = vunpack.c.l.b16 %v1274
        %v3663 = vunpack.c.h.b16 %v1274
        %v3664 = vunpack.c.l.b16 %v1275
        %v3665 = vunpack.c.h.b16 %v1275
        %v3666 = vunpack.c.l.b16 %v1276
        %v3667 = vunpack.c.h.b16 %v1276
        %v3668 = vunpack.c.l.b16 %v1277
        %v3669 = vunpack.c.h.b16 %v1277
        %v3670 = vunpack.c.l.b16 %v1278
        %v3671 = vunpack.c.h.b16 %v1278
        %v3672 = vunpack.c.l.b16 %v1279
        %v3673 = vunpack.c.h.b16 %v1279
        %v3674 = vunpack.c.l.b16 %v1280
        %v3675 = vunpack.c.h.b16 %v1280
        %v3676 = vunpack.c.l.b16 %v1281
        %v3677 = vunpack.c.h.b16 %v1281
        %v3678 = vunpack.c.l.b16 %v1282
        %v3679 = vunpack.c.h.b16 %v1282
        %v3680 = vunpack.c.l.b16 %v1283
        %v3681 = vunpack.c.h.b16 %v1283
        %v3682 = vunpack.c.l.b16 %v1284
        %v3683 = vunpack.c.h.b16 %v1284
        %v3684 = vunpack.c.l.b16 %v1285
        %v3685 = vunpack.c.h.b16 %v1285
        %v3686 = vunpack.c.l.b16 %v1286
        %v3687 = vunpack.c.h.b16 %v1286
        %v3688 = vunpack.c.l.b16 %v1287
        %v3689 = vunpack.c.h.b16 %v1287
        %v3690 = vunpack.c.l.b16 %v1288
        %v3691 = vunpack.c.h.b16 %v1288
        %v3692 = vunpack.c.l.b16 %v1289
        %v3693 = vunpack.c.h.b16 %v1289
        %v3694 = vunpack.c.l.b16 %v1290
        %v3695 = vunpack.c.h.b16 %v1290
        %v3696 = vunpack.c.l.b16 %v1291
        %v3697 = vunpack.c.h.b16 %v1291
        %v3698 = vunpack.c.l.b16 %v1292
        %v3699 = vunpack.c.h.b16 %v1292
        %v3700 = vunpack.c.l.b16 %v1293
        %v3701 = vunpack.c.h.b16 %v1293
        %v3702 = vunpack.c.l.b16 %v1294
        %v3703 = vunpack.c.h.b16 %v1294
        %v3704 = vunpack.c.l.b16 %v1295
        %v3705 = vunpack.c.h.b16 %v1295
        %v3706 = vunpack.c.l.b16 %v1296
        %v3707 = vunpack.c.h.b16 %v1296
        %v3708 = vunpack.c.l.b16 %v1297
        %v3709 = vunpack.c.h.b16 %v1297
        %v3710 = vunpack.c.l.b16 %v1298
        %v3711 = vunpack.c.h.b16 %v1298
        %v3712 = vunpack.c.l.b16 %v1299
        %v3713 = vunpack.c.h.b16 %v1299
        %v3714 = vunpack.c.l.b16 %v1300
        %v3715 = vunpack.c.h.b16 %v1300
        %v3716 = vunpack.c.l.b16 %v1301
        %v3717 = vunpack.c.h.b16 %v1301
        %v3718 = vunpack.c.l.b16 %v1302
        %v3719 = vunpack.c.h.b16 %v1302
        %v3720 = vunpack.c.l.b16 %v1303
        %v3721 = vunpack.c.h.b16 %v1303
        %v3722 = vunpack.c.l.b16 %v1304
        %v3723 = vunpack.c.h.b16 %v1304
        %v3724 = vunpack.c.l.b16 %v1305
        %v3725 = vunpack.c.h.b16 %v1305
        %v3726 = vunpack.c.l.b16 %v1306
        %v3727 = vunpack.c.h.b16 %v1306
        %v3728 = vunpack.c.l.b16 %v1307
        %v3729 = vunpack.c.h.b16 %v1307
        %v3730 = vunpack.c.l.b16 %v1308
        %v3731 = vunpack.c.h.b16 %v1308
        %v3732 = vunpack.c.l.b16 %v1309
        %v3733 = vunpack.c.h.b16 %v1309
        %v3734 = vunpack.c.l.b16 %v1310
        %v3735 = vunpack.c.h.b16 %v1310
        %v3736 = vunpack.c.l.b16 %v1311
        %v3737 = vunpack.c.h.b16 %v1311
        %v3738 = vunpack.c.l.b16 %v1312
        %v3739 = vunpack.c.h.b16 %v1312
        %v3740 = vunpack.c.l.b16 %v1313
        %v3741 = vunpack.c.h.b16 %v1313
        %v3742 = vunpack.c.l.b16 %v1314
        %v3743 = vunpack.c.h.b16 %v1314
        %v3744 = vunpack.c.l.b16 %v1315
        %v3745 = vunpack.c.h.b16 %v1315
        %v3746 = vunpack.c.l.b16 %v1316
        %v3747 = vunpack.c.h.b16 %v1316
        %v3748 = vunpack.c.l.b16 %v1317
        %v3749 = vunpack.c.h.b16 %v1317
        %v3750 = vunpack.c.l.b16 %v1318
        %v3751 = vunpack.c.h.b16 %v1318
        %v3752 = vunpack.c.l.b16 %v1319
        %v3753 = vunpack.c.h.b16 %v1319
        %v3754 = vunpack.c.l.b16 %v1320
        %v3755 = vunpack.c.h.b16 %v1320
        %v3756 = vunpack.c.l.b16 %v1321
        %v3757 = vunpack.c.h.b16 %v1321
        %v3758 = vunpack.c.l.b16 %v1322
        %v3759 = vunpack.c.h.b16 %v1322
        %v3760 = vunpack.c.l.b16 %v1323
        %v3761 = vunpack.c.h.b16 %v1323
        %v3762 = vunpack.c.l.b16 %v1324
        %v3763 = vunpack.c.h.b16 %v1324
        %v3764 = vunpack.c.l.b16 %v1325
        %v3765 = vunpack.c.h.b16 %v1325
        %v3766 = vunpack.c.l.b16 %v1326
        %v3767 = vunpack.c.h.b16 %v1326
        %v3768 = vunpack.c.l.b16 %v1327
        %v3769 = vunpack.c.h.b16 %v1327
        %v3770 = vunpack.c.l.b16 %v1328
        %v3771 = vunpack.c.h.b16 %v1328
        %v3772 = vunpack.c.l.b16 %v1329
        %v3773 = vunpack.c.h.b16 %v1329
        %v3774 = vunpack.c.l.b16 %v1330
        %v3775 = vunpack.c.h.b16 %v1330
        %v3776 = vunpack.c.l.b16 %v1331
        %v3777 = vunpack.c.h.b16 %v1331
        %v3778 = vunpack.c.l.b16 %v1332
        %v3779 = vunpack.c.h.b16 %v1332
        %v3780 = vunpack.c.l.b16 %v1333
        %v3781 = vunpack.c.h.b16 %v1333
        %v3782 = vunpack.c.l.b16 %v1334
        %v3783 = vunpack.c.h.b16 %v1334
        %v3784 = vunpack.c.l.b16 %v1335
        %v3785 = vunpack.c.h.b16 %v1335
        %v3786 = vunpack.c.l.b16 %v1336
        %v3787 = vunpack.c.h.b16 %v1336
        %v3788 = vunpack.c.l.b16 %v1337
        %v3789 = vunpack.c.h.b16 %v1337
        %v3790 = vunpack.c.l.b16 %v1338
        %v3791 = vunpack.c.h.b16 %v1338
        %v3792 = vunpack.c.l.b16 %v1339
        %v3793 = vunpack.c.h.b16 %v1339
        %v3794 = vunpack.c.l.b16 %v1340
        %v3795 = vunpack.c.h.b16 %v1340
        %v3796 = vunpack.c.l.b16 %v1341
        %v3797 = vunpack.c.h.b16 %v1341
        %v3798 = vunpack.c.l.b16 %v1342
        %v3799 = vunpack.c.h.b16 %v1342
        %v3800 = vunpack.c.l.b16 %v1343
        %v3801 = vunpack.c.h.b16 %v1343
        %v3802 = vunpack.c.l.b16 %v1344
        %v3803 = vunpack.c.h.b16 %v1344
        %v3804 = vunpack.c.l.b16 %v1345
        %v3805 = vunpack.c.h.b16 %v1345
        %v3806 = vunpack.c.l.b16 %v1346
        %v3807 = vunpack.c.h.b16 %v1346
        %v3808 = vunpack.c.l.b16 %v1347
        %v3809 = vunpack.c.h.b16 %v1347
        %v3810 = vunpack.c.l.b16 %v1348
        %v3811 = vunpack.c.h.b16 %v1348
        %v3812 = vunpack.c.l.b16 %v1349
        %v3813 = vunpack.c.h.b16 %v1349
        %v3814 = vunpack.c.l.b16 %v1350
        %v3815 = vunpack.c.h.b16 %v1350
        %v3816 = vunpack.c.l.b16 %v1351
        %v3817 = vunpack.c.h.b16 %v1351
        %v3818 = vunpack.c.l.b16 %v1352
        %v3819 = vunpack.c.h.b16 %v1352
        %v3820 = vunpack.c.l.b16 %v1353
        %v3821 = vunpack.c.h.b16 %v1353
        %v3822 = vunpack.c.l.b16 %v1354
        %v3823 = vunpack.c.h.b16 %v1354
        %v3824 = vunpack.c.l.b16 %v1355
        %v3825 = vunpack.c.h.b16 %v1355
        %v3826 = vunpack.c.l.b16 %v1356
        %v3827 = vunpack.c.h.b16 %v1356
        %v3828 = vunpack.c.l.b16 %v1357
        %v3829 = vunpack.c.h.b16 %v1357
        %v3830 = vunpack.c.l.b16 %v1358
        %v3831 = vunpack.c.h.b16 %v1358
        %v3832 = vunpack.c.l.b16 %v1359
        %v3833 = vunpack.c.h.b16 %v1359
        %v3834 = vunpack.c.l.b16 %v1360
        %v3835 = vunpack.c.h.b16 %v1360
        %v3836 = vunpack.c.l.b16 %v1361
        %v3837 = vunpack.c.h.b16 %v1361
        %v3838 = vunpack.c.l.b16 %v1362
        %v3839 = vunpack.c.h.b16 %v1362
        %v3840 = vunpack.c.l.b16 %v1363
        %v3841 = vunpack.c.h.b16 %v1363
        %v3842 = vunpack.c.l.b16 %v1364
        %v3843 = vunpack.c.h.b16 %v1364
        %v3844 = vunpack.c.l.b16 %v1365
        %v3845 = vunpack.c.h.b16 %v1365
        %v3846 = vunpack.c.l.b16 %v1366
        %v3847 = vunpack.c.h.b16 %v1366
        %v3848 = vunpack.c.l.b16 %v1367
        %v3849 = vunpack.c.h.b16 %v1367
        %v3850 = vunpack.c.l.b16 %v1368
        %v3851 = vunpack.c.h.b16 %v1368
        %v3852 = vunpack.c.l.b16 %v1369
        %v3853 = vunpack.c.h.b16 %v1369
        %v3854 = vunpack.c.l.b16 %v1370
        %v3855 = vunpack.c.h.b16 %v1370
        %v3856 = vunpack.c.l.b16 %v1371
        %v3857 = vunpack.c.h.b16 %v1371
        %v3858 = vunpack.c.l.b16 %v1372
        %v3859 = vunpack.c.h.b16 %v1372
        %v3860 = vunpack.c.l.b16 %v1373
        %v3861 = vunpack.c.h.b16 %v1373
        %v3862 = vunpack.c.l.b16 %v1374
        %v3863 = vunpack.c.h.b16 %v1374
        %v3864 = vunpack.c.l.b16 %v1375
        %v3865 = vunpack.c.h.b16 %v1375
        %v3866 = vunpack.c.l.b16 %v1376
        %v3867 = vunpack.c.h.b16 %v1376
        %v3868 = vunpack.c.l.b16 %v1377
        %v3869 = vunpack.c.h.b16 %v1377
        %v3870 = vunpack.c.l.b16 %v1378
        %v3871 = vunpack.c.h.b16 %v1378
        %v3872 = vunpack.c.l.b16 %v1379
        %v3873 = vunpack.c.h.b16 %v1379
        %v3874 = vunpack.c.l.b16 %v1380
        %v3875 = vunpack.c.h.b16 %v1380
        %v3876 = vunpack.c.l.b16 %v1381
        %v3877 = vunpack.c.h.b16 %v1381
        %v3878 = vunpack.c.l.b16 %v1382
        %v3879 = vunpack.c.h.b16 %v1382
        %v3880 = vunpack.c.l.b16 %v1383
        %v3881 = vunpack.c.h.b16 %v1383
        %v3882 = vunpack.c.l.b16 %v1384
        %v3883 = vunpack.c.h.b16 %v1384
        %v3884 = vunpack.c.l.b16 %v1385
        %v3885 = vunpack.c.h.b16 %v1385
        %v3886 = vunpack.c.l.b16 %v1386
        %v3887 = vunpack.c.h.b16 %v1386
        %v3888 = vunpack.c.l.b16 %v1387
        %v3889 = vunpack.c.h.b16 %v1387
        %v3890 = vunpack.c.l.b16 %v1388
        %v3891 = vunpack.c.h.b16 %v1388
        %v3892 = vunpack.c.l.b16 %v1389
        %v3893 = vunpack.c.h.b16 %v1389
        %v3894 = vunpack.c.l.b16 %v1390
        %v3895 = vunpack.c.h.b16 %v1390
        %v3896 = vunpack.c.l.b16 %v1391
        %v3897 = vunpack.c.h.b16 %v1391
        %v3898 = vunpack.c.l.b16 %v1392
        %v3899 = vunpack.c.h.b16 %v1392
        %v3900 = vunpack.c.l.b16 %v1393
        %v3901 = vunpack.c.h.b16 %v1393
        %v3902 = vunpack.c.l.b16 %v1394
        %v3903 = vunpack.c.h.b16 %v1394
        %v3904 = vunpack.c.l.b16 %v1395
        %v3905 = vunpack.c.h.b16 %v1395
        %v3906 = vunpack.c.l.b16 %v1396
        %v3907 = vunpack.c.h.b16 %v1396
        %v3908 = vunpack.c.l.b16 %v1397
        %v3909 = vunpack.c.h.b16 %v1397
        %v3910 = vunpack.c.l.b16 %v1398
        %v3911 = vunpack.c.h.b16 %v1398
        %v3912 = vunpack.c.l.b16 %v1399
        %v3913 = vunpack.c.h.b16 %v1399
        %v3914 = vunpack.c.l.b16 %v1400
        %v3915 = vunpack.c.h.b16 %v1400
        %v3916 = vunpack.c.l.b16 %v1401
        %v3917 = vunpack.c.h.b16 %v1401
        %v3918 = vunpack.c.l.b16 %v1402
        %v3919 = vunpack.c.h.b16 %v1402
        %v3920 = vunpack.c.l.b16 %v1403
        %v3921 = vunpack.c.h.b16 %v1403
        %v3922 = vunpack.c.l.b16 %v1404
        %v3923 = vunpack.c.h.b16 %v1404
        %v3924 = vunpack.c.l.b16 %v1405
        %v3925 = vunpack.c.h.b16 %v1405
        %v3926 = vunpack.c.l.b16 %v1406
        %v3927 = vunpack.c.h.b16 %v1406
        %v3928 = vunpack.c.l.b16 %v1407
        %v3929 = vunpack.c.h.b16 %v1407
        %v3930 = vunpack.c.l.b16 %v1408
        %v3931 = vunpack.c.h.b16 %v1408
        %v3932 = vunpack.c.l.b16 %v1409
        %v3933 = vunpack.c.h.b16 %v1409
        %v3934 = vunpack.c.l.b16 %v1410
        %v3935 = vunpack.c.h.b16 %v1410
        %v3936 = vunpack.c.l.b16 %v1411
        %v3937 = vunpack.c.h.b16 %v1411
        %v3938 = vunpack.c.l.b16 %v1412
        %v3939 = vunpack.c.h.b16 %v1412
        %v3940 = vunpack.c.l.b16 %v1413
        %v3941 = vunpack.c.h.b16 %v1413
        %v3942 = vunpack.c.l.b16 %v1414
        %v3943 = vunpack.c.h.b16 %v1414
        %v3944 = vunpack.c.l.b16 %v1415
        %v3945 = vunpack.c.h.b16 %v1415
        %v3946 = vunpack.c.l.b16 %v1416
        %v3947 = vunpack.c.h.b16 %v1416
        %v3948 = vunpack.c.l.b16 %v1417
        %v3949 = vunpack.c.h.b16 %v1417
        %v3950 = vunpack.c.l.b16 %v1418
        %v3951 = vunpack.c.h.b16 %v1418
        %v3952 = vunpack.c.l.b16 %v1419
        %v3953 = vunpack.c.h.b16 %v1419
        %v3954 = vunpack.c.l.b16 %v1420
        %v3955 = vunpack.c.h.b16 %v1420
        %v3956 = vunpack.c.l.b16 %v1421
        %v3957 = vunpack.c.h.b16 %v1421
        %v3958 = vunpack.c.l.b16 %v1422
        %v3959 = vunpack.c.h.b16 %v1422
        %v3960 = vunpack.c.l.b16 %v1423
        %v3961 = vunpack.c.h.b16 %v1423
        %v3962 = vunpack.c.l.b16 %v1424
        %v3963 = vunpack.c.h.b16 %v1424
        %v3964 = vunpack.c.l.b16 %v1425
        %v3965 = vunpack.c.h.b16 %v1425
        %v3966 = vunpack.c.l.b16 %v1426
        %v3967 = vunpack.c.h.b16 %v1426
        %v3968 = vunpack.c.l.b16 %v1427
        %v3969 = vunpack.c.h.b16 %v1427
        %v3970 = vunpack.c.l.b16 %v1428
        %v3971 = vunpack.c.h.b16 %v1428
        %v3972 = vunpack.c.l.b16 %v1429
        %v3973 = vunpack.c.h.b16 %v1429
        %v3974 = vunpack.c.l.b16 %v1430
        %v3975 = vunpack.c.h.b16 %v1430
        %v3976 = vunpack.c.l.b16 %v1431
        %v3977 = vunpack.c.h.b16 %v1431
        %v3978 = vunpack.c.l.b16 %v1432
        %v3979 = vunpack.c.h.b16 %v1432
        %v3980 = vunpack.c.l.b16 %v1433
        %v3981 = vunpack.c.h.b16 %v1433
        %v3982 = vunpack.c.l.b16 %v1434
        %v3983 = vunpack.c.h.b16 %v1434
        %v3984 = vunpack.c.l.b16 %v1435
        %v3985 = vunpack.c.h.b16 %v1435
        %v3986 = vunpack.c.l.b16 %v1436
        %v3987 = vunpack.c.h.b16 %v1436
        %v3988 = vunpack.c.l.b16 %v1437
        %v3989 = vunpack.c.h.b16 %v1437
        %v3990 = vunpack.c.l.b16 %v1438
        %v3991 = vunpack.c.h.b16 %v1438
        %v3992 = vunpack.c.l.b16 %v1439
        %v3993 = vunpack.c.h.b16 %v1439
        %v3994 = vunpack.c.l.b16 %v1440
        %v3995 = vunpack.c.h.b16 %v1440
        %v3996 = vunpack.c.l.b16 %v1441
        %v3997 = vunpack.c.h.b16 %v1441
        %v3998 = vunpack.c.l.b16 %v1442
        %v3999 = vunpack.c.h.b16 %v1442
        %v4000 = vunpack.c.l.b16 %v1443
        %v4001 = vunpack.c.h.b16 %v1443
        %v4002 = vunpack.c.l.b16 %v1444
        %v4003 = vunpack.c.h.b16 %v1444
        %v4004 = vunpack.c.l.b16 %v1445
        %v4005 = vunpack.c.h.b16 %v1445
        %v4006 = vunpack.c.l.b16 %v1446
        %v4007 = vunpack.c.h.b16 %v1446
        %v4008 = vunpack.c.l.b16 %v1447
        %v4009 = vunpack.c.h.b16 %v1447
        %v4010 = vunpack.c.l.b16 %v1448
        %v4011 = vunpack.c.h.b16 %v1448
        %v4012 = vunpack.c.l.b16 %v1449
        %v4013 = vunpack.c.h.b16 %v1449
        %v4014 = vunpack.c.l.b16 %v1450
        %v4015 = vunpack.c.h.b16 %v1450
        %v4016 = vunpack.c.l.b16 %v1451
        %v4017 = vunpack.c.h.b16 %v1451
        %v4018 = vunpack.c.l.b16 %v1452
        %v4019 = vunpack.c.h.b16 %v1452
        %v4020 = vunpack.c.l.b16 %v1453
        %v4021 = vunpack.c.h.b16 %v1453
        %v4022 = vunpack.c.l.b16 %v1454
        %v4023 = vunpack.c.h.b16 %v1454
        %v4024 = vunpack.c.l.b16 %v1455
        %v4025 = vunpack.c.h.b16 %v1455
        %v4026 = vunpack.c.l.b16 %v1456
        %v4027 = vunpack.c.h.b16 %v1456
        %v4028 = vunpack.c.l.b16 %v1457
        %v4029 = vunpack.c.h.b16 %v1457
        %v4030 = vunpack.c.l.b16 %v1458
        %v4031 = vunpack.c.h.b16 %v1458
        %v4032 = vunpack.c.l.b16 %v1459
        %v4033 = vunpack.c.h.b16 %v1459
        %v4034 = vunpack.c.l.b16 %v1460
        %v4035 = vunpack.c.h.b16 %v1460
        %v4036 = vunpack.c.l.b16 %v1461
        %v4037 = vunpack.c.h.b16 %v1461
        %v4038 = vunpack.c.l.b16 %v1462
        %v4039 = vunpack.c.h.b16 %v1462
        %v4040 = vunpack.c.l.b16 %v1463
        %v4041 = vunpack.c.h.b16 %v1463
        %v4042 = vunpack.c.l.b16 %v1464
        %v4043 = vunpack.c.h.b16 %v1464
        %v4044 = vunpack.c.l.b16 %v1465
        %v4045 = vunpack.c.h.b16 %v1465
        %v4046 = vunpack.c.l.b16 %v1466
        %v4047 = vunpack.c.h.b16 %v1466
        %v4048 = vunpack.c.l.b16 %v1467
        %v4049 = vunpack.c.h.b16 %v1467
        %v4050 = vunpack.c.l.b16 %v1468
        %v4051 = vunpack.c.h.b16 %v1468
        %v4052 = vunpack.c.l.b16 %v1469
        %v4053 = vunpack.c.h.b16 %v1469
        %v4054 = vunpack.c.l.b16 %v1470
        %v4055 = vunpack.c.h.b16 %v1470
        %v4056 = vunpack.c.l.b16 %v1471
        %v4057 = vunpack.c.h.b16 %v1471
        %v4058 = vunpack.c.l.b16 %v1472
        %v4059 = vunpack.c.h.b16 %v1472
        %v4060 = vunpack.c.l.b16 %v1473
        %v4061 = vunpack.c.h.b16 %v1473
        %v4062 = vunpack.c.l.b16 %v1474
        %v4063 = vunpack.c.h.b16 %v1474
        %v4064 = vunpack.c.l.b16 %v1475
        %v4065 = vunpack.c.h.b16 %v1475
        %v4066 = vunpack.c.l.b16 %v1476
        %v4067 = vunpack.c.h.b16 %v1476
        %v4068 = vunpack.c.l.b16 %v1477
        %v4069 = vunpack.c.h.b16 %v1477
        %v4070 = vunpack.c.l.b16 %v1478
        %v4071 = vunpack.c.h.b16 %v1478
        %v4072 = vunpack.c.l.b16 %v1479
        %v4073 = vunpack.c.h.b16 %v1479
        %v4074 = vunpack.c.l.b16 %v1480
        %v4075 = vunpack.c.h.b16 %v1480
        %v4076 = vunpack.c.l.b16 %v1481
        %v4077 = vunpack.c.h.b16 %v1481
        %v4078 = vunpack.c.l.b16 %v1482
        %v4079 = vunpack.c.h.b16 %v1482
        %v4080 = vunpack.c.l.b16 %v1483
        %v4081 = vunpack.c.h.b16 %v1483
        %v4082 = vunpack.c.l.b16 %v1484
        %v4083 = vunpack.c.h.b16 %v1484
        %v4084 = vunpack.c.l.b16 %v1485
        %v4085 = vunpack.c.h.b16 %v1485
        %v4086 = vunpack.c.l.b16 %v1486
        %v4087 = vunpack.c.h.b16 %v1486
        %v4088 = vunpack.c.l.b16 %v1487
        %v4089 = vunpack.c.h.b16 %v1487
        %v4090 = vunpack.c.l.b16 %v1488
        %v4091 = vunpack.c.h.b16 %v1488
        %v4092 = vunpack.c.l.b16 %v1489
        %v4093 = vunpack.c.h.b16 %v1489
        %v4094 = vunpack.c.l.b16 %v1490
        %v4095 = vunpack.c.h.b16 %v1490
        %v4096 = vunpack.c.l.b16 %v1491
        %v4097 = vunpack.c.h.b16 %v1491
        %v4098 = vunpack.c.l.b16 %v1492
        %v4099 = vunpack.c.h.b16 %v1492
        %v4100 = vunpack.c.l.b16 %v1493
        %v4101 = vunpack.c.h.b16 %v1493
        %v4102 = vunpack.c.l.b16 %v1494
        %v4103 = vunpack.c.h.b16 %v1494
        %v4104 = vunpack.c.l.b16 %v1495
        %v4105 = vunpack.c.h.b16 %v1495
        %v4106 = vunpack.c.l.b16 %v1496
        %v4107 = vunpack.c.h.b16 %v1496
        %v4108 = vunpack.c.l.b16 %v1497
        %v4109 = vunpack.c.h.b16 %v1497
        %v4110 = vunpack.c.l.b16 %v1498
        %v4111 = vunpack.c.h.b16 %v1498
        %v4112 = vunpack.c.l.b16 %v1499
        %v4113 = vunpack.c.h.b16 %v1499
        %v4114 = vunpack.c.l.b16 %v1500
        %v4115 = vunpack.c.h.b16 %v1500
        %v4116 = vunpack.c.l.b16 %v1501
        %v4117 = vunpack.c.h.b16 %v1501
        %v4118 = vunpack.c.l.b16 %v1502
        %v4119 = vunpack.c.h.b16 %v1502
        %v4120 = vunpack.c.l.b16 %v1503
        %v4121 = vunpack.c.h.b16 %v1503
        %v4122 = vunpack.c.l.b16 %v1504
        %v4123 = vunpack.c.h.b16 %v1504
        %v4124 = vunpack.c.l.b16 %v1505
        %v4125 = vunpack.c.h.b16 %v1505
        %v4126 = vunpack.c.l.b16 %v1506
        %v4127 = vunpack.c.h.b16 %v1506
        %v4128 = vunpack.c.l.b16 %v1507
        %v4129 = vunpack.c.h.b16 %v1507
        %v4130 = vunpack.c.l.b16 %v1508
        %v4131 = vunpack.c.h.b16 %v1508
        %v4132 = vunpack.c.l.b16 %v1509
        %v4133 = vunpack.c.h.b16 %v1509
        %v4134 = vunpack.c.l.b16 %v1510
        %v4135 = vunpack.c.h.b16 %v1510
        %v4136 = vunpack.c.l.b16 %v1511
        %v4137 = vunpack.c.h.b16 %v1511
        %v4138 = vunpack.c.l.b16 %v1512
        %v4139 = vunpack.c.h.b16 %v1512
        %v4140 = vunpack.c.l.b16 %v1513
        %v4141 = vunpack.c.h.b16 %v1513
        %v4142 = vunpack.c.l.b16 %v1514
        %v4143 = vunpack.c.h.b16 %v1514
        %v4144 = vunpack.c.l.b16 %v1515
        %v4145 = vunpack.c.h.b16 %v1515
        %v4146 = vunpack.c.l.b16 %v1516
        %v4147 = vunpack.c.h.b16 %v1516
        %v4148 = vunpack.c.l.b16 %v1517
        %v4149 = vunpack.c.h.b16 %v1517
        %v4150 = vunpack.c.l.b16 %v1518
        %v4151 = vunpack.c.h.b16 %v1518
        %v4152 = vunpack.c.l.b16 %v1519
        %v4153 = vunpack.c.h.b16 %v1519
        %v4154 = vunpack.c.l.b16 %v1520
        %v4155 = vunpack.c.h.b16 %v1520
        %v4156 = vunpack.c.l.b16 %v1521
        %v4157 = vunpack.c.h.b16 %v1521
        %v4158 = vunpack.c.l.b16 %v1522
        %v4159 = vunpack.c.h.b16 %v1522
        %v4160 = vunpack.c.l.b16 %v1523
        %v4161 = vunpack.c.h.b16 %v1523
        %v4162 = vunpack.c.l.b16 %v1524
        %v4163 = vunpack.c.h.b16 %v1524
        %v4164 = vunpack.c.l.b16 %v1525
        %v4165 = vunpack.c.h.b16 %v1525
        %v4166 = vunpack.c.l.b16 %v1526
        %v4167 = vunpack.c.h.b16 %v1526
        %v4168 = vunpack.c.l.b16 %v1527
        %v4169 = vunpack.c.h.b16 %v1527
        %v4170 = vunpack.c.l.b16 %v1528
        %v4171 = vunpack.c.h.b16 %v1528
        %v4172 = vunpack.c.l.b16 %v1529
        %v4173 = vunpack.c.h.b16 %v1529
        %v4174 = vunpack.c.l.b16 %v1530
        %v4175 = vunpack.c.h.b16 %v1530
        %v4176 = vunpack.c.l.b16 %v1531
        %v4177 = vunpack.c.h.b16 %v1531
        %v4178 = vunpack.c.l.b16 %v1532
        %v4179 = vunpack.c.h.b16 %v1532
        %v4180 = vunpack.c.l.b16 %v1533
        %v4181 = vunpack.c.h.b16 %v1533
        %v4182 = vunpack.c.l.b16 %v1534
        %v4183 = vunpack.c.h.b16 %v1534
        %v4184 = vunpack.c.l.b16 %v1535
        %v4185 = vunpack.c.h.b16 %v1535
        %v4186 = vunpack.c.l.b16 %v1536
        %v4187 = vunpack.c.h.b16 %v1536
        %v4188 = vunpack.c.l.b16 %v1537
        %v4189 = vunpack.c.h.b16 %v1537
        %v4190 = vunpack.c.l.b16 %v1538
        %v4191 = vunpack.c.h.b16 %v1538
        %v4192 = vunpack.c.l.b16 %v1539
        %v4193 = vunpack.c.h.b16 %v1539
        %v4194 = vunpack.c.l.b16 %v1540
        %v4195 = vunpack.c.h.b16 %v1540
        %v4196 = vunpack.c.l.b16 %v1541
        %v4197 = vunpack.c.h.b16 %v1541
        %v4198 = vunpack.c.l.b16 %v1542
        %v4199 = vunpack.c.h.b16 %v1542
        %v4200 = vunpack.c.l.b16 %v1543
        %v4201 = vunpack.c.h.b16 %v1543
        %v4202 = vunpack.c.l.b16 %v1544
        %v4203 = vunpack.c.h.b16 %v1544
        %v4204 = vunpack.c.l.b16 %v1545
        %v4205 = vunpack.c.h.b16 %v1545
        %v4206 = vunpack.c.l.b16 %v1546
        %v4207 = vunpack.c.h.b16 %v1546
        %v4208 = vunpack.c.l.b16 %v1547
        %v4209 = vunpack.c.h.b16 %v1547
        %v4210 = vunpack.c.l.b16 %v1548
        %v4211 = vunpack.c.h.b16 %v1548
        %v4212 = vunpack.c.l.b16 %v1549
        %v4213 = vunpack.c.h.b16 %v1549
        %v4214 = vunpack.c.l.b16 %v1550
        %v4215 = vunpack.c.h.b16 %v1550
        %v4216 = vunpack.c.l.b16 %v1551
        %v4217 = vunpack.c.h.b16 %v1551
        %v4218 = vunpack.c.l.b16 %v1552
        %v4219 = vunpack.c.h.b16 %v1552
        %v4220 = vunpack.c.l.b16 %v1553
        %v4221 = vunpack.c.h.b16 %v1553
        %v4222 = vunpack.c.l.b16 %v1554
        %v4223 = vunpack.c.h.b16 %v1554
        %v4224 = vunpack.c.l.b16 %v1555
        %v4225 = vunpack.c.h.b16 %v1555
        %v4226 = vunpack.c.l.b16 %v1556
        %v4227 = vunpack.c.h.b16 %v1556
        %v4228 = vunpack.c.l.b16 %v1557
        %v4229 = vunpack.c.h.b16 %v1557
        %v4230 = vunpack.c.l.b16 %v1558
        %v4231 = vunpack.c.h.b16 %v1558
        %v4232 = vunpack.c.l.b16 %v1559
        %v4233 = vunpack.c.h.b16 %v1559
        %v4234 = vunpack.c.l.b16 %v1560
        %v4235 = vunpack.c.h.b16 %v1560
        %v4236 = vunpack.c.l.b16 %v1561
        %v4237 = vunpack.c.h.b16 %v1561
        %v4238 = vunpack.c.l.b16 %v1562
        %v4239 = vunpack.c.h.b16 %v1562
        %v4240 = vunpack.c.l.b16 %v1563
        %v4241 = vunpack.c.h.b16 %v1563
        %v4242 = vunpack.c.l.b16 %v1564
        %v4243 = vunpack.c.h.b16 %v1564
        %v4244 = vunpack.c.l.b16 %v1565
        %v4245 = vunpack.c.h.b16 %v1565
        %v4246 = vunpack.c.l.b16 %v1566
        %v4247 = vunpack.c.h.b16 %v1566
        %v4248 = vunpack.c.l.b16 %v1567
        %v4249 = vunpack.c.h.b16 %v1567
        %v4250 = vunpack.c.l.b16 %v1568
        %v4251 = vunpack.c.h.b16 %v1568
        %v4252 = vunpack.c.l.b16 %v1569
        %v4253 = vunpack.c.h.b16 %v1569
        %v4254 = vunpack.c.l.b16 %v1570
        %v4255 = vunpack.c.h.b16 %v1570
        %v4256 = vunpack.c.l.b16 %v1571
        %v4257 = vunpack.c.h.b16 %v1571
        %v4258 = vunpack.c.l.b16 %v1572
        %v4259 = vunpack.c.h.b16 %v1572
        %v4260 = vunpack.c.l.b16 %v1573
        %v4261 = vunpack.c.h.b16 %v1573
        %v4262 = vunpack.c.l.b16 %v1574
        %v4263 = vunpack.c.h.b16 %v1574
        %v4264 = vunpack.c.l.b16 %v1575
        %v4265 = vunpack.c.h.b16 %v1575
        %v4266 = vunpack.c.l.b16 %v1576
        %v4267 = vunpack.c.h.b16 %v1576
        %v4268 = vunpack.c.l.b16 %v1577
        %v4269 = vunpack.c.h.b16 %v1577
        %v4270 = vunpack.c.l.b16 %v1578
        %v4271 = vunpack.c.h.b16 %v1578
        %v4272 = vunpack.c.l.b16 %v1579
        %v4273 = vunpack.c.h.b16 %v1579
        %v4274 = vunpack.c.l.b16 %v1580
        %v4275 = vunpack.c.h.b16 %v1580
        %v4276 = vunpack.c.l.b16 %v1581
        %v4277 = vunpack.c.h.b16 %v1581
        %v4278 = vunpack.c.l.b16 %v1582
        %v4279 = vunpack.c.h.b16 %v1582
        %v4280 = vunpack.c.l.b16 %v1583
        %v4281 = vunpack.c.h.b16 %v1583
        %v4282 = vunpack.c.l.b16 %v1584
        %v4283 = vunpack.c.h.b16 %v1584
        %v4284 = vunpack.c.l.b16 %v1585
        %v4285 = vunpack.c.h.b16 %v1585
        %v4286 = vunpack.c.l.b16 %v1586
        %v4287 = vunpack.c.h.b16 %v1586
        %v4288 = vunpack.c.l.b16 %v1587
        %v4289 = vunpack.c.h.b16 %v1587
        %v4290 = vunpack.c.l.b16 %v1588
        %v4291 = vunpack.c.h.b16 %v1588
        %v4292 = vunpack.c.l.b16 %v1589
        %v4293 = vunpack.c.h.b16 %v1589
        %v4294 = vunpack.c.l.b16 %v1590
        %v4295 = vunpack.c.h.b16 %v1590
        %v4296 = vunpack.c.l.b16 %v1591
        %v4297 = vunpack.c.h.b16 %v1591
        %v4298 = vunpack.c.l.b16 %v1592
        %v4299 = vunpack.c.h.b16 %v1592
        %v4300 = vunpack.c.l.b16 %v1593
        %v4301 = vunpack.c.h.b16 %v1593
        %v4302 = vunpack.c.l.b16 %v1594
        %v4303 = vunpack.c.h.b16 %v1594
        %v4304 = vunpack.c.l.b16 %v1595
        %v4305 = vunpack.c.h.b16 %v1595
        %v4306 = vunpack.c.l.b16 %v1596
        %v4307 = vunpack.c.h.b16 %v1596
        %v4308 = vunpack.c.l.b16 %v1597
        %v4309 = vunpack.c.h.b16 %v1597
        %v4310 = vunpack.c.l.b16 %v1598
        %v4311 = vunpack.c.h.b16 %v1598
        %v4312 = vunpack.c.l.b16 %v1599
        %v4313 = vunpack.c.h.b16 %v1599
        %v4314 = vunpack.c.l.b16 %v1600
        %v4315 = vunpack.c.h.b16 %v1600
        %v4316 = vunpack.c.l.b16 %v1601
        %v4317 = vunpack.c.h.b16 %v1601
        %v4318 = vunpack.c.l.b16 %v1602
        %v4319 = vunpack.c.h.b16 %v1602
        %v4320 = vunpack.c.l.b16 %v1603
        %v4321 = vunpack.c.h.b16 %v1603
        %v4322 = vunpack.c.l.b16 %v1604
        %v4323 = vunpack.c.h.b16 %v1604
        %v4324 = vunpack.c.l.b16 %v1605
        %v4325 = vunpack.c.h.b16 %v1605
        %v4326 = vunpack.c.l.b16 %v1606
        %v4327 = vunpack.c.h.b16 %v1606
        %v4328 = vunpack.c.l.b16 %v1607
        %v4329 = vunpack.c.h.b16 %v1607
        %v4330 = vunpack.c.l.b16 %v1608
        %v4331 = vunpack.c.h.b16 %v1608
        %v4332 = vunpack.c.l.b16 %v1609
        %v4333 = vunpack.c.h.b16 %v1609
        %v4334 = vunpack.c.l.b16 %v1610
        %v4335 = vunpack.c.h.b16 %v1610
        %v4336 = vunpack.c.l.b16 %v1611
        %v4337 = vunpack.c.h.b16 %v1611
        %v4338 = vunpack.c.l.b16 %v1612
        %v4339 = vunpack.c.h.b16 %v1612
        %v4340 = vunpack.c.l.b16 %v1613
        %v4341 = vunpack.c.h.b16 %v1613
        %v4342 = vunpack.c.l.b16 %v1614
        %v4343 = vunpack.c.h.b16 %v1614
        %v4344 = vunpack.c.l.b16 %v1615
        %v4345 = vunpack.c.h.b16 %v1615
        %v4346 = vunpack.c.l.b16 %v1616
        %v4347 = vunpack.c.h.b16 %v1616
        %v4348 = vunpack.c.l.b16 %v1617
        %v4349 = vunpack.c.h.b16 %v1617
        %v4350 = vunpack.c.l.b16 %v1618
        %v4351 = vunpack.c.h.b16 %v1618
        %v4352 = vunpack.c.l.b16 %v1619
        %v4353 = vunpack.c.h.b16 %v1619
        %v4354 = vunpack.c.l.b16 %v1620
        %v4355 = vunpack.c.h.b16 %v1620
        %v4356 = vunpack.c.l.b16 %v1621
        %v4357 = vunpack.c.h.b16 %v1621
        %v4358 = vunpack.c.l.b16 %v1622
        %v4359 = vunpack.c.h.b16 %v1622
        %v4360 = vunpack.c.l.b16 %v1623
        %v4361 = vunpack.c.h.b16 %v1623
        %v4362 = vunpack.c.l.b16 %v1624
        %v4363 = vunpack.c.h.b16 %v1624
        %v4364 = vunpack.c.l.b16 %v1625
        %v4365 = vunpack.c.h.b16 %v1625
        %v4366 = vunpack.c.l.b16 %v1626
        %v4367 = vunpack.c.h.b16 %v1626
        %v4368 = vunpack.c.l.b16 %v1627
        %v4369 = vunpack.c.h.b16 %v1627
        %v4370 = vunpack.c.l.b16 %v1628
        %v4371 = vunpack.c.h.b16 %v1628
        %v4372 = vunpack.c.l.b16 %v1629
        %v4373 = vunpack.c.h.b16 %v1629
        %v4374 = vunpack.c.l.b16 %v1630
        %v4375 = vunpack.c.h.b16 %v1630
        %v4376 = vunpack.c.l.b16 %v1631
        %v4377 = vunpack.c.h.b16 %v1631
        %v4378 = vunpack.c.l.b16 %v1632
        %v4379 = vunpack.c.h.b16 %v1632
        %v4380 = vunpack.c.l.b16 %v1633
        %v4381 = vunpack.c.h.b16 %v1633
        %v4382 = vunpack.c.l.b16 %v1634
        %v4383 = vunpack.c.h.b16 %v1634
        %v4384 = vunpack.c.l.b16 %v1635
        %v4385 = vunpack.c.h.b16 %v1635
        %v4386 = vunpack.c.l.b16 %v1636
        %v4387 = vunpack.c.h.b16 %v1636
        %v4388 = vunpack.c.l.b16 %v1637
        %v4389 = vunpack.c.h.b16 %v1637
        %v4390 = vunpack.c.l.b16 %v1638
        %v4391 = vunpack.c.h.b16 %v1638
        %v4392 = vunpack.c.l.b16 %v1639
        %v4393 = vunpack.c.h.b16 %v1639
        %v4394 = vunpack.c.l.b16 %v1640
        %v4395 = vunpack.c.h.b16 %v1640
        %v4396 = vunpack.c.l.b16 %v1641
        %v4397 = vunpack.c.h.b16 %v1641
        %v4398 = vunpack.c.l.b16 %v1642
        %v4399 = vunpack.c.h.b16 %v1642
        %v4400 = vunpack.c.l.b16 %v1643
        %v4401 = vunpack.c.h.b16 %v1643
        %v4402 = vunpack.c.l.b16 %v1644
        %v4403 = vunpack.c.h.b16 %v1644
        %v4404 = vunpack.c.l.b16 %v1645
        %v4405 = vunpack.c.h.b16 %v1645
        %v4406 = vunpack.c.l.b16 %v1646
        %v4407 = vunpack.c.h.b16 %v1646
        %v4408 = vunpack.c.l.b16 %v1647
        %v4409 = vunpack.c.h.b16 %v1647
        %v4410 = vunpack.c.l.b16 %v1648
        %v4411 = vunpack.c.h.b16 %v1648
        %v4412 = vunpack.c.l.b16 %v1649
        %v4413 = vunpack.c.h.b16 %v1649
        %v4414 = vunpack.c.l.b16 %v1650
        %v4415 = vunpack.c.h.b16 %v1650
        %v4416 = vunpack.c.l.b16 %v1651
        %v4417 = vunpack.c.h.b16 %v1651
        %v4418 = vunpack.c.l.b16 %v1652
        %v4419 = vunpack.c.h.b16 %v1652
        %v4420 = vunpack.c.l.b16 %v1653
        %v4421 = vunpack.c.h.b16 %v1653
        %v4422 = vunpack.c.l.b16 %v1654
        %v4423 = vunpack.c.h.b16 %v1654
        %v4424 = vunpack.c.l.b16 %v1655
        %v4425 = vunpack.c.h.b16 %v1655
        %v4426 = vunpack.c.l.b16 %v1656
        %v4427 = vunpack.c.h.b16 %v1656
        %v4428 = vunpack.c.l.b16 %v1657
        %v4429 = vunpack.c.h.b16 %v1657
        %v4430 = vunpack.c.l.b16 %v1658
        %v4431 = vunpack.c.h.b16 %v1658
        %v4432 = vunpack.c.l.b16 %v1659
        %v4433 = vunpack.c.h.b16 %v1659
        %v4434 = vunpack.c.l.b16 %v1660
        %v4435 = vunpack.c.h.b16 %v1660
        %v4436 = vunpack.c.l.b16 %v1661
        %v4437 = vunpack.c.h.b16 %v1661
        %v4438 = vunpack.c.l.b16 %v1662
        %v4439 = vunpack.c.h.b16 %v1662
        %v4440 = vunpack.c.l.b16 %v1663
        %v4441 = vunpack.c.h.b16 %v1663
        %v4442 = vunpack.c.l.b16 %v1664
        %v4443 = vunpack.c.h.b16 %v1664
        %v4444 = vunpack.c.l.b16 %v1665
        %v4445 = vunpack.c.h.b16 %v1665
        %v4446 = vunpack.c.l.b16 %v1666
        %v4447 = vunpack.c.h.b16 %v1666
        %v4448 = vunpack.c.l.b16 %v1667
        %v4449 = vunpack.c.h.b16 %v1667
        %v4450 = vunpack.c.l.b16 %v1668
        %v4451 = vunpack.c.h.b16 %v1668
        %v4452 = vunpack.c.l.b16 %v1669
        %v4453 = vunpack.c.h.b16 %v1669
        %v4454 = vunpack.c.l.b16 %v1670
        %v4455 = vunpack.c.h.b16 %v1670
        %v4456 = vunpack.c.l.b16 %v1671
        %v4457 = vunpack.c.h.b16 %v1671
        %v4458 = vunpack.c.l.b16 %v1672
        %v4459 = vunpack.c.h.b16 %v1672
        %v4460 = vunpack.c.l.b16 %v1673
        %v4461 = vunpack.c.h.b16 %v1673
        %v4462 = vunpack.c.l.b16 %v1674
        %v4463 = vunpack.c.h.b16 %v1674
        %v4464 = vunpack.c.l.b16 %v1675
        %v4465 = vunpack.c.h.b16 %v1675
        %v4466 = vunpack.c.l.b16 %v1676
        %v4467 = vunpack.c.h.b16 %v1676
        %v4468 = vunpack.c.l.b16 %v1677
        %v4469 = vunpack.c.h.b16 %v1677
        %v4470 = vunpack.c.l.b16 %v1678
        %v4471 = vunpack.c.h.b16 %v1678
        %v4472 = vunpack.c.l.b16 %v1679
        %v4473 = vunpack.c.h.b16 %v1679
        %v4474 = vunpack.c.l.b16 %v1680
        %v4475 = vunpack.c.h.b16 %v1680
        %v4476 = vunpack.c.l.b16 %v1681
        %v4477 = vunpack.c.h.b16 %v1681
        %v4478 = vunpack.c.l.b16 %v1682
        %v4479 = vunpack.c.h.b16 %v1682
        %v4480 = vunpack.c.l.b16 %v1683
        %v4481 = vunpack.c.h.b16 %v1683
        %v4482 = vunpack.c.l.b16 %v1684
        %v4483 = vunpack.c.h.b16 %v1684
        %v4484 = vunpack.c.l.b16 %v1685
        %v4485 = vunpack.c.h.b16 %v1685
        %v4486 = vunpack.c.l.b16 %v1686
        %v4487 = vunpack.c.h.b16 %v1686
        %v4488 = vunpack.c.l.b16 %v1687
        %v4489 = vunpack.c.h.b16 %v1687
        %v4490 = vunpack.c.l.b16 %v1688
        %v4491 = vunpack.c.h.b16 %v1688
        %v4492 = vunpack.c.l.b16 %v1689
        %v4493 = vunpack.c.h.b16 %v1689
        %v4494 = vunpack.c.l.b16 %v1690
        %v4495 = vunpack.c.h.b16 %v1690
        %v4496 = vunpack.c.l.b16 %v1691
        %v4497 = vunpack.c.h.b16 %v1691
        %v4498 = vunpack.c.l.b16 %v1692
        %v4499 = vunpack.c.h.b16 %v1692
        %v4500 = vunpack.c.l.b16 %v1693
        %v4501 = vunpack.c.h.b16 %v1693
        %v4502 = vunpack.c.l.b16 %v1694
        %v4503 = vunpack.c.h.b16 %v1694
        %v4504 = vunpack.c.l.b16 %v1695
        %v4505 = vunpack.c.h.b16 %v1695
        %v4506 = vunpack.c.l.b16 %v1696
        %v4507 = vunpack.c.h.b16 %v1696
        %v4508 = vunpack.c.l.b16 %v1697
        %v4509 = vunpack.c.h.b16 %v1697
        %v4510 = vunpack.c.l.b16 %v1698
        %v4511 = vunpack.c.h.b16 %v1698
        %v4512 = vunpack.c.l.b16 %v1699
        %v4513 = vunpack.c.h.b16 %v1699
        %v4514 = vunpack.c.l.b16 %v1700
        %v4515 = vunpack.c.h.b16 %v1700
        %v4516 = vunpack.c.l.b16 %v1701
        %v4517 = vunpack.c.h.b16 %v1701
        %v4518 = vunpack.c.l.b16 %v1702
        %v4519 = vunpack.c.h.b16 %v1702
        %v4520 = vunpack.c.l.b16 %v1703
        %v4521 = vunpack.c.h.b16 %v1703
        %v4522 = vunpack.c.l.b16 %v1704
        %v4523 = vunpack.c.h.b16 %v1704
        %v4524 = vunpack.c.l.b16 %v1705
        %v4525 = vunpack.c.h.b16 %v1705
        %v4526 = vunpack.c.l.b16 %v1706
        %v4527 = vunpack.c.h.b16 %v1706
        %v4528 = vunpack.c.l.b16 %v1707
        %v4529 = vunpack.c.h.b16 %v1707
        %v4530 = vunpack.c.l.b16 %v1708
        %v4531 = vunpack.c.h.b16 %v1708
        %v4532 = vunpack.c.l.b16 %v1709
        %v4533 = vunpack.c.h.b16 %v1709
        %v4534 = vunpack.c.l.b16 %v1710
        %v4535 = vunpack.c.h.b16 %v1710
        %v4536 = vunpack.c.l.b16 %v1711
        %v4537 = vunpack.c.h.b16 %v1711
        %v4538 = vunpack.c.l.b16 %v1712
        %v4539 = vunpack.c.h.b16 %v1712
        %v4540 = vunpack.c.l.b16 %v1713
        %v4541 = vunpack.c.h.b16 %v1713
        %v4542 = vunpack.c.l.b16 %v1714
        %v4543 = vunpack.c.h.b16 %v1714
        %v4544 = vunpack.c.l.b16 %v1715
        %v4545 = vunpack.c.h.b16 %v1715
        %v4546 = vunpack.c.l.b16 %v1716
        %v4547 = vunpack.c.h.b16 %v1716
        %v4548 = vunpack.c.l.b16 %v1717
        %v4549 = vunpack.c.h.b16 %v1717
        %v4550 = vunpack.c.l.b16 %v1718
        %v4551 = vunpack.c.h.b16 %v1718
        %v4552 = vunpack.c.l.b16 %v1719
        %v4553 = vunpack.c.h.b16 %v1719
        %v4554 = vunpack.c.l.b16 %v1720
        %v4555 = vunpack.c.h.b16 %v1720
        %v4556 = vunpack.c.l.b16 %v1721
        %v4557 = vunpack.c.h.b16 %v1721
        %v4558 = vunpack.c.l.b16 %v1722
        %v4559 = vunpack.c.h.b16 %v1722
        %v4560 = vunpack.c.l.b16 %v1723
        %v4561 = vunpack.c.h.b16 %v1723
        %v4562 = vunpack.c.l.b16 %v1724
        %v4563 = vunpack.c.h.b16 %v1724
        %v4564 = vunpack.c.l.b16 %v1725
        %v4565 = vunpack.c.h.b16 %v1725
        %v4566 = vunpack.c.l.b16 %v1726
        %v4567 = vunpack.c.h.b16 %v1726
        %v4568 = vunpack.c.l.b16 %v1727
        %v4569 = vunpack.c.h.b16 %v1727
        %v4570 = vunpack.c.l.b16 %v1728
        %v4571 = vunpack.c.h.b16 %v1728
        %v4572 = vunpack.c.l.b16 %v1729
        %v4573 = vunpack.c.h.b16 %v1729
        %v4574 = vunpack.c.l.b16 %v1730
        %v4575 = vunpack.c.h.b16 %v1730
        %v4576 = vunpack.c.l.b16 %v1731
        %v4577 = vunpack.c.h.b16 %v1731
        %v4578 = vunpack.c.l.b16 %v1732
        %v4579 = vunpack.c.h.b16 %v1732
        %v4580 = vunpack.c.l.b16 %v1733
        %v4581 = vunpack.c.h.b16 %v1733
        %v4582 = vunpack.c.l.b16 %v1734
        %v4583 = vunpack.c.h.b16 %v1734
        %v4584 = vunpack.c.l.b16 %v1735
        %v4585 = vunpack.c.h.b16 %v1735
        %v4586 = vunpack.c.l.b16 %v1736
        %v4587 = vunpack.c.h.b16 %v1736
        %v4588 = vunpack.c.l.b16 %v1737
        %v4589 = vunpack.c.h.b16 %v1737
        %v4590 = vunpack.c.l.b16 %v1738
        %v4591 = vunpack.c.h.b16 %v1738
        %v4592 = vunpack.c.l.b16 %v1739
        %v4593 = vunpack.c.h.b16 %v1739
        %v4594 = vunpack.c.l.b16 %v1740
        %v4595 = vunpack.c.h.b16 %v1740
        %v4596 = vunpack.c.l.b16 %v1741
        %v4597 = vunpack.c.h.b16 %v1741
        %v4598 = vunpack.c.l.b16 %v1742
        %v4599 = vunpack.c.h.b16 %v1742
        %v4600 = vunpack.c.l.b16 %v1743
        %v4601 = vunpack.c.h.b16 %v1743
        %v4602 = vunpack.c.l.b16 %v1744
        %v4603 = vunpack.c.h.b16 %v1744
        %v4604 = vunpack.c.l.b16 %v1745
        %v4605 = vunpack.c.h.b16 %v1745
        %v4606 = vunpack.c.l.b16 %v1746
        %v4607 = vunpack.c.h.b16 %v1746
        %v4608 = vunpack.c.l.b16 %v1747
        %v4609 = vunpack.c.h.b16 %v1747
        %v4610 = vunpack.c.l.b16 %v1748
        %v4611 = vunpack.c.h.b16 %v1748
        %v4612 = vunpack.c.l.b16 %v1749
        %v4613 = vunpack.c.h.b16 %v1749
        %v4614 = vunpack.c.l.b16 %v1750
        %v4615 = vunpack.c.h.b16 %v1750
        %v4616 = vunpack.c.l.b16 %v1751
        %v4617 = vunpack.c.h.b16 %v1751
        %v4618 = vunpack.c.l.b16 %v1752
        %v4619 = vunpack.c.h.b16 %v1752
        %v4620 = vunpack.c.l.b16 %v1753
        %v4621 = vunpack.c.h.b16 %v1753
        %v4622 = vunpack.c.l.b16 %v1754
        %v4623 = vunpack.c.h.b16 %v1754
        %v4624 = vunpack.c.l.b16 %v1755
        %v4625 = vunpack.c.h.b16 %v1755
        %v4626 = vunpack.c.l.b16 %v1756
        %v4627 = vunpack.c.h.b16 %v1756
        %v4628 = vunpack.c.l.b16 %v1757
        %v4629 = vunpack.c.h.b16 %v1757
        %v4630 = vunpack.c.l.b16 %v1758
        %v4631 = vunpack.c.h.b16 %v1758
        %v4632 = vunpack.c.l.b16 %v1759
        %v4633 = vunpack.c.h.b16 %v1759
        %v4634 = vunpack.c.l.b16 %v1760
        %v4635 = vunpack.c.h.b16 %v1760
        %v4636 = vunpack.c.l.b16 %v1761
        %v4637 = vunpack.c.h.b16 %v1761
        %v4638 = vunpack.c.l.b16 %v1762
        %v4639 = vunpack.c.h.b16 %v1762
        %v4640 = vunpack.c.l.b16 %v1763
        %v4641 = vunpack.c.h.b16 %v1763
        %v4642 = vunpack.c.l.b16 %v1764
        %v4643 = vunpack.c.h.b16 %v1764
        %v4644 = vunpack.c.l.b16 %v1765
        %v4645 = vunpack.c.h.b16 %v1765
        %v4646 = vunpack.c.l.b16 %v1766
        %v4647 = vunpack.c.h.b16 %v1766
        %v4648 = vunpack.c.l.b16 %v1767
        %v4649 = vunpack.c.h.b16 %v1767
        %v4650 = vunpack.c.l.b16 %v1768
        %v4651 = vunpack.c.h.b16 %v1768
        %v4652 = vunpack.c.l.b16 %v1769
        %v4653 = vunpack.c.h.b16 %v1769
        %v4654 = vunpack.c.l.b16 %v1770
        %v4655 = vunpack.c.h.b16 %v1770
        %v4656 = vunpack.c.l.b16 %v1771
        %v4657 = vunpack.c.h.b16 %v1771
        %v4658 = vunpack.c.l.b16 %v1772
        %v4659 = vunpack.c.h.b16 %v1772
        %v4660 = vunpack.c.l.b16 %v1773
        %v4661 = vunpack.c.h.b16 %v1773
        %v4662 = vunpack.c.l.b16 %v1774
        %v4663 = vunpack.c.h.b16 %v1774
        %v4664 = vunpack.c.l.b16 %v1775
        %v4665 = vunpack.c.h.b16 %v1775
        %v4666 = vunpack.c.l.b16 %v1776
        %v4667 = vunpack.c.h.b16 %v1776
        %v4668 = vunpack.c.l.b16 %v1777
        %v4669 = vunpack.c.h.b16 %v1777
        %v4670 = vunpack.c.l.b16 %v1778
        %v4671 = vunpack.c.h.b16 %v1778
        %v4672 = vunpack.c.l.b16 %v1779
        %v4673 = vunpack.c.h.b16 %v1779
        %v4674 = vunpack.c.l.b16 %v1780
        %v4675 = vunpack.c.h.b16 %v1780
        %v4676 = vunpack.c.l.b16 %v1781
        %v4677 = vunpack.c.h.b16 %v1781
        %v4678 = vunpack.c.l.b16 %v1782
        %v4679 = vunpack.c.h.b16 %v1782
        %v4680 = vunpack.c.l.b16 %v1783
        %v4681 = vunpack.c.h.b16 %v1783
        %v4682 = vunpack.c.l.b16 %v1784
        %v4683 = vunpack.c.h.b16 %v1784
        %v4684 = vunpack.c.l.b16 %v1785
        %v4685 = vunpack.c.h.b16 %v1785
        %v4686 = vunpack.c.l.b16 %v1786
        %v4687 = vunpack.c.h.b16 %v1786
        %v4688 = vunpack.c.l.b16 %v1787
        %v4689 = vunpack.c.h.b16 %v1787
        %v4690 = vunpack.c.l.b16 %v1788
        %v4691 = vunpack.c.h.b16 %v1788
        %v4692 = vunpack.c.l.b16 %v1789
        %v4693 = vunpack.c.h.b16 %v1789
        %v4694 = vunpack.c.l.b16 %v1790
        %v4695 = vunpack.c.h.b16 %v1790
        %v4696 = vunpack.c.l.b16 %v1791
        %v4697 = vunpack.c.h.b16 %v1791
        %v4698 = vunpack.c.l.b16 %v1792
        %v4699 = vunpack.c.h.b16 %v1792
        %v4700 = vunpack.c.l.b16 %v1793
        %v4701 = vunpack.c.h.b16 %v1793
        %v4702 = vunpack.c.l.b16 %v1794
        %v4703 = vunpack.c.h.b16 %v1794
        %v4704 = vunpack.c.l.b16 %v1795
        %v4705 = vunpack.c.h.b16 %v1795
        %v4706 = vunpack.c.l.b16 %v1796
        %v4707 = vunpack.c.h.b16 %v1796
        %v4708 = vunpack.c.l.b16 %v1797
        %v4709 = vunpack.c.h.b16 %v1797
        %v4710 = vunpack.c.l.b16 %v1798
        %v4711 = vunpack.c.h.b16 %v1798
        %v4712 = vunpack.c.l.b16 %v1799
        %v4713 = vunpack.c.h.b16 %v1799
        %v4714 = vunpack.c.l.b16 %v1800
        %v4715 = vunpack.c.h.b16 %v1800
        %v4716 = vunpack.c.l.b16 %v1801
        %v4717 = vunpack.c.h.b16 %v1801
        %v4718 = vunpack.c.l.b16 %v1802
        %v4719 = vunpack.c.h.b16 %v1802
        %v4720 = vunpack.c.l.b16 %v1803
        %v4721 = vunpack.c.h.b16 %v1803
        %v4722 = vunpack.c.l.b16 %v1804
        %v4723 = vunpack.c.h.b16 %v1804
        %v4724 = vunpack.c.l.b16 %v1805
        %v4725 = vunpack.c.h.b16 %v1805
        %v4726 = vunpack.c.l.b16 %v1806
        %v4727 = vunpack.c.h.b16 %v1806
        %v4728 = vunpack.c.l.b16 %v1807
        %v4729 = vunpack.c.h.b16 %v1807
        %v4730 = vunpack.c.l.b16 %v1808
        %v4731 = vunpack.c.h.b16 %v1808
        %v4732 = vunpack.c.l.b16 %v1809
        %v4733 = vunpack.c.h.b16 %v1809
        %v4734 = vunpack.c.l.b16 %v1810
        %v4735 = vunpack.c.h.b16 %v1810
        %v4736 = vunpack.c.l.b16 %v1811
        %v4737 = vunpack.c.h.b16 %v1811
        %v4738 = vunpack.c.l.b16 %v1812
        %v4739 = vunpack.c.h.b16 %v1812
        %v4740 = vunpack.c.l.b16 %v1813
        %v4741 = vunpack.c.h.b16 %v1813
        %v4742 = vunpack.c.l.b16 %v1814
        %v4743 = vunpack.c.h.b16 %v1814
        %v4744 = vunpack.c.l.b16 %v1815
        %v4745 = vunpack.c.h.b16 %v1815
        %v4746 = vunpack.c.l.b16 %v1816
        %v4747 = vunpack.c.h.b16 %v1816
        %v4748 = vunpack.c.l.b16 %v1817
        %v4749 = vunpack.c.h.b16 %v1817
        %v4750 = vunpack.c.l.b16 %v1818
        %v4751 = vunpack.c.h.b16 %v1818
        %v4752 = vunpack.c.l.b16 %v1819
        %v4753 = vunpack.c.h.b16 %v1819
        %v4754 = vunpack.c.l.b16 %v1820
        %v4755 = vunpack.c.h.b16 %v1820
        %v4756 = vunpack.c.l.b16 %v1821
        %v4757 = vunpack.c.h.b16 %v1821
        %v4758 = vunpack.c.l.b16 %v1822
        %v4759 = vunpack.c.h.b16 %v1822
        %v4760 = vunpack.c.l.b16 %v1823
        %v4761 = vunpack.c.h.b16 %v1823
        %v4762 = vunpack.c.l.b16 %v1824
        %v4763 = vunpack.c.h.b16 %v1824
        %v4764 = vunpack.c.l.b16 %v1825
        %v4765 = vunpack.c.h.b16 %v1825
        %v4766 = vunpack.c.l.b16 %v1826
        %v4767 = vunpack.c.h.b16 %v1826
        %v4768 = vunpack.c.l.b16 %v1827
        %v4769 = vunpack.c.h.b16 %v1827
        %v4770 = vunpack.c.l.b16 %v1828
        %v4771 = vunpack.c.h.b16 %v1828
        %v4772 = vunpack.c.l.b16 %v1829
        %v4773 = vunpack.c.h.b16 %v1829
        %v4774 = vunpack.c.l.b16 %v1830
        %v4775 = vunpack.c.h.b16 %v1830
        %v4776 = vunpack.c.l.b16 %v1831
        %v4777 = vunpack.c.h.b16 %v1831
        %v4778 = vunpack.c.l.b16 %v1832
        %v4779 = vunpack.c.h.b16 %v1832
        %v4780 = vunpack.c.l.b16 %v1833
        %v4781 = vunpack.c.h.b16 %v1833
        %v4782 = vunpack.c.l.b16 %v1834
        %v4783 = vunpack.c.h.b16 %v1834
        %v4784 = vunpack.c.l.b16 %v1835
        %v4785 = vunpack.c.h.b16 %v1835
        %v4786 = vunpack.c.l.b16 %v1836
        %v4787 = vunpack.c.h.b16 %v1836
        %v4788 = vunpack.c.l.b16 %v1837
        %v4789 = vunpack.c.h.b16 %v1837
        %v4790 = vunpack.c.l.b16 %v1838
        %v4791 = vunpack.c.h.b16 %v1838
        %v4792 = vunpack.c.l.b16 %v1839
        %v4793 = vunpack.c.h.b16 %v1839
        %v4794 = vunpack.c.l.b16 %v1840
        %v4795 = vunpack.c.h.b16 %v1840
        %v4796 = vunpack.c.l.b16 %v1841
        %v4797 = vunpack.c.h.b16 %v1841
        %v4798 = vunpack.c.l.b16 %v1842
        %v4799 = vunpack.c.h.b16 %v1842
        %v4800 = vunpack.c.l.b16 %v1843
        %v4801 = vunpack.c.h.b16 %v1843
        %v4802 = vunpack.c.l.b16 %v1844
        %v4803 = vunpack.c.h.b16 %v1844
        %v4804 = vunpack.c.l.b16 %v1845
        %v4805 = vunpack.c.h.b16 %v1845
        %v4806 = vunpack.c.l.b16 %v1846
        %v4807 = vunpack.c.h.b16 %v1846
        %v4808 = vunpack.c.l.b16 %v1847
        %v4809 = vunpack.c.h.b16 %v1847
        %v4810 = vunpack.c.l.b16 %v1848
        %v4811 = vunpack.c.h.b16 %v1848
        %v4812 = vunpack.c.l.b16 %v1849
        %v4813 = vunpack.c.h.b16 %v1849
        %v4814 = vunpack.c.l.b16 %v1850
        %v4815 = vunpack.c.h.b16 %v1850
        %v4816 = vunpack.c.l.b16 %v1851
        %v4817 = vunpack.c.h.b16 %v1851
        %v4818 = vunpack.c.l.b16 %v1852
        %v4819 = vunpack.c.h.b16 %v1852
        %v4820 = vunpack.c.l.b16 %v1853
        %v4821 = vunpack.c.h.b16 %v1853
        %v4822 = vunpack.c.l.b16 %v1854
        %v4823 = vunpack.c.h.b16 %v1854
        %v4824 = vunpack.c.l.b16 %v1855
        %v4825 = vunpack.c.h.b16 %v1855
        %v4826 = vunpack.c.l.b16 %v1856
        %v4827 = vunpack.c.h.b16 %v1856
        %v4828 = vunpack.c.l.b16 %v1857
        %v4829 = vunpack.c.h.b16 %v1857
        %v4830 = vunpack.c.l.b16 %v1858
        %v4831 = vunpack.c.h.b16 %v1858
        %v4832 = vunpack.c.l.b16 %v1859
        %v4833 = vunpack.c.h.b16 %v1859
        %v4834 = vunpack.c.l.b16 %v1860
        %v4835 = vunpack.c.h.b16 %v1860
        %v4836 = vunpack.c.l.b16 %v1861
        %v4837 = vunpack.c.h.b16 %v1861
        %v4838 = vunpack.c.l.b16 %v1862
        %v4839 = vunpack.c.h.b16 %v1862
        %v4840 = vunpack.c.l.b16 %v1863
        %v4841 = vunpack.c.h.b16 %v1863
        %v4842 = vunpack.c.l.b16 %v1864
        %v4843 = vunpack.c.h.b16 %v1864
        %v4844 = vunpack.c.l.b16 %v1865
        %v4845 = vunpack.c.h.b16 %v1865
        %v4846 = vunpack.c.l.b16 %v1866
        %v4847 = vunpack.c.h.b16 %v1866
        %v4848 = vunpack.c.l.b16 %v1867
        %v4849 = vunpack.c.h.b16 %v1867
        %v4850 = vunpack.c.l.b16 %v1868
        %v4851 = vunpack.c.h.b16 %v1868
        %v4852 = vunpack.c.l.b16 %v1869
        %v4853 = vunpack.c.h.b16 %v1869
        %v4854 = vunpack.c.l.b16 %v1870
        %v4855 = vunpack.c.h.b16 %v1870
        %v4856 = vunpack.c.l.b16 %v1871
        %v4857 = vunpack.c.h.b16 %v1871
        %v4858 = vunpack.c.l.b16 %v1872
        %v4859 = vunpack.c.h.b16 %v1872
        %v4860 = vunpack.c.l.b16 %v1873
        %v4861 = vunpack.c.h.b16 %v1873
        %v4862 = vunpack.c.l.b16 %v1874
        %v4863 = vunpack.c.h.b16 %v1874
        %v4864 = vunpack.c.l.b16 %v1875
        %v4865 = vunpack.c.h.b16 %v1875
        %v4866 = vunpack.c.l.b16 %v1876
        %v4867 = vunpack.c.h.b16 %v1876
        %v4868 = vunpack.c.l.b16 %v1877
        %v4869 = vunpack.c.h.b16 %v1877
        %v4870 = vunpack.c.l.b16 %v1878
        %v4871 = vunpack.c.h.b16 %v1878
        %v4872 = vunpack.c.l.b16 %v1879
        %v4873 = vunpack.c.h.b16 %v1879
        %v4874 = vunpack.c.l.b16 %v1880
        %v4875 = vunpack.c.h.b16 %v1880
        %v4876 = vunpack.c.l.b16 %v1881
        %v4877 = vunpack.c.h.b16 %v1881
        %v4878 = vunpack.c.l.b16 %v1882
        %v4879 = vunpack.c.h.b16 %v1882
        %v4880 = vunpack.c.l.b16 %v1883
        %v4881 = vunpack.c.h.b16 %v1883
        %v4882 = vunpack.c.l.b16 %v1884
        %v4883 = vunpack.c.h.b16 %v1884
        %v4884 = vunpack.c.l.b16 %v1885
        %v4885 = vunpack.c.h.b16 %v1885
        %v4886 = vunpack.c.l.b16 %v1886
        %v4887 = vunpack.c.h.b16 %v1886
        %v4888 = vunpack.c.l.b16 %v1887
        %v4889 = vunpack.c.h.b16 %v1887
        %v4890 = vunpack.c.l.b16 %v1888
        %v4891 = vunpack.c.h.b16 %v1888
        %v4892 = vunpack.c.l.b16 %v1889
        %v4893 = vunpack.c.h.b16 %v1889
        %v4894 = vunpack.c.l.b16 %v1890
        %v4895 = vunpack.c.h.b16 %v1890
        %v4896 = vunpack.c.l.b16 %v1891
        %v4897 = vunpack.c.h.b16 %v1891
        %v4898 = vunpack.c.l.b16 %v1892
        %v4899 = vunpack.c.h.b16 %v1892
        %v4900 = vunpack.c.l.b16 %v1893
        %v4901 = vunpack.c.h.b16 %v1893
        %v4902 = vunpack.c.l.b16 %v1894
        %v4903 = vunpack.c.h.b16 %v1894
        %v4904 = vunpack.c.l.b16 %v1895
        %v4905 = vunpack.c.h.b16 %v1895
        %v4906 = vunpack.c.l.b16 %v1896
        %v4907 = vunpack.c.h.b16 %v1896
        %v4908 = vunpack.c.l.b16 %v1897
        %v4909 = vunpack.c.h.b16 %v1897
        %v4910 = vunpack.c.l.b16 %v1898
        %v4911 = vunpack.c.h.b16 %v1898
        %v4912 = vunpack.c.l.b16 %v1899
        %v4913 = vunpack.c.h.b16 %v1899
        %v4914 = vunpack.c.l.b16 %v1900
        %v4915 = vunpack.c.h.b16 %v1900
        %v4916 = vunpack.c.l.b16 %v1901
        %v4917 = vunpack.c.h.b16 %v1901
        %v4918 = vunpack.c.l.b16 %v1902
        %v4919 = vunpack.c.h.b16 %v1902
        %v4920 = vunpack.c.l.b16 %v1903
        %v4921 = vunpack.c.h.b16 %v1903
        %v4922 = vunpack.c.l.b16 %v1904
        %v4923 = vunpack.c.h.b16 %v1904
        %v4924 = vunpack.c.l.b16 %v1905
        %v4925 = vunpack.c.h.b16 %v1905
        %v4926 = vunpack.c.l.b16 %v1906
        %v4927 = vunpack.c.h.b16 %v1906
        %v4928 = vunpack.c.l.b16 %v1907
        %v4929 = vunpack.c.h.b16 %v1907
        %v4930 = vunpack.c.l.b16 %v1908
        %v4931 = vunpack.c.h.b16 %v1908
        %v4932 = vunpack.c.l.b16 %v1909
        %v4933 = vunpack.c.h.b16 %v1909
        %v4934 = vunpack.c.l.b16 %v1910
        %v4935 = vunpack.c.h.b16 %v1910
        %v4936 = vunpack.c.l.b16 %v1911
        %v4937 = vunpack.c.h.b16 %v1911
        %v4938 = vunpack.c.l.b16 %v1912
        %v4939 = vunpack.c.h.b16 %v1912
        %v4940 = vunpack.c.l.b16 %v1913
        %v4941 = vunpack.c.h.b16 %v1913
        %v4942 = vunpack.c.l.b16 %v1914
        %v4943 = vunpack.c.h.b16 %v1914
        %v4944 = vunpack.c.l.b16 %v1915
        %v4945 = vunpack.c.h.b16 %v1915
        %v4946 = vunpack.c.l.b16 %v1916
        %v4947 = vunpack.c.h.b16 %v1916
        %v4948 = vunpack.c.l.b16 %v1917
        %v4949 = vunpack.c.h.b16 %v1917
        %v4950 = vunpack.c.l.b16 %v1918
        %v4951 = vunpack.c.h.b16 %v1918
        %v4952 = vunpack.c.l.b16 %v1919
        %v4953 = vunpack.c.h.b16 %v1919
        %v4954 = vunpack.c.l.b16 %v1920
        %v4955 = vunpack.c.h.b16 %v1920
        %v4956 = vunpack.c.l.b16 %v1921
        %v4957 = vunpack.c.h.b16 %v1921
        %v4958 = vunpack.c.l.b16 %v1922
        %v4959 = vunpack.c.h.b16 %v1922
        %v4960 = vunpack.c.l.b16 %v1923
        %v4961 = vunpack.c.h.b16 %v1923
        %v4962 = vunpack.c.l.b16 %v1924
        %v4963 = vunpack.c.h.b16 %v1924
        %v4964 = vunpack.c.l.b16 %v1925
        %v4965 = vunpack.c.h.b16 %v1925
        %v4966 = vunpack.c.l.b16 %v1926
        %v4967 = vunpack.c.h.b16 %v1926
        %v4968 = vunpack.c.l.b16 %v1927
        %v4969 = vunpack.c.h.b16 %v1927
        %v4970 = vunpack.c.l.b16 %v1928
        %v4971 = vunpack.c.h.b16 %v1928
        %v4972 = vunpack.c.l.b16 %v1929
        %v4973 = vunpack.c.h.b16 %v1929
        %v4974 = vunpack.c.l.b16 %v1930
        %v4975 = vunpack.c.h.b16 %v1930
        %v4976 = vunpack.c.l.b16 %v1931
        %v4977 = vunpack.c.h.b16 %v1931
        %v4978 = vunpack.c.l.b16 %v1932
        %v4979 = vunpack.c.h.b16 %v1932
        %v4980 = vunpack.c.l.b16 %v1933
        %v4981 = vunpack.c.h.b16 %v1933
        %v4982 = vunpack.c.l.b16 %v1934
        %v4983 = vunpack.c.h.b16 %v1934
        %v4984 = vunpack.c.l.b16 %v1935
        %v4985 = vunpack.c.h.b16 %v1935
        %v4986 = vunpack.c.l.b16 %v1936
        %v4987 = vunpack.c.h.b16 %v1936
        %v4988 = vunpack.c.l.b16 %v1937
        %v4989 = vunpack.c.h.b16 %v1937
        %v4990 = vunpack.c.l.b16 %v1938
        %v4991 = vunpack.c.h.b16 %v1938
        %v4992 = vunpack.c.l.b16 %v1939
        %v4993 = vunpack.c.h.b16 %v1939
        %v4994 = vunpack.c.l.b16 %v1940
        %v4995 = vunpack.c.h.b16 %v1940
        %v4996 = vunpack.c.l.b16 %v1941
        %v4997 = vunpack.c.h.b16 %v1941
        %v4998 = vunpack.c.l.b16 %v1942
        %v4999 = vunpack.c.h.b16 %v1942
        %v5000 = vunpack.c.l.b16 %v1943
        %v5001 = vunpack.c.h.b16 %v1943
        %v5002 = vunpack.c.l.b16 %v1944
        %v5003 = vunpack.c.h.b16 %v1944
        %v5004 = vunpack.c.l.b16 %v1945
        %v5005 = vunpack.c.h.b16 %v1945
        %v5006 = vunpack.c.l.b16 %v1946
        %v5007 = vunpack.c.h.b16 %v1946
        %v5008 = vunpack.c.l.b16 %v1947
        %v5009 = vunpack.c.h.b16 %v1947
        %v5010 = vunpack.c.l.b16 %v1948
        %v5011 = vunpack.c.h.b16 %v1948
        %v5012 = vunpack.c.l.b16 %v1949
        %v5013 = vunpack.c.h.b16 %v1949
        %v5014 = vunpack.c.l.b16 %v1950
        %v5015 = vunpack.c.h.b16 %v1950
        %v5016 = vunpack.c.l.b16 %v1951
        %v5017 = vunpack.c.h.b16 %v1951
        %v5018 = vunpack.c.l.b16 %v1952
        %v5019 = vunpack.c.h.b16 %v1952
        %v5020 = vunpack.c.l.b16 %v1953
        %v5021 = vunpack.c.h.b16 %v1953
        %v5022 = vunpack.c.l.b16 %v1954
        %v5023 = vunpack.c.h.b16 %v1954
        %v5024 = vunpack.c.l.b16 %v1955
        %v5025 = vunpack.c.h.b16 %v1955
        %v5026 = vunpack.c.l.b16 %v1956
        %v5027 = vunpack.c.h.b16 %v1956
        %v5028 = vunpack.c.l.b16 %v1957
        %v5029 = vunpack.c.h.b16 %v1957
        %v5030 = vunpack.c.l.b16 %v1958
        %v5031 = vunpack.c.h.b16 %v1958
        %v5032 = vunpack.c.l.b16 %v1959
        %v5033 = vunpack.c.h.b16 %v1959
        %v5034 = vunpack.c.l.b16 %v1960
        %v5035 = vunpack.c.h.b16 %v1960
        %v5036 = vunpack.c.l.b16 %v1961
        %v5037 = vunpack.c.h.b16 %v1961
        %v5038 = vunpack.c.l.b16 %v1962
        %v5039 = vunpack.c.h.b16 %v1962
        %v5040 = vunpack.c.l.b16 %v1963
        %v5041 = vunpack.c.h.b16 %v1963
        %v5042 = vunpack.c.l.b16 %v1964
        %v5043 = vunpack.c.h.b16 %v1964
        %v5044 = vunpack.c.l.b16 %v1965
        %v5045 = vunpack.c.h.b16 %v1965
        %v5046 = vunpack.c.l.b16 %v1966
        %v5047 = vunpack.c.h.b16 %v1966
        %v5048 = vunpack.c.l.b16 %v1967
        %v5049 = vunpack.c.h.b16 %v1967
        %v5050 = vunpack.c.l.b16 %v1968
        %v5051 = vunpack.c.h.b16 %v1968
        %v5052 = vunpack.c.l.b16 %v1969
        %v5053 = vunpack.c.h.b16 %v1969
        %v5054 = vunpack.c.l.b16 %v1970
        %v5055 = vunpack.c.h.b16 %v1970
        %v5056 = vunpack.c.l.b16 %v1971
        %v5057 = vunpack.c.h.b16 %v1971
        %v5058 = vunpack.c.l.b16 %v1972
        %v5059 = vunpack.c.h.b16 %v1972
        %v5060 = vunpack.c.l.b16 %v1973
        %v5061 = vunpack.c.h.b16 %v1973
        %v5062 = vunpack.c.l.b16 %v1974
        %v5063 = vunpack.c.h.b16 %v1974
        %v5064 = vunpack.c.l.b16 %v1975
        %v5065 = vunpack.c.h.b16 %v1975
        %v5066 = vunpack.c.l.b16 %v1976
        %v5067 = vunpack.c.h.b16 %v1976
        %v5068 = vunpack.c.l.b16 %v1977
        %v5069 = vunpack.c.h.b16 %v1977
        %v5070 = vunpack.c.l.b16 %v1978
        %v5071 = vunpack.c.h.b16 %v1978
        %v5072 = vunpack.c.l.b16 %v1979
        %v5073 = vunpack.c.h.b16 %v1979
        %v5074 = vunpack.c.l.b16 %v1980
        %v5075 = vunpack.c.h.b16 %v1980
        %v5076 = vunpack.c.l.b16 %v1981
        %v5077 = vunpack.c.h.b16 %v1981
        %v5078 = vunpack.c.l.b16 %v1982
        %v5079 = vunpack.c.h.b16 %v1982
        %v5080 = vunpack.c.l.b16 %v1983
        %v5081 = vunpack.c.h.b16 %v1983
        %v5082 = vunpack.c.l.b16 %v1984
        %v5083 = vunpack.c.h.b16 %v1984
        %v5084 = vunpack.c.l.b16 %v1985
        %v5085 = vunpack.c.h.b16 %v1985
        %v5086 = vunpack.c.l.b16 %v1986
        %v5087 = vunpack.c.h.b16 %v1986
        %v5088 = vunpack.c.l.b16 %v1987
        %v5089 = vunpack.c.h.b16 %v1987
        %v5090 = vunpack.c.l.b16 %v1988
        %v5091 = vunpack.c.h.b16 %v1988
        %v5092 = vunpack.c.l.b16 %v1989
        %v5093 = vunpack.c.h.b16 %v1989
        %v5094 = vunpack.c.l.b16 %v1990
        %v5095 = vunpack.c.h.b16 %v1990
        %v5096 = vunpack.c.l.b16 %v1991
        %v5097 = vunpack.c.h.b16 %v1991
        %v5098 = vunpack.c.l.b16 %v1992
        %v5099 = vunpack.c.h.b16 %v1992
        %v5100 = vunpack.c.l.b16 %v1993
        %v5101 = vunpack.c.h.b16 %v1993
        %v5102 = vunpack.c.l.b16 %v1994
        %v5103 = vunpack.c.h.b16 %v1994
        %v5104 = vunpack.c.l.b16 %v1995
        %v5105 = vunpack.c.h.b16 %v1995
        %v5106 = vunpack.c.l.b16 %v1996
        %v5107 = vunpack.c.h.b16 %v1996
        %v5108 = vunpack.c.l.b16 %v1997
        %v5109 = vunpack.c.h.b16 %v1997
        %v5110 = vunpack.c.l.b16 %v1998
        %v5111 = vunpack.c.h.b16 %v1998
        %v5112 = vunpack.c.l.b16 %v1999
        %v5113 = vunpack.c.h.b16 %v1999
        %v5114 = vunpack.c.l.b16 %v2000
        %v5115 = vunpack.c.h.b16 %v2000
        %v5116 = vunpack.c.l.b16 %v2001
        %v5117 = vunpack.c.h.b16 %v2001
        %v5118 = vunpack.c.l.b16 %v2002
        %v5119 = vunpack.c.h.b16 %v2002
        %v5120 = vunpack.c.l.b16 %v2003
        %v5121 = vunpack.c.h.b16 %v2003
        %v5122 = vunpack.c.l.b16 %v2004
        %v5123 = vunpack.c.h.b16 %v2004
        %v5124 = vunpack.c.l.b16 %v2005
        %v5125 = vunpack.c.h.b16 %v2005
        %v5126 = vunpack.c.l.b16 %v2006
        %v5127 = vunpack.c.h.b16 %v2006
        %v5128 = vunpack.c.l.b16 %v2007
        %v5129 = vunpack.c.h.b16 %v2007
        %v5130 = vunpack.c.l.b16 %v2008
        %v5131 = vunpack.c.h.b16 %v2008
        %v5132 = vunpack.c.l.b16 %v2009
        %v5133 = vunpack.c.h.b16 %v2009
        %v5134 = vunpack.c.l.b16 %v2010
        %v5135 = vunpack.c.h.b16 %v2010
        %v5136 = vunpack.c.l.b16 %v2011
        %v5137 = vunpack.c.h.b16 %v2011
        %v5138 = vunpack.c.l.b16 %v2012
        %v5139 = vunpack.c.h.b16 %v2012
        %v5140 = vunpack.c.l.b16 %v2013
        %v5141 = vunpack.c.h.b16 %v2013
        %v5142 = vunpack.c.l.b16 %v2014
        %v5143 = vunpack.c.h.b16 %v2014
        %v5144 = vunpack.c.l.b16 %v2015
        %v5145 = vunpack.c.h.b16 %v2015
        %v5146 = vunpack.c.l.b16 %v2016
        %v5147 = vunpack.c.h.b16 %v2016
        %v5148 = vunpack.c.l.b16 %v2017
        %v5149 = vunpack.c.h.b16 %v2017
        %v5150 = vunpack.c.l.b16 %v2018
        %v5151 = vunpack.c.h.b16 %v2018
        %v5152 = vunpack.c.l.b16 %v2019
        %v5153 = vunpack.c.h.b16 %v2019
        %v5154 = vunpack.c.l.b16 %v2020
        %v5155 = vunpack.c.h.b16 %v2020
        %v5156 = vunpack.c.l.b16 %v2021
        %v5157 = vunpack.c.h.b16 %v2021
        %v5158 = vunpack.c.l.b16 %v2022
        %v5159 = vunpack.c.h.b16 %v2022
        %v5160 = vunpack.c.l.b16 %v2023
        %v5161 = vunpack.c.h.b16 %v2023
        %v5162 = vunpack.c.l.b16 %v2024
        %v5163 = vunpack.c.h.b16 %v2024
        %v5164 = vunpack.c.l.b16 %v2025
        %v5165 = vunpack.c.h.b16 %v2025
        %v5166 = vunpack.c.l.b16 %v2026
        %v5167 = vunpack.c.h.b16 %v2026
        %v5168 = vunpack.c.l.b16 %v2027
        %v5169 = vunpack.c.h.b16 %v2027
        %v5170 = vunpack.c.l.b16 %v2028
        %v5171 = vunpack.c.h.b16 %v2028
        %v5172 = vunpack.c.l.b16 %v2029
        %v5173 = vunpack.c.h.b16 %v2029
        %v5174 = vunpack.c.l.b16 %v2030
        %v5175 = vunpack.c.h.b16 %v2030
        %v5176 = vunpack.c.l.b16 %v2031
        %v5177 = vunpack.c.h.b16 %v2031
        %v5178 = vpack.c.b16 %v3138, %v3130
        %v5179 = vpack.c.b16 %v3139, %v3131
        %v5180 = vpack.c.b16 %v3140, %v3132
        %v5181 = vpack.c.b16 %v3141, %v3133
        %v5182 = vpack.c.b16 %v3142, %v3134
        %v5183 = vpack.c.b16 %v3143, %v3135
        %v5184 = vpack.c.b16 %v3144, %v3136
        %v5185 = vpack.c.b16 %v3145, %v3137
        %v5186 = vpack.c.b16 %v3154, %v3146
        %v5187 = vpack.c.b16 %v3155, %v3147
        %v5188 = vpack.c.b16 %v3156, %v3148
        %v5189 = vpack.c.b16 %v3157, %v3149
        %v5190 = vpack.c.b16 %v3158, %v3150
        %v5191 = vpack.c.b16 %v3159, %v3151
        %v5192 = vpack.c.b16 %v3160, %v3152
        %v5193 = vpack.c.b16 %v3161, %v3153
        %v5194 = vpack.c.b16 %v3170, %v3162
        %v5195 = vpack.c.b16 %v3171, %v3163
        %v5196 = vpack.c.b16 %v3172, %v3164
        %v5197 = vpack.c.b16 %v3173, %v3165
        %v5198 = vpack.c.b16 %v3174, %v3166
        %v5199 = vpack.c.b16 %v3175, %v3167
        %v5200 = vpack.c.b16 %v3176, %v3168
        %v5201 = vpack.c.b16 %v3177, %v3169
        %v5202 = vpack.c.b16 %v3186, %v3178
        %v5203 = vpack.c.b16 %v3187, %v3179
        %v5204 = vpack.c.b16 %v3188, %v3180
        %v5205 = vpack.c.b16 %v3189, %v3181
        %v5206 = vpack.c.b16 %v3190, %v3182
        %v5207 = vpack.c.b16 %v3191, %v3183
        %v5208 = vpack.c.b16 %v3192, %v3184
        %v5209 = vpack.c.b16 %v3193, %v3185
        %v5210 = vpack.c.b16 %v3202, %v3194
        %v5211 = vpack.c.b16 %v3203, %v3195
        %v5212 = vpack.c.b16 %v3204, %v3196
        %v5213 = vpack.c.b16 %v3205, %v3197
        %v5214 = vpack.c.b16 %v3206, %v3198
        %v5215 = vpack.c.b16 %v3207, %v3199
        %v5216 = vpack.c.b16 %v3208, %v3200
        %v5217 = vpack.c.b16 %v3209, %v3201
        %v5218 = vpack.c.b16 %v3218, %v3210
        %v5219 = vpack.c.b16 %v3219, %v3211
        %v5220 = vpack.c.b16 %v3220, %v3212
        %v5221 = vpack.c.b16 %v3221, %v3213
        %v5222 = vpack.c.b16 %v3222, %v3214
        %v5223 = vpack.c.b16 %v3223, %v3215
        %v5224 = vpack.c.b16 %v3224, %v3216
        %v5225 = vpack.c.b16 %v3225, %v3217
        %v5226 = vpack.c.b16 %v3234, %v3226
        %v5227 = vpack.c.b16 %v3235, %v3227
        %v5228 = vpack.c.b16 %v3236, %v3228
        %v5229 = vpack.c.b16 %v3237, %v3229
        %v5230 = vpack.c.b16 %v3238, %v3230
        %v5231 = vpack.c.b16 %v3239, %v3231
        %v5232 = vpack.c.b16 %v3240, %v3232
        %v5233 = vpack.c.b16 %v3241, %v3233
        %v5234 = vpack.c.b16 %v3250, %v3242
        %v5235 = vpack.c.b16 %v3251, %v3243
        %v5236 = vpack.c.b16 %v3252, %v3244
        %v5237 = vpack.c.b16 %v3253, %v3245
        %v5238 = vpack.c.b16 %v3254, %v3246
        %v5239 = vpack.c.b16 %v3255, %v3247
        %v5240 = vpack.c.b16 %v3256, %v3248
        %v5241 = vpack.c.b16 %v3257, %v3249
        %v5242 = vpack.c.b16 %v3266, %v3258
        %v5243 = vpack.c.b16 %v3267, %v3259
        %v5244 = vpack.c.b16 %v3268, %v3260
        %v5245 = vpack.c.b16 %v3269, %v3261
        %v5246 = vpack.c.b16 %v3270, %v3262
        %v5247 = vpack.c.b16 %v3271, %v3263
        %v5248 = vpack.c.b16 %v3272, %v3264
        %v5249 = vpack.c.b16 %v3273, %v3265
        %v5250 = vpack.c.b16 %v3282, %v3274
        %v5251 = vpack.c.b16 %v3283, %v3275
        %v5252 = vpack.c.b16 %v3284, %v3276
        %v5253 = vpack.c.b16 %v3285, %v3277
        %v5254 = vpack.c.b16 %v3286, %v3278
        %v5255 = vpack.c.b16 %v3287, %v3279
        %v5256 = vpack.c.b16 %v3288, %v3280
        %v5257 = vpack.c.b16 %v3289, %v3281
        %v5258 = vpack.c.b16 %v3298, %v3290
        %v5259 = vpack.c.b16 %v3299, %v3291
        %v5260 = vpack.c.b16 %v3300, %v3292
        %v5261 = vpack.c.b16 %v3301, %v3293
        %v5262 = vpack.c.b16 %v3302, %v3294
        %v5263 = vpack.c.b16 %v3303, %v3295
        %v5264 = vpack.c.b16 %v3304, %v3296
        %v5265 = vpack.c.b16 %v3305, %v3297
        %v5266 = vpack.c.b16 %v3314, %v3306
        %v5267 = vpack.c.b16 %v3315, %v3307
        %v5268 = vpack.c.b16 %v3316, %v3308
        %v5269 = vpack.c.b16 %v3317, %v3309
        %v5270 = vpack.c.b16 %v3318, %v3310
        %v5271 = vpack.c.b16 %v3319, %v3311
        %v5272 = vpack.c.b16 %v3320, %v3312
        %v5273 = vpack.c.b16 %v3321, %v3313
        %v5274 = vpack.c.b16 %v3330, %v3322
        %v5275 = vpack.c.b16 %v3331, %v3323
        %v5276 = vpack.c.b16 %v3332, %v3324
        %v5277 = vpack.c.b16 %v3333, %v3325
        %v5278 = vpack.c.b16 %v3334, %v3326
        %v5279 = vpack.c.b16 %v3335, %v3327
        %v5280 = vpack.c.b16 %v3336, %v3328
        %v5281 = vpack.c.b16 %v3337, %v3329
        %v5282 = vpack.c.b16 %v3346, %v3338
        %v5283 = vpack.c.b16 %v3347, %v3339
        %v5284 = vpack.c.b16 %v3348, %v3340
        %v5285 = vpack.c.b16 %v3349, %v3341
        %v5286 = vpack.c.b16 %v3350, %v3342
        %v5287 = vpack.c.b16 %v3351, %v3343
        %v5288 = vpack.c.b16 %v3352, %v3344
        %v5289 = vpack.c.b16 %v3353, %v3345
        %v5290 = vpack.c.b16 %v3362, %v3354
        %v5291 = vpack.c.b16 %v3363, %v3355
        %v5292 = vpack.c.b16 %v3364, %v3356
        %v5293 = vpack.c.b16 %v3365, %v3357
        %v5294 = vpack.c.b16 %v3366, %v3358
        %v5295 = vpack.c.b16 %v3367, %v3359
        %v5296 = vpack.c.b16 %v3368, %v3360
        %v5297 = vpack.c.b16 %v3369, %v3361
        %v5298 = vpack.c.b16 %v3378, %v3370
        %v5299 = vpack.c.b16 %v3379, %v3371
        %v5300 = vpack.c.b16 %v3380, %v3372
        %v5301 = vpack.c.b16 %v3381, %v3373
        %v5302 = vpack.c.b16 %v3382, %v3374
        %v5303 = vpack.c.b16 %v3383, %v3375
        %v5304 = vpack.c.b16 %v3384, %v3376
        %v5305 = vpack.c.b16 %v3385, %v3377
        %v5306 = vpack.c.b16 %v3394, %v3386
        %v5307 = vpack.c.b16 %v3395, %v3387
        %v5308 = vpack.c.b16 %v3396, %v3388
        %v5309 = vpack.c.b16 %v3397, %v3389
        %v5310 = vpack.c.b16 %v3398, %v3390
        %v5311 = vpack.c.b16 %v3399, %v3391
        %v5312 = vpack.c.b16 %v3400, %v3392
        %v5313 = vpack.c.b16 %v3401, %v3393
        %v5314 = vpack.c.b16 %v3410, %v3402
        %v5315 = vpack.c.b16 %v3411, %v3403
        %v5316 = vpack.c.b16 %v3412, %v3404
        %v5317 = vpack.c.b16 %v3413, %v3405
        %v5318 = vpack.c.b16 %v3414, %v3406
        %v5319 = vpack.c.b16 %v3415, %v3407
        %v5320 = vpack.c.b16 %v3416, %v3408
        %v5321 = vpack.c.b16 %v3417, %v3409
        %v5322 = vpack.c.b16 %v3426, %v3418
        %v5323 = vpack.c.b16 %v3427, %v3419
        %v5324 = vpack.c.b16 %v3428, %v3420
        %v5325 = vpack.c.b16 %v3429, %v3421
        %v5326 = vpack.c.b16 %v3430, %v3422
        %v5327 = vpack.c.b16 %v3431, %v3423
        %v5328 = vpack.c.b16 %v3432, %v3424
        %v5329 = vpack.c.b16 %v3433, %v3425
        %v5330 = vpack.c.b16 %v3442, %v3434
        %v5331 = vpack.c.b16 %v3443, %v3435
        %v5332 = vpack.c.b16 %v3444, %v3436
        %v5333 = vpack.c.b16 %v3445, %v3437
        %v5334 = vpack.c.b16 %v3446, %v3438
        %v5335 = vpack.c.b16 %v3447, %v3439
        %v5336 = vpack.c.b16 %v3448, %v3440
        %v5337 = vpack.c.b16 %v3449, %v3441
        %v5338 = vpack.c.b16 %v3458, %v3450
        %v5339 = vpack.c.b16 %v3459, %v3451
        %v5340 = vpack.c.b16 %v3460, %v3452
        %v5341 = vpack.c.b16 %v3461, %v3453
        %v5342 = vpack.c.b16 %v3462, %v3454
        %v5343 = vpack.c.b16 %v3463, %v3455
        %v5344 = vpack.c.b16 %v3464, %v3456
        %v5345 = vpack.c.b16 %v3465, %v3457
        %v5346 = vpack.c.b16 %v3474, %v3466
        %v5347 = vpack.c.b16 %v3475, %v3467
        %v5348 = vpack.c.b16 %v3476, %v3468
        %v5349 = vpack.c.b16 %v3477, %v3469
        %v5350 = vpack.c.b16 %v3478, %v3470
        %v5351 = vpack.c.b16 %v3479, %v3471
        %v5352 = vpack.c.b16 %v3480, %v3472
        %v5353 = vpack.c.b16 %v3481, %v3473
        %v5354 = vpack.c.b16 %v3490, %v3482
        %v5355 = vpack.c.b16 %v3491, %v3483
        %v5356 = vpack.c.b16 %v3492, %v3484
        %v5357 = vpack.c.b16 %v3493, %v3485
        %v5358 = vpack.c.b16 %v3494, %v3486
        %v5359 = vpack.c.b16 %v3495, %v3487
        %v5360 = vpack.c.b16 %v3496, %v3488
        %v5361 = vpack.c.b16 %v3497, %v3489
        %v5362 = vpack.c.b16 %v3506, %v3498
        %v5363 = vpack.c.b16 %v3507, %v3499
        %v5364 = vpack.c.b16 %v3508, %v3500
        %v5365 = vpack.c.b16 %v3509, %v3501
        %v5366 = vpack.c.b16 %v3510, %v3502
        %v5367 = vpack.c.b16 %v3511, %v3503
        %v5368 = vpack.c.b16 %v3512, %v3504
        %v5369 = vpack.c.b16 %v3513, %v3505
        %v5370 = vpack.c.b16 %v3522, %v3514
        %v5371 = vpack.c.b16 %v3523, %v3515
        %v5372 = vpack.c.b16 %v3524, %v3516
        %v5373 = vpack.c.b16 %v3525, %v3517
        %v5374 = vpack.c.b16 %v3526, %v3518
        %v5375 = vpack.c.b16 %v3527, %v3519
        %v5376 = vpack.c.b16 %v3528, %v3520
        %v5377 = vpack.c.b16 %v3529, %v3521
        %v5378 = vpack.c.b16 %v3538, %v3530
        %v5379 = vpack.c.b16 %v3539, %v3531
        %v5380 = vpack.c.b16 %v3540, %v3532
        %v5381 = vpack.c.b16 %v3541, %v3533
        %v5382 = vpack.c.b16 %v3542, %v3534
        %v5383 = vpack.c.b16 %v3543, %v3535
        %v5384 = vpack.c.b16 %v3544, %v3536
        %v5385 = vpack.c.b16 %v3545, %v3537
        %v5386 = vpack.c.b16 %v3554, %v3546
        %v5387 = vpack.c.b16 %v3555, %v3547
        %v5388 = vpack.c.b16 %v3556, %v3548
        %v5389 = vpack.c.b16 %v3557, %v3549
        %v5390 = vpack.c.b16 %v3558, %v3550
        %v5391 = vpack.c.b16 %v3559, %v3551
        %v5392 = vpack.c.b16 %v3560, %v3552
        %v5393 = vpack.c.b16 %v3561, %v3553
        %v5394 = vpack.c.b16 %v3570, %v3562
        %v5395 = vpack.c.b16 %v3571, %v3563
        %v5396 = vpack.c.b16 %v3572, %v3564
        %v5397 = vpack.c.b16 %v3573, %v3565
        %v5398 = vpack.c.b16 %v3574, %v3566
        %v5399 = vpack.c.b16 %v3575, %v3567
        %v5400 = vpack.c.b16 %v3576, %v3568
        %v5401 = vpack.c.b16 %v3577, %v3569
        %v5402 = vpack.c.b16 %v3586, %v3578
        %v5403 = vpack.c.b16 %v3587, %v3579
        %v5404 = vpack.c.b16 %v3588, %v3580
        %v5405 = vpack.c.b16 %v3589, %v3581
        %v5406 = vpack.c.b16 %v3590, %v3582
        %v5407 = vpack.c.b16 %v3591, %v3583
        %v5408 = vpack.c.b16 %v3592, %v3584
        %v5409 = vpack.c.b16 %v3593, %v3585
        %v5410 = vpack.c.b16 %v3602, %v3594
        %v5411 = vpack.c.b16 %v3603, %v3595
        %v5412 = vpack.c.b16 %v3604, %v3596
        %v5413 = vpack.c.b16 %v3605, %v3597
        %v5414 = vpack.c.b16 %v3606, %v3598
        %v5415 = vpack.c.b16 %v3607, %v3599
        %v5416 = vpack.c.b16 %v3608, %v3600
        %v5417 = vpack.c.b16 %v3609, %v3601
        %v5418 = vpack.c.b16 %v3618, %v3610
        %v5419 = vpack.c.b16 %v3619, %v3611
        %v5420 = vpack.c.b16 %v3620, %v3612
        %v5421 = vpack.c.b16 %v3621, %v3613
        %v5422 = vpack.c.b16 %v3622, %v3614
        %v5423 = vpack.c.b16 %v3623, %v3615
        %v5424 = vpack.c.b16 %v3624, %v3616
        %v5425 = vpack.c.b16 %v3625, %v3617
        %v5426 = vpack.c.b16 %v3634, %v3626
        %v5427 = vpack.c.b16 %v3635, %v3627
        %v5428 = vpack.c.b16 %v3636, %v3628
        %v5429 = vpack.c.b16 %v3637, %v3629
        %v5430 = vpack.c.b16 %v3638, %v3630
        %v5431 = vpack.c.b16 %v3639, %v3631
        %v5432 = vpack.c.b16 %v3640, %v3632
        %v5433 = vpack.c.b16 %v3641, %v3633
        %v5434 = vpack.c.b16 %v3650, %v3642
        %v5435 = vpack.c.b16 %v3651, %v3643
        %v5436 = vpack.c.b16 %v3652, %v3644
        %v5437 = vpack.c.b16 %v3653, %v3645
        %v5438 = vpack.c.b16 %v3654, %v3646
        %v5439 = vpack.c.b16 %v3655, %v3647
        %v5440 = vpack.c.b16 %v3656, %v3648
        %v5441 = vpack.c.b16 %v3657, %v3649
        %v5442 = vpack.c.b16 %v3666, %v3658
        %v5443 = vpack.c.b16 %v3667, %v3659
        %v5444 = vpack.c.b16 %v3668, %v3660
        %v5445 = vpack.c.b16 %v3669, %v3661
        %v5446 = vpack.c.b16 %v3670, %v3662
        %v5447 = vpack.c.b16 %v3671, %v3663
        %v5448 = vpack.c.b16 %v3672, %v3664
        %v5449 = vpack.c.b16 %v3673, %v3665
        %v5450 = vpack.c.b16 %v3682, %v3674
        %v5451 = vpack.c.b16 %v3683, %v3675
        %v5452 = vpack.c.b16 %v3684, %v3676
        %v5453 = vpack.c.b16 %v3685, %v3677
        %v5454 = vpack.c.b16 %v3686, %v3678
        %v5455 = vpack.c.b16 %v3687, %v3679
        %v5456 = vpack.c.b16 %v3688, %v3680
        %v5457 = vpack.c.b16 %v3689, %v3681
        %v5458 = vpack.c.b16 %v3698, %v3690
        %v5459 = vpack.c.b16 %v3699, %v3691
        %v5460 = vpack.c.b16 %v3700, %v3692
        %v5461 = vpack.c.b16 %v3701, %v3693
        %v5462 = vpack.c.b16 %v3702, %v3694
        %v5463 = vpack.c.b16 %v3703, %v3695
        %v5464 = vpack.c.b16 %v3704, %v3696
        %v5465 = vpack.c.b16 %v3705, %v3697
        %v5466 = vpack.c.b16 %v3714, %v3706
        %v5467 = vpack.c.b16 %v3715, %v3707
        %v5468 = vpack.c.b16 %v3716, %v3708
        %v5469 = vpack.c.b16 %v3717, %v3709
        %v5470 = vpack.c.b16 %v3718, %v3710
        %v5471 = vpack.c.b16 %v3719, %v3711
        %v5472 = vpack.c.b16 %v3720, %v3712
        %v5473 = vpack.c.b16 %v3721, %v3713
        %v5474 = vpack.c.b16 %v3730, %v3722
        %v5475 = vpack.c.b16 %v3731, %v3723
        %v5476 = vpack.c.b16 %v3732, %v3724
        %v5477 = vpack.c.b16 %v3733, %v3725
        %v5478 = vpack.c.b16 %v3734, %v3726
        %v5479 = vpack.c.b16 %v3735, %v3727
        %v5480 = vpack.c.b16 %v3736, %v3728
        %v5481 = vpack.c.b16 %v3737, %v3729
        %v5482 = vpack.c.b16 %v3746, %v3738
        %v5483 = vpack.c.b16 %v3747, %v3739
        %v5484 = vpack.c.b16 %v3748, %v3740
        %v5485 = vpack.c.b16 %v3749, %v3741
        %v5486 = vpack.c.b16 %v3750, %v3742
        %v5487 = vpack.c.b16 %v3751, %v3743
        %v5488 = vpack.c.b16 %v3752, %v3744
        %v5489 = vpack.c.b16 %v3753, %v3745
        %v5490 = vpack.c.b16 %v3762, %v3754
        %v5491 = vpack.c.b16 %v3763, %v3755
        %v5492 = vpack.c.b16 %v3764, %v3756
        %v5493 = vpack.c.b16 %v3765, %v3757
        %v5494 = vpack.c.b16 %v3766, %v3758
        %v5495 = vpack.c.b16 %v3767, %v3759
        %v5496 = vpack.c.b16 %v3768, %v3760
        %v5497 = vpack.c.b16 %v3769, %v3761
        %v5498 = vpack.c.b16 %v3778, %v3770
        %v5499 = vpack.c.b16 %v3779, %v3771
        %v5500 = vpack.c.b16 %v3780, %v3772
        %v5501 = vpack.c.b16 %v3781, %v3773
        %v5502 = vpack.c.b16 %v3782, %v3774
        %v5503 = vpack.c.b16 %v3783, %v3775
        %v5504 = vpack.c.b16 %v3784, %v3776
        %v5505 = vpack.c.b16 %v3785, %v3777
        %v5506 = vpack.c.b16 %v3794, %v3786
        %v5507 = vpack.c.b16 %v3795, %v3787
        %v5508 = vpack.c.b16 %v3796, %v3788
        %v5509 = vpack.c.b16 %v3797, %v3789
        %v5510 = vpack.c.b16 %v3798, %v3790
        %v5511 = vpack.c.b16 %v3799, %v3791
        %v5512 = vpack.c.b16 %v3800, %v3792
        %v5513 = vpack.c.b16 %v3801, %v3793
        %v5514 = vpack.c.b16 %v3810, %v3802
        %v5515 = vpack.c.b16 %v3811, %v3803
        %v5516 = vpack.c.b16 %v3812, %v3804
        %v5517 = vpack.c.b16 %v3813, %v3805
        %v5518 = vpack.c.b16 %v3814, %v3806
        %v5519 = vpack.c.b16 %v3815, %v3807
        %v5520 = vpack.c.b16 %v3816, %v3808
        %v5521 = vpack.c.b16 %v3817, %v3809
        %v5522 = vpack.c.b16 %v3826, %v3818
        %v5523 = vpack.c.b16 %v3827, %v3819
        %v5524 = vpack.c.b16 %v3828, %v3820
        %v5525 = vpack.c.b16 %v3829, %v3821
        %v5526 = vpack.c.b16 %v3830, %v3822
        %v5527 = vpack.c.b16 %v3831, %v3823
        %v5528 = vpack.c.b16 %v3832, %v3824
        %v5529 = vpack.c.b16 %v3833, %v3825
        %v5530 = vpack.c.b16 %v3842, %v3834
        %v5531 = vpack.c.b16 %v3843, %v3835
        %v5532 = vpack.c.b16 %v3844, %v3836
        %v5533 = vpack.c.b16 %v3845, %v3837
        %v5534 = vpack.c.b16 %v3846, %v3838
        %v5535 = vpack.c.b16 %v3847, %v3839
        %v5536 = vpack.c.b16 %v3848, %v3840
        %v5537 = vpack.c.b16 %v3849, %v3841
        %v5538 = vpack.c.b16 %v3858, %v3850
        %v5539 = vpack.c.b16 %v3859, %v3851
        %v5540 = vpack.c.b16 %v3860, %v3852
        %v5541 = vpack.c.b16 %v3861, %v3853
        %v5542 = vpack.c.b16 %v3862, %v3854
        %v5543 = vpack.c.b16 %v3863, %v3855
        %v5544 = vpack.c.b16 %v3864, %v3856
        %v5545 = vpack.c.b16 %v3865, %v3857
        %v5546 = vpack.c.b16 %v3874, %v3866
        %v5547 = vpack.c.b16 %v3875, %v3867
        %v5548 = vpack.c.b16 %v3876, %v3868
        %v5549 = vpack.c.b16 %v3877, %v3869
        %v5550 = vpack.c.b16 %v3878, %v3870
        %v5551 = vpack.c.b16 %v3879, %v3871
        %v5552 = vpack.c.b16 %v3880, %v3872
        %v5553 = vpack.c.b16 %v3881, %v3873
        %v5554 = vpack.c.b16 %v3890, %v3882
        %v5555 = vpack.c.b16 %v3891, %v3883
        %v5556 = vpack.c.b16 %v3892, %v3884
        %v5557 = vpack.c.b16 %v3893, %v3885
        %v5558 = vpack.c.b16 %v3894, %v3886
        %v5559 = vpack.c.b16 %v3895, %v3887
        %v5560 = vpack.c.b16 %v3896, %v3888
        %v5561 = vpack.c.b16 %v3897, %v3889
        %v5562 = vpack.c.b16 %v3906, %v3898
        %v5563 = vpack.c.b16 %v3907, %v3899
        %v5564 = vpack.c.b16 %v3908, %v3900
        %v5565 = vpack.c.b16 %v3909, %v3901
        %v5566 = vpack.c.b16 %v3910, %v3902
        %v5567 = vpack.c.b16 %v3911, %v3903
        %v5568 = vpack.c.b16 %v3912, %v3904
        %v5569 = vpack.c.b16 %v3913, %v3905
        %v5570 = vpack.c.b16 %v3922, %v3914
        %v5571 = vpack.c.b16 %v3923, %v3915
        %v5572 = vpack.c.b16 %v3924, %v3916
        %v5573 = vpack.c.b16 %v3925, %v3917
        %v5574 = vpack.c.b16 %v3926, %v3918
        %v5575 = vpack.c.b16 %v3927, %v3919
        %v5576 = vpack.c.b16 %v3928, %v3920
        %v5577 = vpack.c.b16 %v3929, %v3921
        %v5578 = vpack.c.b16 %v3938, %v3930
        %v5579 = vpack.c.b16 %v3939, %v3931
        %v5580 = vpack.c.b16 %v3940, %v3932
        %v5581 = vpack.c.b16 %v3941, %v3933
        %v5582 = vpack.c.b16 %v3942, %v3934
        %v5583 = vpack.c.b16 %v3943, %v3935
        %v5584 = vpack.c.b16 %v3944, %v3936
        %v5585 = vpack.c.b16 %v3945, %v3937
        %v5586 = vpack.c.b16 %v3954, %v3946
        %v5587 = vpack.c.b16 %v3955, %v3947
        %v5588 = vpack.c.b16 %v3956, %v3948
        %v5589 = vpack.c.b16 %v3957, %v3949
        %v5590 = vpack.c.b16 %v3958, %v3950
        %v5591 = vpack.c.b16 %v3959, %v3951
        %v5592 = vpack.c.b16 %v3960, %v3952
        %v5593 = vpack.c.b16 %v3961, %v3953
        %v5594 = vpack.c.b16 %v3970, %v3962
        %v5595 = vpack.c.b16 %v3971, %v3963
        %v5596 = vpack.c.b16 %v3972, %v3964
        %v5597 = vpack.c.b16 %v3973, %v3965
        %v5598 = vpack.c.b16 %v3974, %v3966
        %v5599 = vpack.c.b16 %v3975, %v3967
        %v5600 = vpack.c.b16 %v3976, %v3968
        %v5601 = vpack.c.b16 %v3977, %v3969
        %v5602 = vpack.c.b16 %v3986, %v3978
        %v5603 = vpack.c.b16 %v3987, %v3979
        %v5604 = vpack.c.b16 %v3988, %v3980
        %v5605 = vpack.c.b16 %v3989, %v3981
        %v5606 = vpack.c.b16 %v3990, %v3982
        %v5607 = vpack.c.b16 %v3991, %v3983
        %v5608 = vpack.c.b16 %v3992, %v3984
        %v5609 = vpack.c.b16 %v3993, %v3985
        %v5610 = vpack.c.b16 %v4002, %v3994
        %v5611 = vpack.c.b16 %v4003, %v3995
        %v5612 = vpack.c.b16 %v4004, %v3996
        %v5613 = vpack.c.b16 %v4005, %v3997
        %v5614 = vpack.c.b16 %v4006, %v3998
        %v5615 = vpack.c.b16 %v4007, %v3999
        %v5616 = vpack.c.b16 %v4008, %v4000
        %v5617 = vpack.c.b16 %v4009, %v4001
        %v5618 = vpack.c.b16 %v4018, %v4010
        %v5619 = vpack.c.b16 %v4019, %v4011
        %v5620 = vpack.c.b16 %v4020, %v4012
        %v5621 = vpack.c.b16 %v4021, %v4013
        %v5622 = vpack.c.b16 %v4022, %v4014
        %v5623 = vpack.c.b16 %v4023, %v4015
        %v5624 = vpack.c.b16 %v4024, %v4016
        %v5625 = vpack.c.b16 %v4025, %v4017
        %v5626 = vpack.c.b16 %v4034, %v4026
        %v5627 = vpack.c.b16 %v4035, %v4027
        %v5628 = vpack.c.b16 %v4036, %v4028
        %v5629 = vpack.c.b16 %v4037, %v4029
        %v5630 = vpack.c.b16 %v4038, %v4030
        %v5631 = vpack.c.b16 %v4039, %v4031
        %v5632 = vpack.c.b16 %v4040, %v4032
        %v5633 = vpack.c.b16 %v4041, %v4033
        %v5634 = vpack.c.b16 %v4050, %v4042
        %v5635 = vpack.c.b16 %v4051, %v4043
        %v5636 = vpack.c.b16 %v4052, %v4044
        %v5637 = vpack.c.b16 %v4053, %v4045
        %v5638 = vpack.c.b16 %v4054, %v4046
        %v5639 = vpack.c.b16 %v4055, %v4047
        %v5640 = vpack.c.b16 %v4056, %v4048
        %v5641 = vpack.c.b16 %v4057, %v4049
        %v5642 = vpack.c.b16 %v4066, %v4058
        %v5643 = vpack.c.b16 %v4067, %v4059
        %v5644 = vpack.c.b16 %v4068, %v4060
        %v5645 = vpack.c.b16 %v4069, %v4061
        %v5646 = vpack.c.b16 %v4070, %v4062
        %v5647 = vpack.c.b16 %v4071, %v4063
        %v5648 = vpack.c.b16 %v4072, %v4064
        %v5649 = vpack.c.b16 %v4073, %v4065
        %v5650 = vpack.c.b16 %v4082, %v4074
        %v5651 = vpack.c.b16 %v4083, %v4075
        %v5652 = vpack.c.b16 %v4084, %v4076
        %v5653 = vpack.c.b16 %v4085, %v4077
        %v5654 = vpack.c.b16 %v4086, %v4078
        %v5655 = vpack.c.b16 %v4087, %v4079
        %v5656 = vpack.c.b16 %v4088, %v4080
        %v5657 = vpack.c.b16 %v4089, %v4081
        %v5658 = vpack.c.b16 %v4098, %v4090
        %v5659 = vpack.c.b16 %v4099, %v4091
        %v5660 = vpack.c.b16 %v4100, %v4092
        %v5661 = vpack.c.b16 %v4101, %v4093
        %v5662 = vpack.c.b16 %v4102, %v4094
        %v5663 = vpack.c.b16 %v4103, %v4095
        %v5664 = vpack.c.b16 %v4104, %v4096
        %v5665 = vpack.c.b16 %v4105, %v4097
        %v5666 = vpack.c.b16 %v4114, %v4106
        %v5667 = vpack.c.b16 %v4115, %v4107
        %v5668 = vpack.c.b16 %v4116, %v4108
        %v5669 = vpack.c.b16 %v4117, %v4109
        %v5670 = vpack.c.b16 %v4118, %v4110
        %v5671 = vpack.c.b16 %v4119, %v4111
        %v5672 = vpack.c.b16 %v4120, %v4112
        %v5673 = vpack.c.b16 %v4121, %v4113
        %v5674 = vpack.c.b16 %v4130, %v4122
        %v5675 = vpack.c.b16 %v4131, %v4123
        %v5676 = vpack.c.b16 %v4132, %v4124
        %v5677 = vpack.c.b16 %v4133, %v4125
        %v5678 = vpack.c.b16 %v4134, %v4126
        %v5679 = vpack.c.b16 %v4135, %v4127
        %v5680 = vpack.c.b16 %v4136, %v4128
        %v5681 = vpack.c.b16 %v4137, %v4129
        %v5682 = vpack.c.b16 %v4146, %v4138
        %v5683 = vpack.c.b16 %v4147, %v4139
        %v5684 = vpack.c.b16 %v4148, %v4140
        %v5685 = vpack.c.b16 %v4149, %v4141
        %v5686 = vpack.c.b16 %v4150, %v4142
        %v5687 = vpack.c.b16 %v4151, %v4143
        %v5688 = vpack.c.b16 %v4152, %v4144
        %v5689 = vpack.c.b16 %v4153, %v4145
        %v5690 = vpack.c.b16 %v4162, %v4154
        %v5691 = vpack.c.b16 %v4163, %v4155
        %v5692 = vpack.c.b16 %v4164, %v4156
        %v5693 = vpack.c.b16 %v4165, %v4157
        %v5694 = vpack.c.b16 %v4166, %v4158
        %v5695 = vpack.c.b16 %v4167, %v4159
        %v5696 = vpack.c.b16 %v4168, %v4160
        %v5697 = vpack.c.b16 %v4169, %v4161
        %v5698 = vpack.c.b16 %v4178, %v4170
        %v5699 = vpack.c.b16 %v4179, %v4171
        %v5700 = vpack.c.b16 %v4180, %v4172
        %v5701 = vpack.c.b16 %v4181, %v4173
        %v5702 = vpack.c.b16 %v4182, %v4174
        %v5703 = vpack.c.b16 %v4183, %v4175
        %v5704 = vpack.c.b16 %v4184, %v4176
        %v5705 = vpack.c.b16 %v4185, %v4177
        %v5706 = vpack.c.b16 %v4194, %v4186
        %v5707 = vpack.c.b16 %v4195, %v4187
        %v5708 = vpack.c.b16 %v4196, %v4188
        %v5709 = vpack.c.b16 %v4197, %v4189
        %v5710 = vpack.c.b16 %v4198, %v4190
        %v5711 = vpack.c.b16 %v4199, %v4191
        %v5712 = vpack.c.b16 %v4200, %v4192
        %v5713 = vpack.c.b16 %v4201, %v4193
        %v5714 = vpack.c.b16 %v4210, %v4202
        %v5715 = vpack.c.b16 %v4211, %v4203
        %v5716 = vpack.c.b16 %v4212, %v4204
        %v5717 = vpack.c.b16 %v4213, %v4205
        %v5718 = vpack.c.b16 %v4214, %v4206
        %v5719 = vpack.c.b16 %v4215, %v4207
        %v5720 = vpack.c.b16 %v4216, %v4208
        %v5721 = vpack.c.b16 %v4217, %v4209
        %v5722 = vpack.c.b16 %v4226, %v4218
        %v5723 = vpack.c.b16 %v4227, %v4219
        %v5724 = vpack.c.b16 %v4228, %v4220
        %v5725 = vpack.c.b16 %v4229, %v4221
        %v5726 = vpack.c.b16 %v4230, %v4222
        %v5727 = vpack.c.b16 %v4231, %v4223
        %v5728 = vpack.c.b16 %v4232, %v4224
        %v5729 = vpack.c.b16 %v4233, %v4225
        %v5730 = vpack.c.b16 %v4242, %v4234
        %v5731 = vpack.c.b16 %v4243, %v4235
        %v5732 = vpack.c.b16 %v4244, %v4236
        %v5733 = vpack.c.b16 %v4245, %v4237
        %v5734 = vpack.c.b16 %v4246, %v4238
        %v5735 = vpack.c.b16 %v4247, %v4239
        %v5736 = vpack.c.b16 %v4248, %v4240
        %v5737 = vpack.c.b16 %v4249, %v4241
        %v5738 = vpack.c.b16 %v4258, %v4250
        %v5739 = vpack.c.b16 %v4259, %v4251
        %v5740 = vpack.c.b16 %v4260, %v4252
        %v5741 = vpack.c.b16 %v4261, %v4253
        %v5742 = vpack.c.b16 %v4262, %v4254
        %v5743 = vpack.c.b16 %v4263, %v4255
        %v5744 = vpack.c.b16 %v4264, %v4256
        %v5745 = vpack.c.b16 %v4265, %v4257
        %v5746 = vpack.c.b16 %v4274, %v4266
        %v5747 = vpack.c.b16 %v4275, %v4267
        %v5748 = vpack.c.b16 %v4276, %v4268
        %v5749 = vpack.c.b16 %v4277, %v4269
        %v5750 = vpack.c.b16 %v4278, %v4270
        %v5751 = vpack.c.b16 %v4279, %v4271
        %v5752 = vpack.c.b16 %v4280, %v4272
        %v5753 = vpack.c.b16 %v4281, %v4273
        %v5754 = vpack.c.b16 %v4290, %v4282
        %v5755 = vpack.c.b16 %v4291, %v4283
        %v5756 = vpack.c.b16 %v4292, %v4284
        %v5757 = vpack.c.b16 %v4293, %v4285
        %v5758 = vpack.c.b16 %v4294, %v4286
        %v5759 = vpack.c.b16 %v4295, %v4287
        %v5760 = vpack.c.b16 %v4296, %v4288
        %v5761 = vpack.c.b16 %v4297, %v4289
        %v5762 = vpack.c.b16 %v4306, %v4298
        %v5763 = vpack.c.b16 %v4307, %v4299
        %v5764 = vpack.c.b16 %v4308, %v4300
        %v5765 = vpack.c.b16 %v4309, %v4301
        %v5766 = vpack.c.b16 %v4310, %v4302
        %v5767 = vpack.c.b16 %v4311, %v4303
        %v5768 = vpack.c.b16 %v4312, %v4304
        %v5769 = vpack.c.b16 %v4313, %v4305
        %v5770 = vpack.c.b16 %v4322, %v4314
        %v5771 = vpack.c.b16 %v4323, %v4315
        %v5772 = vpack.c.b16 %v4324, %v4316
        %v5773 = vpack.c.b16 %v4325, %v4317
        %v5774 = vpack.c.b16 %v4326, %v4318
        %v5775 = vpack.c.b16 %v4327, %v4319
        %v5776 = vpack.c.b16 %v4328, %v4320
        %v5777 = vpack.c.b16 %v4329, %v4321
        %v5778 = vpack.c.b16 %v4338, %v4330
        %v5779 = vpack.c.b16 %v4339, %v4331
        %v5780 = vpack.c.b16 %v4340, %v4332
        %v5781 = vpack.c.b16 %v4341, %v4333
        %v5782 = vpack.c.b16 %v4342, %v4334
        %v5783 = vpack.c.b16 %v4343, %v4335
        %v5784 = vpack.c.b16 %v4344, %v4336
        %v5785 = vpack.c.b16 %v4345, %v4337
        %v5786 = vpack.c.b16 %v4354, %v4346
        %v5787 = vpack.c.b16 %v4355, %v4347
        %v5788 = vpack.c.b16 %v4356, %v4348
        %v5789 = vpack.c.b16 %v4357, %v4349
        %v5790 = vpack.c.b16 %v4358, %v4350
        %v5791 = vpack.c.b16 %v4359, %v4351
        %v5792 = vpack.c.b16 %v4360, %v4352
        %v5793 = vpack.c.b16 %v4361, %v4353
        %v5794 = vpack.c.b16 %v4370, %v4362
        %v5795 = vpack.c.b16 %v4371, %v4363
        %v5796 = vpack.c.b16 %v4372, %v4364
        %v5797 = vpack.c.b16 %v4373, %v4365
        %v5798 = vpack.c.b16 %v4374, %v4366
        %v5799 = vpack.c.b16 %v4375, %v4367
        %v5800 = vpack.c.b16 %v4376, %v4368
        %v5801 = vpack.c.b16 %v4377, %v4369
        %v5802 = vpack.c.b16 %v4386, %v4378
        %v5803 = vpack.c.b16 %v4387, %v4379
        %v5804 = vpack.c.b16 %v4388, %v4380
        %v5805 = vpack.c.b16 %v4389, %v4381
        %v5806 = vpack.c.b16 %v4390, %v4382
        %v5807 = vpack.c.b16 %v4391, %v4383
        %v5808 = vpack.c.b16 %v4392, %v4384
        %v5809 = vpack.c.b16 %v4393, %v4385
        %v5810 = vpack.c.b16 %v4402, %v4394
        %v5811 = vpack.c.b16 %v4403, %v4395
        %v5812 = vpack.c.b16 %v4404, %v4396
        %v5813 = vpack.c.b16 %v4405, %v4397
        %v5814 = vpack.c.b16 %v4406, %v4398
        %v5815 = vpack.c.b16 %v4407, %v4399
        %v5816 = vpack.c.b16 %v4408, %v4400
        %v5817 = vpack.c.b16 %v4409, %v4401
        %v5818 = vpack.c.b16 %v4418, %v4410
        %v5819 = vpack.c.b16 %v4419, %v4411
        %v5820 = vpack.c.b16 %v4420, %v4412
        %v5821 = vpack.c.b16 %v4421, %v4413
        %v5822 = vpack.c.b16 %v4422, %v4414
        %v5823 = vpack.c.b16 %v4423, %v4415
        %v5824 = vpack.c.b16 %v4424, %v4416
        %v5825 = vpack.c.b16 %v4425, %v4417
        %v5826 = vpack.c.b16 %v4434, %v4426
        %v5827 = vpack.c.b16 %v4435, %v4427
        %v5828 = vpack.c.b16 %v4436, %v4428
        %v5829 = vpack.c.b16 %v4437, %v4429
        %v5830 = vpack.c.b16 %v4438, %v4430
        %v5831 = vpack.c.b16 %v4439, %v4431
        %v5832 = vpack.c.b16 %v4440, %v4432
        %v5833 = vpack.c.b16 %v4441, %v4433
        %v5834 = vpack.c.b16 %v4450, %v4442
        %v5835 = vpack.c.b16 %v4451, %v4443
        %v5836 = vpack.c.b16 %v4452, %v4444
        %v5837 = vpack.c.b16 %v4453, %v4445
        %v5838 = vpack.c.b16 %v4454, %v4446
        %v5839 = vpack.c.b16 %v4455, %v4447
        %v5840 = vpack.c.b16 %v4456, %v4448
        %v5841 = vpack.c.b16 %v4457, %v4449
        %v5842 = vpack.c.b16 %v4466, %v4458
        %v5843 = vpack.c.b16 %v4467, %v4459
        %v5844 = vpack.c.b16 %v4468, %v4460
        %v5845 = vpack.c.b16 %v4469, %v4461
        %v5846 = vpack.c.b16 %v4470, %v4462
        %v5847 = vpack.c.b16 %v4471, %v4463
        %v5848 = vpack.c.b16 %v4472, %v4464
        %v5849 = vpack.c.b16 %v4473, %v4465
        %v5850 = vpack.c.b16 %v4482, %v4474
        %v5851 = vpack.c.b16 %v4483, %v4475
        %v5852 = vpack.c.b16 %v4484, %v4476
        %v5853 = vpack.c.b16 %v4485, %v4477
        %v5854 = vpack.c.b16 %v4486, %v4478
        %v5855 = vpack.c.b16 %v4487, %v4479
        %v5856 = vpack.c.b16 %v4488, %v4480
        %v5857 = vpack.c.b16 %v4489, %v4481
        %v5858 = vpack.c.b16 %v4498, %v4490
        %v5859 = vpack.c.b16 %v4499, %v4491
        %v5860 = vpack.c.b16 %v4500, %v4492
        %v5861 = vpack.c.b16 %v4501, %v4493
        %v5862 = vpack.c.b16 %v4502, %v4494
        %v5863 = vpack.c.b16 %v4503, %v4495
        %v5864 = vpack.c.b16 %v4504, %v4496
        %v5865 = vpack.c.b16 %v4505, %v4497
        %v5866 = vpack.c.b16 %v4514, %v4506
        %v5867 = vpack.c.b16 %v4515, %v4507
        %v5868 = vpack.c.b16 %v4516, %v4508
        %v5869 = vpack.c.b16 %v4517, %v4509
        %v5870 = vpack.c.b16 %v4518, %v4510
        %v5871 = vpack.c.b16 %v4519, %v4511
        %v5872 = vpack.c.b16 %v4520, %v4512
        %v5873 = vpack.c.b16 %v4521, %v4513
        %v5874 = vpack.c.b16 %v4530, %v4522
        %v5875 = vpack.c.b16 %v4531, %v4523
        %v5876 = vpack.c.b16 %v4532, %v4524
        %v5877 = vpack.c.b16 %v4533, %v4525
        %v5878 = vpack.c.b16 %v4534, %v4526
        %v5879 = vpack.c.b16 %v4535, %v4527
        %v5880 = vpack.c.b16 %v4536, %v4528
        %v5881 = vpack.c.b16 %v4537, %v4529
        %v5882 = vpack.c.b16 %v4546, %v4538
        %v5883 = vpack.c.b16 %v4547, %v4539
        %v5884 = vpack.c.b16 %v4548, %v4540
        %v5885 = vpack.c.b16 %v4549, %v4541
        %v5886 = vpack.c.b16 %v4550, %v4542
        %v5887 = vpack.c.b16 %v4551, %v4543
        %v5888 = vpack.c.b16 %v4552, %v4544
        %v5889 = vpack.c.b16 %v4553, %v4545
        %v5890 = vpack.c.b16 %v4562, %v4554
        %v5891 = vpack.c.b16 %v4563, %v4555
        %v5892 = vpack.c.b16 %v4564, %v4556
        %v5893 = vpack.c.b16 %v4565, %v4557
        %v5894 = vpack.c.b16 %v4566, %v4558
        %v5895 = vpack.c.b16 %v4567, %v4559
        %v5896 = vpack.c.b16 %v4568, %v4560
        %v5897 = vpack.c.b16 %v4569, %v4561
        %v5898 = vpack.c.b16 %v4578, %v4570
        %v5899 = vpack.c.b16 %v4579, %v4571
        %v5900 = vpack.c.b16 %v4580, %v4572
        %v5901 = vpack.c.b16 %v4581, %v4573
        %v5902 = vpack.c.b16 %v4582, %v4574
        %v5903 = vpack.c.b16 %v4583, %v4575
        %v5904 = vpack.c.b16 %v4584, %v4576
        %v5905 = vpack.c.b16 %v4585, %v4577
        %v5906 = vpack.c.b16 %v4594, %v4586
        %v5907 = vpack.c.b16 %v4595, %v4587
        %v5908 = vpack.c.b16 %v4596, %v4588
        %v5909 = vpack.c.b16 %v4597, %v4589
        %v5910 = vpack.c.b16 %v4598, %v4590
        %v5911 = vpack.c.b16 %v4599, %v4591
        %v5912 = vpack.c.b16 %v4600, %v4592
        %v5913 = vpack.c.b16 %v4601, %v4593
        %v5914 = vpack.c.b16 %v4610, %v4602
        %v5915 = vpack.c.b16 %v4611, %v4603
        %v5916 = vpack.c.b16 %v4612, %v4604
        %v5917 = vpack.c.b16 %v4613, %v4605
        %v5918 = vpack.c.b16 %v4614, %v4606
        %v5919 = vpack.c.b16 %v4615, %v4607
        %v5920 = vpack.c.b16 %v4616, %v4608
        %v5921 = vpack.c.b16 %v4617, %v4609
        %v5922 = vpack.c.b16 %v4626, %v4618
        %v5923 = vpack.c.b16 %v4627, %v4619
        %v5924 = vpack.c.b16 %v4628, %v4620
        %v5925 = vpack.c.b16 %v4629, %v4621
        %v5926 = vpack.c.b16 %v4630, %v4622
        %v5927 = vpack.c.b16 %v4631, %v4623
        %v5928 = vpack.c.b16 %v4632, %v4624
        %v5929 = vpack.c.b16 %v4633, %v4625
        %v5930 = vpack.c.b16 %v4642, %v4634
        %v5931 = vpack.c.b16 %v4643, %v4635
        %v5932 = vpack.c.b16 %v4644, %v4636
        %v5933 = vpack.c.b16 %v4645, %v4637
        %v5934 = vpack.c.b16 %v4646, %v4638
        %v5935 = vpack.c.b16 %v4647, %v4639
        %v5936 = vpack.c.b16 %v4648, %v4640
        %v5937 = vpack.c.b16 %v4649, %v4641
        %v5938 = vpack.c.b16 %v4658, %v4650
        %v5939 = vpack.c.b16 %v4659, %v4651
        %v5940 = vpack.c.b16 %v4660, %v4652
        %v5941 = vpack.c.b16 %v4661, %v4653
        %v5942 = vpack.c.b16 %v4662, %v4654
        %v5943 = vpack.c.b16 %v4663, %v4655
        %v5944 = vpack.c.b16 %v4664, %v4656
        %v5945 = vpack.c.b16 %v4665, %v4657
        %v5946 = vpack.c.b16 %v4674, %v4666
        %v5947 = vpack.c.b16 %v4675, %v4667
        %v5948 = vpack.c.b16 %v4676, %v4668
        %v5949 = vpack.c.b16 %v4677, %v4669
        %v5950 = vpack.c.b16 %v4678, %v4670
        %v5951 = vpack.c.b16 %v4679, %v4671
        %v5952 = vpack.c.b16 %v4680, %v4672
        %v5953 = vpack.c.b16 %v4681, %v4673
        %v5954 = vpack.c.b16 %v4690, %v4682
        %v5955 = vpack.c.b16 %v4691, %v4683
        %v5956 = vpack.c.b16 %v4692, %v4684
        %v5957 = vpack.c.b16 %v4693, %v4685
        %v5958 = vpack.c.b16 %v4694, %v4686
        %v5959 = vpack.c.b16 %v4695, %v4687
        %v5960 = vpack.c.b16 %v4696, %v4688
        %v5961 = vpack.c.b16 %v4697, %v4689
        %v5962 = vpack.c.b16 %v4706, %v4698
        %v5963 = vpack.c.b16 %v4707, %v4699
        %v5964 = vpack.c.b16 %v4708, %v4700
        %v5965 = vpack.c.b16 %v4709, %v4701
        %v5966 = vpack.c.b16 %v4710, %v4702
        %v5967 = vpack.c.b16 %v4711, %v4703
        %v5968 = vpack.c.b16 %v4712, %v4704
        %v5969 = vpack.c.b16 %v4713, %v4705
        %v5970 = vpack.c.b16 %v4722, %v4714
        %v5971 = vpack.c.b16 %v4723, %v4715
        %v5972 = vpack.c.b16 %v4724, %v4716
        %v5973 = vpack.c.b16 %v4725, %v4717
        %v5974 = vpack.c.b16 %v4726, %v4718
        %v5975 = vpack.c.b16 %v4727, %v4719
        %v5976 = vpack.c.b16 %v4728, %v4720
        %v5977 = vpack.c.b16 %v4729, %v4721
        %v5978 = vpack.c.b16 %v4738, %v4730
        %v5979 = vpack.c.b16 %v4739, %v4731
        %v5980 = vpack.c.b16 %v4740, %v4732
        %v5981 = vpack.c.b16 %v4741, %v4733
        %v5982 = vpack.c.b16 %v4742, %v4734
        %v5983 = vpack.c.b16 %v4743, %v4735
        %v5984 = vpack.c.b16 %v4744, %v4736
        %v5985 = vpack.c.b16 %v4745, %v4737
        %v5986 = vpack.c.b16 %v4754, %v4746
        %v5987 = vpack.c.b16 %v4755, %v4747
        %v5988 = vpack.c.b16 %v4756, %v4748
        %v5989 = vpack.c.b16 %v4757, %v4749
        %v5990 = vpack.c.b16 %v4758, %v4750
        %v5991 = vpack.c.b16 %v4759, %v4751
        %v5992 = vpack.c.b16 %v4760, %v4752
        %v5993 = vpack.c.b16 %v4761, %v4753
        %v5994 = vpack.c.b16 %v4770, %v4762
        %v5995 = vpack.c.b16 %v4771, %v4763
        %v5996 = vpack.c.b16 %v4772, %v4764
        %v5997 = vpack.c.b16 %v4773, %v4765
        %v5998 = vpack.c.b16 %v4774, %v4766
        %v5999 = vpack.c.b16 %v4775, %v4767
        %v6000 = vpack.c.b16 %v4776, %v4768
        %v6001 = vpack.c.b16 %v4777, %v4769
        %v6002 = vpack.c.b16 %v4786, %v4778
        %v6003 = vpack.c.b16 %v4787, %v4779
        %v6004 = vpack.c.b16 %v4788, %v4780
        %v6005 = vpack.c.b16 %v4789, %v4781
        %v6006 = vpack.c.b16 %v4790, %v4782
        %v6007 = vpack.c.b16 %v4791, %v4783
        %v6008 = vpack.c.b16 %v4792, %v4784
        %v6009 = vpack.c.b16 %v4793, %v4785
        %v6010 = vpack.c.b16 %v4802, %v4794
        %v6011 = vpack.c.b16 %v4803, %v4795
        %v6012 = vpack.c.b16 %v4804, %v4796
        %v6013 = vpack.c.b16 %v4805, %v4797
        %v6014 = vpack.c.b16 %v4806, %v4798
        %v6015 = vpack.c.b16 %v4807, %v4799
        %v6016 = vpack.c.b16 %v4808, %v4800
        %v6017 = vpack.c.b16 %v4809, %v4801
        %v6018 = vpack.c.b16 %v4818, %v4810
        %v6019 = vpack.c.b16 %v4819, %v4811
        %v6020 = vpack.c.b16 %v4820, %v4812
        %v6021 = vpack.c.b16 %v4821, %v4813
        %v6022 = vpack.c.b16 %v4822, %v4814
        %v6023 = vpack.c.b16 %v4823, %v4815
        %v6024 = vpack.c.b16 %v4824, %v4816
        %v6025 = vpack.c.b16 %v4825, %v4817
        %v6026 = vpack.c.b16 %v4834, %v4826
        %v6027 = vpack.c.b16 %v4835, %v4827
        %v6028 = vpack.c.b16 %v4836, %v4828
        %v6029 = vpack.c.b16 %v4837, %v4829
        %v6030 = vpack.c.b16 %v4838, %v4830
        %v6031 = vpack.c.b16 %v4839, %v4831
        %v6032 = vpack.c.b16 %v4840, %v4832
        %v6033 = vpack.c.b16 %v4841, %v4833
        %v6034 = vpack.c.b16 %v4850, %v4842
        %v6035 = vpack.c.b16 %v4851, %v4843
        %v6036 = vpack.c.b16 %v4852, %v4844
        %v6037 = vpack.c.b16 %v4853, %v4845
        %v6038 = vpack.c.b16 %v4854, %v4846
        %v6039 = vpack.c.b16 %v4855, %v4847
        %v6040 = vpack.c.b16 %v4856, %v4848
        %v6041 = vpack.c.b16 %v4857, %v4849
        %v6042 = vpack.c.b16 %v4866, %v4858
        %v6043 = vpack.c.b16 %v4867, %v4859
        %v6044 = vpack.c.b16 %v4868, %v4860
        %v6045 = vpack.c.b16 %v4869, %v4861
        %v6046 = vpack.c.b16 %v4870, %v4862
        %v6047 = vpack.c.b16 %v4871, %v4863
        %v6048 = vpack.c.b16 %v4872, %v4864
        %v6049 = vpack.c.b16 %v4873, %v4865
        %v6050 = vpack.c.b16 %v4882, %v4874
        %v6051 = vpack.c.b16 %v4883, %v4875
        %v6052 = vpack.c.b16 %v4884, %v4876
        %v6053 = vpack.c.b16 %v4885, %v4877
        %v6054 = vpack.c.b16 %v4886, %v4878
        %v6055 = vpack.c.b16 %v4887, %v4879
        %v6056 = vpack.c.b16 %v4888, %v4880
        %v6057 = vpack.c.b16 %v4889, %v4881
        %v6058 = vpack.c.b16 %v4898, %v4890
        %v6059 = vpack.c.b16 %v4899, %v4891
        %v6060 = vpack.c.b16 %v4900, %v4892
        %v6061 = vpack.c.b16 %v4901, %v4893
        %v6062 = vpack.c.b16 %v4902, %v4894
        %v6063 = vpack.c.b16 %v4903, %v4895
        %v6064 = vpack.c.b16 %v4904, %v4896
        %v6065 = vpack.c.b16 %v4905, %v4897
        %v6066 = vpack.c.b16 %v4914, %v4906
        %v6067 = vpack.c.b16 %v4915, %v4907
        %v6068 = vpack.c.b16 %v4916, %v4908
        %v6069 = vpack.c.b16 %v4917, %v4909
        %v6070 = vpack.c.b16 %v4918, %v4910
        %v6071 = vpack.c.b16 %v4919, %v4911
        %v6072 = vpack.c.b16 %v4920, %v4912
        %v6073 = vpack.c.b16 %v4921, %v4913
        %v6074 = vpack.c.b16 %v4930, %v4922
        %v6075 = vpack.c.b16 %v4931, %v4923
        %v6076 = vpack.c.b16 %v4932, %v4924
        %v6077 = vpack.c.b16 %v4933, %v4925
        %v6078 = vpack.c.b16 %v4934, %v4926
        %v6079 = vpack.c.b16 %v4935, %v4927
        %v6080 = vpack.c.b16 %v4936, %v4928
        %v6081 = vpack.c.b16 %v4937, %v4929
        %v6082 = vpack.c.b16 %v4946, %v4938
        %v6083 = vpack.c.b16 %v4947, %v4939
        %v6084 = vpack.c.b16 %v4948, %v4940
        %v6085 = vpack.c.b16 %v4949, %v4941
        %v6086 = vpack.c.b16 %v4950, %v4942
        %v6087 = vpack.c.b16 %v4951, %v4943
        %v6088 = vpack.c.b16 %v4952, %v4944
        %v6089 = vpack.c.b16 %v4953, %v4945
        %v6090 = vpack.c.b16 %v4962, %v4954
        %v6091 = vpack.c.b16 %v4963, %v4955
        %v6092 = vpack.c.b16 %v4964, %v4956
        %v6093 = vpack.c.b16 %v4965, %v4957
        %v6094 = vpack.c.b16 %v4966, %v4958
        %v6095 = vpack.c.b16 %v4967, %v4959
        %v6096 = vpack.c.b16 %v4968, %v4960
        %v6097 = vpack.c.b16 %v4969, %v4961
        %v6098 = vpack.c.b16 %v4978, %v4970
        %v6099 = vpack.c.b16 %v4979, %v4971
        %v6100 = vpack.c.b16 %v4980, %v4972
        %v6101 = vpack.c.b16 %v4981, %v4973
        %v6102 = vpack.c.b16 %v4982, %v4974
        %v6103 = vpack.c.b16 %v4983, %v4975
        %v6104 = vpack.c.b16 %v4984, %v4976
        %v6105 = vpack.c.b16 %v4985, %v4977
        %v6106 = vpack.c.b16 %v4994, %v4986
        %v6107 = vpack.c.b16 %v4995, %v4987
        %v6108 = vpack.c.b16 %v4996, %v4988
        %v6109 = vpack.c.b16 %v4997, %v4989
        %v6110 = vpack.c.b16 %v4998, %v4990
        %v6111 = vpack.c.b16 %v4999, %v4991
        %v6112 = vpack.c.b16 %v5000, %v4992
        %v6113 = vpack.c.b16 %v5001, %v4993
        %v6114 = vpack.c.b16 %v5010, %v5002
        %v6115 = vpack.c.b16 %v5011, %v5003
        %v6116 = vpack.c.b16 %v5012, %v5004
        %v6117 = vpack.c.b16 %v5013, %v5005
        %v6118 = vpack.c.b16 %v5014, %v5006
        %v6119 = vpack.c.b16 %v5015, %v5007
        %v6120 = vpack.c.b16 %v5016, %v5008
        %v6121 = vpack.c.b16 %v5017, %v5009
        %v6122 = vpack.c.b16 %v5026, %v5018
        %v6123 = vpack.c.b16 %v5027, %v5019
        %v6124 = vpack.c.b16 %v5028, %v5020
        %v6125 = vpack.c.b16 %v5029, %v5021
        %v6126 = vpack.c.b16 %v5030, %v5022
        %v6127 = vpack.c.b16 %v5031, %v5023
        %v6128 = vpack.c.b16 %v5032, %v5024
        %v6129 = vpack.c.b16 %v5033, %v5025
        %v6130 = vpack.c.b16 %v5042, %v5034
        %v6131 = vpack.c.b16 %v5043, %v5035
        %v6132 = vpack.c.b16 %v5044, %v5036
        %v6133 = vpack.c.b16 %v5045, %v5037
        %v6134 = vpack.c.b16 %v5046, %v5038
        %v6135 = vpack.c.b16 %v5047, %v5039
        %v6136 = vpack.c.b16 %v5048, %v5040
        %v6137 = vpack.c.b16 %v5049, %v5041
        %v6138 = vpack.c.b16 %v5058, %v5050
        %v6139 = vpack.c.b16 %v5059, %v5051
        %v6140 = vpack.c.b16 %v5060, %v5052
        %v6141 = vpack.c.b16 %v5061, %v5053
        %v6142 = vpack.c.b16 %v5062, %v5054
        %v6143 = vpack.c.b16 %v5063, %v5055
        %v6144 = vpack.c.b16 %v5064, %v5056
        %v6145 = vpack.c.b16 %v5065, %v5057
        %v6146 = vpack.c.b16 %v5074, %v5066
        %v6147 = vpack.c.b16 %v5075, %v5067
        %v6148 = vpack.c.b16 %v5076, %v5068
        %v6149 = vpack.c.b16 %v5077, %v5069
        %v6150 = vpack.c.b16 %v5078, %v5070
        %v6151 = vpack.c.b16 %v5079, %v5071
        %v6152 = vpack.c.b16 %v5080, %v5072
        %v6153 = vpack.c.b16 %v5081, %v5073
        %v6154 = vpack.c.b16 %v5090, %v5082
        %v6155 = vpack.c.b16 %v5091, %v5083
        %v6156 = vpack.c.b16 %v5092, %v5084
        %v6157 = vpack.c.b16 %v5093, %v5085
        %v6158 = vpack.c.b16 %v5094, %v5086
        %v6159 = vpack.c.b16 %v5095, %v5087
        %v6160 = vpack.c.b16 %v5096, %v5088
        %v6161 = vpack.c.b16 %v5097, %v5089
        %v6162 = vpack.c.b16 %v5106, %v5098
        %v6163 = vpack.c.b16 %v5107, %v5099
        %v6164 = vpack.c.b16 %v5108, %v5100
        %v6165 = vpack.c.b16 %v5109, %v5101
        %v6166 = vpack.c.b16 %v5110, %v5102
        %v6167 = vpack.c.b16 %v5111, %v5103
        %v6168 = vpack.c.b16 %v5112, %v5104
        %v6169 = vpack.c.b16 %v5113, %v5105
        %v6170 = vpack.c.b16 %v5122, %v5114
        %v6171 = vpack.c.b16 %v5123, %v5115
        %v6172 = vpack.c.b16 %v5124, %v5116
        %v6173 = vpack.c.b16 %v5125, %v5117
        %v6174 = vpack.c.b16 %v5126, %v5118
        %v6175 = vpack.c.b16 %v5127, %v5119
        %v6176 = vpack.c.b16 %v5128, %v5120
        %v6177 = vpack.c.b16 %v5129, %v5121
        %v6178 = vpack.c.b16 %v5138, %v5130
        %v6179 = vpack.c.b16 %v5139, %v5131
        %v6180 = vpack.c.b16 %v5140, %v5132
        %v6181 = vpack.c.b16 %v5141, %v5133
        %v6182 = vpack.c.b16 %v5142, %v5134
        %v6183 = vpack.c.b16 %v5143, %v5135
        %v6184 = vpack.c.b16 %v5144, %v5136
        %v6185 = vpack.c.b16 %v5145, %v5137
        %v6186 = vpack.c.b16 %v5154, %v5146
        %v6187 = vpack.c.b16 %v5155, %v5147
        %v6188 = vpack.c.b16 %v5156, %v5148
        %v6189 = vpack.c.b16 %v5157, %v5149
        %v6190 = vpack.c.b16 %v5158, %v5150
        %v6191 = vpack.c.b16 %v5159, %v5151
        %v6192 = vpack.c.b16 %v5160, %v5152
        %v6193 = vpack.c.b16 %v5161, %v5153
        %v6194 = vpack.c.b16 %v5170, %v5162
        %v6195 = vpack.c.b16 %v5171, %v5163
        %v6196 = vpack.c.b16 %v5172, %v5164
        %v6197 = vpack.c.b16 %v5173, %v5165
        %v6198 = vpack.c.b16 %v5174, %v5166
        %v6199 = vpack.c.b16 %v5175, %v5167
        %v6200 = vpack.c.b16 %v5176, %v5168
        %v6201 = vpack.c.b16 %v5177, %v5169
        %7226 = vmatpush.bf16.msra.mxu0 %v5234
        %7227 = vmatpush.bf16.msra.mxu0 %v5226
        %7228 = vmatpush.bf16.msra.mxu0 %v5218
        %7229 = vmatpush.bf16.msra.mxu0 %v5210
        %7230 = vmatpush.bf16.msra.mxu0 %v5202
        %7231 = vmatpush.bf16.msra.mxu0 %v5194
        %7232 = vmatpush.bf16.msra.mxu0 %v5186
        %7233 = vmatpush.bf16.msra.mxu0 %v5178
        %7234 = vmatmul.bf16.gmra.mxu0 %v2074
        %v7235 = vpop.f32.mrf.mxu0
        %v7236 = vadd.f32 %v2034, %v7235
        %v7237 = vpop.f32.mrf.mxu0
        %7238 = vdwg.mxu0
        %7239 = vmatpush.bf16.msra.mxu0 %v5298
        %7240 = vmatpush.bf16.msra.mxu0 %v5290
        %7241 = vmatpush.bf16.msra.mxu0 %v5282
        %7242 = vmatpush.bf16.msra.mxu0 %v5274
        %7243 = vmatpush.bf16.msra.mxu0 %v5266
        %7244 = vmatpush.bf16.msra.mxu0 %v5258
        %7245 = vmatpush.bf16.msra.mxu0 %v5250
        %7246 = vmatpush.bf16.msra.mxu0 %v5242
        %7247 = vmatmul.bf16.gmra.mxu0 %v2075
        %v7248 = vpop.f32.mrf.mxu0
        %v7249 = vadd.f32 %v7236, %v7248
        %v7250 = vpop.f32.mrf.mxu0
        %7251 = vdwg.mxu0
        %7252 = vmatpush.bf16.msra.mxu0 %v5362
        %7253 = vmatpush.bf16.msra.mxu0 %v5354
        %7254 = vmatpush.bf16.msra.mxu0 %v5346
        %7255 = vmatpush.bf16.msra.mxu0 %v5338
        %7256 = vmatpush.bf16.msra.mxu0 %v5330
        %7257 = vmatpush.bf16.msra.mxu0 %v5322
        %7258 = vmatpush.bf16.msra.mxu0 %v5314
        %7259 = vmatpush.bf16.msra.mxu0 %v5306
        %7260 = vmatmul.bf16.gmra.mxu0 %v2076
        %v7261 = vpop.f32.mrf.mxu0
        %v7262 = vadd.f32 %v7249, %v7261
        %v7263 = vpop.f32.mrf.mxu0
        %7264 = vdwg.mxu0
        %7265 = vmatpush.bf16.msra.mxu0 %v5426
        %7266 = vmatpush.bf16.msra.mxu0 %v5418
        %7267 = vmatpush.bf16.msra.mxu0 %v5410
        %7268 = vmatpush.bf16.msra.mxu0 %v5402
        %7269 = vmatpush.bf16.msra.mxu0 %v5394
        %7270 = vmatpush.bf16.msra.mxu0 %v5386
        %7271 = vmatpush.bf16.msra.mxu0 %v5378
        %7272 = vmatpush.bf16.msra.mxu0 %v5370
        %7273 = vmatmul.bf16.gmra.mxu0 %v2077
        %v7274 = vpop.f32.mrf.mxu0
        %v7275 = vadd.f32 %v7262, %v7274
        %v7276 = vpop.f32.mrf.mxu0
        %7277 = vdwg.mxu0
        %7278 = vmatpush.bf16.msra.mxu0 %v5490
        %7279 = vmatpush.bf16.msra.mxu0 %v5482
        %7280 = vmatpush.bf16.msra.mxu0 %v5474
        %7281 = vmatpush.bf16.msra.mxu0 %v5466
        %7282 = vmatpush.bf16.msra.mxu0 %v5458
        %7283 = vmatpush.bf16.msra.mxu0 %v5450
        %7284 = vmatpush.bf16.msra.mxu0 %v5442
        %7285 = vmatpush.bf16.msra.mxu0 %v5434
        %7286 = vmatmul.bf16.gmra.mxu0 %v2078
        %v7287 = vpop.f32.mrf.mxu0
        %v7288 = vadd.f32 %v7275, %v7287
        %v7289 = vpop.f32.mrf.mxu0
        %7290 = vdwg.mxu0
        %7291 = vmatpush.bf16.msra.mxu0 %v5554
        %7292 = vmatpush.bf16.msra.mxu0 %v5546
        %7293 = vmatpush.bf16.msra.mxu0 %v5538
        %7294 = vmatpush.bf16.msra.mxu0 %v5530
        %7295 = vmatpush.bf16.msra.mxu0 %v5522
        %7296 = vmatpush.bf16.msra.mxu0 %v5514
        %7297 = vmatpush.bf16.msra.mxu0 %v5506
        %7298 = vmatpush.bf16.msra.mxu0 %v5498
        %7299 = vmatmul.bf16.gmra.mxu0 %v2079
        %v7300 = vpop.f32.mrf.mxu0
        %v7301 = vadd.f32 %v7288, %v7300
        %v7302 = vpop.f32.mrf.mxu0
        %7303 = vdwg.mxu0
        %7304 = vmatpush.bf16.msra.mxu0 %v5618
        %7305 = vmatpush.bf16.msra.mxu0 %v5610
        %7306 = vmatpush.bf16.msra.mxu0 %v5602
        %7307 = vmatpush.bf16.msra.mxu0 %v5594
        %7308 = vmatpush.bf16.msra.mxu0 %v5586
        %7309 = vmatpush.bf16.msra.mxu0 %v5578
        %7310 = vmatpush.bf16.msra.mxu0 %v5570
        %7311 = vmatpush.bf16.msra.mxu0 %v5562
        %7312 = vmatmul.bf16.gmra.mxu0 %v2080
        %v7313 = vpop.f32.mrf.mxu0
        %v7314 = vadd.f32 %v7301, %v7313
        %v7315 = vpop.f32.mrf.mxu0
        %7316 = vdwg.mxu0
        %7317 = vmatpush.bf16.msra.mxu0 %v5682
        %7318 = vmatpush.bf16.msra.mxu0 %v5674
        %7319 = vmatpush.bf16.msra.mxu0 %v5666
        %7320 = vmatpush.bf16.msra.mxu0 %v5658
        %7321 = vmatpush.bf16.msra.mxu0 %v5650
        %7322 = vmatpush.bf16.msra.mxu0 %v5642
        %7323 = vmatpush.bf16.msra.mxu0 %v5634
        %7324 = vmatpush.bf16.msra.mxu0 %v5626
        %7325 = vmatmul.bf16.gmra.mxu0 %v2081
        %v7326 = vpop.f32.mrf.mxu0
        %v7327 = vadd.f32 %v7314, %v7326
        %v7328 = vpop.f32.mrf.mxu0
        %7329 = vdwg.mxu0
        %7330 = vmatpush.bf16.msra.mxu0 %v5746
        %7331 = vmatpush.bf16.msra.mxu0 %v5738
        %7332 = vmatpush.bf16.msra.mxu0 %v5730
        %7333 = vmatpush.bf16.msra.mxu0 %v5722
        %7334 = vmatpush.bf16.msra.mxu0 %v5714
        %7335 = vmatpush.bf16.msra.mxu0 %v5706
        %7336 = vmatpush.bf16.msra.mxu0 %v5698
        %7337 = vmatpush.bf16.msra.mxu0 %v5690
        %7338 = vmatmul.bf16.gmra.mxu0 %v2082
        %v7339 = vpop.f32.mrf.mxu0
        %v7340 = vadd.f32 %v7327, %v7339
        %v7341 = vpop.f32.mrf.mxu0
        %7342 = vdwg.mxu0
        %7343 = vmatpush.bf16.msra.mxu0 %v5810
        %7344 = vmatpush.bf16.msra.mxu0 %v5802
        %7345 = vmatpush.bf16.msra.mxu0 %v5794
        %7346 = vmatpush.bf16.msra.mxu0 %v5786
        %7347 = vmatpush.bf16.msra.mxu0 %v5778
        %7348 = vmatpush.bf16.msra.mxu0 %v5770
        %7349 = vmatpush.bf16.msra.mxu0 %v5762
        %7350 = vmatpush.bf16.msra.mxu0 %v5754
        %7351 = vmatmul.bf16.gmra.mxu0 %v2083
        %v7352 = vpop.f32.mrf.mxu0
        %v7353 = vadd.f32 %v7340, %v7352
        %v7354 = vpop.f32.mrf.mxu0
        %7355 = vdwg.mxu0
        %7356 = vmatpush.bf16.msra.mxu0 %v5874
        %7357 = vmatpush.bf16.msra.mxu0 %v5866
        %7358 = vmatpush.bf16.msra.mxu0 %v5858
        %7359 = vmatpush.bf16.msra.mxu0 %v5850
        %7360 = vmatpush.bf16.msra.mxu0 %v5842
        %7361 = vmatpush.bf16.msra.mxu0 %v5834
        %7362 = vmatpush.bf16.msra.mxu0 %v5826
        %7363 = vmatpush.bf16.msra.mxu0 %v5818
        %7364 = vmatmul.bf16.gmra.mxu0 %v2084
        %v7365 = vpop.f32.mrf.mxu0
        %v7366 = vadd.f32 %v7353, %v7365
        %v7367 = vpop.f32.mrf.mxu0
        %7368 = vdwg.mxu0
        %7369 = vmatpush.bf16.msra.mxu0 %v5938
        %7370 = vmatpush.bf16.msra.mxu0 %v5930
        %7371 = vmatpush.bf16.msra.mxu0 %v5922
        %7372 = vmatpush.bf16.msra.mxu0 %v5914
        %7373 = vmatpush.bf16.msra.mxu0 %v5906
        %7374 = vmatpush.bf16.msra.mxu0 %v5898
        %7375 = vmatpush.bf16.msra.mxu0 %v5890
        %7376 = vmatpush.bf16.msra.mxu0 %v5882
        %7377 = vmatmul.bf16.gmra.mxu0 %v2085
        %v7378 = vpop.f32.mrf.mxu0
        %v7379 = vadd.f32 %v7366, %v7378
        %v7380 = vpop.f32.mrf.mxu0
        %7381 = vdwg.mxu0
        %7382 = vmatpush.bf16.msra.mxu0 %v6002
        %7383 = vmatpush.bf16.msra.mxu0 %v5994
        %7384 = vmatpush.bf16.msra.mxu0 %v5986
        %7385 = vmatpush.bf16.msra.mxu0 %v5978
        %7386 = vmatpush.bf16.msra.mxu0 %v5970
        %7387 = vmatpush.bf16.msra.mxu0 %v5962
        %7388 = vmatpush.bf16.msra.mxu0 %v5954
        %7389 = vmatpush.bf16.msra.mxu0 %v5946
        %7390 = vmatmul.bf16.gmra.mxu0 %v2086
        %v7391 = vpop.f32.mrf.mxu0
        %v7392 = vadd.f32 %v7379, %v7391
        %v7393 = vpop.f32.mrf.mxu0
        %7394 = vdwg.mxu0
        %7395 = vmatpush.bf16.msra.mxu0 %v6066
        %7396 = vmatpush.bf16.msra.mxu0 %v6058
        %7397 = vmatpush.bf16.msra.mxu0 %v6050
        %7398 = vmatpush.bf16.msra.mxu0 %v6042
        %7399 = vmatpush.bf16.msra.mxu0 %v6034
        %7400 = vmatpush.bf16.msra.mxu0 %v6026
        %7401 = vmatpush.bf16.msra.mxu0 %v6018
        %7402 = vmatpush.bf16.msra.mxu0 %v6010
        %7403 = vmatmul.bf16.gmra.mxu0 %v2087
        %v7404 = vpop.f32.mrf.mxu0
        %v7405 = vadd.f32 %v7392, %v7404
        %v7406 = vpop.f32.mrf.mxu0
        %7407 = vdwg.mxu0
        %7408 = vmatpush.bf16.msra.mxu0 %v6130
        %7409 = vmatpush.bf16.msra.mxu0 %v6122
        %7410 = vmatpush.bf16.msra.mxu0 %v6114
        %7411 = vmatpush.bf16.msra.mxu0 %v6106
        %7412 = vmatpush.bf16.msra.mxu0 %v6098
        %7413 = vmatpush.bf16.msra.mxu0 %v6090
        %7414 = vmatpush.bf16.msra.mxu0 %v6082
        %7415 = vmatpush.bf16.msra.mxu0 %v6074
        %7416 = vmatmul.bf16.gmra.mxu0 %v2088
        %v7417 = vpop.f32.mrf.mxu0
        %v7418 = vadd.f32 %v7405, %v7417
        %v7419 = vpop.f32.mrf.mxu0
        %7420 = vdwg.mxu0
        %7421 = vmatpush.bf16.msra.mxu0 %v6194
        %7422 = vmatpush.bf16.msra.mxu0 %v6186
        %7423 = vmatpush.bf16.msra.mxu0 %v6178
        %7424 = vmatpush.bf16.msra.mxu0 %v6170
        %7425 = vmatpush.bf16.msra.mxu0 %v6162
        %7426 = vmatpush.bf16.msra.mxu0 %v6154
        %7427 = vmatpush.bf16.msra.mxu0 %v6146
        %7428 = vmatpush.bf16.msra.mxu0 %v6138
        %7429 = vmatmul.bf16.gmra.mxu0 %v2089
        %v7430 = vpop.f32.mrf.mxu0
        %v7431 = vadd.f32 %v7418, %v7430
        %v7432 = vpop.f32.mrf.mxu0
        %7433 = vdwg.mxu0
        %7434 = vmatpush.bf16.msra.mxu0 %v5235
        %7435 = vmatpush.bf16.msra.mxu0 %v5227
        %7436 = vmatpush.bf16.msra.mxu0 %v5219
        %7437 = vmatpush.bf16.msra.mxu0 %v5211
        %7438 = vmatpush.bf16.msra.mxu0 %v5203
        %7439 = vmatpush.bf16.msra.mxu0 %v5195
        %7440 = vmatpush.bf16.msra.mxu0 %v5187
        %7441 = vmatpush.bf16.msra.mxu0 %v5179
        %7442 = vmatmul.bf16.gmra.mxu0 %v2074
        %v7443 = vpop.f32.mrf.mxu0
        %v7444 = vadd.f32 %v2035, %v7443
        %v7445 = vpop.f32.mrf.mxu0
        %7446 = vdwg.mxu0
        %7447 = vmatpush.bf16.msra.mxu0 %v5299
        %7448 = vmatpush.bf16.msra.mxu0 %v5291
        %7449 = vmatpush.bf16.msra.mxu0 %v5283
        %7450 = vmatpush.bf16.msra.mxu0 %v5275
        %7451 = vmatpush.bf16.msra.mxu0 %v5267
        %7452 = vmatpush.bf16.msra.mxu0 %v5259
        %7453 = vmatpush.bf16.msra.mxu0 %v5251
        %7454 = vmatpush.bf16.msra.mxu0 %v5243
        %7455 = vmatmul.bf16.gmra.mxu0 %v2075
        %v7456 = vpop.f32.mrf.mxu0
        %v7457 = vadd.f32 %v7444, %v7456
        %v7458 = vpop.f32.mrf.mxu0
        %7459 = vdwg.mxu0
        %7460 = vmatpush.bf16.msra.mxu0 %v5363
        %7461 = vmatpush.bf16.msra.mxu0 %v5355
        %7462 = vmatpush.bf16.msra.mxu0 %v5347
        %7463 = vmatpush.bf16.msra.mxu0 %v5339
        %7464 = vmatpush.bf16.msra.mxu0 %v5331
        %7465 = vmatpush.bf16.msra.mxu0 %v5323
        %7466 = vmatpush.bf16.msra.mxu0 %v5315
        %7467 = vmatpush.bf16.msra.mxu0 %v5307
        %7468 = vmatmul.bf16.gmra.mxu0 %v2076
        %v7469 = vpop.f32.mrf.mxu0
        %v7470 = vadd.f32 %v7457, %v7469
        %v7471 = vpop.f32.mrf.mxu0
        %7472 = vdwg.mxu0
        %7473 = vmatpush.bf16.msra.mxu0 %v5427
        %7474 = vmatpush.bf16.msra.mxu0 %v5419
        %7475 = vmatpush.bf16.msra.mxu0 %v5411
        %7476 = vmatpush.bf16.msra.mxu0 %v5403
        %7477 = vmatpush.bf16.msra.mxu0 %v5395
        %7478 = vmatpush.bf16.msra.mxu0 %v5387
        %7479 = vmatpush.bf16.msra.mxu0 %v5379
        %7480 = vmatpush.bf16.msra.mxu0 %v5371
        %7481 = vmatmul.bf16.gmra.mxu0 %v2077
        %v7482 = vpop.f32.mrf.mxu0
        %v7483 = vadd.f32 %v7470, %v7482
        %v7484 = vpop.f32.mrf.mxu0
        %7485 = vdwg.mxu0
        %7486 = vmatpush.bf16.msra.mxu0 %v5491
        %7487 = vmatpush.bf16.msra.mxu0 %v5483
        %7488 = vmatpush.bf16.msra.mxu0 %v5475
        %7489 = vmatpush.bf16.msra.mxu0 %v5467
        %7490 = vmatpush.bf16.msra.mxu0 %v5459
        %7491 = vmatpush.bf16.msra.mxu0 %v5451
        %7492 = vmatpush.bf16.msra.mxu0 %v5443
        %7493 = vmatpush.bf16.msra.mxu0 %v5435
        %7494 = vmatmul.bf16.gmra.mxu0 %v2078
        %v7495 = vpop.f32.mrf.mxu0
        %v7496 = vadd.f32 %v7483, %v7495
        %v7497 = vpop.f32.mrf.mxu0
        %7498 = vdwg.mxu0
        %7499 = vmatpush.bf16.msra.mxu0 %v5555
        %7500 = vmatpush.bf16.msra.mxu0 %v5547
        %7501 = vmatpush.bf16.msra.mxu0 %v5539
        %7502 = vmatpush.bf16.msra.mxu0 %v5531
        %7503 = vmatpush.bf16.msra.mxu0 %v5523
        %7504 = vmatpush.bf16.msra.mxu0 %v5515
        %7505 = vmatpush.bf16.msra.mxu0 %v5507
        %7506 = vmatpush.bf16.msra.mxu0 %v5499
        %7507 = vmatmul.bf16.gmra.mxu0 %v2079
        %v7508 = vpop.f32.mrf.mxu0
        %v7509 = vadd.f32 %v7496, %v7508
        %v7510 = vpop.f32.mrf.mxu0
        %7511 = vdwg.mxu0
        %7512 = vmatpush.bf16.msra.mxu0 %v5619
        %7513 = vmatpush.bf16.msra.mxu0 %v5611
        %7514 = vmatpush.bf16.msra.mxu0 %v5603
        %7515 = vmatpush.bf16.msra.mxu0 %v5595
        %7516 = vmatpush.bf16.msra.mxu0 %v5587
        %7517 = vmatpush.bf16.msra.mxu0 %v5579
        %7518 = vmatpush.bf16.msra.mxu0 %v5571
        %7519 = vmatpush.bf16.msra.mxu0 %v5563
        %7520 = vmatmul.bf16.gmra.mxu0 %v2080
        %v7521 = vpop.f32.mrf.mxu0
        %v7522 = vadd.f32 %v7509, %v7521
        %v7523 = vpop.f32.mrf.mxu0
        %7524 = vdwg.mxu0
        %7525 = vmatpush.bf16.msra.mxu0 %v5683
        %7526 = vmatpush.bf16.msra.mxu0 %v5675
        %7527 = vmatpush.bf16.msra.mxu0 %v5667
        %7528 = vmatpush.bf16.msra.mxu0 %v5659
        %7529 = vmatpush.bf16.msra.mxu0 %v5651
        %7530 = vmatpush.bf16.msra.mxu0 %v5643
        %7531 = vmatpush.bf16.msra.mxu0 %v5635
        %7532 = vmatpush.bf16.msra.mxu0 %v5627
        %7533 = vmatmul.bf16.gmra.mxu0 %v2081
        %v7534 = vpop.f32.mrf.mxu0
        %v7535 = vadd.f32 %v7522, %v7534
        %v7536 = vpop.f32.mrf.mxu0
        %7537 = vdwg.mxu0
        %7538 = vmatpush.bf16.msra.mxu0 %v5747
        %7539 = vmatpush.bf16.msra.mxu0 %v5739
        %7540 = vmatpush.bf16.msra.mxu0 %v5731
        %7541 = vmatpush.bf16.msra.mxu0 %v5723
        %7542 = vmatpush.bf16.msra.mxu0 %v5715
        %7543 = vmatpush.bf16.msra.mxu0 %v5707
        %7544 = vmatpush.bf16.msra.mxu0 %v5699
        %7545 = vmatpush.bf16.msra.mxu0 %v5691
        %7546 = vmatmul.bf16.gmra.mxu0 %v2082
        %v7547 = vpop.f32.mrf.mxu0
        %v7548 = vadd.f32 %v7535, %v7547
        %v7549 = vpop.f32.mrf.mxu0
        %7550 = vdwg.mxu0
        %7551 = vmatpush.bf16.msra.mxu0 %v5811
        %7552 = vmatpush.bf16.msra.mxu0 %v5803
        %7553 = vmatpush.bf16.msra.mxu0 %v5795
        %7554 = vmatpush.bf16.msra.mxu0 %v5787
        %7555 = vmatpush.bf16.msra.mxu0 %v5779
        %7556 = vmatpush.bf16.msra.mxu0 %v5771
        %7557 = vmatpush.bf16.msra.mxu0 %v5763
        %7558 = vmatpush.bf16.msra.mxu0 %v5755
        %7559 = vmatmul.bf16.gmra.mxu0 %v2083
        %v7560 = vpop.f32.mrf.mxu0
        %v7561 = vadd.f32 %v7548, %v7560
        %v7562 = vpop.f32.mrf.mxu0
        %7563 = vdwg.mxu0
        %7564 = vmatpush.bf16.msra.mxu0 %v5875
        %7565 = vmatpush.bf16.msra.mxu0 %v5867
        %7566 = vmatpush.bf16.msra.mxu0 %v5859
        %7567 = vmatpush.bf16.msra.mxu0 %v5851
        %7568 = vmatpush.bf16.msra.mxu0 %v5843
        %7569 = vmatpush.bf16.msra.mxu0 %v5835
        %7570 = vmatpush.bf16.msra.mxu0 %v5827
        %7571 = vmatpush.bf16.msra.mxu0 %v5819
        %7572 = vmatmul.bf16.gmra.mxu0 %v2084
        %v7573 = vpop.f32.mrf.mxu0
        %v7574 = vadd.f32 %v7561, %v7573
        %v7575 = vpop.f32.mrf.mxu0
        %7576 = vdwg.mxu0
        %7577 = vmatpush.bf16.msra.mxu0 %v5939
        %7578 = vmatpush.bf16.msra.mxu0 %v5931
        %7579 = vmatpush.bf16.msra.mxu0 %v5923
        %7580 = vmatpush.bf16.msra.mxu0 %v5915
        %7581 = vmatpush.bf16.msra.mxu0 %v5907
        %7582 = vmatpush.bf16.msra.mxu0 %v5899
        %7583 = vmatpush.bf16.msra.mxu0 %v5891
        %7584 = vmatpush.bf16.msra.mxu0 %v5883
        %7585 = vmatmul.bf16.gmra.mxu0 %v2085
        %v7586 = vpop.f32.mrf.mxu0
        %v7587 = vadd.f32 %v7574, %v7586
        %v7588 = vpop.f32.mrf.mxu0
        %7589 = vdwg.mxu0
        %7590 = vmatpush.bf16.msra.mxu0 %v6003
        %7591 = vmatpush.bf16.msra.mxu0 %v5995
        %7592 = vmatpush.bf16.msra.mxu0 %v5987
        %7593 = vmatpush.bf16.msra.mxu0 %v5979
        %7594 = vmatpush.bf16.msra.mxu0 %v5971
        %7595 = vmatpush.bf16.msra.mxu0 %v5963
        %7596 = vmatpush.bf16.msra.mxu0 %v5955
        %7597 = vmatpush.bf16.msra.mxu0 %v5947
        %7598 = vmatmul.bf16.gmra.mxu0 %v2086
        %v7599 = vpop.f32.mrf.mxu0
        %v7600 = vadd.f32 %v7587, %v7599
        %v7601 = vpop.f32.mrf.mxu0
        %7602 = vdwg.mxu0
        %7603 = vmatpush.bf16.msra.mxu0 %v6067
        %7604 = vmatpush.bf16.msra.mxu0 %v6059
        %7605 = vmatpush.bf16.msra.mxu0 %v6051
        %7606 = vmatpush.bf16.msra.mxu0 %v6043
        %7607 = vmatpush.bf16.msra.mxu0 %v6035
        %7608 = vmatpush.bf16.msra.mxu0 %v6027
        %7609 = vmatpush.bf16.msra.mxu0 %v6019
        %7610 = vmatpush.bf16.msra.mxu0 %v6011
        %7611 = vmatmul.bf16.gmra.mxu0 %v2087
        %v7612 = vpop.f32.mrf.mxu0
        %v7613 = vadd.f32 %v7600, %v7612
        %v7614 = vpop.f32.mrf.mxu0
        %7615 = vdwg.mxu0
        %7616 = vmatpush.bf16.msra.mxu0 %v6131
        %7617 = vmatpush.bf16.msra.mxu0 %v6123
        %7618 = vmatpush.bf16.msra.mxu0 %v6115
        %7619 = vmatpush.bf16.msra.mxu0 %v6107
        %7620 = vmatpush.bf16.msra.mxu0 %v6099
        %7621 = vmatpush.bf16.msra.mxu0 %v6091
        %7622 = vmatpush.bf16.msra.mxu0 %v6083
        %7623 = vmatpush.bf16.msra.mxu0 %v6075
        %7624 = vmatmul.bf16.gmra.mxu0 %v2088
        %v7625 = vpop.f32.mrf.mxu0
        %v7626 = vadd.f32 %v7613, %v7625
        %v7627 = vpop.f32.mrf.mxu0
        %7628 = vdwg.mxu0
        %7629 = vmatpush.bf16.msra.mxu0 %v6195
        %7630 = vmatpush.bf16.msra.mxu0 %v6187
        %7631 = vmatpush.bf16.msra.mxu0 %v6179
        %7632 = vmatpush.bf16.msra.mxu0 %v6171
        %7633 = vmatpush.bf16.msra.mxu0 %v6163
        %7634 = vmatpush.bf16.msra.mxu0 %v6155
        %7635 = vmatpush.bf16.msra.mxu0 %v6147
        %7636 = vmatpush.bf16.msra.mxu0 %v6139
        %7637 = vmatmul.bf16.gmra.mxu0 %v2089
        %v7638 = vpop.f32.mrf.mxu0
        %v7639 = vadd.f32 %v7626, %v7638
        %v7640 = vpop.f32.mrf.mxu0
        %7641 = vdwg.mxu0
        %7642 = vmatpush.bf16.msra.mxu0 %v5236
        %7643 = vmatpush.bf16.msra.mxu0 %v5228
        %7644 = vmatpush.bf16.msra.mxu0 %v5220
        %7645 = vmatpush.bf16.msra.mxu0 %v5212
        %7646 = vmatpush.bf16.msra.mxu0 %v5204
        %7647 = vmatpush.bf16.msra.mxu0 %v5196
        %7648 = vmatpush.bf16.msra.mxu0 %v5188
        %7649 = vmatpush.bf16.msra.mxu0 %v5180
        %7650 = vmatmul.bf16.gmra.mxu0 %v2074
        %v7651 = vpop.f32.mrf.mxu0
        %v7652 = vadd.f32 %v2036, %v7651
        %v7653 = vpop.f32.mrf.mxu0
        %7654 = vdwg.mxu0
        %7655 = vmatpush.bf16.msra.mxu0 %v5300
        %7656 = vmatpush.bf16.msra.mxu0 %v5292
        %7657 = vmatpush.bf16.msra.mxu0 %v5284
        %7658 = vmatpush.bf16.msra.mxu0 %v5276
        %7659 = vmatpush.bf16.msra.mxu0 %v5268
        %7660 = vmatpush.bf16.msra.mxu0 %v5260
        %7661 = vmatpush.bf16.msra.mxu0 %v5252
        %7662 = vmatpush.bf16.msra.mxu0 %v5244
        %7663 = vmatmul.bf16.gmra.mxu0 %v2075
        %v7664 = vpop.f32.mrf.mxu0
        %v7665 = vadd.f32 %v7652, %v7664
        %v7666 = vpop.f32.mrf.mxu0
        %7667 = vdwg.mxu0
        %7668 = vmatpush.bf16.msra.mxu0 %v5364
        %7669 = vmatpush.bf16.msra.mxu0 %v5356
        %7670 = vmatpush.bf16.msra.mxu0 %v5348
        %7671 = vmatpush.bf16.msra.mxu0 %v5340
        %7672 = vmatpush.bf16.msra.mxu0 %v5332
        %7673 = vmatpush.bf16.msra.mxu0 %v5324
        %7674 = vmatpush.bf16.msra.mxu0 %v5316
        %7675 = vmatpush.bf16.msra.mxu0 %v5308
        %7676 = vmatmul.bf16.gmra.mxu0 %v2076
        %v7677 = vpop.f32.mrf.mxu0
        %v7678 = vadd.f32 %v7665, %v7677
        %v7679 = vpop.f32.mrf.mxu0
        %7680 = vdwg.mxu0
        %7681 = vmatpush.bf16.msra.mxu0 %v5428
        %7682 = vmatpush.bf16.msra.mxu0 %v5420
        %7683 = vmatpush.bf16.msra.mxu0 %v5412
        %7684 = vmatpush.bf16.msra.mxu0 %v5404
        %7685 = vmatpush.bf16.msra.mxu0 %v5396
        %7686 = vmatpush.bf16.msra.mxu0 %v5388
        %7687 = vmatpush.bf16.msra.mxu0 %v5380
        %7688 = vmatpush.bf16.msra.mxu0 %v5372
        %7689 = vmatmul.bf16.gmra.mxu0 %v2077
        %v7690 = vpop.f32.mrf.mxu0
        %v7691 = vadd.f32 %v7678, %v7690
        %v7692 = vpop.f32.mrf.mxu0
        %7693 = vdwg.mxu0
        %7694 = vmatpush.bf16.msra.mxu0 %v5492
        %7695 = vmatpush.bf16.msra.mxu0 %v5484
        %7696 = vmatpush.bf16.msra.mxu0 %v5476
        %7697 = vmatpush.bf16.msra.mxu0 %v5468
        %7698 = vmatpush.bf16.msra.mxu0 %v5460
        %7699 = vmatpush.bf16.msra.mxu0 %v5452
        %7700 = vmatpush.bf16.msra.mxu0 %v5444
        %7701 = vmatpush.bf16.msra.mxu0 %v5436
        %7702 = vmatmul.bf16.gmra.mxu0 %v2078
        %v7703 = vpop.f32.mrf.mxu0
        %v7704 = vadd.f32 %v7691, %v7703
        %v7705 = vpop.f32.mrf.mxu0
        %7706 = vdwg.mxu0
        %7707 = vmatpush.bf16.msra.mxu0 %v5556
        %7708 = vmatpush.bf16.msra.mxu0 %v5548
        %7709 = vmatpush.bf16.msra.mxu0 %v5540
        %7710 = vmatpush.bf16.msra.mxu0 %v5532
        %7711 = vmatpush.bf16.msra.mxu0 %v5524
        %7712 = vmatpush.bf16.msra.mxu0 %v5516
        %7713 = vmatpush.bf16.msra.mxu0 %v5508
        %7714 = vmatpush.bf16.msra.mxu0 %v5500
        %7715 = vmatmul.bf16.gmra.mxu0 %v2079
        %v7716 = vpop.f32.mrf.mxu0
        %v7717 = vadd.f32 %v7704, %v7716
        %v7718 = vpop.f32.mrf.mxu0
        %7719 = vdwg.mxu0
        %7720 = vmatpush.bf16.msra.mxu0 %v5620
        %7721 = vmatpush.bf16.msra.mxu0 %v5612
        %7722 = vmatpush.bf16.msra.mxu0 %v5604
        %7723 = vmatpush.bf16.msra.mxu0 %v5596
        %7724 = vmatpush.bf16.msra.mxu0 %v5588
        %7725 = vmatpush.bf16.msra.mxu0 %v5580
        %7726 = vmatpush.bf16.msra.mxu0 %v5572
        %7727 = vmatpush.bf16.msra.mxu0 %v5564
        %7728 = vmatmul.bf16.gmra.mxu0 %v2080
        %v7729 = vpop.f32.mrf.mxu0
        %v7730 = vadd.f32 %v7717, %v7729
        %v7731 = vpop.f32.mrf.mxu0
        %7732 = vdwg.mxu0
        %7733 = vmatpush.bf16.msra.mxu0 %v5684
        %7734 = vmatpush.bf16.msra.mxu0 %v5676
        %7735 = vmatpush.bf16.msra.mxu0 %v5668
        %7736 = vmatpush.bf16.msra.mxu0 %v5660
        %7737 = vmatpush.bf16.msra.mxu0 %v5652
        %7738 = vmatpush.bf16.msra.mxu0 %v5644
        %7739 = vmatpush.bf16.msra.mxu0 %v5636
        %7740 = vmatpush.bf16.msra.mxu0 %v5628
        %7741 = vmatmul.bf16.gmra.mxu0 %v2081
        %v7742 = vpop.f32.mrf.mxu0
        %v7743 = vadd.f32 %v7730, %v7742
        %v7744 = vpop.f32.mrf.mxu0
        %7745 = vdwg.mxu0
        %7746 = vmatpush.bf16.msra.mxu0 %v5748
        %7747 = vmatpush.bf16.msra.mxu0 %v5740
        %7748 = vmatpush.bf16.msra.mxu0 %v5732
        %7749 = vmatpush.bf16.msra.mxu0 %v5724
        %7750 = vmatpush.bf16.msra.mxu0 %v5716
        %7751 = vmatpush.bf16.msra.mxu0 %v5708
        %7752 = vmatpush.bf16.msra.mxu0 %v5700
        %7753 = vmatpush.bf16.msra.mxu0 %v5692
        %7754 = vmatmul.bf16.gmra.mxu0 %v2082
        %v7755 = vpop.f32.mrf.mxu0
        %v7756 = vadd.f32 %v7743, %v7755
        %v7757 = vpop.f32.mrf.mxu0
        %7758 = vdwg.mxu0
        %7759 = vmatpush.bf16.msra.mxu0 %v5812
        %7760 = vmatpush.bf16.msra.mxu0 %v5804
        %7761 = vmatpush.bf16.msra.mxu0 %v5796
        %7762 = vmatpush.bf16.msra.mxu0 %v5788
        %7763 = vmatpush.bf16.msra.mxu0 %v5780
        %7764 = vmatpush.bf16.msra.mxu0 %v5772
        %7765 = vmatpush.bf16.msra.mxu0 %v5764
        %7766 = vmatpush.bf16.msra.mxu0 %v5756
        %7767 = vmatmul.bf16.gmra.mxu0 %v2083
        %v7768 = vpop.f32.mrf.mxu0
        %v7769 = vadd.f32 %v7756, %v7768
        %v7770 = vpop.f32.mrf.mxu0
        %7771 = vdwg.mxu0
        %7772 = vmatpush.bf16.msra.mxu0 %v5876
        %7773 = vmatpush.bf16.msra.mxu0 %v5868
        %7774 = vmatpush.bf16.msra.mxu0 %v5860
        %7775 = vmatpush.bf16.msra.mxu0 %v5852
        %7776 = vmatpush.bf16.msra.mxu0 %v5844
        %7777 = vmatpush.bf16.msra.mxu0 %v5836
        %7778 = vmatpush.bf16.msra.mxu0 %v5828
        %7779 = vmatpush.bf16.msra.mxu0 %v5820
        %7780 = vmatmul.bf16.gmra.mxu0 %v2084
        %v7781 = vpop.f32.mrf.mxu0
        %v7782 = vadd.f32 %v7769, %v7781
        %v7783 = vpop.f32.mrf.mxu0
        %7784 = vdwg.mxu0
        %7785 = vmatpush.bf16.msra.mxu0 %v5940
        %7786 = vmatpush.bf16.msra.mxu0 %v5932
        %7787 = vmatpush.bf16.msra.mxu0 %v5924
        %7788 = vmatpush.bf16.msra.mxu0 %v5916
        %7789 = vmatpush.bf16.msra.mxu0 %v5908
        %7790 = vmatpush.bf16.msra.mxu0 %v5900
        %7791 = vmatpush.bf16.msra.mxu0 %v5892
        %7792 = vmatpush.bf16.msra.mxu0 %v5884
        %7793 = vmatmul.bf16.gmra.mxu0 %v2085
        %v7794 = vpop.f32.mrf.mxu0
        %v7795 = vadd.f32 %v7782, %v7794
        %v7796 = vpop.f32.mrf.mxu0
        %7797 = vdwg.mxu0
        %7798 = vmatpush.bf16.msra.mxu0 %v6004
        %7799 = vmatpush.bf16.msra.mxu0 %v5996
        %7800 = vmatpush.bf16.msra.mxu0 %v5988
        %7801 = vmatpush.bf16.msra.mxu0 %v5980
        %7802 = vmatpush.bf16.msra.mxu0 %v5972
        %7803 = vmatpush.bf16.msra.mxu0 %v5964
        %7804 = vmatpush.bf16.msra.mxu0 %v5956
        %7805 = vmatpush.bf16.msra.mxu0 %v5948
        %7806 = vmatmul.bf16.gmra.mxu0 %v2086
        %v7807 = vpop.f32.mrf.mxu0
        %v7808 = vadd.f32 %v7795, %v7807
        %v7809 = vpop.f32.mrf.mxu0
        %7810 = vdwg.mxu0
        %7811 = vmatpush.bf16.msra.mxu0 %v6068
        %7812 = vmatpush.bf16.msra.mxu0 %v6060
        %7813 = vmatpush.bf16.msra.mxu0 %v6052
        %7814 = vmatpush.bf16.msra.mxu0 %v6044
        %7815 = vmatpush.bf16.msra.mxu0 %v6036
        %7816 = vmatpush.bf16.msra.mxu0 %v6028
        %7817 = vmatpush.bf16.msra.mxu0 %v6020
        %7818 = vmatpush.bf16.msra.mxu0 %v6012
        %7819 = vmatmul.bf16.gmra.mxu0 %v2087
        %v7820 = vpop.f32.mrf.mxu0
        %v7821 = vadd.f32 %v7808, %v7820
        %v7822 = vpop.f32.mrf.mxu0
        %7823 = vdwg.mxu0
        %7824 = vmatpush.bf16.msra.mxu0 %v6132
        %7825 = vmatpush.bf16.msra.mxu0 %v6124
        %7826 = vmatpush.bf16.msra.mxu0 %v6116
        %7827 = vmatpush.bf16.msra.mxu0 %v6108
        %7828 = vmatpush.bf16.msra.mxu0 %v6100
        %7829 = vmatpush.bf16.msra.mxu0 %v6092
        %7830 = vmatpush.bf16.msra.mxu0 %v6084
        %7831 = vmatpush.bf16.msra.mxu0 %v6076
        %7832 = vmatmul.bf16.gmra.mxu0 %v2088
        %v7833 = vpop.f32.mrf.mxu0
        %v7834 = vadd.f32 %v7821, %v7833
        %v7835 = vpop.f32.mrf.mxu0
        %7836 = vdwg.mxu0
        %7837 = vmatpush.bf16.msra.mxu0 %v6196
        %7838 = vmatpush.bf16.msra.mxu0 %v6188
        %7839 = vmatpush.bf16.msra.mxu0 %v6180
        %7840 = vmatpush.bf16.msra.mxu0 %v6172
        %7841 = vmatpush.bf16.msra.mxu0 %v6164
        %7842 = vmatpush.bf16.msra.mxu0 %v6156
        %7843 = vmatpush.bf16.msra.mxu0 %v6148
        %7844 = vmatpush.bf16.msra.mxu0 %v6140
        %7845 = vmatmul.bf16.gmra.mxu0 %v2089
        %v7846 = vpop.f32.mrf.mxu0
        %v7847 = vadd.f32 %v7834, %v7846
        %v7848 = vpop.f32.mrf.mxu0
        %7849 = vdwg.mxu0
        %7850 = vmatpush.bf16.msra.mxu0 %v5237
        %7851 = vmatpush.bf16.msra.mxu0 %v5229
        %7852 = vmatpush.bf16.msra.mxu0 %v5221
        %7853 = vmatpush.bf16.msra.mxu0 %v5213
        %7854 = vmatpush.bf16.msra.mxu0 %v5205
        %7855 = vmatpush.bf16.msra.mxu0 %v5197
        %7856 = vmatpush.bf16.msra.mxu0 %v5189
        %7857 = vmatpush.bf16.msra.mxu0 %v5181
        %7858 = vmatmul.bf16.gmra.mxu0 %v2074
        %v7859 = vpop.f32.mrf.mxu0
        %v7860 = vadd.f32 %v2037, %v7859
        %v7861 = vpop.f32.mrf.mxu0
        %7862 = vdwg.mxu0
        %7863 = vmatpush.bf16.msra.mxu0 %v5301
        %7864 = vmatpush.bf16.msra.mxu0 %v5293
        %7865 = vmatpush.bf16.msra.mxu0 %v5285
        %7866 = vmatpush.bf16.msra.mxu0 %v5277
        %7867 = vmatpush.bf16.msra.mxu0 %v5269
        %7868 = vmatpush.bf16.msra.mxu0 %v5261
        %7869 = vmatpush.bf16.msra.mxu0 %v5253
        %7870 = vmatpush.bf16.msra.mxu0 %v5245
        %7871 = vmatmul.bf16.gmra.mxu0 %v2075
        %v7872 = vpop.f32.mrf.mxu0
        %v7873 = vadd.f32 %v7860, %v7872
        %v7874 = vpop.f32.mrf.mxu0
        %7875 = vdwg.mxu0
        %7876 = vmatpush.bf16.msra.mxu0 %v5365
        %7877 = vmatpush.bf16.msra.mxu0 %v5357
        %7878 = vmatpush.bf16.msra.mxu0 %v5349
        %7879 = vmatpush.bf16.msra.mxu0 %v5341
        %7880 = vmatpush.bf16.msra.mxu0 %v5333
        %7881 = vmatpush.bf16.msra.mxu0 %v5325
        %7882 = vmatpush.bf16.msra.mxu0 %v5317
        %7883 = vmatpush.bf16.msra.mxu0 %v5309
        %7884 = vmatmul.bf16.gmra.mxu0 %v2076
        %v7885 = vpop.f32.mrf.mxu0
        %v7886 = vadd.f32 %v7873, %v7885
        %v7887 = vpop.f32.mrf.mxu0
        %7888 = vdwg.mxu0
        %7889 = vmatpush.bf16.msra.mxu0 %v5429
        %7890 = vmatpush.bf16.msra.mxu0 %v5421
        %7891 = vmatpush.bf16.msra.mxu0 %v5413
        %7892 = vmatpush.bf16.msra.mxu0 %v5405
        %7893 = vmatpush.bf16.msra.mxu0 %v5397
        %7894 = vmatpush.bf16.msra.mxu0 %v5389
        %7895 = vmatpush.bf16.msra.mxu0 %v5381
        %7896 = vmatpush.bf16.msra.mxu0 %v5373
        %7897 = vmatmul.bf16.gmra.mxu0 %v2077
        %v7898 = vpop.f32.mrf.mxu0
        %v7899 = vadd.f32 %v7886, %v7898
        %v7900 = vpop.f32.mrf.mxu0
        %7901 = vdwg.mxu0
        %7902 = vmatpush.bf16.msra.mxu0 %v5493
        %7903 = vmatpush.bf16.msra.mxu0 %v5485
        %7904 = vmatpush.bf16.msra.mxu0 %v5477
        %7905 = vmatpush.bf16.msra.mxu0 %v5469
        %7906 = vmatpush.bf16.msra.mxu0 %v5461
        %7907 = vmatpush.bf16.msra.mxu0 %v5453
        %7908 = vmatpush.bf16.msra.mxu0 %v5445
        %7909 = vmatpush.bf16.msra.mxu0 %v5437
        %7910 = vmatmul.bf16.gmra.mxu0 %v2078
        %v7911 = vpop.f32.mrf.mxu0
        %v7912 = vadd.f32 %v7899, %v7911
        %v7913 = vpop.f32.mrf.mxu0
        %7914 = vdwg.mxu0
        %7915 = vmatpush.bf16.msra.mxu0 %v5557
        %7916 = vmatpush.bf16.msra.mxu0 %v5549
        %7917 = vmatpush.bf16.msra.mxu0 %v5541
        %7918 = vmatpush.bf16.msra.mxu0 %v5533
        %7919 = vmatpush.bf16.msra.mxu0 %v5525
        %7920 = vmatpush.bf16.msra.mxu0 %v5517
        %7921 = vmatpush.bf16.msra.mxu0 %v5509
        %7922 = vmatpush.bf16.msra.mxu0 %v5501
        %7923 = vmatmul.bf16.gmra.mxu0 %v2079
        %v7924 = vpop.f32.mrf.mxu0
        %v7925 = vadd.f32 %v7912, %v7924
        %v7926 = vpop.f32.mrf.mxu0
        %7927 = vdwg.mxu0
        %7928 = vmatpush.bf16.msra.mxu0 %v5621
        %7929 = vmatpush.bf16.msra.mxu0 %v5613
        %7930 = vmatpush.bf16.msra.mxu0 %v5605
        %7931 = vmatpush.bf16.msra.mxu0 %v5597
        %7932 = vmatpush.bf16.msra.mxu0 %v5589
        %7933 = vmatpush.bf16.msra.mxu0 %v5581
        %7934 = vmatpush.bf16.msra.mxu0 %v5573
        %7935 = vmatpush.bf16.msra.mxu0 %v5565
        %7936 = vmatmul.bf16.gmra.mxu0 %v2080
        %v7937 = vpop.f32.mrf.mxu0
        %v7938 = vadd.f32 %v7925, %v7937
        %v7939 = vpop.f32.mrf.mxu0
        %7940 = vdwg.mxu0
        %7941 = vmatpush.bf16.msra.mxu0 %v5685
        %7942 = vmatpush.bf16.msra.mxu0 %v5677
        %7943 = vmatpush.bf16.msra.mxu0 %v5669
        %7944 = vmatpush.bf16.msra.mxu0 %v5661
        %7945 = vmatpush.bf16.msra.mxu0 %v5653
        %7946 = vmatpush.bf16.msra.mxu0 %v5645
        %7947 = vmatpush.bf16.msra.mxu0 %v5637
        %7948 = vmatpush.bf16.msra.mxu0 %v5629
        %7949 = vmatmul.bf16.gmra.mxu0 %v2081
        %v7950 = vpop.f32.mrf.mxu0
        %v7951 = vadd.f32 %v7938, %v7950
        %v7952 = vpop.f32.mrf.mxu0
        %7953 = vdwg.mxu0
        %7954 = vmatpush.bf16.msra.mxu0 %v5749
        %7955 = vmatpush.bf16.msra.mxu0 %v5741
        %7956 = vmatpush.bf16.msra.mxu0 %v5733
        %7957 = vmatpush.bf16.msra.mxu0 %v5725
        %7958 = vmatpush.bf16.msra.mxu0 %v5717
        %7959 = vmatpush.bf16.msra.mxu0 %v5709
        %7960 = vmatpush.bf16.msra.mxu0 %v5701
        %7961 = vmatpush.bf16.msra.mxu0 %v5693
        %7962 = vmatmul.bf16.gmra.mxu0 %v2082
        %v7963 = vpop.f32.mrf.mxu0
        %v7964 = vadd.f32 %v7951, %v7963
        %v7965 = vpop.f32.mrf.mxu0
        %7966 = vdwg.mxu0
        %7967 = vmatpush.bf16.msra.mxu0 %v5813
        %7968 = vmatpush.bf16.msra.mxu0 %v5805
        %7969 = vmatpush.bf16.msra.mxu0 %v5797
        %7970 = vmatpush.bf16.msra.mxu0 %v5789
        %7971 = vmatpush.bf16.msra.mxu0 %v5781
        %7972 = vmatpush.bf16.msra.mxu0 %v5773
        %7973 = vmatpush.bf16.msra.mxu0 %v5765
        %7974 = vmatpush.bf16.msra.mxu0 %v5757
        %7975 = vmatmul.bf16.gmra.mxu0 %v2083
        %v7976 = vpop.f32.mrf.mxu0
        %v7977 = vadd.f32 %v7964, %v7976
        %v7978 = vpop.f32.mrf.mxu0
        %7979 = vdwg.mxu0
        %7980 = vmatpush.bf16.msra.mxu0 %v5877
        %7981 = vmatpush.bf16.msra.mxu0 %v5869
        %7982 = vmatpush.bf16.msra.mxu0 %v5861
        %7983 = vmatpush.bf16.msra.mxu0 %v5853
        %7984 = vmatpush.bf16.msra.mxu0 %v5845
        %7985 = vmatpush.bf16.msra.mxu0 %v5837
        %7986 = vmatpush.bf16.msra.mxu0 %v5829
        %7987 = vmatpush.bf16.msra.mxu0 %v5821
        %7988 = vmatmul.bf16.gmra.mxu0 %v2084
        %v7989 = vpop.f32.mrf.mxu0
        %v7990 = vadd.f32 %v7977, %v7989
        %v7991 = vpop.f32.mrf.mxu0
        %7992 = vdwg.mxu0
        %7993 = vmatpush.bf16.msra.mxu0 %v5941
        %7994 = vmatpush.bf16.msra.mxu0 %v5933
        %7995 = vmatpush.bf16.msra.mxu0 %v5925
        %7996 = vmatpush.bf16.msra.mxu0 %v5917
        %7997 = vmatpush.bf16.msra.mxu0 %v5909
        %7998 = vmatpush.bf16.msra.mxu0 %v5901
        %7999 = vmatpush.bf16.msra.mxu0 %v5893
        %8000 = vmatpush.bf16.msra.mxu0 %v5885
        %8001 = vmatmul.bf16.gmra.mxu0 %v2085
        %v8002 = vpop.f32.mrf.mxu0
        %v8003 = vadd.f32 %v7990, %v8002
        %v8004 = vpop.f32.mrf.mxu0
        %8005 = vdwg.mxu0
        %8006 = vmatpush.bf16.msra.mxu0 %v6005
        %8007 = vmatpush.bf16.msra.mxu0 %v5997
        %8008 = vmatpush.bf16.msra.mxu0 %v5989
        %8009 = vmatpush.bf16.msra.mxu0 %v5981
        %8010 = vmatpush.bf16.msra.mxu0 %v5973
        %8011 = vmatpush.bf16.msra.mxu0 %v5965
        %8012 = vmatpush.bf16.msra.mxu0 %v5957
        %8013 = vmatpush.bf16.msra.mxu0 %v5949
        %8014 = vmatmul.bf16.gmra.mxu0 %v2086
        %v8015 = vpop.f32.mrf.mxu0
        %v8016 = vadd.f32 %v8003, %v8015
        %v8017 = vpop.f32.mrf.mxu0
        %8018 = vdwg.mxu0
        %8019 = vmatpush.bf16.msra.mxu0 %v6069
        %8020 = vmatpush.bf16.msra.mxu0 %v6061
        %8021 = vmatpush.bf16.msra.mxu0 %v6053
        %8022 = vmatpush.bf16.msra.mxu0 %v6045
        %8023 = vmatpush.bf16.msra.mxu0 %v6037
        %8024 = vmatpush.bf16.msra.mxu0 %v6029
        %8025 = vmatpush.bf16.msra.mxu0 %v6021
        %8026 = vmatpush.bf16.msra.mxu0 %v6013
        %8027 = vmatmul.bf16.gmra.mxu0 %v2087
        %v8028 = vpop.f32.mrf.mxu0
        %v8029 = vadd.f32 %v8016, %v8028
        %v8030 = vpop.f32.mrf.mxu0
        %8031 = vdwg.mxu0
        %8032 = vmatpush.bf16.msra.mxu0 %v6133
        %8033 = vmatpush.bf16.msra.mxu0 %v6125
        %8034 = vmatpush.bf16.msra.mxu0 %v6117
        %8035 = vmatpush.bf16.msra.mxu0 %v6109
        %8036 = vmatpush.bf16.msra.mxu0 %v6101
        %8037 = vmatpush.bf16.msra.mxu0 %v6093
        %8038 = vmatpush.bf16.msra.mxu0 %v6085
        %8039 = vmatpush.bf16.msra.mxu0 %v6077
        %8040 = vmatmul.bf16.gmra.mxu0 %v2088
        %v8041 = vpop.f32.mrf.mxu0
        %v8042 = vadd.f32 %v8029, %v8041
        %v8043 = vpop.f32.mrf.mxu0
        %8044 = vdwg.mxu0
        %8045 = vmatpush.bf16.msra.mxu0 %v6197
        %8046 = vmatpush.bf16.msra.mxu0 %v6189
        %8047 = vmatpush.bf16.msra.mxu0 %v6181
        %8048 = vmatpush.bf16.msra.mxu0 %v6173
        %8049 = vmatpush.bf16.msra.mxu0 %v6165
        %8050 = vmatpush.bf16.msra.mxu0 %v6157
        %8051 = vmatpush.bf16.msra.mxu0 %v6149
        %8052 = vmatpush.bf16.msra.mxu0 %v6141
        %8053 = vmatmul.bf16.gmra.mxu0 %v2089
        %v8054 = vpop.f32.mrf.mxu0
        %v8055 = vadd.f32 %v8042, %v8054
        %v8056 = vpop.f32.mrf.mxu0
        %8057 = vdwg.mxu0
        %8058 = vmatpush.bf16.msra.mxu0 %v5238
        %8059 = vmatpush.bf16.msra.mxu0 %v5230
        %8060 = vmatpush.bf16.msra.mxu0 %v5222
        %8061 = vmatpush.bf16.msra.mxu0 %v5214
        %8062 = vmatpush.bf16.msra.mxu0 %v5206
        %8063 = vmatpush.bf16.msra.mxu0 %v5198
        %8064 = vmatpush.bf16.msra.mxu0 %v5190
        %8065 = vmatpush.bf16.msra.mxu0 %v5182
        %8066 = vmatmul.bf16.gmra.mxu0 %v2074
        %v8067 = vpop.f32.mrf.mxu0
        %v8068 = vadd.f32 %v2038, %v8067
        %v8069 = vpop.f32.mrf.mxu0
        %8070 = vdwg.mxu0
        %8071 = vmatpush.bf16.msra.mxu0 %v5302
        %8072 = vmatpush.bf16.msra.mxu0 %v5294
        %8073 = vmatpush.bf16.msra.mxu0 %v5286
        %8074 = vmatpush.bf16.msra.mxu0 %v5278
        %8075 = vmatpush.bf16.msra.mxu0 %v5270
        %8076 = vmatpush.bf16.msra.mxu0 %v5262
        %8077 = vmatpush.bf16.msra.mxu0 %v5254
        %8078 = vmatpush.bf16.msra.mxu0 %v5246
        %8079 = vmatmul.bf16.gmra.mxu0 %v2075
        %v8080 = vpop.f32.mrf.mxu0
        %v8081 = vadd.f32 %v8068, %v8080
        %v8082 = vpop.f32.mrf.mxu0
        %8083 = vdwg.mxu0
        %8084 = vmatpush.bf16.msra.mxu0 %v5366
        %8085 = vmatpush.bf16.msra.mxu0 %v5358
        %8086 = vmatpush.bf16.msra.mxu0 %v5350
        %8087 = vmatpush.bf16.msra.mxu0 %v5342
        %8088 = vmatpush.bf16.msra.mxu0 %v5334
        %8089 = vmatpush.bf16.msra.mxu0 %v5326
        %8090 = vmatpush.bf16.msra.mxu0 %v5318
        %8091 = vmatpush.bf16.msra.mxu0 %v5310
        %8092 = vmatmul.bf16.gmra.mxu0 %v2076
        %v8093 = vpop.f32.mrf.mxu0
        %v8094 = vadd.f32 %v8081, %v8093
        %v8095 = vpop.f32.mrf.mxu0
        %8096 = vdwg.mxu0
        %8097 = vmatpush.bf16.msra.mxu0 %v5430
        %8098 = vmatpush.bf16.msra.mxu0 %v5422
        %8099 = vmatpush.bf16.msra.mxu0 %v5414
        %8100 = vmatpush.bf16.msra.mxu0 %v5406
        %8101 = vmatpush.bf16.msra.mxu0 %v5398
        %8102 = vmatpush.bf16.msra.mxu0 %v5390
        %8103 = vmatpush.bf16.msra.mxu0 %v5382
        %8104 = vmatpush.bf16.msra.mxu0 %v5374
        %8105 = vmatmul.bf16.gmra.mxu0 %v2077
        %v8106 = vpop.f32.mrf.mxu0
        %v8107 = vadd.f32 %v8094, %v8106
        %v8108 = vpop.f32.mrf.mxu0
        %8109 = vdwg.mxu0
        %8110 = vmatpush.bf16.msra.mxu0 %v5494
        %8111 = vmatpush.bf16.msra.mxu0 %v5486
        %8112 = vmatpush.bf16.msra.mxu0 %v5478
        %8113 = vmatpush.bf16.msra.mxu0 %v5470
        %8114 = vmatpush.bf16.msra.mxu0 %v5462
        %8115 = vmatpush.bf16.msra.mxu0 %v5454
        %8116 = vmatpush.bf16.msra.mxu0 %v5446
        %8117 = vmatpush.bf16.msra.mxu0 %v5438
        %8118 = vmatmul.bf16.gmra.mxu0 %v2078
        %v8119 = vpop.f32.mrf.mxu0
        %v8120 = vadd.f32 %v8107, %v8119
        %v8121 = vpop.f32.mrf.mxu0
        %8122 = vdwg.mxu0
        %8123 = vmatpush.bf16.msra.mxu0 %v5558
        %8124 = vmatpush.bf16.msra.mxu0 %v5550
        %8125 = vmatpush.bf16.msra.mxu0 %v5542
        %8126 = vmatpush.bf16.msra.mxu0 %v5534
        %8127 = vmatpush.bf16.msra.mxu0 %v5526
        %8128 = vmatpush.bf16.msra.mxu0 %v5518
        %8129 = vmatpush.bf16.msra.mxu0 %v5510
        %8130 = vmatpush.bf16.msra.mxu0 %v5502
        %8131 = vmatmul.bf16.gmra.mxu0 %v2079
        %v8132 = vpop.f32.mrf.mxu0
        %v8133 = vadd.f32 %v8120, %v8132
        %v8134 = vpop.f32.mrf.mxu0
        %8135 = vdwg.mxu0
        %8136 = vmatpush.bf16.msra.mxu0 %v5622
        %8137 = vmatpush.bf16.msra.mxu0 %v5614
        %8138 = vmatpush.bf16.msra.mxu0 %v5606
        %8139 = vmatpush.bf16.msra.mxu0 %v5598
        %8140 = vmatpush.bf16.msra.mxu0 %v5590
        %8141 = vmatpush.bf16.msra.mxu0 %v5582
        %8142 = vmatpush.bf16.msra.mxu0 %v5574
        %8143 = vmatpush.bf16.msra.mxu0 %v5566
        %8144 = vmatmul.bf16.gmra.mxu0 %v2080
        %v8145 = vpop.f32.mrf.mxu0
        %v8146 = vadd.f32 %v8133, %v8145
        %v8147 = vpop.f32.mrf.mxu0
        %8148 = vdwg.mxu0
        %8149 = vmatpush.bf16.msra.mxu0 %v5686
        %8150 = vmatpush.bf16.msra.mxu0 %v5678
        %8151 = vmatpush.bf16.msra.mxu0 %v5670
        %8152 = vmatpush.bf16.msra.mxu0 %v5662
        %8153 = vmatpush.bf16.msra.mxu0 %v5654
        %8154 = vmatpush.bf16.msra.mxu0 %v5646
        %8155 = vmatpush.bf16.msra.mxu0 %v5638
        %8156 = vmatpush.bf16.msra.mxu0 %v5630
        %8157 = vmatmul.bf16.gmra.mxu0 %v2081
        %v8158 = vpop.f32.mrf.mxu0
        %v8159 = vadd.f32 %v8146, %v8158
        %v8160 = vpop.f32.mrf.mxu0
        %8161 = vdwg.mxu0
        %8162 = vmatpush.bf16.msra.mxu0 %v5750
        %8163 = vmatpush.bf16.msra.mxu0 %v5742
        %8164 = vmatpush.bf16.msra.mxu0 %v5734
        %8165 = vmatpush.bf16.msra.mxu0 %v5726
        %8166 = vmatpush.bf16.msra.mxu0 %v5718
        %8167 = vmatpush.bf16.msra.mxu0 %v5710
        %8168 = vmatpush.bf16.msra.mxu0 %v5702
        %8169 = vmatpush.bf16.msra.mxu0 %v5694
        %8170 = vmatmul.bf16.gmra.mxu0 %v2082
        %v8171 = vpop.f32.mrf.mxu0
        %v8172 = vadd.f32 %v8159, %v8171
        %v8173 = vpop.f32.mrf.mxu0
        %8174 = vdwg.mxu0
        %8175 = vmatpush.bf16.msra.mxu0 %v5814
        %8176 = vmatpush.bf16.msra.mxu0 %v5806
        %8177 = vmatpush.bf16.msra.mxu0 %v5798
        %8178 = vmatpush.bf16.msra.mxu0 %v5790
        %8179 = vmatpush.bf16.msra.mxu0 %v5782
        %8180 = vmatpush.bf16.msra.mxu0 %v5774
        %8181 = vmatpush.bf16.msra.mxu0 %v5766
        %8182 = vmatpush.bf16.msra.mxu0 %v5758
        %8183 = vmatmul.bf16.gmra.mxu0 %v2083
        %v8184 = vpop.f32.mrf.mxu0
        %v8185 = vadd.f32 %v8172, %v8184
        %v8186 = vpop.f32.mrf.mxu0
        %8187 = vdwg.mxu0
        %8188 = vmatpush.bf16.msra.mxu0 %v5878
        %8189 = vmatpush.bf16.msra.mxu0 %v5870
        %8190 = vmatpush.bf16.msra.mxu0 %v5862
        %8191 = vmatpush.bf16.msra.mxu0 %v5854
        %8192 = vmatpush.bf16.msra.mxu0 %v5846
        %8193 = vmatpush.bf16.msra.mxu0 %v5838
        %8194 = vmatpush.bf16.msra.mxu0 %v5830
        %8195 = vmatpush.bf16.msra.mxu0 %v5822
        %8196 = vmatmul.bf16.gmra.mxu0 %v2084
        %v8197 = vpop.f32.mrf.mxu0
        %v8198 = vadd.f32 %v8185, %v8197
        %v8199 = vpop.f32.mrf.mxu0
        %8200 = vdwg.mxu0
        %8201 = vmatpush.bf16.msra.mxu0 %v5942
        %8202 = vmatpush.bf16.msra.mxu0 %v5934
        %8203 = vmatpush.bf16.msra.mxu0 %v5926
        %8204 = vmatpush.bf16.msra.mxu0 %v5918
        %8205 = vmatpush.bf16.msra.mxu0 %v5910
        %8206 = vmatpush.bf16.msra.mxu0 %v5902
        %8207 = vmatpush.bf16.msra.mxu0 %v5894
        %8208 = vmatpush.bf16.msra.mxu0 %v5886
        %8209 = vmatmul.bf16.gmra.mxu0 %v2085
        %v8210 = vpop.f32.mrf.mxu0
        %v8211 = vadd.f32 %v8198, %v8210
        %v8212 = vpop.f32.mrf.mxu0
        %8213 = vdwg.mxu0
        %8214 = vmatpush.bf16.msra.mxu0 %v6006
        %8215 = vmatpush.bf16.msra.mxu0 %v5998
        %8216 = vmatpush.bf16.msra.mxu0 %v5990
        %8217 = vmatpush.bf16.msra.mxu0 %v5982
        %8218 = vmatpush.bf16.msra.mxu0 %v5974
        %8219 = vmatpush.bf16.msra.mxu0 %v5966
        %8220 = vmatpush.bf16.msra.mxu0 %v5958
        %8221 = vmatpush.bf16.msra.mxu0 %v5950
        %8222 = vmatmul.bf16.gmra.mxu0 %v2086
        %v8223 = vpop.f32.mrf.mxu0
        %v8224 = vadd.f32 %v8211, %v8223
        %v8225 = vpop.f32.mrf.mxu0
        %8226 = vdwg.mxu0
        %8227 = vmatpush.bf16.msra.mxu0 %v6070
        %8228 = vmatpush.bf16.msra.mxu0 %v6062
        %8229 = vmatpush.bf16.msra.mxu0 %v6054
        %8230 = vmatpush.bf16.msra.mxu0 %v6046
        %8231 = vmatpush.bf16.msra.mxu0 %v6038
        %8232 = vmatpush.bf16.msra.mxu0 %v6030
        %8233 = vmatpush.bf16.msra.mxu0 %v6022
        %8234 = vmatpush.bf16.msra.mxu0 %v6014
        %8235 = vmatmul.bf16.gmra.mxu0 %v2087
        %v8236 = vpop.f32.mrf.mxu0
        %v8237 = vadd.f32 %v8224, %v8236
        %v8238 = vpop.f32.mrf.mxu0
        %8239 = vdwg.mxu0
        %8240 = vmatpush.bf16.msra.mxu0 %v6134
        %8241 = vmatpush.bf16.msra.mxu0 %v6126
        %8242 = vmatpush.bf16.msra.mxu0 %v6118
        %8243 = vmatpush.bf16.msra.mxu0 %v6110
        %8244 = vmatpush.bf16.msra.mxu0 %v6102
        %8245 = vmatpush.bf16.msra.mxu0 %v6094
        %8246 = vmatpush.bf16.msra.mxu0 %v6086
        %8247 = vmatpush.bf16.msra.mxu0 %v6078
        %8248 = vmatmul.bf16.gmra.mxu0 %v2088
        %v8249 = vpop.f32.mrf.mxu0
        %v8250 = vadd.f32 %v8237, %v8249
        %v8251 = vpop.f32.mrf.mxu0
        %8252 = vdwg.mxu0
        %8253 = vmatpush.bf16.msra.mxu0 %v6198
        %8254 = vmatpush.bf16.msra.mxu0 %v6190
        %8255 = vmatpush.bf16.msra.mxu0 %v6182
        %8256 = vmatpush.bf16.msra.mxu0 %v6174
        %8257 = vmatpush.bf16.msra.mxu0 %v6166
        %8258 = vmatpush.bf16.msra.mxu0 %v6158
        %8259 = vmatpush.bf16.msra.mxu0 %v6150
        %8260 = vmatpush.bf16.msra.mxu0 %v6142
        %8261 = vmatmul.bf16.gmra.mxu0 %v2089
        %v8262 = vpop.f32.mrf.mxu0
        %v8263 = vadd.f32 %v8250, %v8262
        %v8264 = vpop.f32.mrf.mxu0
        %8265 = vdwg.mxu0
        %8266 = vmatpush.bf16.msra.mxu0 %v5239
        %8267 = vmatpush.bf16.msra.mxu0 %v5231
        %8268 = vmatpush.bf16.msra.mxu0 %v5223
        %8269 = vmatpush.bf16.msra.mxu0 %v5215
        %8270 = vmatpush.bf16.msra.mxu0 %v5207
        %8271 = vmatpush.bf16.msra.mxu0 %v5199
        %8272 = vmatpush.bf16.msra.mxu0 %v5191
        %8273 = vmatpush.bf16.msra.mxu0 %v5183
        %8274 = vmatmul.bf16.gmra.mxu0 %v2074
        %v8275 = vpop.f32.mrf.mxu0
        %v8276 = vadd.f32 %v2039, %v8275
        %v8277 = vpop.f32.mrf.mxu0
        %8278 = vdwg.mxu0
        %8279 = vmatpush.bf16.msra.mxu0 %v5303
        %8280 = vmatpush.bf16.msra.mxu0 %v5295
        %8281 = vmatpush.bf16.msra.mxu0 %v5287
        %8282 = vmatpush.bf16.msra.mxu0 %v5279
        %8283 = vmatpush.bf16.msra.mxu0 %v5271
        %8284 = vmatpush.bf16.msra.mxu0 %v5263
        %8285 = vmatpush.bf16.msra.mxu0 %v5255
        %8286 = vmatpush.bf16.msra.mxu0 %v5247
        %8287 = vmatmul.bf16.gmra.mxu0 %v2075
        %v8288 = vpop.f32.mrf.mxu0
        %v8289 = vadd.f32 %v8276, %v8288
        %v8290 = vpop.f32.mrf.mxu0
        %8291 = vdwg.mxu0
        %8292 = vmatpush.bf16.msra.mxu0 %v5367
        %8293 = vmatpush.bf16.msra.mxu0 %v5359
        %8294 = vmatpush.bf16.msra.mxu0 %v5351
        %8295 = vmatpush.bf16.msra.mxu0 %v5343
        %8296 = vmatpush.bf16.msra.mxu0 %v5335
        %8297 = vmatpush.bf16.msra.mxu0 %v5327
        %8298 = vmatpush.bf16.msra.mxu0 %v5319
        %8299 = vmatpush.bf16.msra.mxu0 %v5311
        %8300 = vmatmul.bf16.gmra.mxu0 %v2076
        %v8301 = vpop.f32.mrf.mxu0
        %v8302 = vadd.f32 %v8289, %v8301
        %v8303 = vpop.f32.mrf.mxu0
        %8304 = vdwg.mxu0
        %8305 = vmatpush.bf16.msra.mxu0 %v5431
        %8306 = vmatpush.bf16.msra.mxu0 %v5423
        %8307 = vmatpush.bf16.msra.mxu0 %v5415
        %8308 = vmatpush.bf16.msra.mxu0 %v5407
        %8309 = vmatpush.bf16.msra.mxu0 %v5399
        %8310 = vmatpush.bf16.msra.mxu0 %v5391
        %8311 = vmatpush.bf16.msra.mxu0 %v5383
        %8312 = vmatpush.bf16.msra.mxu0 %v5375
        %8313 = vmatmul.bf16.gmra.mxu0 %v2077
        %v8314 = vpop.f32.mrf.mxu0
        %v8315 = vadd.f32 %v8302, %v8314
        %v8316 = vpop.f32.mrf.mxu0
        %8317 = vdwg.mxu0
        %8318 = vmatpush.bf16.msra.mxu0 %v5495
        %8319 = vmatpush.bf16.msra.mxu0 %v5487
        %8320 = vmatpush.bf16.msra.mxu0 %v5479
        %8321 = vmatpush.bf16.msra.mxu0 %v5471
        %8322 = vmatpush.bf16.msra.mxu0 %v5463
        %8323 = vmatpush.bf16.msra.mxu0 %v5455
        %8324 = vmatpush.bf16.msra.mxu0 %v5447
        %8325 = vmatpush.bf16.msra.mxu0 %v5439
        %8326 = vmatmul.bf16.gmra.mxu0 %v2078
        %v8327 = vpop.f32.mrf.mxu0
        %v8328 = vadd.f32 %v8315, %v8327
        %v8329 = vpop.f32.mrf.mxu0
        %8330 = vdwg.mxu0
        %8331 = vmatpush.bf16.msra.mxu0 %v5559
        %8332 = vmatpush.bf16.msra.mxu0 %v5551
        %8333 = vmatpush.bf16.msra.mxu0 %v5543
        %8334 = vmatpush.bf16.msra.mxu0 %v5535
        %8335 = vmatpush.bf16.msra.mxu0 %v5527
        %8336 = vmatpush.bf16.msra.mxu0 %v5519
        %8337 = vmatpush.bf16.msra.mxu0 %v5511
        %8338 = vmatpush.bf16.msra.mxu0 %v5503
        %8339 = vmatmul.bf16.gmra.mxu0 %v2079
        %v8340 = vpop.f32.mrf.mxu0
        %v8341 = vadd.f32 %v8328, %v8340
        %v8342 = vpop.f32.mrf.mxu0
        %8343 = vdwg.mxu0
        %8344 = vmatpush.bf16.msra.mxu0 %v5623
        %8345 = vmatpush.bf16.msra.mxu0 %v5615
        %8346 = vmatpush.bf16.msra.mxu0 %v5607
        %8347 = vmatpush.bf16.msra.mxu0 %v5599
        %8348 = vmatpush.bf16.msra.mxu0 %v5591
        %8349 = vmatpush.bf16.msra.mxu0 %v5583
        %8350 = vmatpush.bf16.msra.mxu0 %v5575
        %8351 = vmatpush.bf16.msra.mxu0 %v5567
        %8352 = vmatmul.bf16.gmra.mxu0 %v2080
        %v8353 = vpop.f32.mrf.mxu0
        %v8354 = vadd.f32 %v8341, %v8353
        %v8355 = vpop.f32.mrf.mxu0
        %8356 = vdwg.mxu0
        %8357 = vmatpush.bf16.msra.mxu0 %v5687
        %8358 = vmatpush.bf16.msra.mxu0 %v5679
        %8359 = vmatpush.bf16.msra.mxu0 %v5671
        %8360 = vmatpush.bf16.msra.mxu0 %v5663
        %8361 = vmatpush.bf16.msra.mxu0 %v5655
        %8362 = vmatpush.bf16.msra.mxu0 %v5647
        %8363 = vmatpush.bf16.msra.mxu0 %v5639
        %8364 = vmatpush.bf16.msra.mxu0 %v5631
        %8365 = vmatmul.bf16.gmra.mxu0 %v2081
        %v8366 = vpop.f32.mrf.mxu0
        %v8367 = vadd.f32 %v8354, %v8366
        %v8368 = vpop.f32.mrf.mxu0
        %8369 = vdwg.mxu0
        %8370 = vmatpush.bf16.msra.mxu0 %v5751
        %8371 = vmatpush.bf16.msra.mxu0 %v5743
        %8372 = vmatpush.bf16.msra.mxu0 %v5735
        %8373 = vmatpush.bf16.msra.mxu0 %v5727
        %8374 = vmatpush.bf16.msra.mxu0 %v5719
        %8375 = vmatpush.bf16.msra.mxu0 %v5711
        %8376 = vmatpush.bf16.msra.mxu0 %v5703
        %8377 = vmatpush.bf16.msra.mxu0 %v5695
        %8378 = vmatmul.bf16.gmra.mxu0 %v2082
        %v8379 = vpop.f32.mrf.mxu0
        %v8380 = vadd.f32 %v8367, %v8379
        %v8381 = vpop.f32.mrf.mxu0
        %8382 = vdwg.mxu0
        %8383 = vmatpush.bf16.msra.mxu0 %v5815
        %8384 = vmatpush.bf16.msra.mxu0 %v5807
        %8385 = vmatpush.bf16.msra.mxu0 %v5799
        %8386 = vmatpush.bf16.msra.mxu0 %v5791
        %8387 = vmatpush.bf16.msra.mxu0 %v5783
        %8388 = vmatpush.bf16.msra.mxu0 %v5775
        %8389 = vmatpush.bf16.msra.mxu0 %v5767
        %8390 = vmatpush.bf16.msra.mxu0 %v5759
        %8391 = vmatmul.bf16.gmra.mxu0 %v2083
        %v8392 = vpop.f32.mrf.mxu0
        %v8393 = vadd.f32 %v8380, %v8392
        %v8394 = vpop.f32.mrf.mxu0
        %8395 = vdwg.mxu0
        %8396 = vmatpush.bf16.msra.mxu0 %v5879
        %8397 = vmatpush.bf16.msra.mxu0 %v5871
        %8398 = vmatpush.bf16.msra.mxu0 %v5863
        %8399 = vmatpush.bf16.msra.mxu0 %v5855
        %8400 = vmatpush.bf16.msra.mxu0 %v5847
        %8401 = vmatpush.bf16.msra.mxu0 %v5839
        %8402 = vmatpush.bf16.msra.mxu0 %v5831
        %8403 = vmatpush.bf16.msra.mxu0 %v5823
        %8404 = vmatmul.bf16.gmra.mxu0 %v2084
        %v8405 = vpop.f32.mrf.mxu0
        %v8406 = vadd.f32 %v8393, %v8405
        %v8407 = vpop.f32.mrf.mxu0
        %8408 = vdwg.mxu0
        %8409 = vmatpush.bf16.msra.mxu0 %v5943
        %8410 = vmatpush.bf16.msra.mxu0 %v5935
        %8411 = vmatpush.bf16.msra.mxu0 %v5927
        %8412 = vmatpush.bf16.msra.mxu0 %v5919
        %8413 = vmatpush.bf16.msra.mxu0 %v5911
        %8414 = vmatpush.bf16.msra.mxu0 %v5903
        %8415 = vmatpush.bf16.msra.mxu0 %v5895
        %8416 = vmatpush.bf16.msra.mxu0 %v5887
        %8417 = vmatmul.bf16.gmra.mxu0 %v2085
        %v8418 = vpop.f32.mrf.mxu0
        %v8419 = vadd.f32 %v8406, %v8418
        %v8420 = vpop.f32.mrf.mxu0
        %8421 = vdwg.mxu0
        %8422 = vmatpush.bf16.msra.mxu0 %v6007
        %8423 = vmatpush.bf16.msra.mxu0 %v5999
        %8424 = vmatpush.bf16.msra.mxu0 %v5991
        %8425 = vmatpush.bf16.msra.mxu0 %v5983
        %8426 = vmatpush.bf16.msra.mxu0 %v5975
        %8427 = vmatpush.bf16.msra.mxu0 %v5967
        %8428 = vmatpush.bf16.msra.mxu0 %v5959
        %8429 = vmatpush.bf16.msra.mxu0 %v5951
        %8430 = vmatmul.bf16.gmra.mxu0 %v2086
        %v8431 = vpop.f32.mrf.mxu0
        %v8432 = vadd.f32 %v8419, %v8431
        %v8433 = vpop.f32.mrf.mxu0
        %8434 = vdwg.mxu0
        %8435 = vmatpush.bf16.msra.mxu0 %v6071
        %8436 = vmatpush.bf16.msra.mxu0 %v6063
        %8437 = vmatpush.bf16.msra.mxu0 %v6055
        %8438 = vmatpush.bf16.msra.mxu0 %v6047
        %8439 = vmatpush.bf16.msra.mxu0 %v6039
        %8440 = vmatpush.bf16.msra.mxu0 %v6031
        %8441 = vmatpush.bf16.msra.mxu0 %v6023
        %8442 = vmatpush.bf16.msra.mxu0 %v6015
        %8443 = vmatmul.bf16.gmra.mxu0 %v2087
        %v8444 = vpop.f32.mrf.mxu0
        %v8445 = vadd.f32 %v8432, %v8444
        %v8446 = vpop.f32.mrf.mxu0
        %8447 = vdwg.mxu0
        %8448 = vmatpush.bf16.msra.mxu0 %v6135
        %8449 = vmatpush.bf16.msra.mxu0 %v6127
        %8450 = vmatpush.bf16.msra.mxu0 %v6119
        %8451 = vmatpush.bf16.msra.mxu0 %v6111
        %8452 = vmatpush.bf16.msra.mxu0 %v6103
        %8453 = vmatpush.bf16.msra.mxu0 %v6095
        %8454 = vmatpush.bf16.msra.mxu0 %v6087
        %8455 = vmatpush.bf16.msra.mxu0 %v6079
        %8456 = vmatmul.bf16.gmra.mxu0 %v2088
        %v8457 = vpop.f32.mrf.mxu0
        %v8458 = vadd.f32 %v8445, %v8457
        %v8459 = vpop.f32.mrf.mxu0
        %8460 = vdwg.mxu0
        %8461 = vmatpush.bf16.msra.mxu0 %v6199
        %8462 = vmatpush.bf16.msra.mxu0 %v6191
        %8463 = vmatpush.bf16.msra.mxu0 %v6183
        %8464 = vmatpush.bf16.msra.mxu0 %v6175
        %8465 = vmatpush.bf16.msra.mxu0 %v6167
        %8466 = vmatpush.bf16.msra.mxu0 %v6159
        %8467 = vmatpush.bf16.msra.mxu0 %v6151
        %8468 = vmatpush.bf16.msra.mxu0 %v6143
        %8469 = vmatmul.bf16.gmra.mxu0 %v2089
        %v8470 = vpop.f32.mrf.mxu0
        %v8471 = vadd.f32 %v8458, %v8470
        %v8472 = vpop.f32.mrf.mxu0
        %8473 = vdwg.mxu0
        %8474 = vmatpush.bf16.msra.mxu0 %v5240
        %8475 = vmatpush.bf16.msra.mxu0 %v5232
        %8476 = vmatpush.bf16.msra.mxu0 %v5224
        %8477 = vmatpush.bf16.msra.mxu0 %v5216
        %8478 = vmatpush.bf16.msra.mxu0 %v5208
        %8479 = vmatpush.bf16.msra.mxu0 %v5200
        %8480 = vmatpush.bf16.msra.mxu0 %v5192
        %8481 = vmatpush.bf16.msra.mxu0 %v5184
        %8482 = vmatmul.bf16.gmra.mxu0 %v2074
        %v8483 = vpop.f32.mrf.mxu0
        %v8484 = vadd.f32 %v2040, %v8483
        %v8485 = vpop.f32.mrf.mxu0
        %8486 = vdwg.mxu0
        %8487 = vmatpush.bf16.msra.mxu0 %v5304
        %8488 = vmatpush.bf16.msra.mxu0 %v5296
        %8489 = vmatpush.bf16.msra.mxu0 %v5288
        %8490 = vmatpush.bf16.msra.mxu0 %v5280
        %8491 = vmatpush.bf16.msra.mxu0 %v5272
        %8492 = vmatpush.bf16.msra.mxu0 %v5264
        %8493 = vmatpush.bf16.msra.mxu0 %v5256
        %8494 = vmatpush.bf16.msra.mxu0 %v5248
        %8495 = vmatmul.bf16.gmra.mxu0 %v2075
        %v8496 = vpop.f32.mrf.mxu0
        %v8497 = vadd.f32 %v8484, %v8496
        %v8498 = vpop.f32.mrf.mxu0
        %8499 = vdwg.mxu0
        %8500 = vmatpush.bf16.msra.mxu0 %v5368
        %8501 = vmatpush.bf16.msra.mxu0 %v5360
        %8502 = vmatpush.bf16.msra.mxu0 %v5352
        %8503 = vmatpush.bf16.msra.mxu0 %v5344
        %8504 = vmatpush.bf16.msra.mxu0 %v5336
        %8505 = vmatpush.bf16.msra.mxu0 %v5328
        %8506 = vmatpush.bf16.msra.mxu0 %v5320
        %8507 = vmatpush.bf16.msra.mxu0 %v5312
        %8508 = vmatmul.bf16.gmra.mxu0 %v2076
        %v8509 = vpop.f32.mrf.mxu0
        %v8510 = vadd.f32 %v8497, %v8509
        %v8511 = vpop.f32.mrf.mxu0
        %8512 = vdwg.mxu0
        %8513 = vmatpush.bf16.msra.mxu0 %v5432
        %8514 = vmatpush.bf16.msra.mxu0 %v5424
        %8515 = vmatpush.bf16.msra.mxu0 %v5416
        %8516 = vmatpush.bf16.msra.mxu0 %v5408
        %8517 = vmatpush.bf16.msra.mxu0 %v5400
        %8518 = vmatpush.bf16.msra.mxu0 %v5392
        %8519 = vmatpush.bf16.msra.mxu0 %v5384
        %8520 = vmatpush.bf16.msra.mxu0 %v5376
        %8521 = vmatmul.bf16.gmra.mxu0 %v2077
        %v8522 = vpop.f32.mrf.mxu0
        %v8523 = vadd.f32 %v8510, %v8522
        %v8524 = vpop.f32.mrf.mxu0
        %8525 = vdwg.mxu0
        %8526 = vmatpush.bf16.msra.mxu0 %v5496
        %8527 = vmatpush.bf16.msra.mxu0 %v5488
        %8528 = vmatpush.bf16.msra.mxu0 %v5480
        %8529 = vmatpush.bf16.msra.mxu0 %v5472
        %8530 = vmatpush.bf16.msra.mxu0 %v5464
        %8531 = vmatpush.bf16.msra.mxu0 %v5456
        %8532 = vmatpush.bf16.msra.mxu0 %v5448
        %8533 = vmatpush.bf16.msra.mxu0 %v5440
        %8534 = vmatmul.bf16.gmra.mxu0 %v2078
        %v8535 = vpop.f32.mrf.mxu0
        %v8536 = vadd.f32 %v8523, %v8535
        %v8537 = vpop.f32.mrf.mxu0
        %8538 = vdwg.mxu0
        %8539 = vmatpush.bf16.msra.mxu0 %v5560
        %8540 = vmatpush.bf16.msra.mxu0 %v5552
        %8541 = vmatpush.bf16.msra.mxu0 %v5544
        %8542 = vmatpush.bf16.msra.mxu0 %v5536
        %8543 = vmatpush.bf16.msra.mxu0 %v5528
        %8544 = vmatpush.bf16.msra.mxu0 %v5520
        %8545 = vmatpush.bf16.msra.mxu0 %v5512
        %8546 = vmatpush.bf16.msra.mxu0 %v5504
        %8547 = vmatmul.bf16.gmra.mxu0 %v2079
        %v8548 = vpop.f32.mrf.mxu0
        %v8549 = vadd.f32 %v8536, %v8548
        %v8550 = vpop.f32.mrf.mxu0
        %8551 = vdwg.mxu0
        %8552 = vmatpush.bf16.msra.mxu0 %v5624
        %8553 = vmatpush.bf16.msra.mxu0 %v5616
        %8554 = vmatpush.bf16.msra.mxu0 %v5608
        %8555 = vmatpush.bf16.msra.mxu0 %v5600
        %8556 = vmatpush.bf16.msra.mxu0 %v5592
        %8557 = vmatpush.bf16.msra.mxu0 %v5584
        %8558 = vmatpush.bf16.msra.mxu0 %v5576
        %8559 = vmatpush.bf16.msra.mxu0 %v5568
        %8560 = vmatmul.bf16.gmra.mxu0 %v2080
        %v8561 = vpop.f32.mrf.mxu0
        %v8562 = vadd.f32 %v8549, %v8561
        %v8563 = vpop.f32.mrf.mxu0
        %8564 = vdwg.mxu0
        %8565 = vmatpush.bf16.msra.mxu0 %v5688
        %8566 = vmatpush.bf16.msra.mxu0 %v5680
        %8567 = vmatpush.bf16.msra.mxu0 %v5672
        %8568 = vmatpush.bf16.msra.mxu0 %v5664
        %8569 = vmatpush.bf16.msra.mxu0 %v5656
        %8570 = vmatpush.bf16.msra.mxu0 %v5648
        %8571 = vmatpush.bf16.msra.mxu0 %v5640
        %8572 = vmatpush.bf16.msra.mxu0 %v5632
        %8573 = vmatmul.bf16.gmra.mxu0 %v2081
        %v8574 = vpop.f32.mrf.mxu0
        %v8575 = vadd.f32 %v8562, %v8574
        %v8576 = vpop.f32.mrf.mxu0
        %8577 = vdwg.mxu0
        %8578 = vmatpush.bf16.msra.mxu0 %v5752
        %8579 = vmatpush.bf16.msra.mxu0 %v5744
        %8580 = vmatpush.bf16.msra.mxu0 %v5736
        %8581 = vmatpush.bf16.msra.mxu0 %v5728
        %8582 = vmatpush.bf16.msra.mxu0 %v5720
        %8583 = vmatpush.bf16.msra.mxu0 %v5712
        %8584 = vmatpush.bf16.msra.mxu0 %v5704
        %8585 = vmatpush.bf16.msra.mxu0 %v5696
        %8586 = vmatmul.bf16.gmra.mxu0 %v2082
        %v8587 = vpop.f32.mrf.mxu0
        %v8588 = vadd.f32 %v8575, %v8587
        %v8589 = vpop.f32.mrf.mxu0
        %8590 = vdwg.mxu0
        %8591 = vmatpush.bf16.msra.mxu0 %v5816
        %8592 = vmatpush.bf16.msra.mxu0 %v5808
        %8593 = vmatpush.bf16.msra.mxu0 %v5800
        %8594 = vmatpush.bf16.msra.mxu0 %v5792
        %8595 = vmatpush.bf16.msra.mxu0 %v5784
        %8596 = vmatpush.bf16.msra.mxu0 %v5776
        %8597 = vmatpush.bf16.msra.mxu0 %v5768
        %8598 = vmatpush.bf16.msra.mxu0 %v5760
        %8599 = vmatmul.bf16.gmra.mxu0 %v2083
        %v8600 = vpop.f32.mrf.mxu0
        %v8601 = vadd.f32 %v8588, %v8600
        %v8602 = vpop.f32.mrf.mxu0
        %8603 = vdwg.mxu0
        %8604 = vmatpush.bf16.msra.mxu0 %v5880
        %8605 = vmatpush.bf16.msra.mxu0 %v5872
        %8606 = vmatpush.bf16.msra.mxu0 %v5864
        %8607 = vmatpush.bf16.msra.mxu0 %v5856
        %8608 = vmatpush.bf16.msra.mxu0 %v5848
        %8609 = vmatpush.bf16.msra.mxu0 %v5840
        %8610 = vmatpush.bf16.msra.mxu0 %v5832
        %8611 = vmatpush.bf16.msra.mxu0 %v5824
        %8612 = vmatmul.bf16.gmra.mxu0 %v2084
        %v8613 = vpop.f32.mrf.mxu0
        %v8614 = vadd.f32 %v8601, %v8613
        %v8615 = vpop.f32.mrf.mxu0
        %8616 = vdwg.mxu0
        %8617 = vmatpush.bf16.msra.mxu0 %v5944
        %8618 = vmatpush.bf16.msra.mxu0 %v5936
        %8619 = vmatpush.bf16.msra.mxu0 %v5928
        %8620 = vmatpush.bf16.msra.mxu0 %v5920
        %8621 = vmatpush.bf16.msra.mxu0 %v5912
        %8622 = vmatpush.bf16.msra.mxu0 %v5904
        %8623 = vmatpush.bf16.msra.mxu0 %v5896
        %8624 = vmatpush.bf16.msra.mxu0 %v5888
        %8625 = vmatmul.bf16.gmra.mxu0 %v2085
        %v8626 = vpop.f32.mrf.mxu0
        %v8627 = vadd.f32 %v8614, %v8626
        %v8628 = vpop.f32.mrf.mxu0
        %8629 = vdwg.mxu0
        %8630 = vmatpush.bf16.msra.mxu0 %v6008
        %8631 = vmatpush.bf16.msra.mxu0 %v6000
        %8632 = vmatpush.bf16.msra.mxu0 %v5992
        %8633 = vmatpush.bf16.msra.mxu0 %v5984
        %8634 = vmatpush.bf16.msra.mxu0 %v5976
        %8635 = vmatpush.bf16.msra.mxu0 %v5968
        %8636 = vmatpush.bf16.msra.mxu0 %v5960
        %8637 = vmatpush.bf16.msra.mxu0 %v5952
        %8638 = vmatmul.bf16.gmra.mxu0 %v2086
        %v8639 = vpop.f32.mrf.mxu0
        %v8640 = vadd.f32 %v8627, %v8639
        %v8641 = vpop.f32.mrf.mxu0
        %8642 = vdwg.mxu0
        %8643 = vmatpush.bf16.msra.mxu0 %v6072
        %8644 = vmatpush.bf16.msra.mxu0 %v6064
        %8645 = vmatpush.bf16.msra.mxu0 %v6056
        %8646 = vmatpush.bf16.msra.mxu0 %v6048
        %8647 = vmatpush.bf16.msra.mxu0 %v6040
        %8648 = vmatpush.bf16.msra.mxu0 %v6032
        %8649 = vmatpush.bf16.msra.mxu0 %v6024
        %8650 = vmatpush.bf16.msra.mxu0 %v6016
        %8651 = vmatmul.bf16.gmra.mxu0 %v2087
        %v8652 = vpop.f32.mrf.mxu0
        %v8653 = vadd.f32 %v8640, %v8652
        %v8654 = vpop.f32.mrf.mxu0
        %8655 = vdwg.mxu0
        %8656 = vmatpush.bf16.msra.mxu0 %v6136
        %8657 = vmatpush.bf16.msra.mxu0 %v6128
        %8658 = vmatpush.bf16.msra.mxu0 %v6120
        %8659 = vmatpush.bf16.msra.mxu0 %v6112
        %8660 = vmatpush.bf16.msra.mxu0 %v6104
        %8661 = vmatpush.bf16.msra.mxu0 %v6096
        %8662 = vmatpush.bf16.msra.mxu0 %v6088
        %8663 = vmatpush.bf16.msra.mxu0 %v6080
        %8664 = vmatmul.bf16.gmra.mxu0 %v2088
        %v8665 = vpop.f32.mrf.mxu0
        %v8666 = vadd.f32 %v8653, %v8665
        %v8667 = vpop.f32.mrf.mxu0
        %8668 = vdwg.mxu0
        %8669 = vmatpush.bf16.msra.mxu0 %v6200
        %8670 = vmatpush.bf16.msra.mxu0 %v6192
        %8671 = vmatpush.bf16.msra.mxu0 %v6184
        %8672 = vmatpush.bf16.msra.mxu0 %v6176
        %8673 = vmatpush.bf16.msra.mxu0 %v6168
        %8674 = vmatpush.bf16.msra.mxu0 %v6160
        %8675 = vmatpush.bf16.msra.mxu0 %v6152
        %8676 = vmatpush.bf16.msra.mxu0 %v6144
        %8677 = vmatmul.bf16.gmra.mxu0 %v2089
        %v8678 = vpop.f32.mrf.mxu0
        %v8679 = vadd.f32 %v8666, %v8678
        %v8680 = vpop.f32.mrf.mxu0
        %8681 = vdwg.mxu0
        %8682 = vmatpush.bf16.msra.mxu0 %v5241
        %8683 = vmatpush.bf16.msra.mxu0 %v5233
        %8684 = vmatpush.bf16.msra.mxu0 %v5225
        %8685 = vmatpush.bf16.msra.mxu0 %v5217
        %8686 = vmatpush.bf16.msra.mxu0 %v5209
        %8687 = vmatpush.bf16.msra.mxu0 %v5201
        %8688 = vmatpush.bf16.msra.mxu0 %v5193
        %8689 = vmatpush.bf16.msra.mxu0 %v5185
        %8690 = vmatmul.bf16.gmra.mxu0 %v2074
        %v8691 = vpop.f32.mrf.mxu0
        %v8692 = vadd.f32 %v2041, %v8691
        %v8693 = vpop.f32.mrf.mxu0
        %8694 = vdwg.mxu0
        %8695 = vmatpush.bf16.msra.mxu0 %v5305
        %8696 = vmatpush.bf16.msra.mxu0 %v5297
        %8697 = vmatpush.bf16.msra.mxu0 %v5289
        %8698 = vmatpush.bf16.msra.mxu0 %v5281
        %8699 = vmatpush.bf16.msra.mxu0 %v5273
        %8700 = vmatpush.bf16.msra.mxu0 %v5265
        %8701 = vmatpush.bf16.msra.mxu0 %v5257
        %8702 = vmatpush.bf16.msra.mxu0 %v5249
        %8703 = vmatmul.bf16.gmra.mxu0 %v2075
        %v8704 = vpop.f32.mrf.mxu0
        %v8705 = vadd.f32 %v8692, %v8704
        %v8706 = vpop.f32.mrf.mxu0
        %8707 = vdwg.mxu0
        %8708 = vmatpush.bf16.msra.mxu0 %v5369
        %8709 = vmatpush.bf16.msra.mxu0 %v5361
        %8710 = vmatpush.bf16.msra.mxu0 %v5353
        %8711 = vmatpush.bf16.msra.mxu0 %v5345
        %8712 = vmatpush.bf16.msra.mxu0 %v5337
        %8713 = vmatpush.bf16.msra.mxu0 %v5329
        %8714 = vmatpush.bf16.msra.mxu0 %v5321
        %8715 = vmatpush.bf16.msra.mxu0 %v5313
        %8716 = vmatmul.bf16.gmra.mxu0 %v2076
        %v8717 = vpop.f32.mrf.mxu0
        %v8718 = vadd.f32 %v8705, %v8717
        %v8719 = vpop.f32.mrf.mxu0
        %8720 = vdwg.mxu0
        %8721 = vmatpush.bf16.msra.mxu0 %v5433
        %8722 = vmatpush.bf16.msra.mxu0 %v5425
        %8723 = vmatpush.bf16.msra.mxu0 %v5417
        %8724 = vmatpush.bf16.msra.mxu0 %v5409
        %8725 = vmatpush.bf16.msra.mxu0 %v5401
        %8726 = vmatpush.bf16.msra.mxu0 %v5393
        %8727 = vmatpush.bf16.msra.mxu0 %v5385
        %8728 = vmatpush.bf16.msra.mxu0 %v5377
        %8729 = vmatmul.bf16.gmra.mxu0 %v2077
        %v8730 = vpop.f32.mrf.mxu0
        %v8731 = vadd.f32 %v8718, %v8730
        %v8732 = vpop.f32.mrf.mxu0
        %8733 = vdwg.mxu0
        %8734 = vmatpush.bf16.msra.mxu0 %v5497
        %8735 = vmatpush.bf16.msra.mxu0 %v5489
        %8736 = vmatpush.bf16.msra.mxu0 %v5481
        %8737 = vmatpush.bf16.msra.mxu0 %v5473
        %8738 = vmatpush.bf16.msra.mxu0 %v5465
        %8739 = vmatpush.bf16.msra.mxu0 %v5457
        %8740 = vmatpush.bf16.msra.mxu0 %v5449
        %8741 = vmatpush.bf16.msra.mxu0 %v5441
        %8742 = vmatmul.bf16.gmra.mxu0 %v2078
        %v8743 = vpop.f32.mrf.mxu0
        %v8744 = vadd.f32 %v8731, %v8743
        %v8745 = vpop.f32.mrf.mxu0
        %8746 = vdwg.mxu0
        %8747 = vmatpush.bf16.msra.mxu0 %v5561
        %8748 = vmatpush.bf16.msra.mxu0 %v5553
        %8749 = vmatpush.bf16.msra.mxu0 %v5545
        %8750 = vmatpush.bf16.msra.mxu0 %v5537
        %8751 = vmatpush.bf16.msra.mxu0 %v5529
        %8752 = vmatpush.bf16.msra.mxu0 %v5521
        %8753 = vmatpush.bf16.msra.mxu0 %v5513
        %8754 = vmatpush.bf16.msra.mxu0 %v5505
        %8755 = vmatmul.bf16.gmra.mxu0 %v2079
        %v8756 = vpop.f32.mrf.mxu0
        %v8757 = vadd.f32 %v8744, %v8756
        %v8758 = vpop.f32.mrf.mxu0
        %8759 = vdwg.mxu0
        %8760 = vmatpush.bf16.msra.mxu0 %v5625
        %8761 = vmatpush.bf16.msra.mxu0 %v5617
        %8762 = vmatpush.bf16.msra.mxu0 %v5609
        %8763 = vmatpush.bf16.msra.mxu0 %v5601
        %8764 = vmatpush.bf16.msra.mxu0 %v5593
        %8765 = vmatpush.bf16.msra.mxu0 %v5585
        %8766 = vmatpush.bf16.msra.mxu0 %v5577
        %8767 = vmatpush.bf16.msra.mxu0 %v5569
        %8768 = vmatmul.bf16.gmra.mxu0 %v2080
        %v8769 = vpop.f32.mrf.mxu0
        %v8770 = vadd.f32 %v8757, %v8769
        %v8771 = vpop.f32.mrf.mxu0
        %8772 = vdwg.mxu0
        %8773 = vmatpush.bf16.msra.mxu0 %v5689
        %8774 = vmatpush.bf16.msra.mxu0 %v5681
        %8775 = vmatpush.bf16.msra.mxu0 %v5673
        %8776 = vmatpush.bf16.msra.mxu0 %v5665
        %8777 = vmatpush.bf16.msra.mxu0 %v5657
        %8778 = vmatpush.bf16.msra.mxu0 %v5649
        %8779 = vmatpush.bf16.msra.mxu0 %v5641
        %8780 = vmatpush.bf16.msra.mxu0 %v5633
        %8781 = vmatmul.bf16.gmra.mxu0 %v2081
        %v8782 = vpop.f32.mrf.mxu0
        %v8783 = vadd.f32 %v8770, %v8782
        %v8784 = vpop.f32.mrf.mxu0
        %8785 = vdwg.mxu0
        %8786 = vmatpush.bf16.msra.mxu0 %v5753
        %8787 = vmatpush.bf16.msra.mxu0 %v5745
        %8788 = vmatpush.bf16.msra.mxu0 %v5737
        %8789 = vmatpush.bf16.msra.mxu0 %v5729
        %8790 = vmatpush.bf16.msra.mxu0 %v5721
        %8791 = vmatpush.bf16.msra.mxu0 %v5713
        %8792 = vmatpush.bf16.msra.mxu0 %v5705
        %8793 = vmatpush.bf16.msra.mxu0 %v5697
        %8794 = vmatmul.bf16.gmra.mxu0 %v2082
        %v8795 = vpop.f32.mrf.mxu0
        %v8796 = vadd.f32 %v8783, %v8795
        %v8797 = vpop.f32.mrf.mxu0
        %8798 = vdwg.mxu0
        %8799 = vmatpush.bf16.msra.mxu0 %v5817
        %8800 = vmatpush.bf16.msra.mxu0 %v5809
        %8801 = vmatpush.bf16.msra.mxu0 %v5801
        %8802 = vmatpush.bf16.msra.mxu0 %v5793
        %8803 = vmatpush.bf16.msra.mxu0 %v5785
        %8804 = vmatpush.bf16.msra.mxu0 %v5777
        %8805 = vmatpush.bf16.msra.mxu0 %v5769
        %8806 = vmatpush.bf16.msra.mxu0 %v5761
        %8807 = vmatmul.bf16.gmra.mxu0 %v2083
        %v8808 = vpop.f32.mrf.mxu0
        %v8809 = vadd.f32 %v8796, %v8808
        %v8810 = vpop.f32.mrf.mxu0
        %8811 = vdwg.mxu0
        %8812 = vmatpush.bf16.msra.mxu0 %v5881
        %8813 = vmatpush.bf16.msra.mxu0 %v5873
        %8814 = vmatpush.bf16.msra.mxu0 %v5865
        %8815 = vmatpush.bf16.msra.mxu0 %v5857
        %8816 = vmatpush.bf16.msra.mxu0 %v5849
        %8817 = vmatpush.bf16.msra.mxu0 %v5841
        %8818 = vmatpush.bf16.msra.mxu0 %v5833
        %8819 = vmatpush.bf16.msra.mxu0 %v5825
        %8820 = vmatmul.bf16.gmra.mxu0 %v2084
        %v8821 = vpop.f32.mrf.mxu0
        %v8822 = vadd.f32 %v8809, %v8821
        %v8823 = vpop.f32.mrf.mxu0
        %8824 = vdwg.mxu0
        %8825 = vmatpush.bf16.msra.mxu0 %v5945
        %8826 = vmatpush.bf16.msra.mxu0 %v5937
        %8827 = vmatpush.bf16.msra.mxu0 %v5929
        %8828 = vmatpush.bf16.msra.mxu0 %v5921
        %8829 = vmatpush.bf16.msra.mxu0 %v5913
        %8830 = vmatpush.bf16.msra.mxu0 %v5905
        %8831 = vmatpush.bf16.msra.mxu0 %v5897
        %8832 = vmatpush.bf16.msra.mxu0 %v5889
        %8833 = vmatmul.bf16.gmra.mxu0 %v2085
        %v8834 = vpop.f32.mrf.mxu0
        %v8835 = vadd.f32 %v8822, %v8834
        %v8836 = vpop.f32.mrf.mxu0
        %8837 = vdwg.mxu0
        %8838 = vmatpush.bf16.msra.mxu0 %v6009
        %8839 = vmatpush.bf16.msra.mxu0 %v6001
        %8840 = vmatpush.bf16.msra.mxu0 %v5993
        %8841 = vmatpush.bf16.msra.mxu0 %v5985
        %8842 = vmatpush.bf16.msra.mxu0 %v5977
        %8843 = vmatpush.bf16.msra.mxu0 %v5969
        %8844 = vmatpush.bf16.msra.mxu0 %v5961
        %8845 = vmatpush.bf16.msra.mxu0 %v5953
        %8846 = vmatmul.bf16.gmra.mxu0 %v2086
        %v8847 = vpop.f32.mrf.mxu0
        %v8848 = vadd.f32 %v8835, %v8847
        %v8849 = vpop.f32.mrf.mxu0
        %8850 = vdwg.mxu0
        %8851 = vmatpush.bf16.msra.mxu0 %v6073
        %8852 = vmatpush.bf16.msra.mxu0 %v6065
        %8853 = vmatpush.bf16.msra.mxu0 %v6057
        %8854 = vmatpush.bf16.msra.mxu0 %v6049
        %8855 = vmatpush.bf16.msra.mxu0 %v6041
        %8856 = vmatpush.bf16.msra.mxu0 %v6033
        %8857 = vmatpush.bf16.msra.mxu0 %v6025
        %8858 = vmatpush.bf16.msra.mxu0 %v6017
        %8859 = vmatmul.bf16.gmra.mxu0 %v2087
        %v8860 = vpop.f32.mrf.mxu0
        %v8861 = vadd.f32 %v8848, %v8860
        %v8862 = vpop.f32.mrf.mxu0
        %8863 = vdwg.mxu0
        %8864 = vmatpush.bf16.msra.mxu0 %v6137
        %8865 = vmatpush.bf16.msra.mxu0 %v6129
        %8866 = vmatpush.bf16.msra.mxu0 %v6121
        %8867 = vmatpush.bf16.msra.mxu0 %v6113
        %8868 = vmatpush.bf16.msra.mxu0 %v6105
        %8869 = vmatpush.bf16.msra.mxu0 %v6097
        %8870 = vmatpush.bf16.msra.mxu0 %v6089
        %8871 = vmatpush.bf16.msra.mxu0 %v6081
        %8872 = vmatmul.bf16.gmra.mxu0 %v2088
        %v8873 = vpop.f32.mrf.mxu0
        %v8874 = vadd.f32 %v8861, %v8873
        %v8875 = vpop.f32.mrf.mxu0
        %8876 = vdwg.mxu0
        %8877 = vmatpush.bf16.msra.mxu0 %v6201
        %8878 = vmatpush.bf16.msra.mxu0 %v6193
        %8879 = vmatpush.bf16.msra.mxu0 %v6185
        %8880 = vmatpush.bf16.msra.mxu0 %v6177
        %8881 = vmatpush.bf16.msra.mxu0 %v6169
        %8882 = vmatpush.bf16.msra.mxu0 %v6161
        %8883 = vmatpush.bf16.msra.mxu0 %v6153
        %8884 = vmatpush.bf16.msra.mxu0 %v6145
        %8885 = vmatmul.bf16.gmra.mxu0 %v2089
        %v8886 = vpop.f32.mrf.mxu0
        %v8887 = vadd.f32 %v8874, %v8886
        %v8888 = vpop.f32.mrf.mxu0
        %8889 = vdwg.mxu0
        %v8890 = vmax.f32 %v7431, 0.0
        %v8891 = vmax.f32 %v7639, 0.0
        %v8892 = vmax.f32 %v7847, 0.0
        %v8893 = vmax.f32 %v8055, 0.0
        %v8894 = vmax.f32 %v8263, 0.0
        %v8895 = vmax.f32 %v8471, 0.0
        %v8896 = vmax.f32 %v8679, 0.0
        %v8897 = vmax.f32 %v8887, 0.0
        %s8898 = smul.u32 %s30, 1024
        %s8899 = sshra.s32 %s8898, 7
        %s8900 = sand.u32 %s8898, 127
        %s8901 = smul.addr %s8899, 8
        %s8902 = scalar_lea.vmem %s5, %s8901
        %8903 = vst [vmem:[%s8902] sm:$0xff] %v8890
        %8904 = vst [vmem:[%s8902 + $0x8] sm:$0xff] %v8891
        %8905 = vst [vmem:[%s8902 + $0x10] sm:$0xff] %v8892
        %8906 = vst [vmem:[%s8902 + $0x18] sm:$0xff] %v8893
        %8907 = vst [vmem:[%s8902 + $0x20] sm:$0xff] %v8894
        %8908 = vst [vmem:[%s8902 + $0x28] sm:$0xff] %v8895
        %8909 = vst [vmem:[%s8902 + $0x30] sm:$0xff] %v8896
        %8910 = vst [vmem:[%s8902 + $0x38] sm:$0xff] %v8897
        // Predicated region
        $region65: #{dnn_forward.4} parent=39 // pred_check
          %p8911 = pneg %p179
        $region66: #{dnn_forward.4} parent=39 // pred_check_branch
          %8913 = sbr.rel (%p8911) target = $region68
        $region67: #{dnn_forward.4} parent=39 // pred_region
          _
        $region68: #{dnn_forward.4} parent=39 // pred_fallthru
          _
        // Predicated region
        $region69: #{dnn_forward.4} parent=39 // pred_check
          %p8914 = pneg %p179
        $region70: #{dnn_forward.4} parent=39 // pred_check_branch
          %8916 = sbr.rel (%p8914) target = $region72
        $region71: #{dnn_forward.4} parent=39 // pred_region
          _
        $region72: #{dnn_forward.4} parent=39 // pred_fallthru
          _
      $region40: #{dnn_forward.4} parent=5 // pred_fallthru
        _
      %p8917 = scmp.le.s32.totalorder 2, %s20
      // Predicated region
      $region73: #{dnn_forward.4} parent=5 // pred_check
        %p8918 = pneg %p8917
      $region74: #{dnn_forward.4} parent=5 // pred_check_branch
        %8920 = sbr.rel (%p8918) target = $region76
      $region75: #{dnn_forward.4} parent=5 // pred_region
        %s8921 = ssub.s32 %s20, 2
      $region76: #{dnn_forward.4} parent=5 // pred_fallthru
        _
    $region6: #{dnn_forward.4} parent=1 // loop_footer
      %s24 = sadd.s32 1, %s20
    $region7: #{dnn_forward.4} parent=1 // loop_footer_branch
      %19 = sbr.rel target = $region3
    $region8: #{dnn_forward.4} parent=1 // loop_exit
      _
    %8922 = vsyncpa [#allocation4], 1
    %s8923 = scalar_lea.sflag [#allocation4], 1
    %8924 = vsyncpa %s8923, 1
    %8925 = vsyncpa [#allocation6], 1
    %s8926 = scalar_lea.sflag [#allocation6], 1
    %8927 = vsyncpa %s8926, 1
    %8928 = vsyncpa [#allocation9], 1
    %s8929 = scalar_lea.sflag [#allocation9], 1
    %8930 = vsyncpa %s8929, 1

</llo_original>
